<compile_context>
chip_gen: v6e
topology: v6e:2x2x1
jax: 0.10.0
libtpu: 0.0.40
codegen_flags: <defaults>
</compile_context>

<pallas_src>
import functools

import jax
import jax.numpy as jnp
from jax.experimental import pallas as pl
from jax.experimental.pallas import tpu as pltpu

BASE = 24
LINEAR_ACT = 0.01
BN_EPS = 0.01


# ----------------------------- fused Pallas kernel -----------------------------


def _fused_incept_c_kernel(x_ref, w1_ref, w2a_ref, w2b_ref, w2c_ref,
                           wc1_ref, wc2_ref, bias_ref, o_ref,
                           padw_ref, padh_ref, *, hh, ww):
    """One (bd, H, W, Cin) slab: stems -> W-conv -> H-conv -> comb + residual + ReLU."""
    bd = x_ref.shape[0]
    cin = x_ref.shape[-1]
    c2a = w2a_ref.shape[1]
    c2b = w2b_ref.shape[2]
    c2c = w2c_ref.shape[2]
    rows = bd * hh * ww

    x = x_ref[...].reshape(rows, cin)              # f32, kept resident for the residual
    xb = x.astype(jnp.bfloat16)

    # ---- branch stems: two 1x1 convs + ReLU (x read from HBM exactly once) ----
    b1 = jnp.maximum(jnp.dot(xb, w1_ref[...], preferred_element_type=jnp.float32), 0.0)
    h2 = jnp.maximum(jnp.dot(xb, w2a_ref[...], preferred_element_type=jnp.float32), 0.0)

    # ---- b2: (1,1,3) conv along W, zero pad 1, ReLU ----
    # Taps come from a zero-haloed bf16 VMEM scratch (no f32 round trip). Halos are
    # rewritten every step because megacore splits the grid (no program_id==0 init).
    padw_ref[:, :, 0:1, :] = jnp.zeros((bd, hh, 1, c2a), padw_ref.dtype)
    padw_ref[:, :, ww + 1:ww + 2, :] = jnp.zeros((bd, hh, 1, c2a), padw_ref.dtype)
    padw_ref[:, :, 1:ww + 1, :] = h2.astype(padw_ref.dtype).reshape(bd, hh, ww, c2a)
    y2 = jnp.zeros((rows, c2b), jnp.float32)
    for k in range(3):
        tap = padw_ref[:, :, k:k + ww, :].reshape(rows, c2a)
        y2 = y2 + jnp.dot(tap, w2b_ref[k], preferred_element_type=jnp.float32)
    y2 = jnp.maximum(y2, 0.0)

    # ---- b2: (1,3,1) conv along H, zero pad 1, ReLU ----
    padh_ref[:, 0:1, :, :] = jnp.zeros((bd, 1, ww, c2b), padh_ref.dtype)
    padh_ref[:, hh + 1:hh + 2, :, :] = jnp.zeros((bd, 1, ww, c2b), padh_ref.dtype)
    padh_ref[:, 1:hh + 1, :, :] = y2.astype(padh_ref.dtype).reshape(bd, hh, ww, c2b)
    y3 = jnp.zeros((rows, c2c), jnp.float32)
    for k in range(3):
        tap = padh_ref[:, k:k + hh, :, :].reshape(rows, c2b)
        y3 = y3 + jnp.dot(tap, w2c_ref[k], preferred_element_type=jnp.float32)
    y3 = jnp.maximum(y3, 0.0)

    # ---- comb 1x1 conv (concat fused as two dots, both BNs folded into wc1/wc2/bias),
    #      residual add against the already-resident x slab, final ReLU ----
    acc = jnp.dot(b1.astype(jnp.bfloat16), wc1_ref[...], preferred_element_type=jnp.float32)
    acc = acc + jnp.dot(y3.astype(jnp.bfloat16), wc2_ref[...], preferred_element_type=jnp.float32)
    acc = acc + bias_ref[...]
    o_ref[...] = jnp.maximum(x + LINEAR_ACT * acc, 0.0).reshape(bd, hh, ww, cin)


# ------------------------------ pallas_call wrapper ------------------------------


def _vmem_limit_bytes():
    """Generation-aware scoped VMEM limit (~48 MiB on v7x, 64 MiB on v5e/v6e)."""
    try:
        phys = int(pltpu.get_tpu_info().vmem_capacity_bytes)
        return int(min(phys * 3 // 4, 64 * 1024 * 1024))
    except Exception:
        return 40 * 1024 * 1024


def _pick_bd(nd, hh, ww):
    """Largest bd dividing nd with <=512 voxels/block and >=4 grid steps (even preferred)."""
    rows_cap = max(1, 512 // max(1, hh * ww))
    step_cap = max(1, nd // 4) if nd >= 4 else nd
    cap = max(1, min(nd, rows_cap, step_cap))
    divisors = [t for t in range(1, cap + 1) if nd % t == 0]
    even = [t for t in divisors if (nd // t) % 2 == 0]
    return max(even) if even else max(divisors)


def incept_c_forward_ndhwc(x_ndhwc, prep):
    """Channels-last forward (preferred: no NCDHW<->NDHWC HBM transposes)."""
    n, d, h, w, c = x_ndhwc.shape
    assert c == 64 * BASE, "residual x + comb(...) requires in_size == 64*BASE"
    nd = n * d
    x4d = x_ndhwc.reshape(nd, h, w, c).astype(jnp.float32)
    bd = _pick_bd(nd, h, w)

    c1 = prep["w_b1"].shape[1]
    c2a = prep["w_b2a"].shape[1]
    c2b = prep["w_b2b"].shape[2]
    c2c = prep["w_b2c"].shape[2]

    out4d = pl.pallas_call(
        functools.partial(_fused_incept_c_kernel, hh=h, ww=w),
        out_shape=jax.ShapeDtypeStruct((nd, h, w, c), jnp.float32),
        grid=(nd // bd,),
        in_specs=[
            pl.BlockSpec((bd, h, w, c), lambda i: (i, 0, 0, 0)),
            pl.BlockSpec((c, c1), lambda i: (0, 0)),
            pl.BlockSpec((c, c2a), lambda i: (0, 0)),
            pl.BlockSpec((3, c2a, c2b), lambda i: (0, 0, 0)),
            pl.BlockSpec((3, c2b, c2c), lambda i: (0, 0, 0)),
            pl.BlockSpec((c1, c), lambda i: (0, 0)),
            pl.BlockSpec((c2c, c), lambda i: (0, 0)),
            pl.BlockSpec((1, c), lambda i: (0, 0)),
        ],
        out_specs=pl.BlockSpec((bd, h, w, c), lambda i: (i, 0, 0, 0)),
        scratch_shapes=[pltpu.VMEM((bd, h, w + 2, c2a), jnp.bfloat16),
                        pltpu.VMEM((bd, h + 2, w, c2b), jnp.bfloat16)],
        compiler_params=pltpu.CompilerParams(
            dimension_semantics=("parallel",),
            vmem_limit_bytes=_vmem_limit_bytes()),
    )(x4d, prep["w_b1"], prep["w_b2a"], prep["w_b2b"], prep["w_b2c"],
      prep["wc1"], prep["wc2"], prep["bias"])
    return out4d.reshape(n, d, h, w, c)


@jax.jit
def incept_c_forward(x_ncdhw, prep):
    """NCDHW wrapper matching the PyTorch module layout.

    # TODO(synk): the two HBM transposes below cost roughly as much as the fused kernel
    # itself; callers that can stay channels-last should use incept_c_forward_ndhwc.
    """
    x = jnp.transpose(x_ncdhw, (0, 2, 3, 4, 1))            # NDHWC
    out = incept_c_forward_ndhwc(x, prep)
    return jnp.transpose(out, (0, 4, 1, 2, 3))              # back to NCDHW


# ------------------------------- parameters --------------------------------


def init_raw_params(key, in_size):
    ks = jax.random.split(key, 8)

    def conv_w(k, cout, cin, kshape):
        fan_in = cin * kshape[0] * kshape[1] * kshape[2]
        std = (2.0 / fan_in) ** 0.5
        return std * jax.random.normal(k, (cout, cin) + kshape, jnp.float32)

    def bn(k, cch):
        k1, k2, k3, k4 = jax.random.split(k, 4)
        return dict(
            gamma=1.0 + 0.1 * jax.random.normal(k1, (cch,), jnp.float32),
            beta=0.1 * jax.random.normal(k2, (cch,), jnp.float32),
            mean=0.1 * jax.random.normal(k3, (cch,), jnp.float32),
            var=1.0 + 0.1 * jnp.abs(jax.random.normal(k4, (cch,), jnp.float32)),
        )

    return dict(
        w_b1=conv_w(ks[0], 6 * BASE, in_size, (1, 1, 1)),
        bn1=bn(ks[1], 6 * BASE),
        w_b2a=conv_w(ks[2], 6 * BASE, in_size, (1, 1, 1)),
        w_b2b=conv_w(ks[3], 7 * BASE, 6 * BASE, (1, 1, 3)),
        w_b2c=conv_w(ks[4], 8 * BASE, 7 * BASE, (1, 3, 1)),
        bn2=bn(ks[5], 8 * BASE),
        w_comb=conv_w(ks[6], 64 * BASE, 14 * BASE, (1, 1, 1)),
    )


def _bn_affine(bn):
    s = bn["gamma"] / jnp.sqrt(bn["var"] + BN_EPS)
    t = bn["beta"] - bn["mean"] * s
    return s, t


def prepare_params(raw):
    """Torch-layout weights -> matmul form; fold both BNs into comb; bf16 MXU weights."""
    s1, t1 = _bn_affine(raw["bn1"])
    s2, t2 = _bn_affine(raw["bn2"])
    w_b1 = raw["w_b1"][:, :, 0, 0, 0].T                                      # (Cin, 6B)
    w_b2a = raw["w_b2a"][:, :, 0, 0, 0].T                                    # (Cin, 6B)
    w_b2b = jnp.stack([raw["w_b2b"][:, :, 0, 0, k].T for k in range(3)])     # (3, 6B, 7B)
    w_b2c = jnp.stack([raw["w_b2c"][:, :, 0, k, 0].T for k in range(3)])     # (3, 7B, 8B)
    wc = raw["w_comb"][:, :, 0, 0, 0].T                                      # (14B, 64B)
    wc1 = wc[:6 * BASE] * s1[:, None]
    wc2 = wc[6 * BASE:] * s2[:, None]
    bias = t1 @ wc[:6 * BASE] + t2 @ wc[6 * BASE:]
    return dict(
        w_b1=w_b1.astype(jnp.bfloat16),
        w_b2a=w_b2a.astype(jnp.bfloat16),
        w_b2b=w_b2b.astype(jnp.bfloat16),
        w_b2c=w_b2c.astype(jnp.bfloat16),
        wc1=wc1.astype(jnp.bfloat16),
        wc2=wc2.astype(jnp.bfloat16),
        bias=bias[None, :].astype(jnp.float32),
    )


# ------------------------------- reference ---------------------------------


def _reference_forward(x_ncdhw, raw):
    """Pure f32 jnp reference of the PyTorch module (eval mode, unfolded BN)."""
    n, c, d, h, w = x_ncdhw.shape
    x = jnp.transpose(x_ncdhw, (0, 2, 3, 4, 1)).astype(jnp.float32)
    m = n * d * h * w
    x2d = x.reshape(m, c)
    s1, t1 = _bn_affine(raw["bn1"])
    s2, t2 = _bn_affine(raw["bn2"])

    b1 = jnp.maximum(x2d @ raw["w_b1"][:, :, 0, 0, 0].T, 0.0) * s1 + t1

    h2 = jnp.maximum(x2d @ raw["w_b2a"][:, :, 0, 0, 0].T, 0.0).reshape(n, d, h, w, 6 * BASE)
    h2p = jnp.pad(h2, ((0, 0), (0, 0), (0, 0), (1, 1), (0, 0)))
    y2 = sum(jnp.einsum("ndhwc,cf->ndhwf", h2p[:, :, :, k:k + w, :],
                        raw["w_b2b"][:, :, 0, 0, k].T) for k in range(3))
    y2 = jnp.maximum(y2, 0.0)
    y2p = jnp.pad(y2, ((0, 0), (0, 0), (1, 1), (0, 0), (0, 0)))
    y3 = sum(jnp.einsum("ndhwc,cf->ndhwf", y2p[:, :, k:k + h, :, :],
                        raw["w_b2c"][:, :, 0, k, 0].T) for k in range(3))
    b2 = jnp.maximum(y3, 0.0).reshape(m, 8 * BASE) * s2 + t2

    cat = jnp.concatenate([b1, b2], axis=-1)
    out2d = jnp.maximum(x2d + LINEAR_ACT * (cat @ raw["w_comb"][:, :, 0, 0, 0].T), 0.0)
    return jnp.transpose(out2d.reshape(n, d, h, w, c), (0, 4, 1, 2, 3))


if __name__ == "__main__":
    key = jax.random.PRNGKey(0)
    k_x, k_p = jax.random.split(key)

    N, D, H, W = 1, 8, 8, 8
    IN_SIZE = 64 * BASE  # the residual x + comb(...) implies in_size == 64*BASE
    x = jax.random.normal(k_x, (N, IN_SIZE, D, H, W), jnp.float32)  # NCDHW

    raw = init_raw_params(k_p, IN_SIZE)
    prep = prepare_params(raw)

    # TODO(synk): training-mode BatchNorm (batch statistics) and active Dropout3d are
    # not implemented; this is the eval-mode forward (running stats, drop_p inactive).
    out = jax.block_until_ready(incept_c_forward(x, prep))
    assert out.shape == (N, IN_SIZE, D, H, W), out.shape

    ref = jax.block_until_ready(_reference_forward(x, raw))
    max_err = float(jnp.max(jnp.abs(out - ref)))
    assert jnp.allclose(out, ref, atol=5e-3, rtol=5e-3), max_err

    print("KERNEL_OK")
</pallas_src>

<mosaic_0001>
module attributes {stable_mosaic.version = 11 : i64} {
  func.func @_fused_incept_c_kernel(%arg0: i32, %arg1: memref<2x8x8x1536xf32, #tpu.memory_space<vmem>>, %arg2: memref<1536x144xbf16, #tpu.memory_space<vmem>>, %arg3: memref<1536x144xbf16, #tpu.memory_space<vmem>>, %arg4: memref<3x144x168xbf16, #tpu.memory_space<vmem>>, %arg5: memref<3x168x192xbf16, #tpu.memory_space<vmem>>, %arg6: memref<144x1536xbf16, #tpu.memory_space<vmem>>, %arg7: memref<192x1536xbf16, #tpu.memory_space<vmem>>, %arg8: memref<1x1536xf32, #tpu.memory_space<vmem>>, %arg9: memref<2x8x8x1536xf32, #tpu.memory_space<vmem>>, %arg10: memref<2x8x10x144xbf16, #tpu.memory_space<vmem>>, %arg11: memref<2x10x8x168xbf16, #tpu.memory_space<vmem>>) attributes {dimension_semantics = [#tpu.dimension_semantics<parallel>], iteration_bounds = array<i64: 4>, scalar_prefetch = 0 : i64, scratch_operands = 2 : i64, tpu.core_type = #tpu.core_type<tc>, window_params = [{transform_indices = @transform_0, window_bounds = array<i64: 2, 8, 8, 1536>}, {pipeline_mode = #tpu.pipeline_mode<synchronous>, transform_indices = @transform_1, window_bounds = array<i64: 1536, 144>}, {pipeline_mode = #tpu.pipeline_mode<synchronous>, transform_indices = @transform_2, window_bounds = array<i64: 1536, 144>}, {pipeline_mode = #tpu.pipeline_mode<synchronous>, transform_indices = @transform_3, window_bounds = array<i64: 3, 144, 168>}, {pipeline_mode = #tpu.pipeline_mode<synchronous>, transform_indices = @transform_4, window_bounds = array<i64: 3, 168, 192>}, {pipeline_mode = #tpu.pipeline_mode<synchronous>, transform_indices = @transform_5, window_bounds = array<i64: 144, 1536>}, {pipeline_mode = #tpu.pipeline_mode<synchronous>, transform_indices = @transform_6, window_bounds = array<i64: 192, 1536>}, {pipeline_mode = #tpu.pipeline_mode<synchronous>, transform_indices = @transform_7, window_bounds = array<i64: 1, 1536>}, {transform_indices = @transform_8, window_bounds = array<i64: 2, 8, 8, 1536>}]} {
    %c0 = arith.constant 0 : index
    %c0_0 = arith.constant 0 : index
    %c0_1 = arith.constant 0 : index
    %c0_2 = arith.constant 0 : index
    %0 = vector.load %arg1[%c0, %c0_0, %c0_1, %c0_2] : memref<2x8x8x1536xf32, #tpu.memory_space<vmem>>, vector<2x8x8x1536xf32>
    %1 = vector.shape_cast %0 : vector<2x8x8x1536xf32> to vector<128x1536xf32>
    %2 = arith.truncf %1 : vector<128x1536xf32> to vector<128x1536xbf16>
    %c0_3 = arith.constant 0 : index
    %c0_4 = arith.constant 0 : index
    %3 = vector.load %arg2[%c0_3, %c0_4] : memref<1536x144xbf16, #tpu.memory_space<vmem>>, vector<1536x144xbf16>
    %cst = arith.constant dense<0.000000e+00> : vector<128x144xf32>
    %4 = tpu.matmul %2, %3, %cst {dimension_numbers = #tpu.dot_dimension_numbers<[1], [0], [0], [1], [0, 0, 1, 1], [], []>} : vector<128x1536xbf16>, vector<1536x144xbf16>, vector<128x144xf32> -> vector<128x144xf32>
    %cst_5 = arith.constant 0.000000e+00 : f32
    %5 = vector.broadcast %cst_5 : f32 to vector<128x144xf32>
    %6 = arith.maximumf %4, %5 : vector<128x144xf32>
    %c0_6 = arith.constant 0 : index
    %c0_7 = arith.constant 0 : index
    %7 = vector.load %arg3[%c0_6, %c0_7] : memref<1536x144xbf16, #tpu.memory_space<vmem>>, vector<1536x144xbf16>
    %cst_8 = arith.constant dense<0.000000e+00> : vector<128x144xf32>
    %8 = tpu.matmul %2, %7, %cst_8 {dimension_numbers = #tpu.dot_dimension_numbers<[1], [0], [0], [1], [0, 0, 1, 1], [], []>} : vector<128x1536xbf16>, vector<1536x144xbf16>, vector<128x144xf32> -> vector<128x144xf32>
    %cst_9 = arith.constant 0.000000e+00 : f32
    %9 = vector.broadcast %cst_9 : f32 to vector<128x144xf32>
    %10 = arith.maximumf %8, %9 : vector<128x144xf32>
    %cst_10 = arith.constant 0.000000e+00 : bf16
    %11 = vector.broadcast %cst_10 : bf16 to vector<2x8x1x144xbf16>
    %c0_11 = arith.constant 0 : index
    %c0_12 = arith.constant 0 : index
    %c0_13 = arith.constant 0 : index
    %c0_14 = arith.constant 0 : index
    %12 = vector.load %arg10[%c0_11, %c0_12, %c0_13, %c0_14] : memref<2x8x10x144xbf16, #tpu.memory_space<vmem>>, vector<2x8x1x144xbf16>
    tpu.vector_store %arg10[%c0_11, %c0_12, %c0_13, %c0_14], %11 {strides = array<i32>} : memref<2x8x10x144xbf16, #tpu.memory_space<vmem>>, vector<2x8x1x144xbf16>,
    %cst_15 = arith.constant 0.000000e+00 : bf16
    %13 = vector.broadcast %cst_15 : bf16 to vector<2x8x1x144xbf16>
    %c0_16 = arith.constant 0 : index
    %c0_17 = arith.constant 0 : index
    %c9 = arith.constant 9 : index
    %c0_18 = arith.constant 0 : index
    %14 = vector.load %arg10[%c0_16, %c0_17, %c9, %c0_18] : memref<2x8x10x144xbf16, #tpu.memory_space<vmem>>, vector<2x8x1x144xbf16>
    tpu.vector_store %arg10[%c0_16, %c0_17, %c9, %c0_18], %13 {strides = array<i32>} : memref<2x8x10x144xbf16, #tpu.memory_space<vmem>>, vector<2x8x1x144xbf16>,
    %15 = arith.truncf %10 : vector<128x144xf32> to vector<128x144xbf16>
    %16 = vector.shape_cast %15 : vector<128x144xbf16> to vector<2x8x8x144xbf16>
    %c0_19 = arith.constant 0 : index
    %c0_20 = arith.constant 0 : index
    %c1 = arith.constant 1 : index
    %c0_21 = arith.constant 0 : index
    %17 = vector.load %arg10[%c0_19, %c0_20, %c1, %c0_21] : memref<2x8x10x144xbf16, #tpu.memory_space<vmem>>, vector<2x8x8x144xbf16>
    tpu.vector_store %arg10[%c0_19, %c0_20, %c1, %c0_21], %16 {strides = array<i32>} : memref<2x8x10x144xbf16, #tpu.memory_space<vmem>>, vector<2x8x8x144xbf16>,
    %cst_22 = arith.constant 0.000000e+00 : f32
    %18 = vector.broadcast %cst_22 : f32 to vector<128x168xf32>
    %c0_23 = arith.constant 0 : index
    %c0_24 = arith.constant 0 : index
    %c0_25 = arith.constant 0 : index
    %c0_26 = arith.constant 0 : index
    %19 = vector.load %arg10[%c0_23, %c0_24, %c0_25, %c0_26] : memref<2x8x10x144xbf16, #tpu.memory_space<vmem>>, vector<2x8x8x144xbf16>
    %20 = vector.shape_cast %19 : vector<2x8x8x144xbf16> to vector<128x144xbf16>
    %c0_27 = arith.constant 0 : index
    %c0_28 = arith.constant 0 : index
    %c0_29 = arith.constant 0 : index
    %21 = vector.load %arg4[%c0_27, %c0_28, %c0_29] : memref<3x144x168xbf16, #tpu.memory_space<vmem>>, vector<1x144x168xbf16>
    %22 = vector.shape_cast %21 : vector<1x144x168xbf16> to vector<144x168xbf16>
    %cst_30 = arith.constant dense<0.000000e+00> : vector<128x168xf32>
    %23 = tpu.matmul %20, %22, %cst_30 {dimension_numbers = #tpu.dot_dimension_numbers<[1], [0], [0], [1], [0, 0, 1, 1], [], []>} : vector<128x144xbf16>, vector<144x168xbf16>, vector<128x168xf32> -> vector<128x168xf32>
    %24 = arith.addf %18, %23 : vector<128x168xf32>
    %c0_31 = arith.constant 0 : index
    %c0_32 = arith.constant 0 : index
    %c1_33 = arith.constant 1 : index
    %c0_34 = arith.constant 0 : index
    %25 = vector.load %arg10[%c0_31, %c0_32, %c1_33, %c0_34] : memref<2x8x10x144xbf16, #tpu.memory_space<vmem>>, vector<2x8x8x144xbf16>
    %26 = vector.shape_cast %25 : vector<2x8x8x144xbf16> to vector<128x144xbf16>
    %c1_35 = arith.constant 1 : index
    %c0_36 = arith.constant 0 : index
    %c0_37 = arith.constant 0 : index
    %27 = vector.load %arg4[%c1_35, %c0_36, %c0_37] : memref<3x144x168xbf16, #tpu.memory_space<vmem>>, vector<1x144x168xbf16>
    %28 = vector.shape_cast %27 : vector<1x144x168xbf16> to vector<144x168xbf16>
    %cst_38 = arith.constant dense<0.000000e+00> : vector<128x168xf32>
    %29 = tpu.matmul %26, %28, %cst_38 {dimension_numbers = #tpu.dot_dimension_numbers<[1], [0], [0], [1], [0, 0, 1, 1], [], []>} : vector<128x144xbf16>, vector<144x168xbf16>, vector<128x168xf32> -> vector<128x168xf32>
    %30 = arith.addf %24, %29 : vector<128x168xf32>
    %c0_39 = arith.constant 0 : index
    %c0_40 = arith.constant 0 : index
    %c2 = arith.constant 2 : index
    %c0_41 = arith.constant 0 : index
    %31 = vector.load %arg10[%c0_39, %c0_40, %c2, %c0_41] : memref<2x8x10x144xbf16, #tpu.memory_space<vmem>>, vector<2x8x8x144xbf16>
    %32 = vector.shape_cast %31 : vector<2x8x8x144xbf16> to vector<128x144xbf16>
    %c2_42 = arith.constant 2 : index
    %c0_43 = arith.constant 0 : index
    %c0_44 = arith.constant 0 : index
    %33 = vector.load %arg4[%c2_42, %c0_43, %c0_44] : memref<3x144x168xbf16, #tpu.memory_space<vmem>>, vector<1x144x168xbf16>
    %34 = vector.shape_cast %33 : vector<1x144x168xbf16> to vector<144x168xbf16>
    %cst_45 = arith.constant dense<0.000000e+00> : vector<128x168xf32>
    %35 = tpu.matmul %32, %34, %cst_45 {dimension_numbers = #tpu.dot_dimension_numbers<[1], [0], [0], [1], [0, 0, 1, 1], [], []>} : vector<128x144xbf16>, vector<144x168xbf16>, vector<128x168xf32> -> vector<128x168xf32>
    %36 = arith.addf %30, %35 : vector<128x168xf32>
    %cst_46 = arith.constant 0.000000e+00 : f32
    %37 = vector.broadcast %cst_46 : f32 to vector<128x168xf32>
    %38 = arith.maximumf %36, %37 : vector<128x168xf32>
    %cst_47 = arith.constant 0.000000e+00 : bf16
    %39 = vector.broadcast %cst_47 : bf16 to vector<2x1x8x168xbf16>
    %c0_48 = arith.constant 0 : index
    %c0_49 = arith.constant 0 : index
    %c0_50 = arith.constant 0 : index
    %c0_51 = arith.constant 0 : index
    %40 = vector.load %arg11[%c0_48, %c0_49, %c0_50, %c0_51] : memref<2x10x8x168xbf16, #tpu.memory_space<vmem>>, vector<2x1x8x168xbf16>
    tpu.vector_store %arg11[%c0_48, %c0_49, %c0_50, %c0_51], %39 {strides = array<i32>} : memref<2x10x8x168xbf16, #tpu.memory_space<vmem>>, vector<2x1x8x168xbf16>,
    %cst_52 = arith.constant 0.000000e+00 : bf16
    %41 = vector.broadcast %cst_52 : bf16 to vector<2x1x8x168xbf16>
    %c0_53 = arith.constant 0 : index
    %c9_54 = arith.constant 9 : index
    %c0_55 = arith.constant 0 : index
    %c0_56 = arith.constant 0 : index
    %42 = vector.load %arg11[%c0_53, %c9_54, %c0_55, %c0_56] : memref<2x10x8x168xbf16, #tpu.memory_space<vmem>>, vector<2x1x8x168xbf16>
    tpu.vector_store %arg11[%c0_53, %c9_54, %c0_55, %c0_56], %41 {strides = array<i32>} : memref<2x10x8x168xbf16, #tpu.memory_space<vmem>>, vector<2x1x8x168xbf16>,
    %43 = arith.truncf %38 : vector<128x168xf32> to vector<128x168xbf16>
    %44 = vector.shape_cast %43 : vector<128x168xbf16> to vector<2x8x8x168xbf16>
    %c0_57 = arith.constant 0 : index
    %c1_58 = arith.constant 1 : index
    %c0_59 = arith.constant 0 : index
    %c0_60 = arith.constant 0 : index
    %45 = vector.load %arg11[%c0_57, %c1_58, %c0_59, %c0_60] : memref<2x10x8x168xbf16, #tpu.memory_space<vmem>>, vector<2x8x8x168xbf16>
    tpu.vector_store %arg11[%c0_57, %c1_58, %c0_59, %c0_60], %44 {strides = array<i32>} : memref<2x10x8x168xbf16, #tpu.memory_space<vmem>>, vector<2x8x8x168xbf16>,
    %cst_61 = arith.constant 0.000000e+00 : f32
    %46 = vector.broadcast %cst_61 : f32 to vector<128x192xf32>
    %c0_62 = arith.constant 0 : index
    %c0_63 = arith.constant 0 : index
    %c0_64 = arith.constant 0 : index
    %c0_65 = arith.constant 0 : index
    %47 = vector.load %arg11[%c0_62, %c0_63, %c0_64, %c0_65] : memref<2x10x8x168xbf16, #tpu.memory_space<vmem>>, vector<2x8x8x168xbf16>
    %48 = vector.shape_cast %47 : vector<2x8x8x168xbf16> to vector<128x168xbf16>
    %c0_66 = arith.constant 0 : index
    %c0_67 = arith.constant 0 : index
    %c0_68 = arith.constant 0 : index
    %49 = vector.load %arg5[%c0_66, %c0_67, %c0_68] : memref<3x168x192xbf16, #tpu.memory_space<vmem>>, vector<1x168x192xbf16>
    %50 = vector.shape_cast %49 : vector<1x168x192xbf16> to vector<168x192xbf16>
    %cst_69 = arith.constant dense<0.000000e+00> : vector<128x192xf32>
    %51 = tpu.matmul %48, %50, %cst_69 {dimension_numbers = #tpu.dot_dimension_numbers<[1], [0], [0], [1], [0, 0, 1, 1], [], []>} : vector<128x168xbf16>, vector<168x192xbf16>, vector<128x192xf32> -> vector<128x192xf32>
    %52 = arith.addf %46, %51 : vector<128x192xf32>
    %c0_70 = arith.constant 0 : index
    %c1_71 = arith.constant 1 : index
    %c0_72 = arith.constant 0 : index
    %c0_73 = arith.constant 0 : index
    %53 = vector.load %arg11[%c0_70, %c1_71, %c0_72, %c0_73] : memref<2x10x8x168xbf16, #tpu.memory_space<vmem>>, vector<2x8x8x168xbf16>
    %54 = vector.shape_cast %53 : vector<2x8x8x168xbf16> to vector<128x168xbf16>
    %c1_74 = arith.constant 1 : index
    %c0_75 = arith.constant 0 : index
    %c0_76 = arith.constant 0 : index
    %55 = vector.load %arg5[%c1_74, %c0_75, %c0_76] : memref<3x168x192xbf16, #tpu.memory_space<vmem>>, vector<1x168x192xbf16>
    %56 = vector.shape_cast %55 : vector<1x168x192xbf16> to vector<168x192xbf16>
    %cst_77 = arith.constant dense<0.000000e+00> : vector<128x192xf32>
    %57 = tpu.matmul %54, %56, %cst_77 {dimension_numbers = #tpu.dot_dimension_numbers<[1], [0], [0], [1], [0, 0, 1, 1], [], []>} : vector<128x168xbf16>, vector<168x192xbf16>, vector<128x192xf32> -> vector<128x192xf32>
    %58 = arith.addf %52, %57 : vector<128x192xf32>
    %c0_78 = arith.constant 0 : index
    %c2_79 = arith.constant 2 : index
    %c0_80 = arith.constant 0 : index
    %c0_81 = arith.constant 0 : index
    %59 = vector.load %arg11[%c0_78, %c2_79, %c0_80, %c0_81] : memref<2x10x8x168xbf16, #tpu.memory_space<vmem>>, vector<2x8x8x168xbf16>
    %60 = vector.shape_cast %59 : vector<2x8x8x168xbf16> to vector<128x168xbf16>
    %c2_82 = arith.constant 2 : index
    %c0_83 = arith.constant 0 : index
    %c0_84 = arith.constant 0 : index
    %61 = vector.load %arg5[%c2_82, %c0_83, %c0_84] : memref<3x168x192xbf16, #tpu.memory_space<vmem>>, vector<1x168x192xbf16>
    %62 = vector.shape_cast %61 : vector<1x168x192xbf16> to vector<168x192xbf16>
    %cst_85 = arith.constant dense<0.000000e+00> : vector<128x192xf32>
    %63 = tpu.matmul %60, %62, %cst_85 {dimension_numbers = #tpu.dot_dimension_numbers<[1], [0], [0], [1], [0, 0, 1, 1], [], []>} : vector<128x168xbf16>, vector<168x192xbf16>, vector<128x192xf32> -> vector<128x192xf32>
    %64 = arith.addf %58, %63 : vector<128x192xf32>
    %cst_86 = arith.constant 0.000000e+00 : f32
    %65 = vector.broadcast %cst_86 : f32 to vector<128x192xf32>
    %66 = arith.maximumf %64, %65 : vector<128x192xf32>
    %67 = arith.truncf %6 : vector<128x144xf32> to vector<128x144xbf16>
    %c0_87 = arith.constant 0 : index
    %c0_88 = arith.constant 0 : index
    %68 = vector.load %arg6[%c0_87, %c0_88] : memref<144x1536xbf16, #tpu.memory_space<vmem>>, vector<144x1536xbf16>
    %cst_89 = arith.constant dense<0.000000e+00> : vector<128x1536xf32>
    %69 = tpu.matmul %67, %68, %cst_89 {dimension_numbers = #tpu.dot_dimension_numbers<[1], [0], [0], [1], [0, 0, 1, 1], [], []>} : vector<128x144xbf16>, vector<144x1536xbf16>, vector<128x1536xf32> -> vector<128x1536xf32>
    %70 = arith.truncf %66 : vector<128x192xf32> to vector<128x192xbf16>
    %c0_90 = arith.constant 0 : index
    %c0_91 = arith.constant 0 : index
    %71 = vector.load %arg7[%c0_90, %c0_91] : memref<192x1536xbf16, #tpu.memory_space<vmem>>, vector<192x1536xbf16>
    %cst_92 = arith.constant dense<0.000000e+00> : vector<128x1536xf32>
    %72 = tpu.matmul %70, %71, %cst_92 {dimension_numbers = #tpu.dot_dimension_numbers<[1], [0], [0], [1], [0, 0, 1, 1], [], []>} : vector<128x192xbf16>, vector<192x1536xbf16>, vector<128x1536xf32> -> vector<128x1536xf32>
    %73 = arith.addf %69, %72 : vector<128x1536xf32>
    %c0_93 = arith.constant 0 : index
    %c0_94 = arith.constant 0 : index
    %74 = vector.load %arg8[%c0_93, %c0_94] : memref<1x1536xf32, #tpu.memory_space<vmem>>, vector<1x1536xf32>
    %75 = vector.broadcast %74 : vector<1x1536xf32> to vector<128x1536xf32>
    %76 = arith.addf %73, %75 : vector<128x1536xf32>
    %cst_95 = arith.constant 0.00999999977 : f32
    %77 = vector.broadcast %cst_95 : f32 to vector<128x1536xf32>
    %78 = arith.mulf %77, %76 : vector<128x1536xf32>
    %79 = arith.addf %1, %78 : vector<128x1536xf32>
    %cst_96 = arith.constant 0.000000e+00 : f32
    %80 = vector.broadcast %cst_96 : f32 to vector<128x1536xf32>
    %81 = arith.maximumf %79, %80 : vector<128x1536xf32>
    %82 = vector.shape_cast %81 : vector<128x1536xf32> to vector<2x8x8x1536xf32>
    %c0_97 = arith.constant 0 : index
    %c0_98 = arith.constant 0 : index
    %c0_99 = arith.constant 0 : index
    %c0_100 = arith.constant 0 : index
    %83 = vector.load %arg9[%c0_97, %c0_98, %c0_99, %c0_100] : memref<2x8x8x1536xf32, #tpu.memory_space<vmem>>, vector<2x8x8x1536xf32>
    tpu.vector_store %arg9[%c0_97, %c0_98, %c0_99, %c0_100], %82 {strides = array<i32>} : memref<2x8x8x1536xf32, #tpu.memory_space<vmem>>, vector<2x8x8x1536xf32>,
    return
  }
  func.func @transform_0(%arg0: i32) -> (i32, i32, i32, i32) {
    %c0_i32 = arith.constant 0 : i32
    %c0_i32_0 = arith.constant 0 : i32
    %c0_i32_1 = arith.constant 0 : i32
    %c0_i32_2 = arith.constant 0 : i32
    return %arg0, %c0_i32, %c0_i32_0, %c0_i32_1 : i32, i32, i32, i32
  }
  func.func @transform_1(%arg0: i32) -> (i32, i32) {
    %c0_i32 = arith.constant 0 : i32
    %c0_i32_0 = arith.constant 0 : i32
    %c0_i32_1 = arith.constant 0 : i32
    return %c0_i32, %c0_i32_0 : i32, i32
  }
  func.func @transform_2(%arg0: i32) -> (i32, i32) {
    %c0_i32 = arith.constant 0 : i32
    %c0_i32_0 = arith.constant 0 : i32
    %c0_i32_1 = arith.constant 0 : i32
    return %c0_i32, %c0_i32_0 : i32, i32
  }
  func.func @transform_3(%arg0: i32) -> (i32, i32, i32) {
    %c0_i32 = arith.constant 0 : i32
    %c0_i32_0 = arith.constant 0 : i32
    %c0_i32_1 = arith.constant 0 : i32
    %c0_i32_2 = arith.constant 0 : i32
    return %c0_i32, %c0_i32_0, %c0_i32_1 : i32, i32, i32
  }
  func.func @transform_4(%arg0: i32) -> (i32, i32, i32) {
    %c0_i32 = arith.constant 0 : i32
    %c0_i32_0 = arith.constant 0 : i32
    %c0_i32_1 = arith.constant 0 : i32
    %c0_i32_2 = arith.constant 0 : i32
    return %c0_i32, %c0_i32_0, %c0_i32_1 : i32, i32, i32
  }
  func.func @transform_5(%arg0: i32) -> (i32, i32) {
    %c0_i32 = arith.constant 0 : i32
    %c0_i32_0 = arith.constant 0 : i32
    %c0_i32_1 = arith.constant 0 : i32
    return %c0_i32, %c0_i32_0 : i32, i32
  }
  func.func @transform_6(%arg0: i32) -> (i32, i32) {
    %c0_i32 = arith.constant 0 : i32
    %c0_i32_0 = arith.constant 0 : i32
    %c0_i32_1 = arith.constant 0 : i32
    return %c0_i32, %c0_i32_0 : i32, i32
  }
  func.func @transform_7(%arg0: i32) -> (i32, i32) {
    %c0_i32 = arith.constant 0 : i32
    %c0_i32_0 = arith.constant 0 : i32
    %c0_i32_1 = arith.constant 0 : i32
    return %c0_i32, %c0_i32_0 : i32, i32
  }
  func.func @transform_8(%arg0: i32) -> (i32, i32, i32, i32) {
    %c0_i32 = arith.constant 0 : i32
    %c0_i32_0 = arith.constant 0 : i32
    %c0_i32_1 = arith.constant 0 : i32
    %c0_i32_2 = arith.constant 0 : i32
    return %arg0, %c0_i32, %c0_i32_0, %c0_i32_1 : i32, i32, i32, i32
  }
}

</mosaic_0001>

<llo_original>
// kernel: incept_c_forward.1
$region0: #{incept_c_forward.1}
  #allocation0 [shape = 'u32[]', space=smem, size = 0x4, offset = 0x4, fixed_abs, tag = 'smem constant byte address 0x4 - core index']
  #allocation1 [shape = 'u32[144,128]{1,0:T(1,128)}', space=vmem, size = 0x12000, scoped, tag = 'internal scratch']
  #allocation2 [shape = 'bf16[2,8,10,144]{3,2,1,0:T(8,128)(2,1)}', space=vmem, size = 0x20000, scoped, tag = 'scratch operand']
  #allocation3 [shape = 'bf16[2,10,8,168]{3,2,1,0:T(8,128)(2,1)}', space=vmem, size = 0x14000, scoped, tag = 'scratch operand']
  %s0 = inlined_call_operand.hbm [shape: f32[8,8,8,1536], index: 0, kind: input, shape index: {}]
  %s1 = inlined_call_operand.vmem [shape: bf16[1536,144], index: 1, kind: input, shape index: {}]
  %s2 = inlined_call_operand.vmem [shape: bf16[1536,144], index: 2, kind: input, shape index: {}]
  %s3 = inlined_call_operand.hbm [shape: bf16[3,144,168], index: 3, kind: input, shape index: {}]
  %s4 = inlined_call_operand.hbm [shape: bf16[3,168,192], index: 4, kind: input, shape index: {}]
  %s5 = inlined_call_operand.hbm [shape: bf16[144,1536], index: 5, kind: input, shape index: {}]
  %s6 = inlined_call_operand.hbm [shape: bf16[192,1536], index: 6, kind: input, shape index: {}]
  %s7 = inlined_call_operand.hbm [shape: f32[1,1536], index: 7, kind: input, shape index: {}]
  %s8 = inlined_call_operand.hbm [shape: f32[8,8,8,1536], index: 8, kind: output, shape index: {}]
  %s9 = sld [smem:[#allocation0]]
  $region89: #{incept_c_forward.1} parent=0
    _
  %s11 = ssub.s32 1, %s9
  %s12 = scalar_select 0, %s11, %s9
  $region1: #{incept_c_forward.1} parent=0
    #allocation4 [shape = 'u8[1572864]{0}', space=vmem, size = 0x180000, scoped, tag = 'input window, operand 0']
    #allocation5 [shape = 's32[2]{0}', space=sflag, size = 0x8, scoped, tag = 'scoped memory for incept_c_forward.1']
    #allocation6 [shape = 's32[2]{0}', space=sflag, size = 0x8, scoped, tag = 'scoped memory for incept_c_forward.1']
    #allocation7 [shape = 'u8[221184]{0}', space=vmem, size = 0x36000, scoped, tag = 'input window, operand 3, single buffered']
    #allocation8 [shape = 's32[1]{0}', space=sflag, size = 0x4, scoped, tag = 'scoped memory for incept_c_forward.1']
    #allocation9 [shape = 'u8[258048]{0}', space=vmem, size = 0x3f000, scoped, tag = 'input window, operand 4, single buffered']
    #allocation10 [shape = 'u8[442368]{0}', space=vmem, size = 0x6c000, scoped, tag = 'input window, operand 5, single buffered']
    #allocation11 [shape = 's32[1]{0}', space=sflag, size = 0x4, scoped, tag = 'scoped memory for incept_c_forward.1']
    #allocation12 [shape = 'u8[589824]{0}', space=vmem, size = 0x90000, scoped, tag = 'input window, operand 6, single buffered']
    #allocation13 [shape = 'u8[6144]{0}', space=vmem, size = 0x1800, scoped, tag = 'input window, operand 7, single buffered']
    #allocation14 [shape = 's32[1]{0}', space=sflag, size = 0x4, scoped, tag = 'scoped memory for incept_c_forward.1']
    #allocation15 [shape = 'u8[1572864]{0}', space=vmem, size = 0x180000, scoped, tag = 'output window, operand 0']
    %13 = vsyncpa [#allocation5], 0
    %s14 = scalar_lea.sflag [#allocation5], 1
    %15 = vsyncpa %s14, 0
    %16 = vsyncpa [#allocation8], 0
    %17 = vsyncpa [#allocation11], 0
    %18 = vsyncpa [#allocation14], 0
    %19 = vsyncpa [#allocation6], 0
    %s20 = scalar_lea.sflag [#allocation6], 1
    %21 = vsyncpa %s20, 0
    loop: start=0, step=1, limit=6
    $region2: #{incept_c_forward.1} parent=1 // loop_pre_header
      _
    $region3: #{incept_c_forward.1} parent=1 // loop_header
      %s23 = sphi 0, %s27
      %p24 = scmp.ge.s32.totalorder %s23, 6
      %s33 = sphi 0, %s35
      %s36 = sphi 0, %s33
      %s37 = sphi 0, %s36
      %s53 = sphi 0, %s37
      %s57 = sphi 0, %s57
      %s59 = sphi 0, %s57
      %s60 = sphi 0, %s59
      %s74 = sphi 0, %s60
      %s78 = sphi 0, %s78
      %s80 = sphi 0, %s78
      %s81 = sphi 0, %s80
      %s95 = sphi 0, %s81
      %s99 = sphi 0, %s99
      %s101 = sphi 0, %s99
      %s102 = sphi 0, %s101
      %s116 = sphi 0, %s102
      %s120 = sphi 0, %s120
      %s122 = sphi 0, %s120
      %s123 = sphi 0, %s122
      %s137 = sphi 0, %s123
      %s141 = sphi 0, %s141
      %s143 = sphi 0, %s141
      %s144 = sphi 0, %s143
      %s158 = sphi 0, %s144
      %s162 = sphi 0, %s162
      %s164 = sphi 0, %s162
      %s165 = sphi 0, %s164
      %s179 = sphi 0, %s165
      %s183 = sphi 0, %s183
      %s185 = sphi 0, %s183
      %s186 = sphi 0, %s185
      %s200 = sphi 0, %s186
      %s206 = sphi 0, %s208
      %s209 = sphi 0, %s206
      %s210 = sphi 0, %s209
      %s226 = sphi 0, %s210
    $region4: #{incept_c_forward.1} parent=1 // loop_header_branch
      %26 = sbr.rel (%p24) target = $region8
    $region5: #{incept_c_forward.1} parent=1 // loop_body
      %s28 = ssub.s32 %s23, 1
      %s29 = ssub.s32 %s23, 2
      %s30 = sadd.s32 %s23, 1
      %s31 = ssub.s32 %s23, %s30
      %p32 = scmp.eq.s32.totalorder %s31, 0
      %s34 = sadd.s32 %s33, 1
      %s35 = scalar_select %p32, %s33, %s34
      %p38 = pneg %p32
      %p39 = scmp.eq.s32.totalorder %s23, 3
      %p40 = por %p38, %p39
      %p41 = scmp.ne.s32.totalorder %s33, %s36
      %p42 = scmp.eq.s32.totalorder %s23, 0
      %p43 = por %p41, %p42
      %p44 = scmp.ne.s32.totalorder %s33, %s36
      %p45 = scmp.eq.s32.totalorder %s28, 3
      %p46 = por %p44, %p45
      %p47 = scmp.ne.s32.totalorder %s36, %s37
      %p48 = scmp.eq.s32.totalorder %s28, 0
      %p49 = por %p47, %p48
      %p50 = scmp.ne.s32.totalorder %s36, %s37
      %p51 = scmp.eq.s32.totalorder %s29, 3
      %p52 = por %p50, %p51
      %p54 = scmp.ne.s32.totalorder %s37, %s53
      %p55 = scmp.eq.s32.totalorder %s29, 0
      %p56 = por %p54, %p55
      %s58 = sadd.s32 %s57, 1
      %p61 = scmp.eq.s32.totalorder %s23, 3
      %p62 = scmp.ne.s32.totalorder %s57, %s59
      %p63 = scmp.eq.s32.totalorder %s23, 0
      %p64 = por %p62, %p63
      %p65 = scmp.ne.s32.totalorder %s57, %s59
      %p66 = scmp.eq.s32.totalorder %s28, 3
      %p67 = por %p65, %p66
      %p68 = scmp.ne.s32.totalorder %s59, %s60
      %p69 = scmp.eq.s32.totalorder %s28, 0
      %p70 = por %p68, %p69
      %p71 = scmp.ne.s32.totalorder %s59, %s60
      %p72 = scmp.eq.s32.totalorder %s29, 3
      %p73 = por %p71, %p72
      %p75 = scmp.ne.s32.totalorder %s60, %s74
      %p76 = scmp.eq.s32.totalorder %s29, 0
      %p77 = por %p75, %p76
      %s79 = sadd.s32 %s78, 1
      %p82 = scmp.eq.s32.totalorder %s23, 3
      %p83 = scmp.ne.s32.totalorder %s78, %s80
      %p84 = scmp.eq.s32.totalorder %s23, 0
      %p85 = por %p83, %p84
      %p86 = scmp.ne.s32.totalorder %s78, %s80
      %p87 = scmp.eq.s32.totalorder %s28, 3
      %p88 = por %p86, %p87
      %p89 = scmp.ne.s32.totalorder %s80, %s81
      %p90 = scmp.eq.s32.totalorder %s28, 0
      %p91 = por %p89, %p90
      %p92 = scmp.ne.s32.totalorder %s80, %s81
      %p93 = scmp.eq.s32.totalorder %s29, 3
      %p94 = por %p92, %p93
      %p96 = scmp.ne.s32.totalorder %s81, %s95
      %p97 = scmp.eq.s32.totalorder %s29, 0
      %p98 = por %p96, %p97
      %s100 = sadd.s32 %s99, 1
      %p103 = scmp.eq.s32.totalorder %s23, 3
      %p104 = scmp.ne.s32.totalorder %s99, %s101
      %p105 = scmp.eq.s32.totalorder %s23, 0
      %p106 = por %p104, %p105
      %p107 = scmp.ne.s32.totalorder %s99, %s101
      %p108 = scmp.eq.s32.totalorder %s28, 3
      %p109 = por %p107, %p108
      %p110 = scmp.ne.s32.totalorder %s101, %s102
      %p111 = scmp.eq.s32.totalorder %s28, 0
      %p112 = por %p110, %p111
      %p113 = scmp.ne.s32.totalorder %s101, %s102
      %p114 = scmp.eq.s32.totalorder %s29, 3
      %p115 = por %p113, %p114
      %p117 = scmp.ne.s32.totalorder %s102, %s116
      %p118 = scmp.eq.s32.totalorder %s29, 0
      %p119 = por %p117, %p118
      %s121 = sadd.s32 %s120, 1
      %p124 = scmp.eq.s32.totalorder %s23, 3
      %p125 = scmp.ne.s32.totalorder %s120, %s122
      %p126 = scmp.eq.s32.totalorder %s23, 0
      %p127 = por %p125, %p126
      %p128 = scmp.ne.s32.totalorder %s120, %s122
      %p129 = scmp.eq.s32.totalorder %s28, 3
      %p130 = por %p128, %p129
      %p131 = scmp.ne.s32.totalorder %s122, %s123
      %p132 = scmp.eq.s32.totalorder %s28, 0
      %p133 = por %p131, %p132
      %p134 = scmp.ne.s32.totalorder %s122, %s123
      %p135 = scmp.eq.s32.totalorder %s29, 3
      %p136 = por %p134, %p135
      %p138 = scmp.ne.s32.totalorder %s123, %s137
      %p139 = scmp.eq.s32.totalorder %s29, 0
      %p140 = por %p138, %p139
      %s142 = sadd.s32 %s141, 1
      %p145 = scmp.eq.s32.totalorder %s23, 3
      %p146 = scmp.ne.s32.totalorder %s141, %s143
      %p147 = scmp.eq.s32.totalorder %s23, 0
      %p148 = por %p146, %p147
      %p149 = scmp.ne.s32.totalorder %s141, %s143
      %p150 = scmp.eq.s32.totalorder %s28, 3
      %p151 = por %p149, %p150
      %p152 = scmp.ne.s32.totalorder %s143, %s144
      %p153 = scmp.eq.s32.totalorder %s28, 0
      %p154 = por %p152, %p153
      %p155 = scmp.ne.s32.totalorder %s143, %s144
      %p156 = scmp.eq.s32.totalorder %s29, 3
      %p157 = por %p155, %p156
      %p159 = scmp.ne.s32.totalorder %s144, %s158
      %p160 = scmp.eq.s32.totalorder %s29, 0
      %p161 = por %p159, %p160
      %s163 = sadd.s32 %s162, 1
      %p166 = scmp.eq.s32.totalorder %s23, 3
      %p167 = scmp.ne.s32.totalorder %s162, %s164
      %p168 = scmp.eq.s32.totalorder %s23, 0
      %p169 = por %p167, %p168
      %p170 = scmp.ne.s32.totalorder %s162, %s164
      %p171 = scmp.eq.s32.totalorder %s28, 3
      %p172 = por %p170, %p171
      %p173 = scmp.ne.s32.totalorder %s164, %s165
      %p174 = scmp.eq.s32.totalorder %s28, 0
      %p175 = por %p173, %p174
      %p176 = scmp.ne.s32.totalorder %s164, %s165
      %p177 = scmp.eq.s32.totalorder %s29, 3
      %p178 = por %p176, %p177
      %p180 = scmp.ne.s32.totalorder %s165, %s179
      %p181 = scmp.eq.s32.totalorder %s29, 0
      %p182 = por %p180, %p181
      %s184 = sadd.s32 %s183, 1
      %p187 = scmp.eq.s32.totalorder %s23, 3
      %p188 = scmp.ne.s32.totalorder %s183, %s185
      %p189 = scmp.eq.s32.totalorder %s23, 0
      %p190 = por %p188, %p189
      %p191 = scmp.ne.s32.totalorder %s183, %s185
      %p192 = scmp.eq.s32.totalorder %s28, 3
      %p193 = por %p191, %p192
      %p194 = scmp.ne.s32.totalorder %s185, %s186
      %p195 = scmp.eq.s32.totalorder %s28, 0
      %p196 = por %p194, %p195
      %p197 = scmp.ne.s32.totalorder %s185, %s186
      %p198 = scmp.eq.s32.totalorder %s29, 3
      %p199 = por %p197, %p198
      %p201 = scmp.ne.s32.totalorder %s186, %s200
      %p202 = scmp.eq.s32.totalorder %s29, 0
      %p203 = por %p201, %p202
      %s204 = ssub.s32 %s23, %s30
      %p205 = scmp.eq.s32.totalorder %s204, 0
      %s207 = sadd.s32 %s206, 1
      %s208 = scalar_select %p205, %s206, %s207
      %p211 = pneg %p205
      %p212 = scmp.eq.s32.totalorder %s23, 3
      %p213 = por %p211, %p212
      %p214 = scmp.ne.s32.totalorder %s206, %s209
      %p215 = scmp.eq.s32.totalorder %s23, 0
      %p216 = por %p214, %p215
      %p217 = scmp.ne.s32.totalorder %s206, %s209
      %p218 = scmp.eq.s32.totalorder %s28, 3
      %p219 = por %p217, %p218
      %p220 = scmp.ne.s32.totalorder %s209, %s210
      %p221 = scmp.eq.s32.totalorder %s28, 0
      %p222 = por %p220, %p221
      %p223 = scmp.ne.s32.totalorder %s209, %s210
      %p224 = scmp.eq.s32.totalorder %s29, 3
      %p225 = por %p223, %p224
      %p227 = scmp.ne.s32.totalorder %s210, %s226
      %p228 = scmp.eq.s32.totalorder %s29, 0
      %p229 = por %p227, %p228
      %p230 = scmp.le.s32.totalorder 1, %s23
      %p231 = scmp.lt.s32.totalorder %s23, 5
      %p232 = pnand %p230, %p231
      %p233 = pneg %p232
      // Predicated region
      $region9: #{incept_c_forward.1} parent=5 // pred_check
        _
      $region10: #{incept_c_forward.1} parent=5 // pred_check_branch
        %235 = sbr.rel (%p232) target = $region12
      $region11: #{incept_c_forward.1} parent=5 // pred_region
        %s236 = ssub.s32 %s23, 1
        // Predicated region
        $region13: #{incept_c_forward.1} parent=11 // pred_check
          %p237 = pneg %p70
        $region14: #{incept_c_forward.1} parent=11 // pred_check_branch
          %239 = sbr.rel (%p237) target = $region16
        $region15: #{incept_c_forward.1} parent=11 // pred_region
          _
        $region16: #{incept_c_forward.1} parent=11 // pred_fallthru
          _
        // Predicated region
        $region17: #{incept_c_forward.1} parent=11 // pred_check
          %p240 = pneg %p91
        $region18: #{incept_c_forward.1} parent=11 // pred_check_branch
          %242 = sbr.rel (%p240) target = $region20
        $region19: #{incept_c_forward.1} parent=11 // pred_region
          _
        $region20: #{incept_c_forward.1} parent=11 // pred_fallthru
          _
        // Predicated region
        $region21: #{incept_c_forward.1} parent=11 // pred_check
          %p243 = pneg %p112
        $region22: #{incept_c_forward.1} parent=11 // pred_check_branch
          %245 = sbr.rel (%p243) target = $region24
        $region23: #{incept_c_forward.1} parent=11 // pred_region
          %s247 = ssub.s32 6912, 6912
          %248 = vsyncadd [#allocation8], %s247
          %s249 = sshll.u32 [#allocation7], 4
          %s250 = int_to_ptr.vmem [resolvable:$true] %s249
          %255 = dma.hbm_to_vmem [thread:$0]  %s3, 6912, %s250, [#allocation8], 128, 128, 8
        $region24: #{incept_c_forward.1} parent=11 // pred_fallthru
          _
        // Predicated region
        $region25: #{incept_c_forward.1} parent=11 // pred_check
          %p256 = pneg %p133
        $region26: #{incept_c_forward.1} parent=11 // pred_check_branch
          %258 = sbr.rel (%p256) target = $region28
        $region27: #{incept_c_forward.1} parent=11 // pred_region
          %s260 = ssub.s32 8064, 8064
          %261 = vsyncadd [#allocation8], %s260
          %s262 = sshll.u32 [#allocation9], 4
          %s263 = int_to_ptr.vmem [resolvable:$true] %s262
          %268 = dma.hbm_to_vmem [thread:$0]  %s4, 8064, %s263, [#allocation8], 128, 128, 8
        $region28: #{incept_c_forward.1} parent=11 // pred_fallthru
          _
        // Predicated region
        $region29: #{incept_c_forward.1} parent=11 // pred_check
          %p269 = pneg %p154
        $region30: #{incept_c_forward.1} parent=11 // pred_check_branch
          %271 = sbr.rel (%p269) target = $region32
        $region31: #{incept_c_forward.1} parent=11 // pred_region
          %s273 = ssub.s32 13824, 13824
          %274 = vsyncadd [#allocation11], %s273
          %s275 = sshll.u32 [#allocation10], 4
          %s276 = int_to_ptr.vmem [resolvable:$true] %s275
          %281 = dma.hbm_to_vmem [thread:$0]  %s5, 13824, %s276, [#allocation11], 768, 768, 48
        $region32: #{incept_c_forward.1} parent=11 // pred_fallthru
          _
        // Predicated region
        $region33: #{incept_c_forward.1} parent=11 // pred_check
          %p282 = pneg %p175
        $region34: #{incept_c_forward.1} parent=11 // pred_check_branch
          %284 = sbr.rel (%p282) target = $region36
        $region35: #{incept_c_forward.1} parent=11 // pred_region
          %s286 = ssub.s32 18432, 18432
          %287 = vsyncadd [#allocation11], %s286
          %s288 = sshll.u32 [#allocation12], 4
          %s289 = int_to_ptr.vmem [resolvable:$true] %s288
          %294 = dma.hbm_to_vmem [thread:$0]  %s6, 18432, %s289, [#allocation11], 768, 768, 48
        $region36: #{incept_c_forward.1} parent=11 // pred_fallthru
          _
        // Predicated region
        $region37: #{incept_c_forward.1} parent=11 // pred_check
          %p295 = pneg %p196
        $region38: #{incept_c_forward.1} parent=11 // pred_check_branch
          %297 = sbr.rel (%p295) target = $region40
        $region39: #{incept_c_forward.1} parent=11 // pred_region
          %s299 = ssub.s32 192, 192
          %300 = vsyncadd [#allocation14], %s299
          %s302 = sshll.u32 [#allocation13], 4
          %s303 = int_to_ptr.vmem [resolvable:$true] %s302
          %305 = dma.hbm_to_vmem [thread:$0]  %s7, 192, %s303, [#allocation14]
        $region40: #{incept_c_forward.1} parent=11 // pred_fallthru
          _
      $region12: #{incept_c_forward.1} parent=5 // pred_fallthru
        _
      %p306 = scmp.lt.s32.totalorder %s23, 4
      // Predicated region
      $region41: #{incept_c_forward.1} parent=5 // pred_check
        %p307 = pneg %p306
      $region42: #{incept_c_forward.1} parent=5 // pred_check_branch
        %309 = sbr.rel (%p307) target = $region44
      $region43: #{incept_c_forward.1} parent=5 // pred_region
        // Predicated region
        $region45: #{incept_c_forward.1} parent=43 // pred_check
          %p310 = pneg %p43
        $region46: #{incept_c_forward.1} parent=43 // pred_check_branch
          %312 = sbr.rel (%p310) target = $region48
        $region47: #{incept_c_forward.1} parent=43 // pred_region
          %s313 = sand.u32 %s33, 1
          %s314 = scalar_lea.sflag [#allocation5], %s313
          %s315 = sand.u32 %s33, 1
          %s316 = smul.addr %s315, 1536
          %s317 = scalar_lea.vmem [#allocation4], %s316
          %s318 = smul.u32 2, %s23
          %s320 = ssub.s32 24576, 24576
          %321 = vsyncadd %s314, %s320
          %s322 = smul.addr %s318, 96
          %s323 = smul.addr %s322, 128
          %s324 = scalar_lea.hbm %s0, %s323
          %s325 = sshll.u32 %s317, 4
          %s326 = int_to_ptr.vmem [resolvable:$true] %s325
          %331 = dma.hbm_to_vmem [thread:$0]  %s324, 24576, %s326, %s314, 1536, 1536, 96
        $region48: #{incept_c_forward.1} parent=43 // pred_fallthru
          _
      $region44: #{incept_c_forward.1} parent=5 // pred_fallthru
        _
      %p332 = scmp.le.s32.totalorder 1, %s23
      %p333 = scmp.lt.s32.totalorder %s23, 5
      %p334 = pnand %p332, %p333
      %p335 = pneg %p334
      // Predicated region
      $region49: #{incept_c_forward.1} parent=5 // pred_check
        _
      $region50: #{incept_c_forward.1} parent=5 // pred_check_branch
        %337 = sbr.rel (%p334) target = $region52
      $region51: #{incept_c_forward.1} parent=5 // pred_region
        %s338 = ssub.s32 %s23, 1
        %s339 = sand.u32 %s36, 1
        %s340 = scalar_lea.sflag [#allocation5], %s339
        %s341 = sand.u32 %s36, 1
        %s342 = smul.addr %s341, 1536
        %s343 = scalar_lea.vmem [#allocation4], %s342
        // Predicated region
        $region53: #{incept_c_forward.1} parent=51 // pred_check
          %p344 = pneg %p49
        $region54: #{incept_c_forward.1} parent=51 // pred_check_branch
          %346 = sbr.rel (%p344) target = $region56
        $region55: #{incept_c_forward.1} parent=51 // pred_region
          %347 = dma.done %s340, 24576
        $region56: #{incept_c_forward.1} parent=51 // pred_fallthru
          _
        // Predicated region
        $region57: #{incept_c_forward.1} parent=51 // pred_check
          %p348 = pneg %p112
        $region58: #{incept_c_forward.1} parent=51 // pred_check_branch
          %350 = sbr.rel (%p348) target = $region60
        $region59: #{incept_c_forward.1} parent=51 // pred_region
          %351 = dma.done [#allocation8], 6912
        $region60: #{incept_c_forward.1} parent=51 // pred_fallthru
          _
        // Predicated region
        $region61: #{incept_c_forward.1} parent=51 // pred_check
          %p352 = pneg %p133
        $region62: #{incept_c_forward.1} parent=51 // pred_check_branch
          %354 = sbr.rel (%p352) target = $region64
        $region63: #{incept_c_forward.1} parent=51 // pred_region
          %355 = dma.done [#allocation8], 8064
        $region64: #{incept_c_forward.1} parent=51 // pred_fallthru
          _
        // Predicated region
        $region65: #{incept_c_forward.1} parent=51 // pred_check
          %p356 = pneg %p154
        $region66: #{incept_c_forward.1} parent=51 // pred_check_branch
          %358 = sbr.rel (%p356) target = $region68
        $region67: #{incept_c_forward.1} parent=51 // pred_region
          %359 = dma.done [#allocation11], 13824
        $region68: #{incept_c_forward.1} parent=51 // pred_fallthru
          _
        // Predicated region
        $region69: #{incept_c_forward.1} parent=51 // pred_check
          %p360 = pneg %p175
        $region70: #{incept_c_forward.1} parent=51 // pred_check_branch
          %362 = sbr.rel (%p360) target = $region72
        $region71: #{incept_c_forward.1} parent=51 // pred_region
          %363 = dma.done [#allocation11], 18432
        $region72: #{incept_c_forward.1} parent=51 // pred_fallthru
          _
        // Predicated region
        $region73: #{incept_c_forward.1} parent=51 // pred_check
          %p364 = pneg %p196
        $region74: #{incept_c_forward.1} parent=51 // pred_check_branch
          %366 = sbr.rel (%p364) target = $region76
        $region75: #{incept_c_forward.1} parent=51 // pred_region
          %367 = dma.done [#allocation14], 192
        $region76: #{incept_c_forward.1} parent=51 // pred_fallthru
          _
        %s368 = sand.u32 %s36, 1
        %s369 = scalar_lea.sflag [#allocation5], %s368
        %s370 = sand.u32 %s36, 1
        %s371 = smul.addr %s370, 1536
        %s372 = scalar_lea.vmem [#allocation4], %s371
        %p373 = pneg %p49
        %p374 = pneg %p46
        %p375 = pneg %p70
        %p376 = pneg %p67
        %p377 = pneg %p91
        %p378 = pneg %p88
        %p379 = pneg %p112
        %p380 = pneg %p109
        %p381 = pneg %p133
        %p382 = pneg %p130
        %p383 = pneg %p154
        %p384 = pneg %p151
        %p385 = pneg %p175
        %p386 = pneg %p172
        %p387 = pneg %p196
        %p388 = pneg %p193
        %p389 = pneg %p222
        %p390 = pneg %p219
        %s391 = sand.u32 %s209, 1
        %s392 = scalar_lea.sflag [#allocation6], %s391
        %s393 = sand.u32 %s209, 1
        %s394 = smul.addr %s393, 1536
        %s395 = scalar_lea.vmem [#allocation15], %s394
        %s396 = smul.u32 2, %s28
        %s397 = smul.u32 2, %s28
        %v399 = vld [vmem:[%s343] sm:$0xff]
        %v400 = vld [vmem:[%s343 + $0x8] sm:$0xff]
        %v401 = vld [vmem:[%s343 + $0x10] sm:$0xff]
        %v402 = vld [vmem:[%s343 + $0x18] sm:$0xff]
        %v403 = vld [vmem:[%s343 + $0x20] sm:$0xff]
        %v404 = vld [vmem:[%s343 + $0x28] sm:$0xff]
        %v405 = vld [vmem:[%s343 + $0x30] sm:$0xff]
        %v406 = vld [vmem:[%s343 + $0x38] sm:$0xff]
        %v407 = vld [vmem:[%s343 + $0x40] sm:$0xff]
        %v408 = vld [vmem:[%s343 + $0x48] sm:$0xff]
        %v409 = vld [vmem:[%s343 + $0x50] sm:$0xff]
        %v410 = vld [vmem:[%s343 + $0x58] sm:$0xff]
        %v411 = vld [vmem:[%s343 + $0x60] sm:$0xff]
        %v412 = vld [vmem:[%s343 + $0x68] sm:$0xff]
        %v413 = vld [vmem:[%s343 + $0x70] sm:$0xff]
        %v414 = vld [vmem:[%s343 + $0x78] sm:$0xff]
        %v415 = vld [vmem:[%s343 + $0x80] sm:$0xff]
        %v416 = vld [vmem:[%s343 + $0x88] sm:$0xff]
        %v417 = vld [vmem:[%s343 + $0x90] sm:$0xff]
        %v418 = vld [vmem:[%s343 + $0x98] sm:$0xff]
        %v419 = vld [vmem:[%s343 + $0xa0] sm:$0xff]
        %v420 = vld [vmem:[%s343 + $0xa8] sm:$0xff]
        %v421 = vld [vmem:[%s343 + $0xb0] sm:$0xff]
        %v422 = vld [vmem:[%s343 + $0xb8] sm:$0xff]
        %v423 = vld [vmem:[%s343 + $0xc0] sm:$0xff]
        %v424 = vld [vmem:[%s343 + $0xc8] sm:$0xff]
        %v425 = vld [vmem:[%s343 + $0xd0] sm:$0xff]
        %v426 = vld [vmem:[%s343 + $0xd8] sm:$0xff]
        %v427 = vld [vmem:[%s343 + $0xe0] sm:$0xff]
        %v428 = vld [vmem:[%s343 + $0xe8] sm:$0xff]
        %v429 = vld [vmem:[%s343 + $0xf0] sm:$0xff]
        %v430 = vld [vmem:[%s343 + $0xf8] sm:$0xff]
        %v431 = vld [vmem:[%s343 + $0x100] sm:$0xff]
        %v432 = vld [vmem:[%s343 + $0x108] sm:$0xff]
        %v433 = vld [vmem:[%s343 + $0x110] sm:$0xff]
        %v434 = vld [vmem:[%s343 + $0x118] sm:$0xff]
        %v435 = vld [vmem:[%s343 + $0x120] sm:$0xff]
        %v436 = vld [vmem:[%s343 + $0x128] sm:$0xff]
        %v437 = vld [vmem:[%s343 + $0x130] sm:$0xff]
        %v438 = vld [vmem:[%s343 + $0x138] sm:$0xff]
        %v439 = vld [vmem:[%s343 + $0x140] sm:$0xff]
        %v440 = vld [vmem:[%s343 + $0x148] sm:$0xff]
        %v441 = vld [vmem:[%s343 + $0x150] sm:$0xff]
        %v442 = vld [vmem:[%s343 + $0x158] sm:$0xff]
        %v443 = vld [vmem:[%s343 + $0x160] sm:$0xff]
        %v444 = vld [vmem:[%s343 + $0x168] sm:$0xff]
        %v445 = vld [vmem:[%s343 + $0x170] sm:$0xff]
        %v446 = vld [vmem:[%s343 + $0x178] sm:$0xff]
        %v447 = vld [vmem:[%s343 + $0x180] sm:$0xff]
        %v448 = vld [vmem:[%s343 + $0x188] sm:$0xff]
        %v449 = vld [vmem:[%s343 + $0x190] sm:$0xff]
        %v450 = vld [vmem:[%s343 + $0x198] sm:$0xff]
        %v451 = vld [vmem:[%s343 + $0x1a0] sm:$0xff]
        %v452 = vld [vmem:[%s343 + $0x1a8] sm:$0xff]
        %v453 = vld [vmem:[%s343 + $0x1b0] sm:$0xff]
        %v454 = vld [vmem:[%s343 + $0x1b8] sm:$0xff]
        %v455 = vld [vmem:[%s343 + $0x1c0] sm:$0xff]
        %v456 = vld [vmem:[%s343 + $0x1c8] sm:$0xff]
        %v457 = vld [vmem:[%s343 + $0x1d0] sm:$0xff]
        %v458 = vld [vmem:[%s343 + $0x1d8] sm:$0xff]
        %v459 = vld [vmem:[%s343 + $0x1e0] sm:$0xff]
        %v460 = vld [vmem:[%s343 + $0x1e8] sm:$0xff]
        %v461 = vld [vmem:[%s343 + $0x1f0] sm:$0xff]
        %v462 = vld [vmem:[%s343 + $0x1f8] sm:$0xff]
        %v463 = vld [vmem:[%s343 + $0x200] sm:$0xff]
        %v464 = vld [vmem:[%s343 + $0x208] sm:$0xff]
        %v465 = vld [vmem:[%s343 + $0x210] sm:$0xff]
        %v466 = vld [vmem:[%s343 + $0x218] sm:$0xff]
        %v467 = vld [vmem:[%s343 + $0x220] sm:$0xff]
        %v468 = vld [vmem:[%s343 + $0x228] sm:$0xff]
        %v469 = vld [vmem:[%s343 + $0x230] sm:$0xff]
        %v470 = vld [vmem:[%s343 + $0x238] sm:$0xff]
        %v471 = vld [vmem:[%s343 + $0x240] sm:$0xff]
        %v472 = vld [vmem:[%s343 + $0x248] sm:$0xff]
        %v473 = vld [vmem:[%s343 + $0x250] sm:$0xff]
        %v474 = vld [vmem:[%s343 + $0x258] sm:$0xff]
        %v475 = vld [vmem:[%s343 + $0x260] sm:$0xff]
        %v476 = vld [vmem:[%s343 + $0x268] sm:$0xff]
        %v477 = vld [vmem:[%s343 + $0x270] sm:$0xff]
        %v478 = vld [vmem:[%s343 + $0x278] sm:$0xff]
        %v479 = vld [vmem:[%s343 + $0x280] sm:$0xff]
        %v480 = vld [vmem:[%s343 + $0x288] sm:$0xff]
        %v481 = vld [vmem:[%s343 + $0x290] sm:$0xff]
        %v482 = vld [vmem:[%s343 + $0x298] sm:$0xff]
        %v483 = vld [vmem:[%s343 + $0x2a0] sm:$0xff]
        %v484 = vld [vmem:[%s343 + $0x2a8] sm:$0xff]
        %v485 = vld [vmem:[%s343 + $0x2b0] sm:$0xff]
        %v486 = vld [vmem:[%s343 + $0x2b8] sm:$0xff]
        %v487 = vld [vmem:[%s343 + $0x2c0] sm:$0xff]
        %v488 = vld [vmem:[%s343 + $0x2c8] sm:$0xff]
        %v489 = vld [vmem:[%s343 + $0x2d0] sm:$0xff]
        %v490 = vld [vmem:[%s343 + $0x2d8] sm:$0xff]
        %v491 = vld [vmem:[%s343 + $0x2e0] sm:$0xff]
        %v492 = vld [vmem:[%s343 + $0x2e8] sm:$0xff]
        %v493 = vld [vmem:[%s343 + $0x2f0] sm:$0xff]
        %v494 = vld [vmem:[%s343 + $0x2f8] sm:$0xff]
        %v495 = vld [vmem:[%s343 + $0x300] sm:$0xff]
        %v496 = vld [vmem:[%s343 + $0x308] sm:$0xff]
        %v497 = vld [vmem:[%s343 + $0x310] sm:$0xff]
        %v498 = vld [vmem:[%s343 + $0x318] sm:$0xff]
        %v499 = vld [vmem:[%s343 + $0x320] sm:$0xff]
        %v500 = vld [vmem:[%s343 + $0x328] sm:$0xff]
        %v501 = vld [vmem:[%s343 + $0x330] sm:$0xff]
        %v502 = vld [vmem:[%s343 + $0x338] sm:$0xff]
        %v503 = vld [vmem:[%s343 + $0x340] sm:$0xff]
        %v504 = vld [vmem:[%s343 + $0x348] sm:$0xff]
        %v505 = vld [vmem:[%s343 + $0x350] sm:$0xff]
        %v506 = vld [vmem:[%s343 + $0x358] sm:$0xff]
        %v507 = vld [vmem:[%s343 + $0x360] sm:$0xff]
        %v508 = vld [vmem:[%s343 + $0x368] sm:$0xff]
        %v509 = vld [vmem:[%s343 + $0x370] sm:$0xff]
        %v510 = vld [vmem:[%s343 + $0x378] sm:$0xff]
        %v511 = vld [vmem:[%s343 + $0x380] sm:$0xff]
        %v512 = vld [vmem:[%s343 + $0x388] sm:$0xff]
        %v513 = vld [vmem:[%s343 + $0x390] sm:$0xff]
        %v514 = vld [vmem:[%s343 + $0x398] sm:$0xff]
        %v515 = vld [vmem:[%s343 + $0x3a0] sm:$0xff]
        %v516 = vld [vmem:[%s343 + $0x3a8] sm:$0xff]
        %v517 = vld [vmem:[%s343 + $0x3b0] sm:$0xff]
        %v518 = vld [vmem:[%s343 + $0x3b8] sm:$0xff]
        %v519 = vld [vmem:[%s343 + $0x3c0] sm:$0xff]
        %v520 = vld [vmem:[%s343 + $0x3c8] sm:$0xff]
        %v521 = vld [vmem:[%s343 + $0x3d0] sm:$0xff]
        %v522 = vld [vmem:[%s343 + $0x3d8] sm:$0xff]
        %v523 = vld [vmem:[%s343 + $0x3e0] sm:$0xff]
        %v524 = vld [vmem:[%s343 + $0x3e8] sm:$0xff]
        %v525 = vld [vmem:[%s343 + $0x3f0] sm:$0xff]
        %v526 = vld [vmem:[%s343 + $0x3f8] sm:$0xff]
        %v527 = vld [vmem:[%s343 + $0x400] sm:$0xff]
        %v528 = vld [vmem:[%s343 + $0x408] sm:$0xff]
        %v529 = vld [vmem:[%s343 + $0x410] sm:$0xff]
        %v530 = vld [vmem:[%s343 + $0x418] sm:$0xff]
        %v531 = vld [vmem:[%s343 + $0x420] sm:$0xff]
        %v532 = vld [vmem:[%s343 + $0x428] sm:$0xff]
        %v533 = vld [vmem:[%s343 + $0x430] sm:$0xff]
        %v534 = vld [vmem:[%s343 + $0x438] sm:$0xff]
        %v535 = vld [vmem:[%s343 + $0x440] sm:$0xff]
        %v536 = vld [vmem:[%s343 + $0x448] sm:$0xff]
        %v537 = vld [vmem:[%s343 + $0x450] sm:$0xff]
        %v538 = vld [vmem:[%s343 + $0x458] sm:$0xff]
        %v539 = vld [vmem:[%s343 + $0x460] sm:$0xff]
        %v540 = vld [vmem:[%s343 + $0x468] sm:$0xff]
        %v541 = vld [vmem:[%s343 + $0x470] sm:$0xff]
        %v542 = vld [vmem:[%s343 + $0x478] sm:$0xff]
        %v543 = vld [vmem:[%s343 + $0x480] sm:$0xff]
        %v544 = vld [vmem:[%s343 + $0x488] sm:$0xff]
        %v545 = vld [vmem:[%s343 + $0x490] sm:$0xff]
        %v546 = vld [vmem:[%s343 + $0x498] sm:$0xff]
        %v547 = vld [vmem:[%s343 + $0x4a0] sm:$0xff]
        %v548 = vld [vmem:[%s343 + $0x4a8] sm:$0xff]
        %v549 = vld [vmem:[%s343 + $0x4b0] sm:$0xff]
        %v550 = vld [vmem:[%s343 + $0x4b8] sm:$0xff]
        %v551 = vld [vmem:[%s343 + $0x4c0] sm:$0xff]
        %v552 = vld [vmem:[%s343 + $0x4c8] sm:$0xff]
        %v553 = vld [vmem:[%s343 + $0x4d0] sm:$0xff]
        %v554 = vld [vmem:[%s343 + $0x4d8] sm:$0xff]
        %v555 = vld [vmem:[%s343 + $0x4e0] sm:$0xff]
        %v556 = vld [vmem:[%s343 + $0x4e8] sm:$0xff]
        %v557 = vld [vmem:[%s343 + $0x4f0] sm:$0xff]
        %v558 = vld [vmem:[%s343 + $0x4f8] sm:$0xff]
        %v559 = vld [vmem:[%s343 + $0x500] sm:$0xff]
        %v560 = vld [vmem:[%s343 + $0x508] sm:$0xff]
        %v561 = vld [vmem:[%s343 + $0x510] sm:$0xff]
        %v562 = vld [vmem:[%s343 + $0x518] sm:$0xff]
        %v563 = vld [vmem:[%s343 + $0x520] sm:$0xff]
        %v564 = vld [vmem:[%s343 + $0x528] sm:$0xff]
        %v565 = vld [vmem:[%s343 + $0x530] sm:$0xff]
        %v566 = vld [vmem:[%s343 + $0x538] sm:$0xff]
        %v567 = vld [vmem:[%s343 + $0x540] sm:$0xff]
        %v568 = vld [vmem:[%s343 + $0x548] sm:$0xff]
        %v569 = vld [vmem:[%s343 + $0x550] sm:$0xff]
        %v570 = vld [vmem:[%s343 + $0x558] sm:$0xff]
        %v571 = vld [vmem:[%s343 + $0x560] sm:$0xff]
        %v572 = vld [vmem:[%s343 + $0x568] sm:$0xff]
        %v573 = vld [vmem:[%s343 + $0x570] sm:$0xff]
        %v574 = vld [vmem:[%s343 + $0x578] sm:$0xff]
        %v575 = vld [vmem:[%s343 + $0x580] sm:$0xff]
        %v576 = vld [vmem:[%s343 + $0x588] sm:$0xff]
        %v577 = vld [vmem:[%s343 + $0x590] sm:$0xff]
        %v578 = vld [vmem:[%s343 + $0x598] sm:$0xff]
        %v579 = vld [vmem:[%s343 + $0x5a0] sm:$0xff]
        %v580 = vld [vmem:[%s343 + $0x5a8] sm:$0xff]
        %v581 = vld [vmem:[%s343 + $0x5b0] sm:$0xff]
        %v582 = vld [vmem:[%s343 + $0x5b8] sm:$0xff]
        %v583 = vld [vmem:[%s343 + $0x5c0] sm:$0xff]
        %v584 = vld [vmem:[%s343 + $0x5c8] sm:$0xff]
        %v585 = vld [vmem:[%s343 + $0x5d0] sm:$0xff]
        %v586 = vld [vmem:[%s343 + $0x5d8] sm:$0xff]
        %v587 = vld [vmem:[%s343 + $0x5e0] sm:$0xff]
        %v588 = vld [vmem:[%s343 + $0x5e8] sm:$0xff]
        %v589 = vld [vmem:[%s343 + $0x5f0] sm:$0xff]
        %v590 = vld [vmem:[%s343 + $0x5f8] sm:$0xff]
        %v591 = vpack.c.bf16 %v411, %v399
        %v592 = vpack.c.bf16 %v412, %v400
        %v593 = vpack.c.bf16 %v413, %v401
        %v594 = vpack.c.bf16 %v414, %v402
        %v595 = vpack.c.bf16 %v415, %v403
        %v596 = vpack.c.bf16 %v416, %v404
        %v597 = vpack.c.bf16 %v417, %v405
        %v598 = vpack.c.bf16 %v418, %v406
        %v599 = vpack.c.bf16 %v419, %v407
        %v600 = vpack.c.bf16 %v420, %v408
        %v601 = vpack.c.bf16 %v421, %v409
        %v602 = vpack.c.bf16 %v422, %v410
        %v603 = vpack.c.bf16 %v435, %v423
        %v604 = vpack.c.bf16 %v436, %v424
        %v605 = vpack.c.bf16 %v437, %v425
        %v606 = vpack.c.bf16 %v438, %v426
        %v607 = vpack.c.bf16 %v439, %v427
        %v608 = vpack.c.bf16 %v440, %v428
        %v609 = vpack.c.bf16 %v441, %v429
        %v610 = vpack.c.bf16 %v442, %v430
        %v611 = vpack.c.bf16 %v443, %v431
        %v612 = vpack.c.bf16 %v444, %v432
        %v613 = vpack.c.bf16 %v445, %v433
        %v614 = vpack.c.bf16 %v446, %v434
        %v615 = vpack.c.bf16 %v459, %v447
        %v616 = vpack.c.bf16 %v460, %v448
        %v617 = vpack.c.bf16 %v461, %v449
        %v618 = vpack.c.bf16 %v462, %v450
        %v619 = vpack.c.bf16 %v463, %v451
        %v620 = vpack.c.bf16 %v464, %v452
        %v621 = vpack.c.bf16 %v465, %v453
        %v622 = vpack.c.bf16 %v466, %v454
        %v623 = vpack.c.bf16 %v467, %v455
        %v624 = vpack.c.bf16 %v468, %v456
        %v625 = vpack.c.bf16 %v469, %v457
        %v626 = vpack.c.bf16 %v470, %v458
        %v627 = vpack.c.bf16 %v483, %v471
        %v628 = vpack.c.bf16 %v484, %v472
        %v629 = vpack.c.bf16 %v485, %v473
        %v630 = vpack.c.bf16 %v486, %v474
        %v631 = vpack.c.bf16 %v487, %v475
        %v632 = vpack.c.bf16 %v488, %v476
        %v633 = vpack.c.bf16 %v489, %v477
        %v634 = vpack.c.bf16 %v490, %v478
        %v635 = vpack.c.bf16 %v491, %v479
        %v636 = vpack.c.bf16 %v492, %v480
        %v637 = vpack.c.bf16 %v493, %v481
        %v638 = vpack.c.bf16 %v494, %v482
        %v639 = vpack.c.bf16 %v507, %v495
        %v640 = vpack.c.bf16 %v508, %v496
        %v641 = vpack.c.bf16 %v509, %v497
        %v642 = vpack.c.bf16 %v510, %v498
        %v643 = vpack.c.bf16 %v511, %v499
        %v644 = vpack.c.bf16 %v512, %v500
        %v645 = vpack.c.bf16 %v513, %v501
        %v646 = vpack.c.bf16 %v514, %v502
        %v647 = vpack.c.bf16 %v515, %v503
        %v648 = vpack.c.bf16 %v516, %v504
        %v649 = vpack.c.bf16 %v517, %v505
        %v650 = vpack.c.bf16 %v518, %v506
        %v651 = vpack.c.bf16 %v531, %v519
        %v652 = vpack.c.bf16 %v532, %v520
        %v653 = vpack.c.bf16 %v533, %v521
        %v654 = vpack.c.bf16 %v534, %v522
        %v655 = vpack.c.bf16 %v535, %v523
        %v656 = vpack.c.bf16 %v536, %v524
        %v657 = vpack.c.bf16 %v537, %v525
        %v658 = vpack.c.bf16 %v538, %v526
        %v659 = vpack.c.bf16 %v539, %v527
        %v660 = vpack.c.bf16 %v540, %v528
        %v661 = vpack.c.bf16 %v541, %v529
        %v662 = vpack.c.bf16 %v542, %v530
        %v663 = vpack.c.bf16 %v555, %v543
        %v664 = vpack.c.bf16 %v556, %v544
        %v665 = vpack.c.bf16 %v557, %v545
        %v666 = vpack.c.bf16 %v558, %v546
        %v667 = vpack.c.bf16 %v559, %v547
        %v668 = vpack.c.bf16 %v560, %v548
        %v669 = vpack.c.bf16 %v561, %v549
        %v670 = vpack.c.bf16 %v562, %v550
        %v671 = vpack.c.bf16 %v563, %v551
        %v672 = vpack.c.bf16 %v564, %v552
        %v673 = vpack.c.bf16 %v565, %v553
        %v674 = vpack.c.bf16 %v566, %v554
        %v675 = vpack.c.bf16 %v579, %v567
        %v676 = vpack.c.bf16 %v580, %v568
        %v677 = vpack.c.bf16 %v581, %v569
        %v678 = vpack.c.bf16 %v582, %v570
        %v679 = vpack.c.bf16 %v583, %v571
        %v680 = vpack.c.bf16 %v584, %v572
        %v681 = vpack.c.bf16 %v585, %v573
        %v682 = vpack.c.bf16 %v586, %v574
        %v683 = vpack.c.bf16 %v587, %v575
        %v684 = vpack.c.bf16 %v588, %v576
        %v685 = vpack.c.bf16 %v589, %v577
        %v686 = vpack.c.bf16 %v590, %v578
        %v687 = vld [vmem:[%s1] sm:$0xff]
        %v688 = vld [vmem:[%s1 + $0x8] sm:$0xff]
        %v689 = vld [vmem:[%s1 + $0x10] sm:$0xff]
        %v690 = vld [vmem:[%s1 + $0x18] sm:$0xff]
        %v691 = vld [vmem:[%s1 + $0x20] sm:$0xff]
        %v692 = vld [vmem:[%s1 + $0x28] sm:$0xff]
        %v693 = vld [vmem:[%s1 + $0x30] sm:$0xff]
        %v694 = vld [vmem:[%s1 + $0x38] sm:$0xff]
        %v695 = vld [vmem:[%s1 + $0x40] sm:$0xff]
        %v696 = vld [vmem:[%s1 + $0x48] sm:$0xff]
        %v697 = vld [vmem:[%s1 + $0x50] sm:$0xff]
        %v698 = vld [vmem:[%s1 + $0x58] sm:$0xff]
        %v699 = vld [vmem:[%s1 + $0x60] sm:$0xff]
        %v700 = vld [vmem:[%s1 + $0x68] sm:$0xff]
        %v701 = vld [vmem:[%s1 + $0x70] sm:$0xff]
        %v702 = vld [vmem:[%s1 + $0x78] sm:$0xff]
        %v703 = vld [vmem:[%s1 + $0x80] sm:$0xff]
        %v704 = vld [vmem:[%s1 + $0x88] sm:$0xff]
        %v705 = vld [vmem:[%s1 + $0x90] sm:$0xff]
        %v706 = vld [vmem:[%s1 + $0x98] sm:$0xff]
        %v707 = vld [vmem:[%s1 + $0xa0] sm:$0xff]
        %v708 = vld [vmem:[%s1 + $0xa8] sm:$0xff]
        %v709 = vld [vmem:[%s1 + $0xb0] sm:$0xff]
        %v710 = vld [vmem:[%s1 + $0xb8] sm:$0xff]
        %v711 = vld [vmem:[%s1 + $0xc0] sm:$0xff]
        %v712 = vld [vmem:[%s1 + $0xc8] sm:$0xff]
        %v713 = vld [vmem:[%s1 + $0xd0] sm:$0xff]
        %v714 = vld [vmem:[%s1 + $0xd8] sm:$0xff]
        %v715 = vld [vmem:[%s1 + $0xe0] sm:$0xff]
        %v716 = vld [vmem:[%s1 + $0xe8] sm:$0xff]
        %v717 = vld [vmem:[%s1 + $0xf0] sm:$0xff]
        %v718 = vld [vmem:[%s1 + $0xf8] sm:$0xff]
        %v719 = vld [vmem:[%s1 + $0x100] sm:$0xff]
        %v720 = vld [vmem:[%s1 + $0x108] sm:$0xff]
        %v721 = vld [vmem:[%s1 + $0x110] sm:$0xff]
        %v722 = vld [vmem:[%s1 + $0x118] sm:$0xff]
        %v723 = vld [vmem:[%s1 + $0x120] sm:$0xff]
        %v724 = vld [vmem:[%s1 + $0x128] sm:$0xff]
        %v725 = vld [vmem:[%s1 + $0x130] sm:$0xff]
        %v726 = vld [vmem:[%s1 + $0x138] sm:$0xff]
        %v727 = vld [vmem:[%s1 + $0x140] sm:$0xff]
        %v728 = vld [vmem:[%s1 + $0x148] sm:$0xff]
        %v729 = vld [vmem:[%s1 + $0x150] sm:$0xff]
        %v730 = vld [vmem:[%s1 + $0x158] sm:$0xff]
        %v731 = vld [vmem:[%s1 + $0x160] sm:$0xff]
        %v732 = vld [vmem:[%s1 + $0x168] sm:$0xff]
        %v733 = vld [vmem:[%s1 + $0x170] sm:$0xff]
        %v734 = vld [vmem:[%s1 + $0x178] sm:$0xff]
        %v735 = vld [vmem:[%s1 + $0x180] sm:$0xff]
        %v736 = vld [vmem:[%s1 + $0x188] sm:$0xff]
        %v737 = vld [vmem:[%s1 + $0x190] sm:$0xff]
        %v738 = vld [vmem:[%s1 + $0x198] sm:$0xff]
        %v739 = vld [vmem:[%s1 + $0x1a0] sm:$0xff]
        %v740 = vld [vmem:[%s1 + $0x1a8] sm:$0xff]
        %v741 = vld [vmem:[%s1 + $0x1b0] sm:$0xff]
        %v742 = vld [vmem:[%s1 + $0x1b8] sm:$0xff]
        %v743 = vld [vmem:[%s1 + $0x1c0] sm:$0xff]
        %v744 = vld [vmem:[%s1 + $0x1c8] sm:$0xff]
        %v745 = vld [vmem:[%s1 + $0x1d0] sm:$0xff]
        %v746 = vld [vmem:[%s1 + $0x1d8] sm:$0xff]
        %v747 = vld [vmem:[%s1 + $0x1e0] sm:$0xff]
        %v748 = vld [vmem:[%s1 + $0x1e8] sm:$0xff]
        %v749 = vld [vmem:[%s1 + $0x1f0] sm:$0xff]
        %v750 = vld [vmem:[%s1 + $0x1f8] sm:$0xff]
        %v751 = vld [vmem:[%s1 + $0x200] sm:$0xff]
        %v752 = vld [vmem:[%s1 + $0x208] sm:$0xff]
        %v753 = vld [vmem:[%s1 + $0x210] sm:$0xff]
        %v754 = vld [vmem:[%s1 + $0x218] sm:$0xff]
        %v755 = vld [vmem:[%s1 + $0x220] sm:$0xff]
        %v756 = vld [vmem:[%s1 + $0x228] sm:$0xff]
        %v757 = vld [vmem:[%s1 + $0x230] sm:$0xff]
        %v758 = vld [vmem:[%s1 + $0x238] sm:$0xff]
        %v759 = vld [vmem:[%s1 + $0x240] sm:$0xff]
        %v760 = vld [vmem:[%s1 + $0x248] sm:$0xff]
        %v761 = vld [vmem:[%s1 + $0x250] sm:$0xff]
        %v762 = vld [vmem:[%s1 + $0x258] sm:$0xff]
        %v763 = vld [vmem:[%s1 + $0x260] sm:$0xff]
        %v764 = vld [vmem:[%s1 + $0x268] sm:$0xff]
        %v765 = vld [vmem:[%s1 + $0x270] sm:$0xff]
        %v766 = vld [vmem:[%s1 + $0x278] sm:$0xff]
        %v767 = vld [vmem:[%s1 + $0x280] sm:$0xff]
        %v768 = vld [vmem:[%s1 + $0x288] sm:$0xff]
        %v769 = vld [vmem:[%s1 + $0x290] sm:$0xff]
        %v770 = vld [vmem:[%s1 + $0x298] sm:$0xff]
        %v771 = vld [vmem:[%s1 + $0x2a0] sm:$0xff]
        %v772 = vld [vmem:[%s1 + $0x2a8] sm:$0xff]
        %v773 = vld [vmem:[%s1 + $0x2b0] sm:$0xff]
        %v774 = vld [vmem:[%s1 + $0x2b8] sm:$0xff]
        %v775 = vld [vmem:[%s1 + $0x2c0] sm:$0xff]
        %v776 = vld [vmem:[%s1 + $0x2c8] sm:$0xff]
        %v777 = vld [vmem:[%s1 + $0x2d0] sm:$0xff]
        %v778 = vld [vmem:[%s1 + $0x2d8] sm:$0xff]
        %v779 = vld [vmem:[%s1 + $0x2e0] sm:$0xff]
        %v780 = vld [vmem:[%s1 + $0x2e8] sm:$0xff]
        %v781 = vld [vmem:[%s1 + $0x2f0] sm:$0xff]
        %v782 = vld [vmem:[%s1 + $0x2f8] sm:$0xff]
        %v783 = vld [vmem:[%s1 + $0x300] sm:$0xff]
        %v784 = vld [vmem:[%s1 + $0x308] sm:$0xff]
        %v785 = vld [vmem:[%s1 + $0x310] sm:$0xff]
        %v786 = vld [vmem:[%s1 + $0x318] sm:$0xff]
        %v787 = vld [vmem:[%s1 + $0x320] sm:$0xff]
        %v788 = vld [vmem:[%s1 + $0x328] sm:$0xff]
        %v789 = vld [vmem:[%s1 + $0x330] sm:$0xff]
        %v790 = vld [vmem:[%s1 + $0x338] sm:$0xff]
        %v791 = vld [vmem:[%s1 + $0x340] sm:$0xff]
        %v792 = vld [vmem:[%s1 + $0x348] sm:$0xff]
        %v793 = vld [vmem:[%s1 + $0x350] sm:$0xff]
        %v794 = vld [vmem:[%s1 + $0x358] sm:$0xff]
        %v795 = vld [vmem:[%s1 + $0x360] sm:$0xff]
        %v796 = vld [vmem:[%s1 + $0x368] sm:$0xff]
        %v797 = vld [vmem:[%s1 + $0x370] sm:$0xff]
        %v798 = vld [vmem:[%s1 + $0x378] sm:$0xff]
        %v799 = vld [vmem:[%s1 + $0x380] sm:$0xff]
        %v800 = vld [vmem:[%s1 + $0x388] sm:$0xff]
        %v801 = vld [vmem:[%s1 + $0x390] sm:$0xff]
        %v802 = vld [vmem:[%s1 + $0x398] sm:$0xff]
        %v803 = vld [vmem:[%s1 + $0x3a0] sm:$0xff]
        %v804 = vld [vmem:[%s1 + $0x3a8] sm:$0xff]
        %v805 = vld [vmem:[%s1 + $0x3b0] sm:$0xff]
        %v806 = vld [vmem:[%s1 + $0x3b8] sm:$0xff]
        %v807 = vld [vmem:[%s1 + $0x3c0] sm:$0xff]
        %v808 = vld [vmem:[%s1 + $0x3c8] sm:$0xff]
        %v809 = vld [vmem:[%s1 + $0x3d0] sm:$0xff]
        %v810 = vld [vmem:[%s1 + $0x3d8] sm:$0xff]
        %v811 = vld [vmem:[%s1 + $0x3e0] sm:$0xff]
        %v812 = vld [vmem:[%s1 + $0x3e8] sm:$0xff]
        %v813 = vld [vmem:[%s1 + $0x3f0] sm:$0xff]
        %v814 = vld [vmem:[%s1 + $0x3f8] sm:$0xff]
        %v815 = vld [vmem:[%s1 + $0x400] sm:$0xff]
        %v816 = vld [vmem:[%s1 + $0x408] sm:$0xff]
        %v817 = vld [vmem:[%s1 + $0x410] sm:$0xff]
        %v818 = vld [vmem:[%s1 + $0x418] sm:$0xff]
        %v819 = vld [vmem:[%s1 + $0x420] sm:$0xff]
        %v820 = vld [vmem:[%s1 + $0x428] sm:$0xff]
        %v821 = vld [vmem:[%s1 + $0x430] sm:$0xff]
        %v822 = vld [vmem:[%s1 + $0x438] sm:$0xff]
        %v823 = vld [vmem:[%s1 + $0x440] sm:$0xff]
        %v824 = vld [vmem:[%s1 + $0x448] sm:$0xff]
        %v825 = vld [vmem:[%s1 + $0x450] sm:$0xff]
        %v826 = vld [vmem:[%s1 + $0x458] sm:$0xff]
        %v827 = vld [vmem:[%s1 + $0x460] sm:$0xff]
        %v828 = vld [vmem:[%s1 + $0x468] sm:$0xff]
        %v829 = vld [vmem:[%s1 + $0x470] sm:$0xff]
        %v830 = vld [vmem:[%s1 + $0x478] sm:$0xff]
        %v831 = vld [vmem:[%s1 + $0x480] sm:$0xff]
        %v832 = vld [vmem:[%s1 + $0x488] sm:$0xff]
        %v833 = vld [vmem:[%s1 + $0x490] sm:$0xff]
        %v834 = vld [vmem:[%s1 + $0x498] sm:$0xff]
        %v835 = vld [vmem:[%s1 + $0x4a0] sm:$0xff]
        %v836 = vld [vmem:[%s1 + $0x4a8] sm:$0xff]
        %v837 = vld [vmem:[%s1 + $0x4b0] sm:$0xff]
        %v838 = vld [vmem:[%s1 + $0x4b8] sm:$0xff]
        %v839 = vld [vmem:[%s1 + $0x4c0] sm:$0xff]
        %v840 = vld [vmem:[%s1 + $0x4c8] sm:$0xff]
        %v841 = vld [vmem:[%s1 + $0x4d0] sm:$0xff]
        %v842 = vld [vmem:[%s1 + $0x4d8] sm:$0xff]
        %v843 = vld [vmem:[%s1 + $0x4e0] sm:$0xff]
        %v844 = vld [vmem:[%s1 + $0x4e8] sm:$0xff]
        %v845 = vld [vmem:[%s1 + $0x4f0] sm:$0xff]
        %v846 = vld [vmem:[%s1 + $0x4f8] sm:$0xff]
        %v847 = vld [vmem:[%s1 + $0x500] sm:$0xff]
        %v848 = vld [vmem:[%s1 + $0x508] sm:$0xff]
        %v849 = vld [vmem:[%s1 + $0x510] sm:$0xff]
        %v850 = vld [vmem:[%s1 + $0x518] sm:$0xff]
        %v851 = vld [vmem:[%s1 + $0x520] sm:$0xff]
        %v852 = vld [vmem:[%s1 + $0x528] sm:$0xff]
        %v853 = vld [vmem:[%s1 + $0x530] sm:$0xff]
        %v854 = vld [vmem:[%s1 + $0x538] sm:$0xff]
        %v855 = vld [vmem:[%s1 + $0x540] sm:$0xff]
        %v856 = vld [vmem:[%s1 + $0x548] sm:$0xff]
        %v857 = vld [vmem:[%s1 + $0x550] sm:$0xff]
        %v858 = vld [vmem:[%s1 + $0x558] sm:$0xff]
        %v859 = vld [vmem:[%s1 + $0x560] sm:$0xff]
        %v860 = vld [vmem:[%s1 + $0x568] sm:$0xff]
        %v861 = vld [vmem:[%s1 + $0x570] sm:$0xff]
        %v862 = vld [vmem:[%s1 + $0x578] sm:$0xff]
        %v863 = vld [vmem:[%s1 + $0x580] sm:$0xff]
        %v864 = vld [vmem:[%s1 + $0x588] sm:$0xff]
        %v865 = vld [vmem:[%s1 + $0x590] sm:$0xff]
        %v866 = vld [vmem:[%s1 + $0x598] sm:$0xff]
        %v867 = vld [vmem:[%s1 + $0x5a0] sm:$0xff]
        %v868 = vld [vmem:[%s1 + $0x5a8] sm:$0xff]
        %v869 = vld [vmem:[%s1 + $0x5b0] sm:$0xff]
        %v870 = vld [vmem:[%s1 + $0x5b8] sm:$0xff]
        %v871 = vld [vmem:[%s1 + $0x5c0] sm:$0xff]
        %v872 = vld [vmem:[%s1 + $0x5c8] sm:$0xff]
        %v873 = vld [vmem:[%s1 + $0x5d0] sm:$0xff]
        %v874 = vld [vmem:[%s1 + $0x5d8] sm:$0xff]
        %v875 = vld [vmem:[%s1 + $0x5e0] sm:$0xff]
        %v876 = vld [vmem:[%s1 + $0x5e8] sm:$0xff]
        %v877 = vld [vmem:[%s1 + $0x5f0] sm:$0xff]
        %v878 = vld [vmem:[%s1 + $0x5f8] sm:$0xff]
        %v1071 = vunpack.c.l.b16 %v687
        %v1072 = vunpack.c.h.b16 %v687
        %v1073 = vunpack.c.l.b16 %v688
        %v1074 = vunpack.c.h.b16 %v688
        %v1075 = vunpack.c.l.b16 %v689
        %v1076 = vunpack.c.h.b16 %v689
        %v1077 = vunpack.c.l.b16 %v690
        %v1078 = vunpack.c.h.b16 %v690
        %v1079 = vunpack.c.l.b16 %v691
        %v1080 = vunpack.c.h.b16 %v691
        %v1081 = vunpack.c.l.b16 %v692
        %v1082 = vunpack.c.h.b16 %v692
        %v1083 = vunpack.c.l.b16 %v693
        %v1084 = vunpack.c.h.b16 %v693
        %v1085 = vunpack.c.l.b16 %v694
        %v1086 = vunpack.c.h.b16 %v694
        %v1087 = vunpack.c.l.b16 %v695
        %v1088 = vunpack.c.h.b16 %v695
        %v1089 = vunpack.c.l.b16 %v696
        %v1090 = vunpack.c.h.b16 %v696
        %v1091 = vunpack.c.l.b16 %v697
        %v1092 = vunpack.c.h.b16 %v697
        %v1093 = vunpack.c.l.b16 %v698
        %v1094 = vunpack.c.h.b16 %v698
        %v1095 = vunpack.c.l.b16 %v699
        %v1096 = vunpack.c.h.b16 %v699
        %v1097 = vunpack.c.l.b16 %v700
        %v1098 = vunpack.c.h.b16 %v700
        %v1099 = vunpack.c.l.b16 %v701
        %v1100 = vunpack.c.h.b16 %v701
        %v1101 = vunpack.c.l.b16 %v702
        %v1102 = vunpack.c.h.b16 %v702
        %v1103 = vunpack.c.l.b16 %v703
        %v1104 = vunpack.c.h.b16 %v703
        %v1105 = vunpack.c.l.b16 %v704
        %v1106 = vunpack.c.h.b16 %v704
        %v1107 = vunpack.c.l.b16 %v705
        %v1108 = vunpack.c.h.b16 %v705
        %v1109 = vunpack.c.l.b16 %v706
        %v1110 = vunpack.c.h.b16 %v706
        %v1111 = vunpack.c.l.b16 %v707
        %v1112 = vunpack.c.h.b16 %v707
        %v1113 = vunpack.c.l.b16 %v708
        %v1114 = vunpack.c.h.b16 %v708
        %v1115 = vunpack.c.l.b16 %v709
        %v1116 = vunpack.c.h.b16 %v709
        %v1117 = vunpack.c.l.b16 %v710
        %v1118 = vunpack.c.h.b16 %v710
        %v1119 = vunpack.c.l.b16 %v711
        %v1120 = vunpack.c.h.b16 %v711
        %v1121 = vunpack.c.l.b16 %v712
        %v1122 = vunpack.c.h.b16 %v712
        %v1123 = vunpack.c.l.b16 %v713
        %v1124 = vunpack.c.h.b16 %v713
        %v1125 = vunpack.c.l.b16 %v714
        %v1126 = vunpack.c.h.b16 %v714
        %v1127 = vunpack.c.l.b16 %v715
        %v1128 = vunpack.c.h.b16 %v715
        %v1129 = vunpack.c.l.b16 %v716
        %v1130 = vunpack.c.h.b16 %v716
        %v1131 = vunpack.c.l.b16 %v717
        %v1132 = vunpack.c.h.b16 %v717
        %v1133 = vunpack.c.l.b16 %v718
        %v1134 = vunpack.c.h.b16 %v718
        %v1135 = vunpack.c.l.b16 %v719
        %v1136 = vunpack.c.h.b16 %v719
        %v1137 = vunpack.c.l.b16 %v720
        %v1138 = vunpack.c.h.b16 %v720
        %v1139 = vunpack.c.l.b16 %v721
        %v1140 = vunpack.c.h.b16 %v721
        %v1141 = vunpack.c.l.b16 %v722
        %v1142 = vunpack.c.h.b16 %v722
        %v1143 = vunpack.c.l.b16 %v723
        %v1144 = vunpack.c.h.b16 %v723
        %v1145 = vunpack.c.l.b16 %v724
        %v1146 = vunpack.c.h.b16 %v724
        %v1147 = vunpack.c.l.b16 %v725
        %v1148 = vunpack.c.h.b16 %v725
        %v1149 = vunpack.c.l.b16 %v726
        %v1150 = vunpack.c.h.b16 %v726
        %v1151 = vunpack.c.l.b16 %v727
        %v1152 = vunpack.c.h.b16 %v727
        %v1153 = vunpack.c.l.b16 %v728
        %v1154 = vunpack.c.h.b16 %v728
        %v1155 = vunpack.c.l.b16 %v729
        %v1156 = vunpack.c.h.b16 %v729
        %v1157 = vunpack.c.l.b16 %v730
        %v1158 = vunpack.c.h.b16 %v730
        %v1159 = vunpack.c.l.b16 %v731
        %v1160 = vunpack.c.h.b16 %v731
        %v1161 = vunpack.c.l.b16 %v732
        %v1162 = vunpack.c.h.b16 %v732
        %v1163 = vunpack.c.l.b16 %v733
        %v1164 = vunpack.c.h.b16 %v733
        %v1165 = vunpack.c.l.b16 %v734
        %v1166 = vunpack.c.h.b16 %v734
        %v1167 = vunpack.c.l.b16 %v735
        %v1168 = vunpack.c.h.b16 %v735
        %v1169 = vunpack.c.l.b16 %v736
        %v1170 = vunpack.c.h.b16 %v736
        %v1171 = vunpack.c.l.b16 %v737
        %v1172 = vunpack.c.h.b16 %v737
        %v1173 = vunpack.c.l.b16 %v738
        %v1174 = vunpack.c.h.b16 %v738
        %v1175 = vunpack.c.l.b16 %v739
        %v1176 = vunpack.c.h.b16 %v739
        %v1177 = vunpack.c.l.b16 %v740
        %v1178 = vunpack.c.h.b16 %v740
        %v1179 = vunpack.c.l.b16 %v741
        %v1180 = vunpack.c.h.b16 %v741
        %v1181 = vunpack.c.l.b16 %v742
        %v1182 = vunpack.c.h.b16 %v742
        %v1183 = vunpack.c.l.b16 %v743
        %v1184 = vunpack.c.h.b16 %v743
        %v1185 = vunpack.c.l.b16 %v744
        %v1186 = vunpack.c.h.b16 %v744
        %v1187 = vunpack.c.l.b16 %v745
        %v1188 = vunpack.c.h.b16 %v745
        %v1189 = vunpack.c.l.b16 %v746
        %v1190 = vunpack.c.h.b16 %v746
        %v1191 = vunpack.c.l.b16 %v747
        %v1192 = vunpack.c.h.b16 %v747
        %v1193 = vunpack.c.l.b16 %v748
        %v1194 = vunpack.c.h.b16 %v748
        %v1195 = vunpack.c.l.b16 %v749
        %v1196 = vunpack.c.h.b16 %v749
        %v1197 = vunpack.c.l.b16 %v750
        %v1198 = vunpack.c.h.b16 %v750
        %v1199 = vunpack.c.l.b16 %v751
        %v1200 = vunpack.c.h.b16 %v751
        %v1201 = vunpack.c.l.b16 %v752
        %v1202 = vunpack.c.h.b16 %v752
        %v1203 = vunpack.c.l.b16 %v753
        %v1204 = vunpack.c.h.b16 %v753
        %v1205 = vunpack.c.l.b16 %v754
        %v1206 = vunpack.c.h.b16 %v754
        %v1207 = vunpack.c.l.b16 %v755
        %v1208 = vunpack.c.h.b16 %v755
        %v1209 = vunpack.c.l.b16 %v756
        %v1210 = vunpack.c.h.b16 %v756
        %v1211 = vunpack.c.l.b16 %v757
        %v1212 = vunpack.c.h.b16 %v757
        %v1213 = vunpack.c.l.b16 %v758
        %v1214 = vunpack.c.h.b16 %v758
        %v1215 = vunpack.c.l.b16 %v759
        %v1216 = vunpack.c.h.b16 %v759
        %v1217 = vunpack.c.l.b16 %v760
        %v1218 = vunpack.c.h.b16 %v760
        %v1219 = vunpack.c.l.b16 %v761
        %v1220 = vunpack.c.h.b16 %v761
        %v1221 = vunpack.c.l.b16 %v762
        %v1222 = vunpack.c.h.b16 %v762
        %v1223 = vunpack.c.l.b16 %v763
        %v1224 = vunpack.c.h.b16 %v763
        %v1225 = vunpack.c.l.b16 %v764
        %v1226 = vunpack.c.h.b16 %v764
        %v1227 = vunpack.c.l.b16 %v765
        %v1228 = vunpack.c.h.b16 %v765
        %v1229 = vunpack.c.l.b16 %v766
        %v1230 = vunpack.c.h.b16 %v766
        %v1231 = vunpack.c.l.b16 %v767
        %v1232 = vunpack.c.h.b16 %v767
        %v1233 = vunpack.c.l.b16 %v768
        %v1234 = vunpack.c.h.b16 %v768
        %v1235 = vunpack.c.l.b16 %v769
        %v1236 = vunpack.c.h.b16 %v769
        %v1237 = vunpack.c.l.b16 %v770
        %v1238 = vunpack.c.h.b16 %v770
        %v1239 = vunpack.c.l.b16 %v771
        %v1240 = vunpack.c.h.b16 %v771
        %v1241 = vunpack.c.l.b16 %v772
        %v1242 = vunpack.c.h.b16 %v772
        %v1243 = vunpack.c.l.b16 %v773
        %v1244 = vunpack.c.h.b16 %v773
        %v1245 = vunpack.c.l.b16 %v774
        %v1246 = vunpack.c.h.b16 %v774
        %v1247 = vunpack.c.l.b16 %v775
        %v1248 = vunpack.c.h.b16 %v775
        %v1249 = vunpack.c.l.b16 %v776
        %v1250 = vunpack.c.h.b16 %v776
        %v1251 = vunpack.c.l.b16 %v777
        %v1252 = vunpack.c.h.b16 %v777
        %v1253 = vunpack.c.l.b16 %v778
        %v1254 = vunpack.c.h.b16 %v778
        %v1255 = vunpack.c.l.b16 %v779
        %v1256 = vunpack.c.h.b16 %v779
        %v1257 = vunpack.c.l.b16 %v780
        %v1258 = vunpack.c.h.b16 %v780
        %v1259 = vunpack.c.l.b16 %v781
        %v1260 = vunpack.c.h.b16 %v781
        %v1261 = vunpack.c.l.b16 %v782
        %v1262 = vunpack.c.h.b16 %v782
        %v1263 = vunpack.c.l.b16 %v783
        %v1264 = vunpack.c.h.b16 %v783
        %v1265 = vunpack.c.l.b16 %v784
        %v1266 = vunpack.c.h.b16 %v784
        %v1267 = vunpack.c.l.b16 %v785
        %v1268 = vunpack.c.h.b16 %v785
        %v1269 = vunpack.c.l.b16 %v786
        %v1270 = vunpack.c.h.b16 %v786
        %v1271 = vunpack.c.l.b16 %v787
        %v1272 = vunpack.c.h.b16 %v787
        %v1273 = vunpack.c.l.b16 %v788
        %v1274 = vunpack.c.h.b16 %v788
        %v1275 = vunpack.c.l.b16 %v789
        %v1276 = vunpack.c.h.b16 %v789
        %v1277 = vunpack.c.l.b16 %v790
        %v1278 = vunpack.c.h.b16 %v790
        %v1279 = vunpack.c.l.b16 %v791
        %v1280 = vunpack.c.h.b16 %v791
        %v1281 = vunpack.c.l.b16 %v792
        %v1282 = vunpack.c.h.b16 %v792
        %v1283 = vunpack.c.l.b16 %v793
        %v1284 = vunpack.c.h.b16 %v793
        %v1285 = vunpack.c.l.b16 %v794
        %v1286 = vunpack.c.h.b16 %v794
        %v1287 = vunpack.c.l.b16 %v795
        %v1288 = vunpack.c.h.b16 %v795
        %v1289 = vunpack.c.l.b16 %v796
        %v1290 = vunpack.c.h.b16 %v796
        %v1291 = vunpack.c.l.b16 %v797
        %v1292 = vunpack.c.h.b16 %v797
        %v1293 = vunpack.c.l.b16 %v798
        %v1294 = vunpack.c.h.b16 %v798
        %v1295 = vunpack.c.l.b16 %v799
        %v1296 = vunpack.c.h.b16 %v799
        %v1297 = vunpack.c.l.b16 %v800
        %v1298 = vunpack.c.h.b16 %v800
        %v1299 = vunpack.c.l.b16 %v801
        %v1300 = vunpack.c.h.b16 %v801
        %v1301 = vunpack.c.l.b16 %v802
        %v1302 = vunpack.c.h.b16 %v802
        %v1303 = vunpack.c.l.b16 %v803
        %v1304 = vunpack.c.h.b16 %v803
        %v1305 = vunpack.c.l.b16 %v804
        %v1306 = vunpack.c.h.b16 %v804
        %v1307 = vunpack.c.l.b16 %v805
        %v1308 = vunpack.c.h.b16 %v805
        %v1309 = vunpack.c.l.b16 %v806
        %v1310 = vunpack.c.h.b16 %v806
        %v1311 = vunpack.c.l.b16 %v807
        %v1312 = vunpack.c.h.b16 %v807
        %v1313 = vunpack.c.l.b16 %v808
        %v1314 = vunpack.c.h.b16 %v808
        %v1315 = vunpack.c.l.b16 %v809
        %v1316 = vunpack.c.h.b16 %v809
        %v1317 = vunpack.c.l.b16 %v810
        %v1318 = vunpack.c.h.b16 %v810
        %v1319 = vunpack.c.l.b16 %v811
        %v1320 = vunpack.c.h.b16 %v811
        %v1321 = vunpack.c.l.b16 %v812
        %v1322 = vunpack.c.h.b16 %v812
        %v1323 = vunpack.c.l.b16 %v813
        %v1324 = vunpack.c.h.b16 %v813
        %v1325 = vunpack.c.l.b16 %v814
        %v1326 = vunpack.c.h.b16 %v814
        %v1327 = vunpack.c.l.b16 %v815
        %v1328 = vunpack.c.h.b16 %v815
        %v1329 = vunpack.c.l.b16 %v816
        %v1330 = vunpack.c.h.b16 %v816
        %v1331 = vunpack.c.l.b16 %v817
        %v1332 = vunpack.c.h.b16 %v817
        %v1333 = vunpack.c.l.b16 %v818
        %v1334 = vunpack.c.h.b16 %v818
        %v1335 = vunpack.c.l.b16 %v819
        %v1336 = vunpack.c.h.b16 %v819
        %v1337 = vunpack.c.l.b16 %v820
        %v1338 = vunpack.c.h.b16 %v820
        %v1339 = vunpack.c.l.b16 %v821
        %v1340 = vunpack.c.h.b16 %v821
        %v1341 = vunpack.c.l.b16 %v822
        %v1342 = vunpack.c.h.b16 %v822
        %v1343 = vunpack.c.l.b16 %v823
        %v1344 = vunpack.c.h.b16 %v823
        %v1345 = vunpack.c.l.b16 %v824
        %v1346 = vunpack.c.h.b16 %v824
        %v1347 = vunpack.c.l.b16 %v825
        %v1348 = vunpack.c.h.b16 %v825
        %v1349 = vunpack.c.l.b16 %v826
        %v1350 = vunpack.c.h.b16 %v826
        %v1351 = vunpack.c.l.b16 %v827
        %v1352 = vunpack.c.h.b16 %v827
        %v1353 = vunpack.c.l.b16 %v828
        %v1354 = vunpack.c.h.b16 %v828
        %v1355 = vunpack.c.l.b16 %v829
        %v1356 = vunpack.c.h.b16 %v829
        %v1357 = vunpack.c.l.b16 %v830
        %v1358 = vunpack.c.h.b16 %v830
        %v1359 = vunpack.c.l.b16 %v831
        %v1360 = vunpack.c.h.b16 %v831
        %v1361 = vunpack.c.l.b16 %v832
        %v1362 = vunpack.c.h.b16 %v832
        %v1363 = vunpack.c.l.b16 %v833
        %v1364 = vunpack.c.h.b16 %v833
        %v1365 = vunpack.c.l.b16 %v834
        %v1366 = vunpack.c.h.b16 %v834
        %v1367 = vunpack.c.l.b16 %v835
        %v1368 = vunpack.c.h.b16 %v835
        %v1369 = vunpack.c.l.b16 %v836
        %v1370 = vunpack.c.h.b16 %v836
        %v1371 = vunpack.c.l.b16 %v837
        %v1372 = vunpack.c.h.b16 %v837
        %v1373 = vunpack.c.l.b16 %v838
        %v1374 = vunpack.c.h.b16 %v838
        %v1375 = vunpack.c.l.b16 %v839
        %v1376 = vunpack.c.h.b16 %v839
        %v1377 = vunpack.c.l.b16 %v840
        %v1378 = vunpack.c.h.b16 %v840
        %v1379 = vunpack.c.l.b16 %v841
        %v1380 = vunpack.c.h.b16 %v841
        %v1381 = vunpack.c.l.b16 %v842
        %v1382 = vunpack.c.h.b16 %v842
        %v1383 = vunpack.c.l.b16 %v843
        %v1384 = vunpack.c.h.b16 %v843
        %v1385 = vunpack.c.l.b16 %v844
        %v1386 = vunpack.c.h.b16 %v844
        %v1387 = vunpack.c.l.b16 %v845
        %v1388 = vunpack.c.h.b16 %v845
        %v1389 = vunpack.c.l.b16 %v846
        %v1390 = vunpack.c.h.b16 %v846
        %v1391 = vunpack.c.l.b16 %v847
        %v1392 = vunpack.c.h.b16 %v847
        %v1393 = vunpack.c.l.b16 %v848
        %v1394 = vunpack.c.h.b16 %v848
        %v1395 = vunpack.c.l.b16 %v849
        %v1396 = vunpack.c.h.b16 %v849
        %v1397 = vunpack.c.l.b16 %v850
        %v1398 = vunpack.c.h.b16 %v850
        %v1399 = vunpack.c.l.b16 %v851
        %v1400 = vunpack.c.h.b16 %v851
        %v1401 = vunpack.c.l.b16 %v852
        %v1402 = vunpack.c.h.b16 %v852
        %v1403 = vunpack.c.l.b16 %v853
        %v1404 = vunpack.c.h.b16 %v853
        %v1405 = vunpack.c.l.b16 %v854
        %v1406 = vunpack.c.h.b16 %v854
        %v1407 = vunpack.c.l.b16 %v855
        %v1408 = vunpack.c.h.b16 %v855
        %v1409 = vunpack.c.l.b16 %v856
        %v1410 = vunpack.c.h.b16 %v856
        %v1411 = vunpack.c.l.b16 %v857
        %v1412 = vunpack.c.h.b16 %v857
        %v1413 = vunpack.c.l.b16 %v858
        %v1414 = vunpack.c.h.b16 %v858
        %v1415 = vunpack.c.l.b16 %v859
        %v1416 = vunpack.c.h.b16 %v859
        %v1417 = vunpack.c.l.b16 %v860
        %v1418 = vunpack.c.h.b16 %v860
        %v1419 = vunpack.c.l.b16 %v861
        %v1420 = vunpack.c.h.b16 %v861
        %v1421 = vunpack.c.l.b16 %v862
        %v1422 = vunpack.c.h.b16 %v862
        %v1423 = vunpack.c.l.b16 %v863
        %v1424 = vunpack.c.h.b16 %v863
        %v1425 = vunpack.c.l.b16 %v864
        %v1426 = vunpack.c.h.b16 %v864
        %v1427 = vunpack.c.l.b16 %v865
        %v1428 = vunpack.c.h.b16 %v865
        %v1429 = vunpack.c.l.b16 %v866
        %v1430 = vunpack.c.h.b16 %v866
        %v1431 = vunpack.c.l.b16 %v867
        %v1432 = vunpack.c.h.b16 %v867
        %v1433 = vunpack.c.l.b16 %v868
        %v1434 = vunpack.c.h.b16 %v868
        %v1435 = vunpack.c.l.b16 %v869
        %v1436 = vunpack.c.h.b16 %v869
        %v1437 = vunpack.c.l.b16 %v870
        %v1438 = vunpack.c.h.b16 %v870
        %v1439 = vunpack.c.l.b16 %v871
        %v1440 = vunpack.c.h.b16 %v871
        %v1441 = vunpack.c.l.b16 %v872
        %v1442 = vunpack.c.h.b16 %v872
        %v1443 = vunpack.c.l.b16 %v873
        %v1444 = vunpack.c.h.b16 %v873
        %v1445 = vunpack.c.l.b16 %v874
        %v1446 = vunpack.c.h.b16 %v874
        %v1447 = vunpack.c.l.b16 %v875
        %v1448 = vunpack.c.h.b16 %v875
        %v1449 = vunpack.c.l.b16 %v876
        %v1450 = vunpack.c.h.b16 %v876
        %v1451 = vunpack.c.l.b16 %v877
        %v1452 = vunpack.c.h.b16 %v877
        %v1453 = vunpack.c.l.b16 %v878
        %v1454 = vunpack.c.h.b16 %v878
        %v1455 = vpack.c.b16 %v1073, %v1071
        %v1456 = vpack.c.b16 %v1074, %v1072
        %v1457 = vpack.c.b16 %v1077, %v1075
        %v1458 = vpack.c.b16 %v1078, %v1076
        %v1459 = vpack.c.b16 %v1081, %v1079
        %v1460 = vpack.c.b16 %v1082, %v1080
        %v1461 = vpack.c.b16 %v1085, %v1083
        %v1462 = vpack.c.b16 %v1086, %v1084
        %v1463 = vpack.c.b16 %v1089, %v1087
        %v1464 = vpack.c.b16 %v1090, %v1088
        %v1465 = vpack.c.b16 %v1093, %v1091
        %v1466 = vpack.c.b16 %v1094, %v1092
        %v1467 = vpack.c.b16 %v1097, %v1095
        %v1468 = vpack.c.b16 %v1098, %v1096
        %v1469 = vpack.c.b16 %v1101, %v1099
        %v1470 = vpack.c.b16 %v1102, %v1100
        %v1471 = vpack.c.b16 %v1105, %v1103
        %v1472 = vpack.c.b16 %v1106, %v1104
        %v1473 = vpack.c.b16 %v1109, %v1107
        %v1474 = vpack.c.b16 %v1110, %v1108
        %v1475 = vpack.c.b16 %v1113, %v1111
        %v1476 = vpack.c.b16 %v1114, %v1112
        %v1477 = vpack.c.b16 %v1117, %v1115
        %v1478 = vpack.c.b16 %v1118, %v1116
        %v1479 = vpack.c.b16 %v1121, %v1119
        %v1480 = vpack.c.b16 %v1122, %v1120
        %v1481 = vpack.c.b16 %v1125, %v1123
        %v1482 = vpack.c.b16 %v1126, %v1124
        %v1483 = vpack.c.b16 %v1129, %v1127
        %v1484 = vpack.c.b16 %v1130, %v1128
        %v1485 = vpack.c.b16 %v1133, %v1131
        %v1486 = vpack.c.b16 %v1134, %v1132
        %v1487 = vpack.c.b16 %v1137, %v1135
        %v1488 = vpack.c.b16 %v1138, %v1136
        %v1489 = vpack.c.b16 %v1141, %v1139
        %v1490 = vpack.c.b16 %v1142, %v1140
        %v1491 = vpack.c.b16 %v1145, %v1143
        %v1492 = vpack.c.b16 %v1146, %v1144
        %v1493 = vpack.c.b16 %v1149, %v1147
        %v1494 = vpack.c.b16 %v1150, %v1148
        %v1495 = vpack.c.b16 %v1153, %v1151
        %v1496 = vpack.c.b16 %v1154, %v1152
        %v1497 = vpack.c.b16 %v1157, %v1155
        %v1498 = vpack.c.b16 %v1158, %v1156
        %v1499 = vpack.c.b16 %v1161, %v1159
        %v1500 = vpack.c.b16 %v1162, %v1160
        %v1501 = vpack.c.b16 %v1165, %v1163
        %v1502 = vpack.c.b16 %v1166, %v1164
        %v1503 = vpack.c.b16 %v1169, %v1167
        %v1504 = vpack.c.b16 %v1170, %v1168
        %v1505 = vpack.c.b16 %v1173, %v1171
        %v1506 = vpack.c.b16 %v1174, %v1172
        %v1507 = vpack.c.b16 %v1177, %v1175
        %v1508 = vpack.c.b16 %v1178, %v1176
        %v1509 = vpack.c.b16 %v1181, %v1179
        %v1510 = vpack.c.b16 %v1182, %v1180
        %v1511 = vpack.c.b16 %v1185, %v1183
        %v1512 = vpack.c.b16 %v1186, %v1184
        %v1513 = vpack.c.b16 %v1189, %v1187
        %v1514 = vpack.c.b16 %v1190, %v1188
        %v1515 = vpack.c.b16 %v1193, %v1191
        %v1516 = vpack.c.b16 %v1194, %v1192
        %v1517 = vpack.c.b16 %v1197, %v1195
        %v1518 = vpack.c.b16 %v1198, %v1196
        %v1519 = vpack.c.b16 %v1201, %v1199
        %v1520 = vpack.c.b16 %v1202, %v1200
        %v1521 = vpack.c.b16 %v1205, %v1203
        %v1522 = vpack.c.b16 %v1206, %v1204
        %v1523 = vpack.c.b16 %v1209, %v1207
        %v1524 = vpack.c.b16 %v1210, %v1208
        %v1525 = vpack.c.b16 %v1213, %v1211
        %v1526 = vpack.c.b16 %v1214, %v1212
        %v1527 = vpack.c.b16 %v1217, %v1215
        %v1528 = vpack.c.b16 %v1218, %v1216
        %v1529 = vpack.c.b16 %v1221, %v1219
        %v1530 = vpack.c.b16 %v1222, %v1220
        %v1531 = vpack.c.b16 %v1225, %v1223
        %v1532 = vpack.c.b16 %v1226, %v1224
        %v1533 = vpack.c.b16 %v1229, %v1227
        %v1534 = vpack.c.b16 %v1230, %v1228
        %v1535 = vpack.c.b16 %v1233, %v1231
        %v1536 = vpack.c.b16 %v1234, %v1232
        %v1537 = vpack.c.b16 %v1237, %v1235
        %v1538 = vpack.c.b16 %v1238, %v1236
        %v1539 = vpack.c.b16 %v1241, %v1239
        %v1540 = vpack.c.b16 %v1242, %v1240
        %v1541 = vpack.c.b16 %v1245, %v1243
        %v1542 = vpack.c.b16 %v1246, %v1244
        %v1543 = vpack.c.b16 %v1249, %v1247
        %v1544 = vpack.c.b16 %v1250, %v1248
        %v1545 = vpack.c.b16 %v1253, %v1251
        %v1546 = vpack.c.b16 %v1254, %v1252
        %v1547 = vpack.c.b16 %v1257, %v1255
        %v1548 = vpack.c.b16 %v1258, %v1256
        %v1549 = vpack.c.b16 %v1261, %v1259
        %v1550 = vpack.c.b16 %v1262, %v1260
        %v1551 = vpack.c.b16 %v1265, %v1263
        %v1552 = vpack.c.b16 %v1266, %v1264
        %v1553 = vpack.c.b16 %v1269, %v1267
        %v1554 = vpack.c.b16 %v1270, %v1268
        %v1555 = vpack.c.b16 %v1273, %v1271
        %v1556 = vpack.c.b16 %v1274, %v1272
        %v1557 = vpack.c.b16 %v1277, %v1275
        %v1558 = vpack.c.b16 %v1278, %v1276
        %v1559 = vpack.c.b16 %v1281, %v1279
        %v1560 = vpack.c.b16 %v1282, %v1280
        %v1561 = vpack.c.b16 %v1285, %v1283
        %v1562 = vpack.c.b16 %v1286, %v1284
        %v1563 = vpack.c.b16 %v1289, %v1287
        %v1564 = vpack.c.b16 %v1290, %v1288
        %v1565 = vpack.c.b16 %v1293, %v1291
        %v1566 = vpack.c.b16 %v1294, %v1292
        %v1567 = vpack.c.b16 %v1297, %v1295
        %v1568 = vpack.c.b16 %v1298, %v1296
        %v1569 = vpack.c.b16 %v1301, %v1299
        %v1570 = vpack.c.b16 %v1302, %v1300
        %v1571 = vpack.c.b16 %v1305, %v1303
        %v1572 = vpack.c.b16 %v1306, %v1304
        %v1573 = vpack.c.b16 %v1309, %v1307
        %v1574 = vpack.c.b16 %v1310, %v1308
        %v1575 = vpack.c.b16 %v1313, %v1311
        %v1576 = vpack.c.b16 %v1314, %v1312
        %v1577 = vpack.c.b16 %v1317, %v1315
        %v1578 = vpack.c.b16 %v1318, %v1316
        %v1579 = vpack.c.b16 %v1321, %v1319
        %v1580 = vpack.c.b16 %v1322, %v1320
        %v1581 = vpack.c.b16 %v1325, %v1323
        %v1582 = vpack.c.b16 %v1326, %v1324
        %v1583 = vpack.c.b16 %v1329, %v1327
        %v1584 = vpack.c.b16 %v1330, %v1328
        %v1585 = vpack.c.b16 %v1333, %v1331
        %v1586 = vpack.c.b16 %v1334, %v1332
        %v1587 = vpack.c.b16 %v1337, %v1335
        %v1588 = vpack.c.b16 %v1338, %v1336
        %v1589 = vpack.c.b16 %v1341, %v1339
        %v1590 = vpack.c.b16 %v1342, %v1340
        %v1591 = vpack.c.b16 %v1345, %v1343
        %v1592 = vpack.c.b16 %v1346, %v1344
        %v1593 = vpack.c.b16 %v1349, %v1347
        %v1594 = vpack.c.b16 %v1350, %v1348
        %v1595 = vpack.c.b16 %v1353, %v1351
        %v1596 = vpack.c.b16 %v1354, %v1352
        %v1597 = vpack.c.b16 %v1357, %v1355
        %v1598 = vpack.c.b16 %v1358, %v1356
        %v1599 = vpack.c.b16 %v1361, %v1359
        %v1600 = vpack.c.b16 %v1362, %v1360
        %v1601 = vpack.c.b16 %v1365, %v1363
        %v1602 = vpack.c.b16 %v1366, %v1364
        %v1603 = vpack.c.b16 %v1369, %v1367
        %v1604 = vpack.c.b16 %v1370, %v1368
        %v1605 = vpack.c.b16 %v1373, %v1371
        %v1606 = vpack.c.b16 %v1374, %v1372
        %v1607 = vpack.c.b16 %v1377, %v1375
        %v1608 = vpack.c.b16 %v1378, %v1376
        %v1609 = vpack.c.b16 %v1381, %v1379
        %v1610 = vpack.c.b16 %v1382, %v1380
        %v1611 = vpack.c.b16 %v1385, %v1383
        %v1612 = vpack.c.b16 %v1386, %v1384
        %v1613 = vpack.c.b16 %v1389, %v1387
        %v1614 = vpack.c.b16 %v1390, %v1388
        %v1615 = vpack.c.b16 %v1393, %v1391
        %v1616 = vpack.c.b16 %v1394, %v1392
        %v1617 = vpack.c.b16 %v1397, %v1395
        %v1618 = vpack.c.b16 %v1398, %v1396
        %v1619 = vpack.c.b16 %v1401, %v1399
        %v1620 = vpack.c.b16 %v1402, %v1400
        %v1621 = vpack.c.b16 %v1405, %v1403
        %v1622 = vpack.c.b16 %v1406, %v1404
        %v1623 = vpack.c.b16 %v1409, %v1407
        %v1624 = vpack.c.b16 %v1410, %v1408
        %v1625 = vpack.c.b16 %v1413, %v1411
        %v1626 = vpack.c.b16 %v1414, %v1412
        %v1627 = vpack.c.b16 %v1417, %v1415
        %v1628 = vpack.c.b16 %v1418, %v1416
        %v1629 = vpack.c.b16 %v1421, %v1419
        %v1630 = vpack.c.b16 %v1422, %v1420
        %v1631 = vpack.c.b16 %v1425, %v1423
        %v1632 = vpack.c.b16 %v1426, %v1424
        %v1633 = vpack.c.b16 %v1429, %v1427
        %v1634 = vpack.c.b16 %v1430, %v1428
        %v1635 = vpack.c.b16 %v1433, %v1431
        %v1636 = vpack.c.b16 %v1434, %v1432
        %v1637 = vpack.c.b16 %v1437, %v1435
        %v1638 = vpack.c.b16 %v1438, %v1436
        %v1639 = vpack.c.b16 %v1441, %v1439
        %v1640 = vpack.c.b16 %v1442, %v1440
        %v1641 = vpack.c.b16 %v1445, %v1443
        %v1642 = vpack.c.b16 %v1446, %v1444
        %v1643 = vpack.c.b16 %v1449, %v1447
        %v1644 = vpack.c.b16 %v1450, %v1448
        %v1645 = vpack.c.b16 %v1453, %v1451
        %v1646 = vpack.c.b16 %v1454, %v1452
        %1839 = vmatprep.subr.bf16.mxu0 %v1470
        %1840 = vmatpush1.bf16.msra.mxu0 %v1469
        %1841 = vmatprep.subr.bf16.mxu0 %v1468
        %1842 = vmatpush1.bf16.msra.mxu0 %v1467
        %1843 = vmatprep.subr.bf16.mxu0 %v1466
        %1844 = vmatpush1.bf16.msra.mxu0 %v1465
        %1845 = vmatprep.subr.bf16.mxu0 %v1464
        %1846 = vmatpush1.bf16.msra.mxu0 %v1463
        %1847 = vmatprep.subr.bf16.mxu0 %v1462
        %1848 = vmatpush1.bf16.msra.mxu0 %v1461
        %1849 = vmatprep.subr.bf16.mxu0 %v1460
        %1850 = vmatpush1.bf16.msra.mxu0 %v1459
        %1851 = vmatprep.subr.bf16.mxu0 %v1458
        %1852 = vmatpush1.bf16.msra.mxu0 %v1457
        %1853 = vmatprep.subr.bf16.mxu0 %v1456
        %1854 = vmatpush1.bf16.msra.mxu0 %v1455
        %1855 = vmatprep.subr.bf16.mxu0 %v1486
        %1856 = vmatpush2.bf16.msra.mxu0 %v1485
        %1857 = vmatprep.subr.bf16.mxu0 %v1484
        %1858 = vmatpush2.bf16.msra.mxu0 %v1483
        %1859 = vmatprep.subr.bf16.mxu0 %v1482
        %1860 = vmatpush2.bf16.msra.mxu0 %v1481
        %1861 = vmatprep.subr.bf16.mxu0 %v1480
        %1862 = vmatpush2.bf16.msra.mxu0 %v1479
        %1863 = vmatprep.subr.bf16.mxu0 %v1478
        %1864 = vmatpush2.bf16.msra.mxu0 %v1477
        %1865 = vmatprep.subr.bf16.mxu0 %v1476
        %1866 = vmatpush2.bf16.msra.mxu0 %v1475
        %1867 = vmatprep.subr.bf16.mxu0 %v1474
        %1868 = vmatpush2.bf16.msra.mxu0 %v1473
        %1869 = vmatprep.subr.bf16.mxu0 %v1472
        %1870 = vmatpush2.bf16.msra.mxu0 %v1471
        %1871 = vmatprep.mubr.bf16.mxu0 %v592
        %1872 = vmatmul.mubr.bf16.gmra.mxu0 %v591
        %v1873 = vpop.f32.mrf.mxu0
        %v1874 = vadd.f32 0.0, %v1873
        %v1875 = vpop.f32.mrf.mxu0
        %v1876 = vadd.f32 0.0, %v1875
        %v1877 = vpop.f32.mrf.mxu0
        %v1878 = vadd.f32 0.0, %v1877
        %v1879 = vpop.f32.mrf.mxu0
        %v1880 = vadd.f32 0.0, %v1879
        %1881 = vmatprep.mubr.bf16.mxu0 %v604
        %1882 = vmatmul.mubr.bf16.gmra.mxu0 %v603
        %v1883 = vpop.f32.mrf.mxu0
        %v1884 = vadd.f32 0.0, %v1883
        %v1885 = vpop.f32.mrf.mxu0
        %v1886 = vadd.f32 0.0, %v1885
        %v1887 = vpop.f32.mrf.mxu0
        %v1888 = vadd.f32 0.0, %v1887
        %v1889 = vpop.f32.mrf.mxu0
        %v1890 = vadd.f32 0.0, %v1889
        %1891 = vmatprep.mubr.bf16.mxu0 %v616
        %1892 = vmatmul.mubr.bf16.gmra.mxu0 %v615
        %v1893 = vpop.f32.mrf.mxu0
        %v1894 = vadd.f32 0.0, %v1893
        %v1895 = vpop.f32.mrf.mxu0
        %v1896 = vadd.f32 0.0, %v1895
        %v1897 = vpop.f32.mrf.mxu0
        %v1898 = vadd.f32 0.0, %v1897
        %v1899 = vpop.f32.mrf.mxu0
        %v1900 = vadd.f32 0.0, %v1899
        %1901 = vmatprep.mubr.bf16.mxu0 %v628
        %1902 = vmatmul.mubr.bf16.gmra.mxu0 %v627
        %v1903 = vpop.f32.mrf.mxu0
        %v1904 = vadd.f32 0.0, %v1903
        %v1905 = vpop.f32.mrf.mxu0
        %v1906 = vadd.f32 0.0, %v1905
        %v1907 = vpop.f32.mrf.mxu0
        %v1908 = vadd.f32 0.0, %v1907
        %v1909 = vpop.f32.mrf.mxu0
        %v1910 = vadd.f32 0.0, %v1909
        %1911 = vmatprep.mubr.bf16.mxu0 %v640
        %1912 = vmatmul.mubr.bf16.gmra.mxu0 %v639
        %v1913 = vpop.f32.mrf.mxu0
        %v1914 = vadd.f32 0.0, %v1913
        %v1915 = vpop.f32.mrf.mxu0
        %v1916 = vadd.f32 0.0, %v1915
        %v1917 = vpop.f32.mrf.mxu0
        %v1918 = vadd.f32 0.0, %v1917
        %v1919 = vpop.f32.mrf.mxu0
        %v1920 = vadd.f32 0.0, %v1919
        %1921 = vmatprep.mubr.bf16.mxu0 %v652
        %1922 = vmatmul.mubr.bf16.gmra.mxu0 %v651
        %v1923 = vpop.f32.mrf.mxu0
        %v1924 = vadd.f32 0.0, %v1923
        %v1925 = vpop.f32.mrf.mxu0
        %v1926 = vadd.f32 0.0, %v1925
        %v1927 = vpop.f32.mrf.mxu0
        %v1928 = vadd.f32 0.0, %v1927
        %v1929 = vpop.f32.mrf.mxu0
        %v1930 = vadd.f32 0.0, %v1929
        %1931 = vmatprep.mubr.bf16.mxu0 %v664
        %1932 = vmatmul.mubr.bf16.gmra.mxu0 %v663
        %v1933 = vpop.f32.mrf.mxu0
        %v1934 = vadd.f32 0.0, %v1933
        %v1935 = vpop.f32.mrf.mxu0
        %v1936 = vadd.f32 0.0, %v1935
        %v1937 = vpop.f32.mrf.mxu0
        %v1938 = vadd.f32 0.0, %v1937
        %v1939 = vpop.f32.mrf.mxu0
        %v1940 = vadd.f32 0.0, %v1939
        %1941 = vmatprep.mubr.bf16.mxu0 %v676
        %1942 = vmatmul.mubr.bf16.gmra.mxu0 %v675
        %v1943 = vpop.f32.mrf.mxu0
        %v1944 = vadd.f32 0.0, %v1943
        %v1945 = vpop.f32.mrf.mxu0
        %v1946 = vadd.f32 0.0, %v1945
        %v1947 = vpop.f32.mrf.mxu0
        %v1948 = vadd.f32 0.0, %v1947
        %v1949 = vpop.f32.mrf.mxu0
        %v1950 = vadd.f32 0.0, %v1949
        %1951 = vdwg.mxu0
        %1952 = vmatprep.subr.bf16.mxu0 %v1502
        %1953 = vmatpush1.bf16.msra.mxu0 %v1501
        %1954 = vmatprep.subr.bf16.mxu0 %v1500
        %1955 = vmatpush1.bf16.msra.mxu0 %v1499
        %1956 = vmatprep.subr.bf16.mxu0 %v1498
        %1957 = vmatpush1.bf16.msra.mxu0 %v1497
        %1958 = vmatprep.subr.bf16.mxu0 %v1496
        %1959 = vmatpush1.bf16.msra.mxu0 %v1495
        %1960 = vmatprep.subr.bf16.mxu0 %v1494
        %1961 = vmatpush1.bf16.msra.mxu0 %v1493
        %1962 = vmatprep.subr.bf16.mxu0 %v1492
        %1963 = vmatpush1.bf16.msra.mxu0 %v1491
        %1964 = vmatprep.subr.bf16.mxu0 %v1490
        %1965 = vmatpush1.bf16.msra.mxu0 %v1489
        %1966 = vmatprep.subr.bf16.mxu0 %v1488
        %1967 = vmatpush1.bf16.msra.mxu0 %v1487
        %1968 = vmatprep.subr.bf16.mxu0 %v1518
        %1969 = vmatpush2.bf16.msra.mxu0 %v1517
        %1970 = vmatprep.subr.bf16.mxu0 %v1516
        %1971 = vmatpush2.bf16.msra.mxu0 %v1515
        %1972 = vmatprep.subr.bf16.mxu0 %v1514
        %1973 = vmatpush2.bf16.msra.mxu0 %v1513
        %1974 = vmatprep.subr.bf16.mxu0 %v1512
        %1975 = vmatpush2.bf16.msra.mxu0 %v1511
        %1976 = vmatprep.subr.bf16.mxu0 %v1510
        %1977 = vmatpush2.bf16.msra.mxu0 %v1509
        %1978 = vmatprep.subr.bf16.mxu0 %v1508
        %1979 = vmatpush2.bf16.msra.mxu0 %v1507
        %1980 = vmatprep.subr.bf16.mxu0 %v1506
        %1981 = vmatpush2.bf16.msra.mxu0 %v1505
        %1982 = vmatprep.subr.bf16.mxu0 %v1504
        %1983 = vmatpush2.bf16.msra.mxu0 %v1503
        %1984 = vmatprep.mubr.bf16.mxu0 %v594
        %1985 = vmatmul.mubr.bf16.gmra.mxu0 %v593
        %v1986 = vpop.f32.mrf.mxu0
        %v1987 = vadd.f32 %v1874, %v1986
        %v1988 = vpop.f32.mrf.mxu0
        %v1989 = vadd.f32 %v1876, %v1988
        %v1990 = vpop.f32.mrf.mxu0
        %v1991 = vadd.f32 %v1878, %v1990
        %v1992 = vpop.f32.mrf.mxu0
        %v1993 = vadd.f32 %v1880, %v1992
        %1994 = vmatprep.mubr.bf16.mxu0 %v606
        %1995 = vmatmul.mubr.bf16.gmra.mxu0 %v605
        %v1996 = vpop.f32.mrf.mxu0
        %v1997 = vadd.f32 %v1884, %v1996
        %v1998 = vpop.f32.mrf.mxu0
        %v1999 = vadd.f32 %v1886, %v1998
        %v2000 = vpop.f32.mrf.mxu0
        %v2001 = vadd.f32 %v1888, %v2000
        %v2002 = vpop.f32.mrf.mxu0
        %v2003 = vadd.f32 %v1890, %v2002
        %2004 = vmatprep.mubr.bf16.mxu0 %v618
        %2005 = vmatmul.mubr.bf16.gmra.mxu0 %v617
        %v2006 = vpop.f32.mrf.mxu0
        %v2007 = vadd.f32 %v1894, %v2006
        %v2008 = vpop.f32.mrf.mxu0
        %v2009 = vadd.f32 %v1896, %v2008
        %v2010 = vpop.f32.mrf.mxu0
        %v2011 = vadd.f32 %v1898, %v2010
        %v2012 = vpop.f32.mrf.mxu0
        %v2013 = vadd.f32 %v1900, %v2012
        %2014 = vmatprep.mubr.bf16.mxu0 %v630
        %2015 = vmatmul.mubr.bf16.gmra.mxu0 %v629
        %v2016 = vpop.f32.mrf.mxu0
        %v2017 = vadd.f32 %v1904, %v2016
        %v2018 = vpop.f32.mrf.mxu0
        %v2019 = vadd.f32 %v1906, %v2018
        %v2020 = vpop.f32.mrf.mxu0
        %v2021 = vadd.f32 %v1908, %v2020
        %v2022 = vpop.f32.mrf.mxu0
        %v2023 = vadd.f32 %v1910, %v2022
        %2024 = vmatprep.mubr.bf16.mxu0 %v642
        %2025 = vmatmul.mubr.bf16.gmra.mxu0 %v641
        %v2026 = vpop.f32.mrf.mxu0
        %v2027 = vadd.f32 %v1914, %v2026
        %v2028 = vpop.f32.mrf.mxu0
        %v2029 = vadd.f32 %v1916, %v2028
        %v2030 = vpop.f32.mrf.mxu0
        %v2031 = vadd.f32 %v1918, %v2030
        %v2032 = vpop.f32.mrf.mxu0
        %v2033 = vadd.f32 %v1920, %v2032
        %2034 = vmatprep.mubr.bf16.mxu0 %v654
        %2035 = vmatmul.mubr.bf16.gmra.mxu0 %v653
        %v2036 = vpop.f32.mrf.mxu0
        %v2037 = vadd.f32 %v1924, %v2036
        %v2038 = vpop.f32.mrf.mxu0
        %v2039 = vadd.f32 %v1926, %v2038
        %v2040 = vpop.f32.mrf.mxu0
        %v2041 = vadd.f32 %v1928, %v2040
        %v2042 = vpop.f32.mrf.mxu0
        %v2043 = vadd.f32 %v1930, %v2042
        %2044 = vmatprep.mubr.bf16.mxu0 %v666
        %2045 = vmatmul.mubr.bf16.gmra.mxu0 %v665
        %v2046 = vpop.f32.mrf.mxu0
        %v2047 = vadd.f32 %v1934, %v2046
        %v2048 = vpop.f32.mrf.mxu0
        %v2049 = vadd.f32 %v1936, %v2048
        %v2050 = vpop.f32.mrf.mxu0
        %v2051 = vadd.f32 %v1938, %v2050
        %v2052 = vpop.f32.mrf.mxu0
        %v2053 = vadd.f32 %v1940, %v2052
        %2054 = vmatprep.mubr.bf16.mxu0 %v678
        %2055 = vmatmul.mubr.bf16.gmra.mxu0 %v677
        %v2056 = vpop.f32.mrf.mxu0
        %v2057 = vadd.f32 %v1944, %v2056
        %v2058 = vpop.f32.mrf.mxu0
        %v2059 = vadd.f32 %v1946, %v2058
        %v2060 = vpop.f32.mrf.mxu0
        %v2061 = vadd.f32 %v1948, %v2060
        %v2062 = vpop.f32.mrf.mxu0
        %v2063 = vadd.f32 %v1950, %v2062
        %2064 = vdwg.mxu0
        %2065 = vmatprep.subr.bf16.mxu0 %v1534
        %2066 = vmatpush1.bf16.msra.mxu0 %v1533
        %2067 = vmatprep.subr.bf16.mxu0 %v1532
        %2068 = vmatpush1.bf16.msra.mxu0 %v1531
        %2069 = vmatprep.subr.bf16.mxu0 %v1530
        %2070 = vmatpush1.bf16.msra.mxu0 %v1529
        %2071 = vmatprep.subr.bf16.mxu0 %v1528
        %2072 = vmatpush1.bf16.msra.mxu0 %v1527
        %2073 = vmatprep.subr.bf16.mxu0 %v1526
        %2074 = vmatpush1.bf16.msra.mxu0 %v1525
        %2075 = vmatprep.subr.bf16.mxu0 %v1524
        %2076 = vmatpush1.bf16.msra.mxu0 %v1523
        %2077 = vmatprep.subr.bf16.mxu0 %v1522
        %2078 = vmatpush1.bf16.msra.mxu0 %v1521
        %2079 = vmatprep.subr.bf16.mxu0 %v1520
        %2080 = vmatpush1.bf16.msra.mxu0 %v1519
        %2081 = vmatprep.subr.bf16.mxu0 %v1550
        %2082 = vmatpush2.bf16.msra.mxu0 %v1549
        %2083 = vmatprep.subr.bf16.mxu0 %v1548
        %2084 = vmatpush2.bf16.msra.mxu0 %v1547
        %2085 = vmatprep.subr.bf16.mxu0 %v1546
        %2086 = vmatpush2.bf16.msra.mxu0 %v1545
        %2087 = vmatprep.subr.bf16.mxu0 %v1544
        %2088 = vmatpush2.bf16.msra.mxu0 %v1543
        %2089 = vmatprep.subr.bf16.mxu0 %v1542
        %2090 = vmatpush2.bf16.msra.mxu0 %v1541
        %2091 = vmatprep.subr.bf16.mxu0 %v1540
        %2092 = vmatpush2.bf16.msra.mxu0 %v1539
        %2093 = vmatprep.subr.bf16.mxu0 %v1538
        %2094 = vmatpush2.bf16.msra.mxu0 %v1537
        %2095 = vmatprep.subr.bf16.mxu0 %v1536
        %2096 = vmatpush2.bf16.msra.mxu0 %v1535
        %2097 = vmatprep.mubr.bf16.mxu0 %v596
        %2098 = vmatmul.mubr.bf16.gmra.mxu0 %v595
        %v2099 = vpop.f32.mrf.mxu0
        %v2100 = vadd.f32 %v1987, %v2099
        %v2101 = vpop.f32.mrf.mxu0
        %v2102 = vadd.f32 %v1989, %v2101
        %v2103 = vpop.f32.mrf.mxu0
        %v2104 = vadd.f32 %v1991, %v2103
        %v2105 = vpop.f32.mrf.mxu0
        %v2106 = vadd.f32 %v1993, %v2105
        %2107 = vmatprep.mubr.bf16.mxu0 %v608
        %2108 = vmatmul.mubr.bf16.gmra.mxu0 %v607
        %v2109 = vpop.f32.mrf.mxu0
        %v2110 = vadd.f32 %v1997, %v2109
        %v2111 = vpop.f32.mrf.mxu0
        %v2112 = vadd.f32 %v1999, %v2111
        %v2113 = vpop.f32.mrf.mxu0
        %v2114 = vadd.f32 %v2001, %v2113
        %v2115 = vpop.f32.mrf.mxu0
        %v2116 = vadd.f32 %v2003, %v2115
        %2117 = vmatprep.mubr.bf16.mxu0 %v620
        %2118 = vmatmul.mubr.bf16.gmra.mxu0 %v619
        %v2119 = vpop.f32.mrf.mxu0
        %v2120 = vadd.f32 %v2007, %v2119
        %v2121 = vpop.f32.mrf.mxu0
        %v2122 = vadd.f32 %v2009, %v2121
        %v2123 = vpop.f32.mrf.mxu0
        %v2124 = vadd.f32 %v2011, %v2123
        %v2125 = vpop.f32.mrf.mxu0
        %v2126 = vadd.f32 %v2013, %v2125
        %2127 = vmatprep.mubr.bf16.mxu0 %v632
        %2128 = vmatmul.mubr.bf16.gmra.mxu0 %v631
        %v2129 = vpop.f32.mrf.mxu0
        %v2130 = vadd.f32 %v2017, %v2129
        %v2131 = vpop.f32.mrf.mxu0
        %v2132 = vadd.f32 %v2019, %v2131
        %v2133 = vpop.f32.mrf.mxu0
        %v2134 = vadd.f32 %v2021, %v2133
        %v2135 = vpop.f32.mrf.mxu0
        %v2136 = vadd.f32 %v2023, %v2135
        %2137 = vmatprep.mubr.bf16.mxu0 %v644
        %2138 = vmatmul.mubr.bf16.gmra.mxu0 %v643
        %v2139 = vpop.f32.mrf.mxu0
        %v2140 = vadd.f32 %v2027, %v2139
        %v2141 = vpop.f32.mrf.mxu0
        %v2142 = vadd.f32 %v2029, %v2141
        %v2143 = vpop.f32.mrf.mxu0
        %v2144 = vadd.f32 %v2031, %v2143
        %v2145 = vpop.f32.mrf.mxu0
        %v2146 = vadd.f32 %v2033, %v2145
        %2147 = vmatprep.mubr.bf16.mxu0 %v656
        %2148 = vmatmul.mubr.bf16.gmra.mxu0 %v655
        %v2149 = vpop.f32.mrf.mxu0
        %v2150 = vadd.f32 %v2037, %v2149
        %v2151 = vpop.f32.mrf.mxu0
        %v2152 = vadd.f32 %v2039, %v2151
        %v2153 = vpop.f32.mrf.mxu0
        %v2154 = vadd.f32 %v2041, %v2153
        %v2155 = vpop.f32.mrf.mxu0
        %v2156 = vadd.f32 %v2043, %v2155
        %2157 = vmatprep.mubr.bf16.mxu0 %v668
        %2158 = vmatmul.mubr.bf16.gmra.mxu0 %v667
        %v2159 = vpop.f32.mrf.mxu0
        %v2160 = vadd.f32 %v2047, %v2159
        %v2161 = vpop.f32.mrf.mxu0
        %v2162 = vadd.f32 %v2049, %v2161
        %v2163 = vpop.f32.mrf.mxu0
        %v2164 = vadd.f32 %v2051, %v2163
        %v2165 = vpop.f32.mrf.mxu0
        %v2166 = vadd.f32 %v2053, %v2165
        %2167 = vmatprep.mubr.bf16.mxu0 %v680
        %2168 = vmatmul.mubr.bf16.gmra.mxu0 %v679
        %v2169 = vpop.f32.mrf.mxu0
        %v2170 = vadd.f32 %v2057, %v2169
        %v2171 = vpop.f32.mrf.mxu0
        %v2172 = vadd.f32 %v2059, %v2171
        %v2173 = vpop.f32.mrf.mxu0
        %v2174 = vadd.f32 %v2061, %v2173
        %v2175 = vpop.f32.mrf.mxu0
        %v2176 = vadd.f32 %v2063, %v2175
        %2177 = vdwg.mxu0
        %2178 = vmatprep.subr.bf16.mxu0 %v1566
        %2179 = vmatpush1.bf16.msra.mxu0 %v1565
        %2180 = vmatprep.subr.bf16.mxu0 %v1564
        %2181 = vmatpush1.bf16.msra.mxu0 %v1563
        %2182 = vmatprep.subr.bf16.mxu0 %v1562
        %2183 = vmatpush1.bf16.msra.mxu0 %v1561
        %2184 = vmatprep.subr.bf16.mxu0 %v1560
        %2185 = vmatpush1.bf16.msra.mxu0 %v1559
        %2186 = vmatprep.subr.bf16.mxu0 %v1558
        %2187 = vmatpush1.bf16.msra.mxu0 %v1557
        %2188 = vmatprep.subr.bf16.mxu0 %v1556
        %2189 = vmatpush1.bf16.msra.mxu0 %v1555
        %2190 = vmatprep.subr.bf16.mxu0 %v1554
        %2191 = vmatpush1.bf16.msra.mxu0 %v1553
        %2192 = vmatprep.subr.bf16.mxu0 %v1552
        %2193 = vmatpush1.bf16.msra.mxu0 %v1551
        %2194 = vmatprep.subr.bf16.mxu0 %v1582
        %2195 = vmatpush2.bf16.msra.mxu0 %v1581
        %2196 = vmatprep.subr.bf16.mxu0 %v1580
        %2197 = vmatpush2.bf16.msra.mxu0 %v1579
        %2198 = vmatprep.subr.bf16.mxu0 %v1578
        %2199 = vmatpush2.bf16.msra.mxu0 %v1577
        %2200 = vmatprep.subr.bf16.mxu0 %v1576
        %2201 = vmatpush2.bf16.msra.mxu0 %v1575
        %2202 = vmatprep.subr.bf16.mxu0 %v1574
        %2203 = vmatpush2.bf16.msra.mxu0 %v1573
        %2204 = vmatprep.subr.bf16.mxu0 %v1572
        %2205 = vmatpush2.bf16.msra.mxu0 %v1571
        %2206 = vmatprep.subr.bf16.mxu0 %v1570
        %2207 = vmatpush2.bf16.msra.mxu0 %v1569
        %2208 = vmatprep.subr.bf16.mxu0 %v1568
        %2209 = vmatpush2.bf16.msra.mxu0 %v1567
        %2210 = vmatprep.mubr.bf16.mxu0 %v598
        %2211 = vmatmul.mubr.bf16.gmra.mxu0 %v597
        %v2212 = vpop.f32.mrf.mxu0
        %v2213 = vadd.f32 %v2100, %v2212
        %v2214 = vpop.f32.mrf.mxu0
        %v2215 = vadd.f32 %v2102, %v2214
        %v2216 = vpop.f32.mrf.mxu0
        %v2217 = vadd.f32 %v2104, %v2216
        %v2218 = vpop.f32.mrf.mxu0
        %v2219 = vadd.f32 %v2106, %v2218
        %2220 = vmatprep.mubr.bf16.mxu0 %v610
        %2221 = vmatmul.mubr.bf16.gmra.mxu0 %v609
        %v2222 = vpop.f32.mrf.mxu0
        %v2223 = vadd.f32 %v2110, %v2222
        %v2224 = vpop.f32.mrf.mxu0
        %v2225 = vadd.f32 %v2112, %v2224
        %v2226 = vpop.f32.mrf.mxu0
        %v2227 = vadd.f32 %v2114, %v2226
        %v2228 = vpop.f32.mrf.mxu0
        %v2229 = vadd.f32 %v2116, %v2228
        %2230 = vmatprep.mubr.bf16.mxu0 %v622
        %2231 = vmatmul.mubr.bf16.gmra.mxu0 %v621
        %v2232 = vpop.f32.mrf.mxu0
        %v2233 = vadd.f32 %v2120, %v2232
        %v2234 = vpop.f32.mrf.mxu0
        %v2235 = vadd.f32 %v2122, %v2234
        %v2236 = vpop.f32.mrf.mxu0
        %v2237 = vadd.f32 %v2124, %v2236
        %v2238 = vpop.f32.mrf.mxu0
        %v2239 = vadd.f32 %v2126, %v2238
        %2240 = vmatprep.mubr.bf16.mxu0 %v634
        %2241 = vmatmul.mubr.bf16.gmra.mxu0 %v633
        %v2242 = vpop.f32.mrf.mxu0
        %v2243 = vadd.f32 %v2130, %v2242
        %v2244 = vpop.f32.mrf.mxu0
        %v2245 = vadd.f32 %v2132, %v2244
        %v2246 = vpop.f32.mrf.mxu0
        %v2247 = vadd.f32 %v2134, %v2246
        %v2248 = vpop.f32.mrf.mxu0
        %v2249 = vadd.f32 %v2136, %v2248
        %2250 = vmatprep.mubr.bf16.mxu0 %v646
        %2251 = vmatmul.mubr.bf16.gmra.mxu0 %v645
        %v2252 = vpop.f32.mrf.mxu0
        %v2253 = vadd.f32 %v2140, %v2252
        %v2254 = vpop.f32.mrf.mxu0
        %v2255 = vadd.f32 %v2142, %v2254
        %v2256 = vpop.f32.mrf.mxu0
        %v2257 = vadd.f32 %v2144, %v2256
        %v2258 = vpop.f32.mrf.mxu0
        %v2259 = vadd.f32 %v2146, %v2258
        %2260 = vmatprep.mubr.bf16.mxu0 %v658
        %2261 = vmatmul.mubr.bf16.gmra.mxu0 %v657
        %v2262 = vpop.f32.mrf.mxu0
        %v2263 = vadd.f32 %v2150, %v2262
        %v2264 = vpop.f32.mrf.mxu0
        %v2265 = vadd.f32 %v2152, %v2264
        %v2266 = vpop.f32.mrf.mxu0
        %v2267 = vadd.f32 %v2154, %v2266
        %v2268 = vpop.f32.mrf.mxu0
        %v2269 = vadd.f32 %v2156, %v2268
        %2270 = vmatprep.mubr.bf16.mxu0 %v670
        %2271 = vmatmul.mubr.bf16.gmra.mxu0 %v669
        %v2272 = vpop.f32.mrf.mxu0
        %v2273 = vadd.f32 %v2160, %v2272
        %v2274 = vpop.f32.mrf.mxu0
        %v2275 = vadd.f32 %v2162, %v2274
        %v2276 = vpop.f32.mrf.mxu0
        %v2277 = vadd.f32 %v2164, %v2276
        %v2278 = vpop.f32.mrf.mxu0
        %v2279 = vadd.f32 %v2166, %v2278
        %2280 = vmatprep.mubr.bf16.mxu0 %v682
        %2281 = vmatmul.mubr.bf16.gmra.mxu0 %v681
        %v2282 = vpop.f32.mrf.mxu0
        %v2283 = vadd.f32 %v2170, %v2282
        %v2284 = vpop.f32.mrf.mxu0
        %v2285 = vadd.f32 %v2172, %v2284
        %v2286 = vpop.f32.mrf.mxu0
        %v2287 = vadd.f32 %v2174, %v2286
        %v2288 = vpop.f32.mrf.mxu0
        %v2289 = vadd.f32 %v2176, %v2288
        %2290 = vdwg.mxu0
        %2291 = vmatprep.subr.bf16.mxu0 %v1598
        %2292 = vmatpush1.bf16.msra.mxu0 %v1597
        %2293 = vmatprep.subr.bf16.mxu0 %v1596
        %2294 = vmatpush1.bf16.msra.mxu0 %v1595
        %2295 = vmatprep.subr.bf16.mxu0 %v1594
        %2296 = vmatpush1.bf16.msra.mxu0 %v1593
        %2297 = vmatprep.subr.bf16.mxu0 %v1592
        %2298 = vmatpush1.bf16.msra.mxu0 %v1591
        %2299 = vmatprep.subr.bf16.mxu0 %v1590
        %2300 = vmatpush1.bf16.msra.mxu0 %v1589
        %2301 = vmatprep.subr.bf16.mxu0 %v1588
        %2302 = vmatpush1.bf16.msra.mxu0 %v1587
        %2303 = vmatprep.subr.bf16.mxu0 %v1586
        %2304 = vmatpush1.bf16.msra.mxu0 %v1585
        %2305 = vmatprep.subr.bf16.mxu0 %v1584
        %2306 = vmatpush1.bf16.msra.mxu0 %v1583
        %2307 = vmatprep.subr.bf16.mxu0 %v1614
        %2308 = vmatpush2.bf16.msra.mxu0 %v1613
        %2309 = vmatprep.subr.bf16.mxu0 %v1612
        %2310 = vmatpush2.bf16.msra.mxu0 %v1611
        %2311 = vmatprep.subr.bf16.mxu0 %v1610
        %2312 = vmatpush2.bf16.msra.mxu0 %v1609
        %2313 = vmatprep.subr.bf16.mxu0 %v1608
        %2314 = vmatpush2.bf16.msra.mxu0 %v1607
        %2315 = vmatprep.subr.bf16.mxu0 %v1606
        %2316 = vmatpush2.bf16.msra.mxu0 %v1605
        %2317 = vmatprep.subr.bf16.mxu0 %v1604
        %2318 = vmatpush2.bf16.msra.mxu0 %v1603
        %2319 = vmatprep.subr.bf16.mxu0 %v1602
        %2320 = vmatpush2.bf16.msra.mxu0 %v1601
        %2321 = vmatprep.subr.bf16.mxu0 %v1600
        %2322 = vmatpush2.bf16.msra.mxu0 %v1599
        %2323 = vmatprep.mubr.bf16.mxu0 %v600
        %2324 = vmatmul.mubr.bf16.gmra.mxu0 %v599
        %v2325 = vpop.f32.mrf.mxu0
        %v2326 = vadd.f32 %v2213, %v2325
        %v2327 = vpop.f32.mrf.mxu0
        %v2328 = vadd.f32 %v2215, %v2327
        %v2329 = vpop.f32.mrf.mxu0
        %v2330 = vadd.f32 %v2217, %v2329
        %v2331 = vpop.f32.mrf.mxu0
        %v2332 = vadd.f32 %v2219, %v2331
        %2333 = vmatprep.mubr.bf16.mxu0 %v612
        %2334 = vmatmul.mubr.bf16.gmra.mxu0 %v611
        %v2335 = vpop.f32.mrf.mxu0
        %v2336 = vadd.f32 %v2223, %v2335
        %v2337 = vpop.f32.mrf.mxu0
        %v2338 = vadd.f32 %v2225, %v2337
        %v2339 = vpop.f32.mrf.mxu0
        %v2340 = vadd.f32 %v2227, %v2339
        %v2341 = vpop.f32.mrf.mxu0
        %v2342 = vadd.f32 %v2229, %v2341
        %2343 = vmatprep.mubr.bf16.mxu0 %v624
        %2344 = vmatmul.mubr.bf16.gmra.mxu0 %v623
        %v2345 = vpop.f32.mrf.mxu0
        %v2346 = vadd.f32 %v2233, %v2345
        %v2347 = vpop.f32.mrf.mxu0
        %v2348 = vadd.f32 %v2235, %v2347
        %v2349 = vpop.f32.mrf.mxu0
        %v2350 = vadd.f32 %v2237, %v2349
        %v2351 = vpop.f32.mrf.mxu0
        %v2352 = vadd.f32 %v2239, %v2351
        %2353 = vmatprep.mubr.bf16.mxu0 %v636
        %2354 = vmatmul.mubr.bf16.gmra.mxu0 %v635
        %v2355 = vpop.f32.mrf.mxu0
        %v2356 = vadd.f32 %v2243, %v2355
        %v2357 = vpop.f32.mrf.mxu0
        %v2358 = vadd.f32 %v2245, %v2357
        %v2359 = vpop.f32.mrf.mxu0
        %v2360 = vadd.f32 %v2247, %v2359
        %v2361 = vpop.f32.mrf.mxu0
        %v2362 = vadd.f32 %v2249, %v2361
        %2363 = vmatprep.mubr.bf16.mxu0 %v648
        %2364 = vmatmul.mubr.bf16.gmra.mxu0 %v647
        %v2365 = vpop.f32.mrf.mxu0
        %v2366 = vadd.f32 %v2253, %v2365
        %v2367 = vpop.f32.mrf.mxu0
        %v2368 = vadd.f32 %v2255, %v2367
        %v2369 = vpop.f32.mrf.mxu0
        %v2370 = vadd.f32 %v2257, %v2369
        %v2371 = vpop.f32.mrf.mxu0
        %v2372 = vadd.f32 %v2259, %v2371
        %2373 = vmatprep.mubr.bf16.mxu0 %v660
        %2374 = vmatmul.mubr.bf16.gmra.mxu0 %v659
        %v2375 = vpop.f32.mrf.mxu0
        %v2376 = vadd.f32 %v2263, %v2375
        %v2377 = vpop.f32.mrf.mxu0
        %v2378 = vadd.f32 %v2265, %v2377
        %v2379 = vpop.f32.mrf.mxu0
        %v2380 = vadd.f32 %v2267, %v2379
        %v2381 = vpop.f32.mrf.mxu0
        %v2382 = vadd.f32 %v2269, %v2381
        %2383 = vmatprep.mubr.bf16.mxu0 %v672
        %2384 = vmatmul.mubr.bf16.gmra.mxu0 %v671
        %v2385 = vpop.f32.mrf.mxu0
        %v2386 = vadd.f32 %v2273, %v2385
        %v2387 = vpop.f32.mrf.mxu0
        %v2388 = vadd.f32 %v2275, %v2387
        %v2389 = vpop.f32.mrf.mxu0
        %v2390 = vadd.f32 %v2277, %v2389
        %v2391 = vpop.f32.mrf.mxu0
        %v2392 = vadd.f32 %v2279, %v2391
        %2393 = vmatprep.mubr.bf16.mxu0 %v684
        %2394 = vmatmul.mubr.bf16.gmra.mxu0 %v683
        %v2395 = vpop.f32.mrf.mxu0
        %v2396 = vadd.f32 %v2283, %v2395
        %v2397 = vpop.f32.mrf.mxu0
        %v2398 = vadd.f32 %v2285, %v2397
        %v2399 = vpop.f32.mrf.mxu0
        %v2400 = vadd.f32 %v2287, %v2399
        %v2401 = vpop.f32.mrf.mxu0
        %v2402 = vadd.f32 %v2289, %v2401
        %2403 = vdwg.mxu0
        %2404 = vmatprep.subr.bf16.mxu0 %v1630
        %2405 = vmatpush1.bf16.msra.mxu0 %v1629
        %2406 = vmatprep.subr.bf16.mxu0 %v1628
        %2407 = vmatpush1.bf16.msra.mxu0 %v1627
        %2408 = vmatprep.subr.bf16.mxu0 %v1626
        %2409 = vmatpush1.bf16.msra.mxu0 %v1625
        %2410 = vmatprep.subr.bf16.mxu0 %v1624
        %2411 = vmatpush1.bf16.msra.mxu0 %v1623
        %2412 = vmatprep.subr.bf16.mxu0 %v1622
        %2413 = vmatpush1.bf16.msra.mxu0 %v1621
        %2414 = vmatprep.subr.bf16.mxu0 %v1620
        %2415 = vmatpush1.bf16.msra.mxu0 %v1619
        %2416 = vmatprep.subr.bf16.mxu0 %v1618
        %2417 = vmatpush1.bf16.msra.mxu0 %v1617
        %2418 = vmatprep.subr.bf16.mxu0 %v1616
        %2419 = vmatpush1.bf16.msra.mxu0 %v1615
        %2420 = vmatprep.subr.bf16.mxu0 %v1646
        %2421 = vmatpush2.bf16.msra.mxu0 %v1645
        %2422 = vmatprep.subr.bf16.mxu0 %v1644
        %2423 = vmatpush2.bf16.msra.mxu0 %v1643
        %2424 = vmatprep.subr.bf16.mxu0 %v1642
        %2425 = vmatpush2.bf16.msra.mxu0 %v1641
        %2426 = vmatprep.subr.bf16.mxu0 %v1640
        %2427 = vmatpush2.bf16.msra.mxu0 %v1639
        %2428 = vmatprep.subr.bf16.mxu0 %v1638
        %2429 = vmatpush2.bf16.msra.mxu0 %v1637
        %2430 = vmatprep.subr.bf16.mxu0 %v1636
        %2431 = vmatpush2.bf16.msra.mxu0 %v1635
        %2432 = vmatprep.subr.bf16.mxu0 %v1634
        %2433 = vmatpush2.bf16.msra.mxu0 %v1633
        %2434 = vmatprep.subr.bf16.mxu0 %v1632
        %2435 = vmatpush2.bf16.msra.mxu0 %v1631
        %2436 = vmatprep.mubr.bf16.mxu0 %v602
        %2437 = vmatmul.mubr.bf16.gmra.mxu0 %v601
        %v2438 = vpop.f32.mrf.mxu0
        %v2439 = vadd.f32 %v2326, %v2438
        %v2440 = vpop.f32.mrf.mxu0
        %v2441 = vadd.f32 %v2328, %v2440
        %v2442 = vpop.f32.mrf.mxu0
        %v2443 = vadd.f32 %v2330, %v2442
        %v2444 = vpop.f32.mrf.mxu0
        %v2445 = vadd.f32 %v2332, %v2444
        %2446 = vmatprep.mubr.bf16.mxu0 %v614
        %2447 = vmatmul.mubr.bf16.gmra.mxu0 %v613
        %v2448 = vpop.f32.mrf.mxu0
        %v2449 = vadd.f32 %v2336, %v2448
        %v2450 = vpop.f32.mrf.mxu0
        %v2451 = vadd.f32 %v2338, %v2450
        %v2452 = vpop.f32.mrf.mxu0
        %v2453 = vadd.f32 %v2340, %v2452
        %v2454 = vpop.f32.mrf.mxu0
        %v2455 = vadd.f32 %v2342, %v2454
        %2456 = vmatprep.mubr.bf16.mxu0 %v626
        %2457 = vmatmul.mubr.bf16.gmra.mxu0 %v625
        %v2458 = vpop.f32.mrf.mxu0
        %v2459 = vadd.f32 %v2346, %v2458
        %v2460 = vpop.f32.mrf.mxu0
        %v2461 = vadd.f32 %v2348, %v2460
        %v2462 = vpop.f32.mrf.mxu0
        %v2463 = vadd.f32 %v2350, %v2462
        %v2464 = vpop.f32.mrf.mxu0
        %v2465 = vadd.f32 %v2352, %v2464
        %2466 = vmatprep.mubr.bf16.mxu0 %v638
        %2467 = vmatmul.mubr.bf16.gmra.mxu0 %v637
        %v2468 = vpop.f32.mrf.mxu0
        %v2469 = vadd.f32 %v2356, %v2468
        %v2470 = vpop.f32.mrf.mxu0
        %v2471 = vadd.f32 %v2358, %v2470
        %v2472 = vpop.f32.mrf.mxu0
        %v2473 = vadd.f32 %v2360, %v2472
        %v2474 = vpop.f32.mrf.mxu0
        %v2475 = vadd.f32 %v2362, %v2474
        %2476 = vmatprep.mubr.bf16.mxu0 %v650
        %2477 = vmatmul.mubr.bf16.gmra.mxu0 %v649
        %v2478 = vpop.f32.mrf.mxu0
        %v2479 = vadd.f32 %v2366, %v2478
        %v2480 = vpop.f32.mrf.mxu0
        %v2481 = vadd.f32 %v2368, %v2480
        %v2482 = vpop.f32.mrf.mxu0
        %v2483 = vadd.f32 %v2370, %v2482
        %v2484 = vpop.f32.mrf.mxu0
        %v2485 = vadd.f32 %v2372, %v2484
        %2486 = vmatprep.mubr.bf16.mxu0 %v662
        %2487 = vmatmul.mubr.bf16.gmra.mxu0 %v661
        %v2488 = vpop.f32.mrf.mxu0
        %v2489 = vadd.f32 %v2376, %v2488
        %v2490 = vpop.f32.mrf.mxu0
        %v2491 = vadd.f32 %v2378, %v2490
        %v2492 = vpop.f32.mrf.mxu0
        %v2493 = vadd.f32 %v2380, %v2492
        %v2494 = vpop.f32.mrf.mxu0
        %v2495 = vadd.f32 %v2382, %v2494
        %2496 = vmatprep.mubr.bf16.mxu0 %v674
        %2497 = vmatmul.mubr.bf16.gmra.mxu0 %v673
        %v2498 = vpop.f32.mrf.mxu0
        %v2499 = vadd.f32 %v2386, %v2498
        %v2500 = vpop.f32.mrf.mxu0
        %v2501 = vadd.f32 %v2388, %v2500
        %v2502 = vpop.f32.mrf.mxu0
        %v2503 = vadd.f32 %v2390, %v2502
        %v2504 = vpop.f32.mrf.mxu0
        %v2505 = vadd.f32 %v2392, %v2504
        %2506 = vmatprep.mubr.bf16.mxu0 %v686
        %2507 = vmatmul.mubr.bf16.gmra.mxu0 %v685
        %v2508 = vpop.f32.mrf.mxu0
        %v2509 = vadd.f32 %v2396, %v2508
        %v2510 = vpop.f32.mrf.mxu0
        %v2511 = vadd.f32 %v2398, %v2510
        %v2512 = vpop.f32.mrf.mxu0
        %v2513 = vadd.f32 %v2400, %v2512
        %v2514 = vpop.f32.mrf.mxu0
        %v2515 = vadd.f32 %v2402, %v2514
        %2516 = vdwg.mxu0
        %v2517 = vmax.f32 %v2439, 0.0
        %v2518 = vmax.f32 %v2441, 0.0
        %v2519 = vmax.f32 %v2443, 0.0
        %v2520 = vmax.f32 %v2445, 0.0
        %v2521 = vmax.f32 %v2449, 0.0
        %v2522 = vmax.f32 %v2451, 0.0
        %v2523 = vmax.f32 %v2453, 0.0
        %v2524 = vmax.f32 %v2455, 0.0
        %v2525 = vmax.f32 %v2459, 0.0
        %v2526 = vmax.f32 %v2461, 0.0
        %v2527 = vmax.f32 %v2463, 0.0
        %v2528 = vmax.f32 %v2465, 0.0
        %v2529 = vmax.f32 %v2469, 0.0
        %v2530 = vmax.f32 %v2471, 0.0
        %v2531 = vmax.f32 %v2473, 0.0
        %v2532 = vmax.f32 %v2475, 0.0
        %v2533 = vmax.f32 %v2479, 0.0
        %v2534 = vmax.f32 %v2481, 0.0
        %v2535 = vmax.f32 %v2483, 0.0
        %v2536 = vmax.f32 %v2485, 0.0
        %v2537 = vmax.f32 %v2489, 0.0
        %v2538 = vmax.f32 %v2491, 0.0
        %v2539 = vmax.f32 %v2493, 0.0
        %v2540 = vmax.f32 %v2495, 0.0
        %v2541 = vmax.f32 %v2499, 0.0
        %v2542 = vmax.f32 %v2501, 0.0
        %v2543 = vmax.f32 %v2503, 0.0
        %v2544 = vmax.f32 %v2505, 0.0
        %v2545 = vmax.f32 %v2509, 0.0
        %v2546 = vmax.f32 %v2511, 0.0
        %v2547 = vmax.f32 %v2513, 0.0
        %v2548 = vmax.f32 %v2515, 0.0
        %v2549 = vld [vmem:[%s2] sm:$0xff]
        %v2550 = vld [vmem:[%s2 + $0x8] sm:$0xff]
        %v2551 = vld [vmem:[%s2 + $0x10] sm:$0xff]
        %v2552 = vld [vmem:[%s2 + $0x18] sm:$0xff]
        %v2553 = vld [vmem:[%s2 + $0x20] sm:$0xff]
        %v2554 = vld [vmem:[%s2 + $0x28] sm:$0xff]
        %v2555 = vld [vmem:[%s2 + $0x30] sm:$0xff]
        %v2556 = vld [vmem:[%s2 + $0x38] sm:$0xff]
        %v2557 = vld [vmem:[%s2 + $0x40] sm:$0xff]
        %v2558 = vld [vmem:[%s2 + $0x48] sm:$0xff]
        %v2559 = vld [vmem:[%s2 + $0x50] sm:$0xff]
        %v2560 = vld [vmem:[%s2 + $0x58] sm:$0xff]
        %v2561 = vld [vmem:[%s2 + $0x60] sm:$0xff]
        %v2562 = vld [vmem:[%s2 + $0x68] sm:$0xff]
        %v2563 = vld [vmem:[%s2 + $0x70] sm:$0xff]
        %v2564 = vld [vmem:[%s2 + $0x78] sm:$0xff]
        %v2565 = vld [vmem:[%s2 + $0x80] sm:$0xff]
        %v2566 = vld [vmem:[%s2 + $0x88] sm:$0xff]
        %v2567 = vld [vmem:[%s2 + $0x90] sm:$0xff]
        %v2568 = vld [vmem:[%s2 + $0x98] sm:$0xff]
        %v2569 = vld [vmem:[%s2 + $0xa0] sm:$0xff]
        %v2570 = vld [vmem:[%s2 + $0xa8] sm:$0xff]
        %v2571 = vld [vmem:[%s2 + $0xb0] sm:$0xff]
        %v2572 = vld [vmem:[%s2 + $0xb8] sm:$0xff]
        %v2573 = vld [vmem:[%s2 + $0xc0] sm:$0xff]
        %v2574 = vld [vmem:[%s2 + $0xc8] sm:$0xff]
        %v2575 = vld [vmem:[%s2 + $0xd0] sm:$0xff]
        %v2576 = vld [vmem:[%s2 + $0xd8] sm:$0xff]
        %v2577 = vld [vmem:[%s2 + $0xe0] sm:$0xff]
        %v2578 = vld [vmem:[%s2 + $0xe8] sm:$0xff]
        %v2579 = vld [vmem:[%s2 + $0xf0] sm:$0xff]
        %v2580 = vld [vmem:[%s2 + $0xf8] sm:$0xff]
        %v2581 = vld [vmem:[%s2 + $0x100] sm:$0xff]
        %v2582 = vld [vmem:[%s2 + $0x108] sm:$0xff]
        %v2583 = vld [vmem:[%s2 + $0x110] sm:$0xff]
        %v2584 = vld [vmem:[%s2 + $0x118] sm:$0xff]
        %v2585 = vld [vmem:[%s2 + $0x120] sm:$0xff]
        %v2586 = vld [vmem:[%s2 + $0x128] sm:$0xff]
        %v2587 = vld [vmem:[%s2 + $0x130] sm:$0xff]
        %v2588 = vld [vmem:[%s2 + $0x138] sm:$0xff]
        %v2589 = vld [vmem:[%s2 + $0x140] sm:$0xff]
        %v2590 = vld [vmem:[%s2 + $0x148] sm:$0xff]
        %v2591 = vld [vmem:[%s2 + $0x150] sm:$0xff]
        %v2592 = vld [vmem:[%s2 + $0x158] sm:$0xff]
        %v2593 = vld [vmem:[%s2 + $0x160] sm:$0xff]
        %v2594 = vld [vmem:[%s2 + $0x168] sm:$0xff]
        %v2595 = vld [vmem:[%s2 + $0x170] sm:$0xff]
        %v2596 = vld [vmem:[%s2 + $0x178] sm:$0xff]
        %v2597 = vld [vmem:[%s2 + $0x180] sm:$0xff]
        %v2598 = vld [vmem:[%s2 + $0x188] sm:$0xff]
        %v2599 = vld [vmem:[%s2 + $0x190] sm:$0xff]
        %v2600 = vld [vmem:[%s2 + $0x198] sm:$0xff]
        %v2601 = vld [vmem:[%s2 + $0x1a0] sm:$0xff]
        %v2602 = vld [vmem:[%s2 + $0x1a8] sm:$0xff]
        %v2603 = vld [vmem:[%s2 + $0x1b0] sm:$0xff]
        %v2604 = vld [vmem:[%s2 + $0x1b8] sm:$0xff]
        %v2605 = vld [vmem:[%s2 + $0x1c0] sm:$0xff]
        %v2606 = vld [vmem:[%s2 + $0x1c8] sm:$0xff]
        %v2607 = vld [vmem:[%s2 + $0x1d0] sm:$0xff]
        %v2608 = vld [vmem:[%s2 + $0x1d8] sm:$0xff]
        %v2609 = vld [vmem:[%s2 + $0x1e0] sm:$0xff]
        %v2610 = vld [vmem:[%s2 + $0x1e8] sm:$0xff]
        %v2611 = vld [vmem:[%s2 + $0x1f0] sm:$0xff]
        %v2612 = vld [vmem:[%s2 + $0x1f8] sm:$0xff]
        %v2613 = vld [vmem:[%s2 + $0x200] sm:$0xff]
        %v2614 = vld [vmem:[%s2 + $0x208] sm:$0xff]
        %v2615 = vld [vmem:[%s2 + $0x210] sm:$0xff]
        %v2616 = vld [vmem:[%s2 + $0x218] sm:$0xff]
        %v2617 = vld [vmem:[%s2 + $0x220] sm:$0xff]
        %v2618 = vld [vmem:[%s2 + $0x228] sm:$0xff]
        %v2619 = vld [vmem:[%s2 + $0x230] sm:$0xff]
        %v2620 = vld [vmem:[%s2 + $0x238] sm:$0xff]
        %v2621 = vld [vmem:[%s2 + $0x240] sm:$0xff]
        %v2622 = vld [vmem:[%s2 + $0x248] sm:$0xff]
        %v2623 = vld [vmem:[%s2 + $0x250] sm:$0xff]
        %v2624 = vld [vmem:[%s2 + $0x258] sm:$0xff]
        %v2625 = vld [vmem:[%s2 + $0x260] sm:$0xff]
        %v2626 = vld [vmem:[%s2 + $0x268] sm:$0xff]
        %v2627 = vld [vmem:[%s2 + $0x270] sm:$0xff]
        %v2628 = vld [vmem:[%s2 + $0x278] sm:$0xff]
        %v2629 = vld [vmem:[%s2 + $0x280] sm:$0xff]
        %v2630 = vld [vmem:[%s2 + $0x288] sm:$0xff]
        %v2631 = vld [vmem:[%s2 + $0x290] sm:$0xff]
        %v2632 = vld [vmem:[%s2 + $0x298] sm:$0xff]
        %v2633 = vld [vmem:[%s2 + $0x2a0] sm:$0xff]
        %v2634 = vld [vmem:[%s2 + $0x2a8] sm:$0xff]
        %v2635 = vld [vmem:[%s2 + $0x2b0] sm:$0xff]
        %v2636 = vld [vmem:[%s2 + $0x2b8] sm:$0xff]
        %v2637 = vld [vmem:[%s2 + $0x2c0] sm:$0xff]
        %v2638 = vld [vmem:[%s2 + $0x2c8] sm:$0xff]
        %v2639 = vld [vmem:[%s2 + $0x2d0] sm:$0xff]
        %v2640 = vld [vmem:[%s2 + $0x2d8] sm:$0xff]
        %v2641 = vld [vmem:[%s2 + $0x2e0] sm:$0xff]
        %v2642 = vld [vmem:[%s2 + $0x2e8] sm:$0xff]
        %v2643 = vld [vmem:[%s2 + $0x2f0] sm:$0xff]
        %v2644 = vld [vmem:[%s2 + $0x2f8] sm:$0xff]
        %v2645 = vld [vmem:[%s2 + $0x300] sm:$0xff]
        %v2646 = vld [vmem:[%s2 + $0x308] sm:$0xff]
        %v2647 = vld [vmem:[%s2 + $0x310] sm:$0xff]
        %v2648 = vld [vmem:[%s2 + $0x318] sm:$0xff]
        %v2649 = vld [vmem:[%s2 + $0x320] sm:$0xff]
        %v2650 = vld [vmem:[%s2 + $0x328] sm:$0xff]
        %v2651 = vld [vmem:[%s2 + $0x330] sm:$0xff]
        %v2652 = vld [vmem:[%s2 + $0x338] sm:$0xff]
        %v2653 = vld [vmem:[%s2 + $0x340] sm:$0xff]
        %v2654 = vld [vmem:[%s2 + $0x348] sm:$0xff]
        %v2655 = vld [vmem:[%s2 + $0x350] sm:$0xff]
        %v2656 = vld [vmem:[%s2 + $0x358] sm:$0xff]
        %v2657 = vld [vmem:[%s2 + $0x360] sm:$0xff]
        %v2658 = vld [vmem:[%s2 + $0x368] sm:$0xff]
        %v2659 = vld [vmem:[%s2 + $0x370] sm:$0xff]
        %v2660 = vld [vmem:[%s2 + $0x378] sm:$0xff]
        %v2661 = vld [vmem:[%s2 + $0x380] sm:$0xff]
        %v2662 = vld [vmem:[%s2 + $0x388] sm:$0xff]
        %v2663 = vld [vmem:[%s2 + $0x390] sm:$0xff]
        %v2664 = vld [vmem:[%s2 + $0x398] sm:$0xff]
        %v2665 = vld [vmem:[%s2 + $0x3a0] sm:$0xff]
        %v2666 = vld [vmem:[%s2 + $0x3a8] sm:$0xff]
        %v2667 = vld [vmem:[%s2 + $0x3b0] sm:$0xff]
        %v2668 = vld [vmem:[%s2 + $0x3b8] sm:$0xff]
        %v2669 = vld [vmem:[%s2 + $0x3c0] sm:$0xff]
        %v2670 = vld [vmem:[%s2 + $0x3c8] sm:$0xff]
        %v2671 = vld [vmem:[%s2 + $0x3d0] sm:$0xff]
        %v2672 = vld [vmem:[%s2 + $0x3d8] sm:$0xff]
        %v2673 = vld [vmem:[%s2 + $0x3e0] sm:$0xff]
        %v2674 = vld [vmem:[%s2 + $0x3e8] sm:$0xff]
        %v2675 = vld [vmem:[%s2 + $0x3f0] sm:$0xff]
        %v2676 = vld [vmem:[%s2 + $0x3f8] sm:$0xff]
        %v2677 = vld [vmem:[%s2 + $0x400] sm:$0xff]
        %v2678 = vld [vmem:[%s2 + $0x408] sm:$0xff]
        %v2679 = vld [vmem:[%s2 + $0x410] sm:$0xff]
        %v2680 = vld [vmem:[%s2 + $0x418] sm:$0xff]
        %v2681 = vld [vmem:[%s2 + $0x420] sm:$0xff]
        %v2682 = vld [vmem:[%s2 + $0x428] sm:$0xff]
        %v2683 = vld [vmem:[%s2 + $0x430] sm:$0xff]
        %v2684 = vld [vmem:[%s2 + $0x438] sm:$0xff]
        %v2685 = vld [vmem:[%s2 + $0x440] sm:$0xff]
        %v2686 = vld [vmem:[%s2 + $0x448] sm:$0xff]
        %v2687 = vld [vmem:[%s2 + $0x450] sm:$0xff]
        %v2688 = vld [vmem:[%s2 + $0x458] sm:$0xff]
        %v2689 = vld [vmem:[%s2 + $0x460] sm:$0xff]
        %v2690 = vld [vmem:[%s2 + $0x468] sm:$0xff]
        %v2691 = vld [vmem:[%s2 + $0x470] sm:$0xff]
        %v2692 = vld [vmem:[%s2 + $0x478] sm:$0xff]
        %v2693 = vld [vmem:[%s2 + $0x480] sm:$0xff]
        %v2694 = vld [vmem:[%s2 + $0x488] sm:$0xff]
        %v2695 = vld [vmem:[%s2 + $0x490] sm:$0xff]
        %v2696 = vld [vmem:[%s2 + $0x498] sm:$0xff]
        %v2697 = vld [vmem:[%s2 + $0x4a0] sm:$0xff]
        %v2698 = vld [vmem:[%s2 + $0x4a8] sm:$0xff]
        %v2699 = vld [vmem:[%s2 + $0x4b0] sm:$0xff]
        %v2700 = vld [vmem:[%s2 + $0x4b8] sm:$0xff]
        %v2701 = vld [vmem:[%s2 + $0x4c0] sm:$0xff]
        %v2702 = vld [vmem:[%s2 + $0x4c8] sm:$0xff]
        %v2703 = vld [vmem:[%s2 + $0x4d0] sm:$0xff]
        %v2704 = vld [vmem:[%s2 + $0x4d8] sm:$0xff]
        %v2705 = vld [vmem:[%s2 + $0x4e0] sm:$0xff]
        %v2706 = vld [vmem:[%s2 + $0x4e8] sm:$0xff]
        %v2707 = vld [vmem:[%s2 + $0x4f0] sm:$0xff]
        %v2708 = vld [vmem:[%s2 + $0x4f8] sm:$0xff]
        %v2709 = vld [vmem:[%s2 + $0x500] sm:$0xff]
        %v2710 = vld [vmem:[%s2 + $0x508] sm:$0xff]
        %v2711 = vld [vmem:[%s2 + $0x510] sm:$0xff]
        %v2712 = vld [vmem:[%s2 + $0x518] sm:$0xff]
        %v2713 = vld [vmem:[%s2 + $0x520] sm:$0xff]
        %v2714 = vld [vmem:[%s2 + $0x528] sm:$0xff]
        %v2715 = vld [vmem:[%s2 + $0x530] sm:$0xff]
        %v2716 = vld [vmem:[%s2 + $0x538] sm:$0xff]
        %v2717 = vld [vmem:[%s2 + $0x540] sm:$0xff]
        %v2718 = vld [vmem:[%s2 + $0x548] sm:$0xff]
        %v2719 = vld [vmem:[%s2 + $0x550] sm:$0xff]
        %v2720 = vld [vmem:[%s2 + $0x558] sm:$0xff]
        %v2721 = vld [vmem:[%s2 + $0x560] sm:$0xff]
        %v2722 = vld [vmem:[%s2 + $0x568] sm:$0xff]
        %v2723 = vld [vmem:[%s2 + $0x570] sm:$0xff]
        %v2724 = vld [vmem:[%s2 + $0x578] sm:$0xff]
        %v2725 = vld [vmem:[%s2 + $0x580] sm:$0xff]
        %v2726 = vld [vmem:[%s2 + $0x588] sm:$0xff]
        %v2727 = vld [vmem:[%s2 + $0x590] sm:$0xff]
        %v2728 = vld [vmem:[%s2 + $0x598] sm:$0xff]
        %v2729 = vld [vmem:[%s2 + $0x5a0] sm:$0xff]
        %v2730 = vld [vmem:[%s2 + $0x5a8] sm:$0xff]
        %v2731 = vld [vmem:[%s2 + $0x5b0] sm:$0xff]
        %v2732 = vld [vmem:[%s2 + $0x5b8] sm:$0xff]
        %v2733 = vld [vmem:[%s2 + $0x5c0] sm:$0xff]
        %v2734 = vld [vmem:[%s2 + $0x5c8] sm:$0xff]
        %v2735 = vld [vmem:[%s2 + $0x5d0] sm:$0xff]
        %v2736 = vld [vmem:[%s2 + $0x5d8] sm:$0xff]
        %v2737 = vld [vmem:[%s2 + $0x5e0] sm:$0xff]
        %v2738 = vld [vmem:[%s2 + $0x5e8] sm:$0xff]
        %v2739 = vld [vmem:[%s2 + $0x5f0] sm:$0xff]
        %v2740 = vld [vmem:[%s2 + $0x5f8] sm:$0xff]
        %v2933 = vunpack.c.l.b16 %v2549
        %v2934 = vunpack.c.h.b16 %v2549
        %v2935 = vunpack.c.l.b16 %v2550
        %v2936 = vunpack.c.h.b16 %v2550
        %v2937 = vunpack.c.l.b16 %v2551
        %v2938 = vunpack.c.h.b16 %v2551
        %v2939 = vunpack.c.l.b16 %v2552
        %v2940 = vunpack.c.h.b16 %v2552
        %v2941 = vunpack.c.l.b16 %v2553
        %v2942 = vunpack.c.h.b16 %v2553
        %v2943 = vunpack.c.l.b16 %v2554
        %v2944 = vunpack.c.h.b16 %v2554
        %v2945 = vunpack.c.l.b16 %v2555
        %v2946 = vunpack.c.h.b16 %v2555
        %v2947 = vunpack.c.l.b16 %v2556
        %v2948 = vunpack.c.h.b16 %v2556
        %v2949 = vunpack.c.l.b16 %v2557
        %v2950 = vunpack.c.h.b16 %v2557
        %v2951 = vunpack.c.l.b16 %v2558
        %v2952 = vunpack.c.h.b16 %v2558
        %v2953 = vunpack.c.l.b16 %v2559
        %v2954 = vunpack.c.h.b16 %v2559
        %v2955 = vunpack.c.l.b16 %v2560
        %v2956 = vunpack.c.h.b16 %v2560
        %v2957 = vunpack.c.l.b16 %v2561
        %v2958 = vunpack.c.h.b16 %v2561
        %v2959 = vunpack.c.l.b16 %v2562
        %v2960 = vunpack.c.h.b16 %v2562
        %v2961 = vunpack.c.l.b16 %v2563
        %v2962 = vunpack.c.h.b16 %v2563
        %v2963 = vunpack.c.l.b16 %v2564
        %v2964 = vunpack.c.h.b16 %v2564
        %v2965 = vunpack.c.l.b16 %v2565
        %v2966 = vunpack.c.h.b16 %v2565
        %v2967 = vunpack.c.l.b16 %v2566
        %v2968 = vunpack.c.h.b16 %v2566
        %v2969 = vunpack.c.l.b16 %v2567
        %v2970 = vunpack.c.h.b16 %v2567
        %v2971 = vunpack.c.l.b16 %v2568
        %v2972 = vunpack.c.h.b16 %v2568
        %v2973 = vunpack.c.l.b16 %v2569
        %v2974 = vunpack.c.h.b16 %v2569
        %v2975 = vunpack.c.l.b16 %v2570
        %v2976 = vunpack.c.h.b16 %v2570
        %v2977 = vunpack.c.l.b16 %v2571
        %v2978 = vunpack.c.h.b16 %v2571
        %v2979 = vunpack.c.l.b16 %v2572
        %v2980 = vunpack.c.h.b16 %v2572
        %v2981 = vunpack.c.l.b16 %v2573
        %v2982 = vunpack.c.h.b16 %v2573
        %v2983 = vunpack.c.l.b16 %v2574
        %v2984 = vunpack.c.h.b16 %v2574
        %v2985 = vunpack.c.l.b16 %v2575
        %v2986 = vunpack.c.h.b16 %v2575
        %v2987 = vunpack.c.l.b16 %v2576
        %v2988 = vunpack.c.h.b16 %v2576
        %v2989 = vunpack.c.l.b16 %v2577
        %v2990 = vunpack.c.h.b16 %v2577
        %v2991 = vunpack.c.l.b16 %v2578
        %v2992 = vunpack.c.h.b16 %v2578
        %v2993 = vunpack.c.l.b16 %v2579
        %v2994 = vunpack.c.h.b16 %v2579
        %v2995 = vunpack.c.l.b16 %v2580
        %v2996 = vunpack.c.h.b16 %v2580
        %v2997 = vunpack.c.l.b16 %v2581
        %v2998 = vunpack.c.h.b16 %v2581
        %v2999 = vunpack.c.l.b16 %v2582
        %v3000 = vunpack.c.h.b16 %v2582
        %v3001 = vunpack.c.l.b16 %v2583
        %v3002 = vunpack.c.h.b16 %v2583
        %v3003 = vunpack.c.l.b16 %v2584
        %v3004 = vunpack.c.h.b16 %v2584
        %v3005 = vunpack.c.l.b16 %v2585
        %v3006 = vunpack.c.h.b16 %v2585
        %v3007 = vunpack.c.l.b16 %v2586
        %v3008 = vunpack.c.h.b16 %v2586
        %v3009 = vunpack.c.l.b16 %v2587
        %v3010 = vunpack.c.h.b16 %v2587
        %v3011 = vunpack.c.l.b16 %v2588
        %v3012 = vunpack.c.h.b16 %v2588
        %v3013 = vunpack.c.l.b16 %v2589
        %v3014 = vunpack.c.h.b16 %v2589
        %v3015 = vunpack.c.l.b16 %v2590
        %v3016 = vunpack.c.h.b16 %v2590
        %v3017 = vunpack.c.l.b16 %v2591
        %v3018 = vunpack.c.h.b16 %v2591
        %v3019 = vunpack.c.l.b16 %v2592
        %v3020 = vunpack.c.h.b16 %v2592
        %v3021 = vunpack.c.l.b16 %v2593
        %v3022 = vunpack.c.h.b16 %v2593
        %v3023 = vunpack.c.l.b16 %v2594
        %v3024 = vunpack.c.h.b16 %v2594
        %v3025 = vunpack.c.l.b16 %v2595
        %v3026 = vunpack.c.h.b16 %v2595
        %v3027 = vunpack.c.l.b16 %v2596
        %v3028 = vunpack.c.h.b16 %v2596
        %v3029 = vunpack.c.l.b16 %v2597
        %v3030 = vunpack.c.h.b16 %v2597
        %v3031 = vunpack.c.l.b16 %v2598
        %v3032 = vunpack.c.h.b16 %v2598
        %v3033 = vunpack.c.l.b16 %v2599
        %v3034 = vunpack.c.h.b16 %v2599
        %v3035 = vunpack.c.l.b16 %v2600
        %v3036 = vunpack.c.h.b16 %v2600
        %v3037 = vunpack.c.l.b16 %v2601
        %v3038 = vunpack.c.h.b16 %v2601
        %v3039 = vunpack.c.l.b16 %v2602
        %v3040 = vunpack.c.h.b16 %v2602
        %v3041 = vunpack.c.l.b16 %v2603
        %v3042 = vunpack.c.h.b16 %v2603
        %v3043 = vunpack.c.l.b16 %v2604
        %v3044 = vunpack.c.h.b16 %v2604
        %v3045 = vunpack.c.l.b16 %v2605
        %v3046 = vunpack.c.h.b16 %v2605
        %v3047 = vunpack.c.l.b16 %v2606
        %v3048 = vunpack.c.h.b16 %v2606
        %v3049 = vunpack.c.l.b16 %v2607
        %v3050 = vunpack.c.h.b16 %v2607
        %v3051 = vunpack.c.l.b16 %v2608
        %v3052 = vunpack.c.h.b16 %v2608
        %v3053 = vunpack.c.l.b16 %v2609
        %v3054 = vunpack.c.h.b16 %v2609
        %v3055 = vunpack.c.l.b16 %v2610
        %v3056 = vunpack.c.h.b16 %v2610
        %v3057 = vunpack.c.l.b16 %v2611
        %v3058 = vunpack.c.h.b16 %v2611
        %v3059 = vunpack.c.l.b16 %v2612
        %v3060 = vunpack.c.h.b16 %v2612
        %v3061 = vunpack.c.l.b16 %v2613
        %v3062 = vunpack.c.h.b16 %v2613
        %v3063 = vunpack.c.l.b16 %v2614
        %v3064 = vunpack.c.h.b16 %v2614
        %v3065 = vunpack.c.l.b16 %v2615
        %v3066 = vunpack.c.h.b16 %v2615
        %v3067 = vunpack.c.l.b16 %v2616
        %v3068 = vunpack.c.h.b16 %v2616
        %v3069 = vunpack.c.l.b16 %v2617
        %v3070 = vunpack.c.h.b16 %v2617
        %v3071 = vunpack.c.l.b16 %v2618
        %v3072 = vunpack.c.h.b16 %v2618
        %v3073 = vunpack.c.l.b16 %v2619
        %v3074 = vunpack.c.h.b16 %v2619
        %v3075 = vunpack.c.l.b16 %v2620
        %v3076 = vunpack.c.h.b16 %v2620
        %v3077 = vunpack.c.l.b16 %v2621
        %v3078 = vunpack.c.h.b16 %v2621
        %v3079 = vunpack.c.l.b16 %v2622
        %v3080 = vunpack.c.h.b16 %v2622
        %v3081 = vunpack.c.l.b16 %v2623
        %v3082 = vunpack.c.h.b16 %v2623
        %v3083 = vunpack.c.l.b16 %v2624
        %v3084 = vunpack.c.h.b16 %v2624
        %v3085 = vunpack.c.l.b16 %v2625
        %v3086 = vunpack.c.h.b16 %v2625
        %v3087 = vunpack.c.l.b16 %v2626
        %v3088 = vunpack.c.h.b16 %v2626
        %v3089 = vunpack.c.l.b16 %v2627
        %v3090 = vunpack.c.h.b16 %v2627
        %v3091 = vunpack.c.l.b16 %v2628
        %v3092 = vunpack.c.h.b16 %v2628
        %v3093 = vunpack.c.l.b16 %v2629
        %v3094 = vunpack.c.h.b16 %v2629
        %v3095 = vunpack.c.l.b16 %v2630
        %v3096 = vunpack.c.h.b16 %v2630
        %v3097 = vunpack.c.l.b16 %v2631
        %v3098 = vunpack.c.h.b16 %v2631
        %v3099 = vunpack.c.l.b16 %v2632
        %v3100 = vunpack.c.h.b16 %v2632
        %v3101 = vunpack.c.l.b16 %v2633
        %v3102 = vunpack.c.h.b16 %v2633
        %v3103 = vunpack.c.l.b16 %v2634
        %v3104 = vunpack.c.h.b16 %v2634
        %v3105 = vunpack.c.l.b16 %v2635
        %v3106 = vunpack.c.h.b16 %v2635
        %v3107 = vunpack.c.l.b16 %v2636
        %v3108 = vunpack.c.h.b16 %v2636
        %v3109 = vunpack.c.l.b16 %v2637
        %v3110 = vunpack.c.h.b16 %v2637
        %v3111 = vunpack.c.l.b16 %v2638
        %v3112 = vunpack.c.h.b16 %v2638
        %v3113 = vunpack.c.l.b16 %v2639
        %v3114 = vunpack.c.h.b16 %v2639
        %v3115 = vunpack.c.l.b16 %v2640
        %v3116 = vunpack.c.h.b16 %v2640
        %v3117 = vunpack.c.l.b16 %v2641
        %v3118 = vunpack.c.h.b16 %v2641
        %v3119 = vunpack.c.l.b16 %v2642
        %v3120 = vunpack.c.h.b16 %v2642
        %v3121 = vunpack.c.l.b16 %v2643
        %v3122 = vunpack.c.h.b16 %v2643
        %v3123 = vunpack.c.l.b16 %v2644
        %v3124 = vunpack.c.h.b16 %v2644
        %v3125 = vunpack.c.l.b16 %v2645
        %v3126 = vunpack.c.h.b16 %v2645
        %v3127 = vunpack.c.l.b16 %v2646
        %v3128 = vunpack.c.h.b16 %v2646
        %v3129 = vunpack.c.l.b16 %v2647
        %v3130 = vunpack.c.h.b16 %v2647
        %v3131 = vunpack.c.l.b16 %v2648
        %v3132 = vunpack.c.h.b16 %v2648
        %v3133 = vunpack.c.l.b16 %v2649
        %v3134 = vunpack.c.h.b16 %v2649
        %v3135 = vunpack.c.l.b16 %v2650
        %v3136 = vunpack.c.h.b16 %v2650
        %v3137 = vunpack.c.l.b16 %v2651
        %v3138 = vunpack.c.h.b16 %v2651
        %v3139 = vunpack.c.l.b16 %v2652
        %v3140 = vunpack.c.h.b16 %v2652
        %v3141 = vunpack.c.l.b16 %v2653
        %v3142 = vunpack.c.h.b16 %v2653
        %v3143 = vunpack.c.l.b16 %v2654
        %v3144 = vunpack.c.h.b16 %v2654
        %v3145 = vunpack.c.l.b16 %v2655
        %v3146 = vunpack.c.h.b16 %v2655
        %v3147 = vunpack.c.l.b16 %v2656
        %v3148 = vunpack.c.h.b16 %v2656
        %v3149 = vunpack.c.l.b16 %v2657
        %v3150 = vunpack.c.h.b16 %v2657
        %v3151 = vunpack.c.l.b16 %v2658
        %v3152 = vunpack.c.h.b16 %v2658
        %v3153 = vunpack.c.l.b16 %v2659
        %v3154 = vunpack.c.h.b16 %v2659
        %v3155 = vunpack.c.l.b16 %v2660
        %v3156 = vunpack.c.h.b16 %v2660
        %v3157 = vunpack.c.l.b16 %v2661
        %v3158 = vunpack.c.h.b16 %v2661
        %v3159 = vunpack.c.l.b16 %v2662
        %v3160 = vunpack.c.h.b16 %v2662
        %v3161 = vunpack.c.l.b16 %v2663
        %v3162 = vunpack.c.h.b16 %v2663
        %v3163 = vunpack.c.l.b16 %v2664
        %v3164 = vunpack.c.h.b16 %v2664
        %v3165 = vunpack.c.l.b16 %v2665
        %v3166 = vunpack.c.h.b16 %v2665
        %v3167 = vunpack.c.l.b16 %v2666
        %v3168 = vunpack.c.h.b16 %v2666
        %v3169 = vunpack.c.l.b16 %v2667
        %v3170 = vunpack.c.h.b16 %v2667
        %v3171 = vunpack.c.l.b16 %v2668
        %v3172 = vunpack.c.h.b16 %v2668
        %v3173 = vunpack.c.l.b16 %v2669
        %v3174 = vunpack.c.h.b16 %v2669
        %v3175 = vunpack.c.l.b16 %v2670
        %v3176 = vunpack.c.h.b16 %v2670
        %v3177 = vunpack.c.l.b16 %v2671
        %v3178 = vunpack.c.h.b16 %v2671
        %v3179 = vunpack.c.l.b16 %v2672
        %v3180 = vunpack.c.h.b16 %v2672
        %v3181 = vunpack.c.l.b16 %v2673
        %v3182 = vunpack.c.h.b16 %v2673
        %v3183 = vunpack.c.l.b16 %v2674
        %v3184 = vunpack.c.h.b16 %v2674
        %v3185 = vunpack.c.l.b16 %v2675
        %v3186 = vunpack.c.h.b16 %v2675
        %v3187 = vunpack.c.l.b16 %v2676
        %v3188 = vunpack.c.h.b16 %v2676
        %v3189 = vunpack.c.l.b16 %v2677
        %v3190 = vunpack.c.h.b16 %v2677
        %v3191 = vunpack.c.l.b16 %v2678
        %v3192 = vunpack.c.h.b16 %v2678
        %v3193 = vunpack.c.l.b16 %v2679
        %v3194 = vunpack.c.h.b16 %v2679
        %v3195 = vunpack.c.l.b16 %v2680
        %v3196 = vunpack.c.h.b16 %v2680
        %v3197 = vunpack.c.l.b16 %v2681
        %v3198 = vunpack.c.h.b16 %v2681
        %v3199 = vunpack.c.l.b16 %v2682
        %v3200 = vunpack.c.h.b16 %v2682
        %v3201 = vunpack.c.l.b16 %v2683
        %v3202 = vunpack.c.h.b16 %v2683
        %v3203 = vunpack.c.l.b16 %v2684
        %v3204 = vunpack.c.h.b16 %v2684
        %v3205 = vunpack.c.l.b16 %v2685
        %v3206 = vunpack.c.h.b16 %v2685
        %v3207 = vunpack.c.l.b16 %v2686
        %v3208 = vunpack.c.h.b16 %v2686
        %v3209 = vunpack.c.l.b16 %v2687
        %v3210 = vunpack.c.h.b16 %v2687
        %v3211 = vunpack.c.l.b16 %v2688
        %v3212 = vunpack.c.h.b16 %v2688
        %v3213 = vunpack.c.l.b16 %v2689
        %v3214 = vunpack.c.h.b16 %v2689
        %v3215 = vunpack.c.l.b16 %v2690
        %v3216 = vunpack.c.h.b16 %v2690
        %v3217 = vunpack.c.l.b16 %v2691
        %v3218 = vunpack.c.h.b16 %v2691
        %v3219 = vunpack.c.l.b16 %v2692
        %v3220 = vunpack.c.h.b16 %v2692
        %v3221 = vunpack.c.l.b16 %v2693
        %v3222 = vunpack.c.h.b16 %v2693
        %v3223 = vunpack.c.l.b16 %v2694
        %v3224 = vunpack.c.h.b16 %v2694
        %v3225 = vunpack.c.l.b16 %v2695
        %v3226 = vunpack.c.h.b16 %v2695
        %v3227 = vunpack.c.l.b16 %v2696
        %v3228 = vunpack.c.h.b16 %v2696
        %v3229 = vunpack.c.l.b16 %v2697
        %v3230 = vunpack.c.h.b16 %v2697
        %v3231 = vunpack.c.l.b16 %v2698
        %v3232 = vunpack.c.h.b16 %v2698
        %v3233 = vunpack.c.l.b16 %v2699
        %v3234 = vunpack.c.h.b16 %v2699
        %v3235 = vunpack.c.l.b16 %v2700
        %v3236 = vunpack.c.h.b16 %v2700
        %v3237 = vunpack.c.l.b16 %v2701
        %v3238 = vunpack.c.h.b16 %v2701
        %v3239 = vunpack.c.l.b16 %v2702
        %v3240 = vunpack.c.h.b16 %v2702
        %v3241 = vunpack.c.l.b16 %v2703
        %v3242 = vunpack.c.h.b16 %v2703
        %v3243 = vunpack.c.l.b16 %v2704
        %v3244 = vunpack.c.h.b16 %v2704
        %v3245 = vunpack.c.l.b16 %v2705
        %v3246 = vunpack.c.h.b16 %v2705
        %v3247 = vunpack.c.l.b16 %v2706
        %v3248 = vunpack.c.h.b16 %v2706
        %v3249 = vunpack.c.l.b16 %v2707
        %v3250 = vunpack.c.h.b16 %v2707
        %v3251 = vunpack.c.l.b16 %v2708
        %v3252 = vunpack.c.h.b16 %v2708
        %v3253 = vunpack.c.l.b16 %v2709
        %v3254 = vunpack.c.h.b16 %v2709
        %v3255 = vunpack.c.l.b16 %v2710
        %v3256 = vunpack.c.h.b16 %v2710
        %v3257 = vunpack.c.l.b16 %v2711
        %v3258 = vunpack.c.h.b16 %v2711
        %v3259 = vunpack.c.l.b16 %v2712
        %v3260 = vunpack.c.h.b16 %v2712
        %v3261 = vunpack.c.l.b16 %v2713
        %v3262 = vunpack.c.h.b16 %v2713
        %v3263 = vunpack.c.l.b16 %v2714
        %v3264 = vunpack.c.h.b16 %v2714
        %v3265 = vunpack.c.l.b16 %v2715
        %v3266 = vunpack.c.h.b16 %v2715
        %v3267 = vunpack.c.l.b16 %v2716
        %v3268 = vunpack.c.h.b16 %v2716
        %v3269 = vunpack.c.l.b16 %v2717
        %v3270 = vunpack.c.h.b16 %v2717
        %v3271 = vunpack.c.l.b16 %v2718
        %v3272 = vunpack.c.h.b16 %v2718
        %v3273 = vunpack.c.l.b16 %v2719
        %v3274 = vunpack.c.h.b16 %v2719
        %v3275 = vunpack.c.l.b16 %v2720
        %v3276 = vunpack.c.h.b16 %v2720
        %v3277 = vunpack.c.l.b16 %v2721
        %v3278 = vunpack.c.h.b16 %v2721
        %v3279 = vunpack.c.l.b16 %v2722
        %v3280 = vunpack.c.h.b16 %v2722
        %v3281 = vunpack.c.l.b16 %v2723
        %v3282 = vunpack.c.h.b16 %v2723
        %v3283 = vunpack.c.l.b16 %v2724
        %v3284 = vunpack.c.h.b16 %v2724
        %v3285 = vunpack.c.l.b16 %v2725
        %v3286 = vunpack.c.h.b16 %v2725
        %v3287 = vunpack.c.l.b16 %v2726
        %v3288 = vunpack.c.h.b16 %v2726
        %v3289 = vunpack.c.l.b16 %v2727
        %v3290 = vunpack.c.h.b16 %v2727
        %v3291 = vunpack.c.l.b16 %v2728
        %v3292 = vunpack.c.h.b16 %v2728
        %v3293 = vunpack.c.l.b16 %v2729
        %v3294 = vunpack.c.h.b16 %v2729
        %v3295 = vunpack.c.l.b16 %v2730
        %v3296 = vunpack.c.h.b16 %v2730
        %v3297 = vunpack.c.l.b16 %v2731
        %v3298 = vunpack.c.h.b16 %v2731
        %v3299 = vunpack.c.l.b16 %v2732
        %v3300 = vunpack.c.h.b16 %v2732
        %v3301 = vunpack.c.l.b16 %v2733
        %v3302 = vunpack.c.h.b16 %v2733
        %v3303 = vunpack.c.l.b16 %v2734
        %v3304 = vunpack.c.h.b16 %v2734
        %v3305 = vunpack.c.l.b16 %v2735
        %v3306 = vunpack.c.h.b16 %v2735
        %v3307 = vunpack.c.l.b16 %v2736
        %v3308 = vunpack.c.h.b16 %v2736
        %v3309 = vunpack.c.l.b16 %v2737
        %v3310 = vunpack.c.h.b16 %v2737
        %v3311 = vunpack.c.l.b16 %v2738
        %v3312 = vunpack.c.h.b16 %v2738
        %v3313 = vunpack.c.l.b16 %v2739
        %v3314 = vunpack.c.h.b16 %v2739
        %v3315 = vunpack.c.l.b16 %v2740
        %v3316 = vunpack.c.h.b16 %v2740
        %v3317 = vpack.c.b16 %v2935, %v2933
        %v3318 = vpack.c.b16 %v2936, %v2934
        %v3319 = vpack.c.b16 %v2939, %v2937
        %v3320 = vpack.c.b16 %v2940, %v2938
        %v3321 = vpack.c.b16 %v2943, %v2941
        %v3322 = vpack.c.b16 %v2944, %v2942
        %v3323 = vpack.c.b16 %v2947, %v2945
        %v3324 = vpack.c.b16 %v2948, %v2946
        %v3325 = vpack.c.b16 %v2951, %v2949
        %v3326 = vpack.c.b16 %v2952, %v2950
        %v3327 = vpack.c.b16 %v2955, %v2953
        %v3328 = vpack.c.b16 %v2956, %v2954
        %v3329 = vpack.c.b16 %v2959, %v2957
        %v3330 = vpack.c.b16 %v2960, %v2958
        %v3331 = vpack.c.b16 %v2963, %v2961
        %v3332 = vpack.c.b16 %v2964, %v2962
        %v3333 = vpack.c.b16 %v2967, %v2965
        %v3334 = vpack.c.b16 %v2968, %v2966
        %v3335 = vpack.c.b16 %v2971, %v2969
        %v3336 = vpack.c.b16 %v2972, %v2970
        %v3337 = vpack.c.b16 %v2975, %v2973
        %v3338 = vpack.c.b16 %v2976, %v2974
        %v3339 = vpack.c.b16 %v2979, %v2977
        %v3340 = vpack.c.b16 %v2980, %v2978
        %v3341 = vpack.c.b16 %v2983, %v2981
        %v3342 = vpack.c.b16 %v2984, %v2982
        %v3343 = vpack.c.b16 %v2987, %v2985
        %v3344 = vpack.c.b16 %v2988, %v2986
        %v3345 = vpack.c.b16 %v2991, %v2989
        %v3346 = vpack.c.b16 %v2992, %v2990
        %v3347 = vpack.c.b16 %v2995, %v2993
        %v3348 = vpack.c.b16 %v2996, %v2994
        %v3349 = vpack.c.b16 %v2999, %v2997
        %v3350 = vpack.c.b16 %v3000, %v2998
        %v3351 = vpack.c.b16 %v3003, %v3001
        %v3352 = vpack.c.b16 %v3004, %v3002
        %v3353 = vpack.c.b16 %v3007, %v3005
        %v3354 = vpack.c.b16 %v3008, %v3006
        %v3355 = vpack.c.b16 %v3011, %v3009
        %v3356 = vpack.c.b16 %v3012, %v3010
        %v3357 = vpack.c.b16 %v3015, %v3013
        %v3358 = vpack.c.b16 %v3016, %v3014
        %v3359 = vpack.c.b16 %v3019, %v3017
        %v3360 = vpack.c.b16 %v3020, %v3018
        %v3361 = vpack.c.b16 %v3023, %v3021
        %v3362 = vpack.c.b16 %v3024, %v3022
        %v3363 = vpack.c.b16 %v3027, %v3025
        %v3364 = vpack.c.b16 %v3028, %v3026
        %v3365 = vpack.c.b16 %v3031, %v3029
        %v3366 = vpack.c.b16 %v3032, %v3030
        %v3367 = vpack.c.b16 %v3035, %v3033
        %v3368 = vpack.c.b16 %v3036, %v3034
        %v3369 = vpack.c.b16 %v3039, %v3037
        %v3370 = vpack.c.b16 %v3040, %v3038
        %v3371 = vpack.c.b16 %v3043, %v3041
        %v3372 = vpack.c.b16 %v3044, %v3042
        %v3373 = vpack.c.b16 %v3047, %v3045
        %v3374 = vpack.c.b16 %v3048, %v3046
        %v3375 = vpack.c.b16 %v3051, %v3049
        %v3376 = vpack.c.b16 %v3052, %v3050
        %v3377 = vpack.c.b16 %v3055, %v3053
        %v3378 = vpack.c.b16 %v3056, %v3054
        %v3379 = vpack.c.b16 %v3059, %v3057
        %v3380 = vpack.c.b16 %v3060, %v3058
        %v3381 = vpack.c.b16 %v3063, %v3061
        %v3382 = vpack.c.b16 %v3064, %v3062
        %v3383 = vpack.c.b16 %v3067, %v3065
        %v3384 = vpack.c.b16 %v3068, %v3066
        %v3385 = vpack.c.b16 %v3071, %v3069
        %v3386 = vpack.c.b16 %v3072, %v3070
        %v3387 = vpack.c.b16 %v3075, %v3073
        %v3388 = vpack.c.b16 %v3076, %v3074
        %v3389 = vpack.c.b16 %v3079, %v3077
        %v3390 = vpack.c.b16 %v3080, %v3078
        %v3391 = vpack.c.b16 %v3083, %v3081
        %v3392 = vpack.c.b16 %v3084, %v3082
        %v3393 = vpack.c.b16 %v3087, %v3085
        %v3394 = vpack.c.b16 %v3088, %v3086
        %v3395 = vpack.c.b16 %v3091, %v3089
        %v3396 = vpack.c.b16 %v3092, %v3090
        %v3397 = vpack.c.b16 %v3095, %v3093
        %v3398 = vpack.c.b16 %v3096, %v3094
        %v3399 = vpack.c.b16 %v3099, %v3097
        %v3400 = vpack.c.b16 %v3100, %v3098
        %v3401 = vpack.c.b16 %v3103, %v3101
        %v3402 = vpack.c.b16 %v3104, %v3102
        %v3403 = vpack.c.b16 %v3107, %v3105
        %v3404 = vpack.c.b16 %v3108, %v3106
        %v3405 = vpack.c.b16 %v3111, %v3109
        %v3406 = vpack.c.b16 %v3112, %v3110
        %v3407 = vpack.c.b16 %v3115, %v3113
        %v3408 = vpack.c.b16 %v3116, %v3114
        %v3409 = vpack.c.b16 %v3119, %v3117
        %v3410 = vpack.c.b16 %v3120, %v3118
        %v3411 = vpack.c.b16 %v3123, %v3121
        %v3412 = vpack.c.b16 %v3124, %v3122
        %v3413 = vpack.c.b16 %v3127, %v3125
        %v3414 = vpack.c.b16 %v3128, %v3126
        %v3415 = vpack.c.b16 %v3131, %v3129
        %v3416 = vpack.c.b16 %v3132, %v3130
        %v3417 = vpack.c.b16 %v3135, %v3133
        %v3418 = vpack.c.b16 %v3136, %v3134
        %v3419 = vpack.c.b16 %v3139, %v3137
        %v3420 = vpack.c.b16 %v3140, %v3138
        %v3421 = vpack.c.b16 %v3143, %v3141
        %v3422 = vpack.c.b16 %v3144, %v3142
        %v3423 = vpack.c.b16 %v3147, %v3145
        %v3424 = vpack.c.b16 %v3148, %v3146
        %v3425 = vpack.c.b16 %v3151, %v3149
        %v3426 = vpack.c.b16 %v3152, %v3150
        %v3427 = vpack.c.b16 %v3155, %v3153
        %v3428 = vpack.c.b16 %v3156, %v3154
        %v3429 = vpack.c.b16 %v3159, %v3157
        %v3430 = vpack.c.b16 %v3160, %v3158
        %v3431 = vpack.c.b16 %v3163, %v3161
        %v3432 = vpack.c.b16 %v3164, %v3162
        %v3433 = vpack.c.b16 %v3167, %v3165
        %v3434 = vpack.c.b16 %v3168, %v3166
        %v3435 = vpack.c.b16 %v3171, %v3169
        %v3436 = vpack.c.b16 %v3172, %v3170
        %v3437 = vpack.c.b16 %v3175, %v3173
        %v3438 = vpack.c.b16 %v3176, %v3174
        %v3439 = vpack.c.b16 %v3179, %v3177
        %v3440 = vpack.c.b16 %v3180, %v3178
        %v3441 = vpack.c.b16 %v3183, %v3181
        %v3442 = vpack.c.b16 %v3184, %v3182
        %v3443 = vpack.c.b16 %v3187, %v3185
        %v3444 = vpack.c.b16 %v3188, %v3186
        %v3445 = vpack.c.b16 %v3191, %v3189
        %v3446 = vpack.c.b16 %v3192, %v3190
        %v3447 = vpack.c.b16 %v3195, %v3193
        %v3448 = vpack.c.b16 %v3196, %v3194
        %v3449 = vpack.c.b16 %v3199, %v3197
        %v3450 = vpack.c.b16 %v3200, %v3198
        %v3451 = vpack.c.b16 %v3203, %v3201
        %v3452 = vpack.c.b16 %v3204, %v3202
        %v3453 = vpack.c.b16 %v3207, %v3205
        %v3454 = vpack.c.b16 %v3208, %v3206
        %v3455 = vpack.c.b16 %v3211, %v3209
        %v3456 = vpack.c.b16 %v3212, %v3210
        %v3457 = vpack.c.b16 %v3215, %v3213
        %v3458 = vpack.c.b16 %v3216, %v3214
        %v3459 = vpack.c.b16 %v3219, %v3217
        %v3460 = vpack.c.b16 %v3220, %v3218
        %v3461 = vpack.c.b16 %v3223, %v3221
        %v3462 = vpack.c.b16 %v3224, %v3222
        %v3463 = vpack.c.b16 %v3227, %v3225
        %v3464 = vpack.c.b16 %v3228, %v3226
        %v3465 = vpack.c.b16 %v3231, %v3229
        %v3466 = vpack.c.b16 %v3232, %v3230
        %v3467 = vpack.c.b16 %v3235, %v3233
        %v3468 = vpack.c.b16 %v3236, %v3234
        %v3469 = vpack.c.b16 %v3239, %v3237
        %v3470 = vpack.c.b16 %v3240, %v3238
        %v3471 = vpack.c.b16 %v3243, %v3241
        %v3472 = vpack.c.b16 %v3244, %v3242
        %v3473 = vpack.c.b16 %v3247, %v3245
        %v3474 = vpack.c.b16 %v3248, %v3246
        %v3475 = vpack.c.b16 %v3251, %v3249
        %v3476 = vpack.c.b16 %v3252, %v3250
        %v3477 = vpack.c.b16 %v3255, %v3253
        %v3478 = vpack.c.b16 %v3256, %v3254
        %v3479 = vpack.c.b16 %v3259, %v3257
        %v3480 = vpack.c.b16 %v3260, %v3258
        %v3481 = vpack.c.b16 %v3263, %v3261
        %v3482 = vpack.c.b16 %v3264, %v3262
        %v3483 = vpack.c.b16 %v3267, %v3265
        %v3484 = vpack.c.b16 %v3268, %v3266
        %v3485 = vpack.c.b16 %v3271, %v3269
        %v3486 = vpack.c.b16 %v3272, %v3270
        %v3487 = vpack.c.b16 %v3275, %v3273
        %v3488 = vpack.c.b16 %v3276, %v3274
        %v3489 = vpack.c.b16 %v3279, %v3277
        %v3490 = vpack.c.b16 %v3280, %v3278
        %v3491 = vpack.c.b16 %v3283, %v3281
        %v3492 = vpack.c.b16 %v3284, %v3282
        %v3493 = vpack.c.b16 %v3287, %v3285
        %v3494 = vpack.c.b16 %v3288, %v3286
        %v3495 = vpack.c.b16 %v3291, %v3289
        %v3496 = vpack.c.b16 %v3292, %v3290
        %v3497 = vpack.c.b16 %v3295, %v3293
        %v3498 = vpack.c.b16 %v3296, %v3294
        %v3499 = vpack.c.b16 %v3299, %v3297
        %v3500 = vpack.c.b16 %v3300, %v3298
        %v3501 = vpack.c.b16 %v3303, %v3301
        %v3502 = vpack.c.b16 %v3304, %v3302
        %v3503 = vpack.c.b16 %v3307, %v3305
        %v3504 = vpack.c.b16 %v3308, %v3306
        %v3505 = vpack.c.b16 %v3311, %v3309
        %v3506 = vpack.c.b16 %v3312, %v3310
        %v3507 = vpack.c.b16 %v3315, %v3313
        %v3508 = vpack.c.b16 %v3316, %v3314
        %3701 = vmatprep.subr.bf16.mxu0 %v3332
        %3702 = vmatpush1.bf16.msra.mxu0 %v3331
        %3703 = vmatprep.subr.bf16.mxu0 %v3330
        %3704 = vmatpush1.bf16.msra.mxu0 %v3329
        %3705 = vmatprep.subr.bf16.mxu0 %v3328
        %3706 = vmatpush1.bf16.msra.mxu0 %v3327
        %3707 = vmatprep.subr.bf16.mxu0 %v3326
        %3708 = vmatpush1.bf16.msra.mxu0 %v3325
        %3709 = vmatprep.subr.bf16.mxu0 %v3324
        %3710 = vmatpush1.bf16.msra.mxu0 %v3323
        %3711 = vmatprep.subr.bf16.mxu0 %v3322
        %3712 = vmatpush1.bf16.msra.mxu0 %v3321
        %3713 = vmatprep.subr.bf16.mxu0 %v3320
        %3714 = vmatpush1.bf16.msra.mxu0 %v3319
        %3715 = vmatprep.subr.bf16.mxu0 %v3318
        %3716 = vmatpush1.bf16.msra.mxu0 %v3317
        %3717 = vmatprep.subr.bf16.mxu0 %v3348
        %3718 = vmatpush2.bf16.msra.mxu0 %v3347
        %3719 = vmatprep.subr.bf16.mxu0 %v3346
        %3720 = vmatpush2.bf16.msra.mxu0 %v3345
        %3721 = vmatprep.subr.bf16.mxu0 %v3344
        %3722 = vmatpush2.bf16.msra.mxu0 %v3343
        %3723 = vmatprep.subr.bf16.mxu0 %v3342
        %3724 = vmatpush2.bf16.msra.mxu0 %v3341
        %3725 = vmatprep.subr.bf16.mxu0 %v3340
        %3726 = vmatpush2.bf16.msra.mxu0 %v3339
        %3727 = vmatprep.subr.bf16.mxu0 %v3338
        %3728 = vmatpush2.bf16.msra.mxu0 %v3337
        %3729 = vmatprep.subr.bf16.mxu0 %v3336
        %3730 = vmatpush2.bf16.msra.mxu0 %v3335
        %3731 = vmatprep.subr.bf16.mxu0 %v3334
        %3732 = vmatpush2.bf16.msra.mxu0 %v3333
        %3733 = vmatprep.mubr.bf16.mxu0 %v592
        %3734 = vmatmul.mubr.bf16.gmra.mxu0 %v591
        %v3735 = vpop.f32.mrf.mxu0
        %v3736 = vadd.f32 0.0, %v3735
        %v3737 = vpop.f32.mrf.mxu0
        %v3738 = vadd.f32 0.0, %v3737
        %v3739 = vpop.f32.mrf.mxu0
        %v3740 = vadd.f32 0.0, %v3739
        %v3741 = vpop.f32.mrf.mxu0
        %v3742 = vadd.f32 0.0, %v3741
        %3743 = vmatprep.mubr.bf16.mxu0 %v604
        %3744 = vmatmul.mubr.bf16.gmra.mxu0 %v603
        %v3745 = vpop.f32.mrf.mxu0
        %v3746 = vadd.f32 0.0, %v3745
        %v3747 = vpop.f32.mrf.mxu0
        %v3748 = vadd.f32 0.0, %v3747
        %v3749 = vpop.f32.mrf.mxu0
        %v3750 = vadd.f32 0.0, %v3749
        %v3751 = vpop.f32.mrf.mxu0
        %v3752 = vadd.f32 0.0, %v3751
        %3753 = vmatprep.mubr.bf16.mxu0 %v616
        %3754 = vmatmul.mubr.bf16.gmra.mxu0 %v615
        %v3755 = vpop.f32.mrf.mxu0
        %v3756 = vadd.f32 0.0, %v3755
        %v3757 = vpop.f32.mrf.mxu0
        %v3758 = vadd.f32 0.0, %v3757
        %v3759 = vpop.f32.mrf.mxu0
        %v3760 = vadd.f32 0.0, %v3759
        %v3761 = vpop.f32.mrf.mxu0
        %v3762 = vadd.f32 0.0, %v3761
        %3763 = vmatprep.mubr.bf16.mxu0 %v628
        %3764 = vmatmul.mubr.bf16.gmra.mxu0 %v627
        %v3765 = vpop.f32.mrf.mxu0
        %v3766 = vadd.f32 0.0, %v3765
        %v3767 = vpop.f32.mrf.mxu0
        %v3768 = vadd.f32 0.0, %v3767
        %v3769 = vpop.f32.mrf.mxu0
        %v3770 = vadd.f32 0.0, %v3769
        %v3771 = vpop.f32.mrf.mxu0
        %v3772 = vadd.f32 0.0, %v3771
        %3773 = vmatprep.mubr.bf16.mxu0 %v640
        %3774 = vmatmul.mubr.bf16.gmra.mxu0 %v639
        %v3775 = vpop.f32.mrf.mxu0
        %v3776 = vadd.f32 0.0, %v3775
        %v3777 = vpop.f32.mrf.mxu0
        %v3778 = vadd.f32 0.0, %v3777
        %v3779 = vpop.f32.mrf.mxu0
        %v3780 = vadd.f32 0.0, %v3779
        %v3781 = vpop.f32.mrf.mxu0
        %v3782 = vadd.f32 0.0, %v3781
        %3783 = vmatprep.mubr.bf16.mxu0 %v652
        %3784 = vmatmul.mubr.bf16.gmra.mxu0 %v651
        %v3785 = vpop.f32.mrf.mxu0
        %v3786 = vadd.f32 0.0, %v3785
        %v3787 = vpop.f32.mrf.mxu0
        %v3788 = vadd.f32 0.0, %v3787
        %v3789 = vpop.f32.mrf.mxu0
        %v3790 = vadd.f32 0.0, %v3789
        %v3791 = vpop.f32.mrf.mxu0
        %v3792 = vadd.f32 0.0, %v3791
        %3793 = vmatprep.mubr.bf16.mxu0 %v664
        %3794 = vmatmul.mubr.bf16.gmra.mxu0 %v663
        %v3795 = vpop.f32.mrf.mxu0
        %v3796 = vadd.f32 0.0, %v3795
        %v3797 = vpop.f32.mrf.mxu0
        %v3798 = vadd.f32 0.0, %v3797
        %v3799 = vpop.f32.mrf.mxu0
        %v3800 = vadd.f32 0.0, %v3799
        %v3801 = vpop.f32.mrf.mxu0
        %v3802 = vadd.f32 0.0, %v3801
        %3803 = vmatprep.mubr.bf16.mxu0 %v676
        %3804 = vmatmul.mubr.bf16.gmra.mxu0 %v675
        %v3805 = vpop.f32.mrf.mxu0
        %v3806 = vadd.f32 0.0, %v3805
        %v3807 = vpop.f32.mrf.mxu0
        %v3808 = vadd.f32 0.0, %v3807
        %v3809 = vpop.f32.mrf.mxu0
        %v3810 = vadd.f32 0.0, %v3809
        %v3811 = vpop.f32.mrf.mxu0
        %v3812 = vadd.f32 0.0, %v3811
        %3813 = vdwg.mxu0
        %3814 = vmatprep.subr.bf16.mxu0 %v3364
        %3815 = vmatpush1.bf16.msra.mxu0 %v3363
        %3816 = vmatprep.subr.bf16.mxu0 %v3362
        %3817 = vmatpush1.bf16.msra.mxu0 %v3361
        %3818 = vmatprep.subr.bf16.mxu0 %v3360
        %3819 = vmatpush1.bf16.msra.mxu0 %v3359
        %3820 = vmatprep.subr.bf16.mxu0 %v3358
        %3821 = vmatpush1.bf16.msra.mxu0 %v3357
        %3822 = vmatprep.subr.bf16.mxu0 %v3356
        %3823 = vmatpush1.bf16.msra.mxu0 %v3355
        %3824 = vmatprep.subr.bf16.mxu0 %v3354
        %3825 = vmatpush1.bf16.msra.mxu0 %v3353
        %3826 = vmatprep.subr.bf16.mxu0 %v3352
        %3827 = vmatpush1.bf16.msra.mxu0 %v3351
        %3828 = vmatprep.subr.bf16.mxu0 %v3350
        %3829 = vmatpush1.bf16.msra.mxu0 %v3349
        %3830 = vmatprep.subr.bf16.mxu0 %v3380
        %3831 = vmatpush2.bf16.msra.mxu0 %v3379
        %3832 = vmatprep.subr.bf16.mxu0 %v3378
        %3833 = vmatpush2.bf16.msra.mxu0 %v3377
        %3834 = vmatprep.subr.bf16.mxu0 %v3376
        %3835 = vmatpush2.bf16.msra.mxu0 %v3375
        %3836 = vmatprep.subr.bf16.mxu0 %v3374
        %3837 = vmatpush2.bf16.msra.mxu0 %v3373
        %3838 = vmatprep.subr.bf16.mxu0 %v3372
        %3839 = vmatpush2.bf16.msra.mxu0 %v3371
        %3840 = vmatprep.subr.bf16.mxu0 %v3370
        %3841 = vmatpush2.bf16.msra.mxu0 %v3369
        %3842 = vmatprep.subr.bf16.mxu0 %v3368
        %3843 = vmatpush2.bf16.msra.mxu0 %v3367
        %3844 = vmatprep.subr.bf16.mxu0 %v3366
        %3845 = vmatpush2.bf16.msra.mxu0 %v3365
        %3846 = vmatprep.mubr.bf16.mxu0 %v594
        %3847 = vmatmul.mubr.bf16.gmra.mxu0 %v593
        %v3848 = vpop.f32.mrf.mxu0
        %v3849 = vadd.f32 %v3736, %v3848
        %v3850 = vpop.f32.mrf.mxu0
        %v3851 = vadd.f32 %v3738, %v3850
        %v3852 = vpop.f32.mrf.mxu0
        %v3853 = vadd.f32 %v3740, %v3852
        %v3854 = vpop.f32.mrf.mxu0
        %v3855 = vadd.f32 %v3742, %v3854
        %3856 = vmatprep.mubr.bf16.mxu0 %v606
        %3857 = vmatmul.mubr.bf16.gmra.mxu0 %v605
        %v3858 = vpop.f32.mrf.mxu0
        %v3859 = vadd.f32 %v3746, %v3858
        %v3860 = vpop.f32.mrf.mxu0
        %v3861 = vadd.f32 %v3748, %v3860
        %v3862 = vpop.f32.mrf.mxu0
        %v3863 = vadd.f32 %v3750, %v3862
        %v3864 = vpop.f32.mrf.mxu0
        %v3865 = vadd.f32 %v3752, %v3864
        %3866 = vmatprep.mubr.bf16.mxu0 %v618
        %3867 = vmatmul.mubr.bf16.gmra.mxu0 %v617
        %v3868 = vpop.f32.mrf.mxu0
        %v3869 = vadd.f32 %v3756, %v3868
        %v3870 = vpop.f32.mrf.mxu0
        %v3871 = vadd.f32 %v3758, %v3870
        %v3872 = vpop.f32.mrf.mxu0
        %v3873 = vadd.f32 %v3760, %v3872
        %v3874 = vpop.f32.mrf.mxu0
        %v3875 = vadd.f32 %v3762, %v3874
        %3876 = vmatprep.mubr.bf16.mxu0 %v630
        %3877 = vmatmul.mubr.bf16.gmra.mxu0 %v629
        %v3878 = vpop.f32.mrf.mxu0
        %v3879 = vadd.f32 %v3766, %v3878
        %v3880 = vpop.f32.mrf.mxu0
        %v3881 = vadd.f32 %v3768, %v3880
        %v3882 = vpop.f32.mrf.mxu0
        %v3883 = vadd.f32 %v3770, %v3882
        %v3884 = vpop.f32.mrf.mxu0
        %v3885 = vadd.f32 %v3772, %v3884
        %3886 = vmatprep.mubr.bf16.mxu0 %v642
        %3887 = vmatmul.mubr.bf16.gmra.mxu0 %v641
        %v3888 = vpop.f32.mrf.mxu0
        %v3889 = vadd.f32 %v3776, %v3888
        %v3890 = vpop.f32.mrf.mxu0
        %v3891 = vadd.f32 %v3778, %v3890
        %v3892 = vpop.f32.mrf.mxu0
        %v3893 = vadd.f32 %v3780, %v3892
        %v3894 = vpop.f32.mrf.mxu0
        %v3895 = vadd.f32 %v3782, %v3894
        %3896 = vmatprep.mubr.bf16.mxu0 %v654
        %3897 = vmatmul.mubr.bf16.gmra.mxu0 %v653
        %v3898 = vpop.f32.mrf.mxu0
        %v3899 = vadd.f32 %v3786, %v3898
        %v3900 = vpop.f32.mrf.mxu0
        %v3901 = vadd.f32 %v3788, %v3900
        %v3902 = vpop.f32.mrf.mxu0
        %v3903 = vadd.f32 %v3790, %v3902
        %v3904 = vpop.f32.mrf.mxu0
        %v3905 = vadd.f32 %v3792, %v3904
        %3906 = vmatprep.mubr.bf16.mxu0 %v666
        %3907 = vmatmul.mubr.bf16.gmra.mxu0 %v665
        %v3908 = vpop.f32.mrf.mxu0
        %v3909 = vadd.f32 %v3796, %v3908
        %v3910 = vpop.f32.mrf.mxu0
        %v3911 = vadd.f32 %v3798, %v3910
        %v3912 = vpop.f32.mrf.mxu0
        %v3913 = vadd.f32 %v3800, %v3912
        %v3914 = vpop.f32.mrf.mxu0
        %v3915 = vadd.f32 %v3802, %v3914
        %3916 = vmatprep.mubr.bf16.mxu0 %v678
        %3917 = vmatmul.mubr.bf16.gmra.mxu0 %v677
        %v3918 = vpop.f32.mrf.mxu0
        %v3919 = vadd.f32 %v3806, %v3918
        %v3920 = vpop.f32.mrf.mxu0
        %v3921 = vadd.f32 %v3808, %v3920
        %v3922 = vpop.f32.mrf.mxu0
        %v3923 = vadd.f32 %v3810, %v3922
        %v3924 = vpop.f32.mrf.mxu0
        %v3925 = vadd.f32 %v3812, %v3924
        %3926 = vdwg.mxu0
        %3927 = vmatprep.subr.bf16.mxu0 %v3396
        %3928 = vmatpush1.bf16.msra.mxu0 %v3395
        %3929 = vmatprep.subr.bf16.mxu0 %v3394
        %3930 = vmatpush1.bf16.msra.mxu0 %v3393
        %3931 = vmatprep.subr.bf16.mxu0 %v3392
        %3932 = vmatpush1.bf16.msra.mxu0 %v3391
        %3933 = vmatprep.subr.bf16.mxu0 %v3390
        %3934 = vmatpush1.bf16.msra.mxu0 %v3389
        %3935 = vmatprep.subr.bf16.mxu0 %v3388
        %3936 = vmatpush1.bf16.msra.mxu0 %v3387
        %3937 = vmatprep.subr.bf16.mxu0 %v3386
        %3938 = vmatpush1.bf16.msra.mxu0 %v3385
        %3939 = vmatprep.subr.bf16.mxu0 %v3384
        %3940 = vmatpush1.bf16.msra.mxu0 %v3383
        %3941 = vmatprep.subr.bf16.mxu0 %v3382
        %3942 = vmatpush1.bf16.msra.mxu0 %v3381
        %3943 = vmatprep.subr.bf16.mxu0 %v3412
        %3944 = vmatpush2.bf16.msra.mxu0 %v3411
        %3945 = vmatprep.subr.bf16.mxu0 %v3410
        %3946 = vmatpush2.bf16.msra.mxu0 %v3409
        %3947 = vmatprep.subr.bf16.mxu0 %v3408
        %3948 = vmatpush2.bf16.msra.mxu0 %v3407
        %3949 = vmatprep.subr.bf16.mxu0 %v3406
        %3950 = vmatpush2.bf16.msra.mxu0 %v3405
        %3951 = vmatprep.subr.bf16.mxu0 %v3404
        %3952 = vmatpush2.bf16.msra.mxu0 %v3403
        %3953 = vmatprep.subr.bf16.mxu0 %v3402
        %3954 = vmatpush2.bf16.msra.mxu0 %v3401
        %3955 = vmatprep.subr.bf16.mxu0 %v3400
        %3956 = vmatpush2.bf16.msra.mxu0 %v3399
        %3957 = vmatprep.subr.bf16.mxu0 %v3398
        %3958 = vmatpush2.bf16.msra.mxu0 %v3397
        %3959 = vmatprep.mubr.bf16.mxu0 %v596
        %3960 = vmatmul.mubr.bf16.gmra.mxu0 %v595
        %v3961 = vpop.f32.mrf.mxu0
        %v3962 = vadd.f32 %v3849, %v3961
        %v3963 = vpop.f32.mrf.mxu0
        %v3964 = vadd.f32 %v3851, %v3963
        %v3965 = vpop.f32.mrf.mxu0
        %v3966 = vadd.f32 %v3853, %v3965
        %v3967 = vpop.f32.mrf.mxu0
        %v3968 = vadd.f32 %v3855, %v3967
        %3969 = vmatprep.mubr.bf16.mxu0 %v608
        %3970 = vmatmul.mubr.bf16.gmra.mxu0 %v607
        %v3971 = vpop.f32.mrf.mxu0
        %v3972 = vadd.f32 %v3859, %v3971
        %v3973 = vpop.f32.mrf.mxu0
        %v3974 = vadd.f32 %v3861, %v3973
        %v3975 = vpop.f32.mrf.mxu0
        %v3976 = vadd.f32 %v3863, %v3975
        %v3977 = vpop.f32.mrf.mxu0
        %v3978 = vadd.f32 %v3865, %v3977
        %3979 = vmatprep.mubr.bf16.mxu0 %v620
        %3980 = vmatmul.mubr.bf16.gmra.mxu0 %v619
        %v3981 = vpop.f32.mrf.mxu0
        %v3982 = vadd.f32 %v3869, %v3981
        %v3983 = vpop.f32.mrf.mxu0
        %v3984 = vadd.f32 %v3871, %v3983
        %v3985 = vpop.f32.mrf.mxu0
        %v3986 = vadd.f32 %v3873, %v3985
        %v3987 = vpop.f32.mrf.mxu0
        %v3988 = vadd.f32 %v3875, %v3987
        %3989 = vmatprep.mubr.bf16.mxu0 %v632
        %3990 = vmatmul.mubr.bf16.gmra.mxu0 %v631
        %v3991 = vpop.f32.mrf.mxu0
        %v3992 = vadd.f32 %v3879, %v3991
        %v3993 = vpop.f32.mrf.mxu0
        %v3994 = vadd.f32 %v3881, %v3993
        %v3995 = vpop.f32.mrf.mxu0
        %v3996 = vadd.f32 %v3883, %v3995
        %v3997 = vpop.f32.mrf.mxu0
        %v3998 = vadd.f32 %v3885, %v3997
        %3999 = vmatprep.mubr.bf16.mxu0 %v644
        %4000 = vmatmul.mubr.bf16.gmra.mxu0 %v643
        %v4001 = vpop.f32.mrf.mxu0
        %v4002 = vadd.f32 %v3889, %v4001
        %v4003 = vpop.f32.mrf.mxu0
        %v4004 = vadd.f32 %v3891, %v4003
        %v4005 = vpop.f32.mrf.mxu0
        %v4006 = vadd.f32 %v3893, %v4005
        %v4007 = vpop.f32.mrf.mxu0
        %v4008 = vadd.f32 %v3895, %v4007
        %4009 = vmatprep.mubr.bf16.mxu0 %v656
        %4010 = vmatmul.mubr.bf16.gmra.mxu0 %v655
        %v4011 = vpop.f32.mrf.mxu0
        %v4012 = vadd.f32 %v3899, %v4011
        %v4013 = vpop.f32.mrf.mxu0
        %v4014 = vadd.f32 %v3901, %v4013
        %v4015 = vpop.f32.mrf.mxu0
        %v4016 = vadd.f32 %v3903, %v4015
        %v4017 = vpop.f32.mrf.mxu0
        %v4018 = vadd.f32 %v3905, %v4017
        %4019 = vmatprep.mubr.bf16.mxu0 %v668
        %4020 = vmatmul.mubr.bf16.gmra.mxu0 %v667
        %v4021 = vpop.f32.mrf.mxu0
        %v4022 = vadd.f32 %v3909, %v4021
        %v4023 = vpop.f32.mrf.mxu0
        %v4024 = vadd.f32 %v3911, %v4023
        %v4025 = vpop.f32.mrf.mxu0
        %v4026 = vadd.f32 %v3913, %v4025
        %v4027 = vpop.f32.mrf.mxu0
        %v4028 = vadd.f32 %v3915, %v4027
        %4029 = vmatprep.mubr.bf16.mxu0 %v680
        %4030 = vmatmul.mubr.bf16.gmra.mxu0 %v679
        %v4031 = vpop.f32.mrf.mxu0
        %v4032 = vadd.f32 %v3919, %v4031
        %v4033 = vpop.f32.mrf.mxu0
        %v4034 = vadd.f32 %v3921, %v4033
        %v4035 = vpop.f32.mrf.mxu0
        %v4036 = vadd.f32 %v3923, %v4035
        %v4037 = vpop.f32.mrf.mxu0
        %v4038 = vadd.f32 %v3925, %v4037
        %4039 = vdwg.mxu0
        %4040 = vmatprep.subr.bf16.mxu0 %v3428
        %4041 = vmatpush1.bf16.msra.mxu0 %v3427
        %4042 = vmatprep.subr.bf16.mxu0 %v3426
        %4043 = vmatpush1.bf16.msra.mxu0 %v3425
        %4044 = vmatprep.subr.bf16.mxu0 %v3424
        %4045 = vmatpush1.bf16.msra.mxu0 %v3423
        %4046 = vmatprep.subr.bf16.mxu0 %v3422
        %4047 = vmatpush1.bf16.msra.mxu0 %v3421
        %4048 = vmatprep.subr.bf16.mxu0 %v3420
        %4049 = vmatpush1.bf16.msra.mxu0 %v3419
        %4050 = vmatprep.subr.bf16.mxu0 %v3418
        %4051 = vmatpush1.bf16.msra.mxu0 %v3417
        %4052 = vmatprep.subr.bf16.mxu0 %v3416
        %4053 = vmatpush1.bf16.msra.mxu0 %v3415
        %4054 = vmatprep.subr.bf16.mxu0 %v3414
        %4055 = vmatpush1.bf16.msra.mxu0 %v3413
        %4056 = vmatprep.subr.bf16.mxu0 %v3444
        %4057 = vmatpush2.bf16.msra.mxu0 %v3443
        %4058 = vmatprep.subr.bf16.mxu0 %v3442
        %4059 = vmatpush2.bf16.msra.mxu0 %v3441
        %4060 = vmatprep.subr.bf16.mxu0 %v3440
        %4061 = vmatpush2.bf16.msra.mxu0 %v3439
        %4062 = vmatprep.subr.bf16.mxu0 %v3438
        %4063 = vmatpush2.bf16.msra.mxu0 %v3437
        %4064 = vmatprep.subr.bf16.mxu0 %v3436
        %4065 = vmatpush2.bf16.msra.mxu0 %v3435
        %4066 = vmatprep.subr.bf16.mxu0 %v3434
        %4067 = vmatpush2.bf16.msra.mxu0 %v3433
        %4068 = vmatprep.subr.bf16.mxu0 %v3432
        %4069 = vmatpush2.bf16.msra.mxu0 %v3431
        %4070 = vmatprep.subr.bf16.mxu0 %v3430
        %4071 = vmatpush2.bf16.msra.mxu0 %v3429
        %4072 = vmatprep.mubr.bf16.mxu0 %v598
        %4073 = vmatmul.mubr.bf16.gmra.mxu0 %v597
        %v4074 = vpop.f32.mrf.mxu0
        %v4075 = vadd.f32 %v3962, %v4074
        %v4076 = vpop.f32.mrf.mxu0
        %v4077 = vadd.f32 %v3964, %v4076
        %v4078 = vpop.f32.mrf.mxu0
        %v4079 = vadd.f32 %v3966, %v4078
        %v4080 = vpop.f32.mrf.mxu0
        %v4081 = vadd.f32 %v3968, %v4080
        %4082 = vmatprep.mubr.bf16.mxu0 %v610
        %4083 = vmatmul.mubr.bf16.gmra.mxu0 %v609
        %v4084 = vpop.f32.mrf.mxu0
        %v4085 = vadd.f32 %v3972, %v4084
        %v4086 = vpop.f32.mrf.mxu0
        %v4087 = vadd.f32 %v3974, %v4086
        %v4088 = vpop.f32.mrf.mxu0
        %v4089 = vadd.f32 %v3976, %v4088
        %v4090 = vpop.f32.mrf.mxu0
        %v4091 = vadd.f32 %v3978, %v4090
        %4092 = vmatprep.mubr.bf16.mxu0 %v622
        %4093 = vmatmul.mubr.bf16.gmra.mxu0 %v621
        %v4094 = vpop.f32.mrf.mxu0
        %v4095 = vadd.f32 %v3982, %v4094
        %v4096 = vpop.f32.mrf.mxu0
        %v4097 = vadd.f32 %v3984, %v4096
        %v4098 = vpop.f32.mrf.mxu0
        %v4099 = vadd.f32 %v3986, %v4098
        %v4100 = vpop.f32.mrf.mxu0
        %v4101 = vadd.f32 %v3988, %v4100
        %4102 = vmatprep.mubr.bf16.mxu0 %v634
        %4103 = vmatmul.mubr.bf16.gmra.mxu0 %v633
        %v4104 = vpop.f32.mrf.mxu0
        %v4105 = vadd.f32 %v3992, %v4104
        %v4106 = vpop.f32.mrf.mxu0
        %v4107 = vadd.f32 %v3994, %v4106
        %v4108 = vpop.f32.mrf.mxu0
        %v4109 = vadd.f32 %v3996, %v4108
        %v4110 = vpop.f32.mrf.mxu0
        %v4111 = vadd.f32 %v3998, %v4110
        %4112 = vmatprep.mubr.bf16.mxu0 %v646
        %4113 = vmatmul.mubr.bf16.gmra.mxu0 %v645
        %v4114 = vpop.f32.mrf.mxu0
        %v4115 = vadd.f32 %v4002, %v4114
        %v4116 = vpop.f32.mrf.mxu0
        %v4117 = vadd.f32 %v4004, %v4116
        %v4118 = vpop.f32.mrf.mxu0
        %v4119 = vadd.f32 %v4006, %v4118
        %v4120 = vpop.f32.mrf.mxu0
        %v4121 = vadd.f32 %v4008, %v4120
        %4122 = vmatprep.mubr.bf16.mxu0 %v658
        %4123 = vmatmul.mubr.bf16.gmra.mxu0 %v657
        %v4124 = vpop.f32.mrf.mxu0
        %v4125 = vadd.f32 %v4012, %v4124
        %v4126 = vpop.f32.mrf.mxu0
        %v4127 = vadd.f32 %v4014, %v4126
        %v4128 = vpop.f32.mrf.mxu0
        %v4129 = vadd.f32 %v4016, %v4128
        %v4130 = vpop.f32.mrf.mxu0
        %v4131 = vadd.f32 %v4018, %v4130
        %4132 = vmatprep.mubr.bf16.mxu0 %v670
        %4133 = vmatmul.mubr.bf16.gmra.mxu0 %v669
        %v4134 = vpop.f32.mrf.mxu0
        %v4135 = vadd.f32 %v4022, %v4134
        %v4136 = vpop.f32.mrf.mxu0
        %v4137 = vadd.f32 %v4024, %v4136
        %v4138 = vpop.f32.mrf.mxu0
        %v4139 = vadd.f32 %v4026, %v4138
        %v4140 = vpop.f32.mrf.mxu0
        %v4141 = vadd.f32 %v4028, %v4140
        %4142 = vmatprep.mubr.bf16.mxu0 %v682
        %4143 = vmatmul.mubr.bf16.gmra.mxu0 %v681
        %v4144 = vpop.f32.mrf.mxu0
        %v4145 = vadd.f32 %v4032, %v4144
        %v4146 = vpop.f32.mrf.mxu0
        %v4147 = vadd.f32 %v4034, %v4146
        %v4148 = vpop.f32.mrf.mxu0
        %v4149 = vadd.f32 %v4036, %v4148
        %v4150 = vpop.f32.mrf.mxu0
        %v4151 = vadd.f32 %v4038, %v4150
        %4152 = vdwg.mxu0
        %4153 = vmatprep.subr.bf16.mxu0 %v3460
        %4154 = vmatpush1.bf16.msra.mxu0 %v3459
        %4155 = vmatprep.subr.bf16.mxu0 %v3458
        %4156 = vmatpush1.bf16.msra.mxu0 %v3457
        %4157 = vmatprep.subr.bf16.mxu0 %v3456
        %4158 = vmatpush1.bf16.msra.mxu0 %v3455
        %4159 = vmatprep.subr.bf16.mxu0 %v3454
        %4160 = vmatpush1.bf16.msra.mxu0 %v3453
        %4161 = vmatprep.subr.bf16.mxu0 %v3452
        %4162 = vmatpush1.bf16.msra.mxu0 %v3451
        %4163 = vmatprep.subr.bf16.mxu0 %v3450
        %4164 = vmatpush1.bf16.msra.mxu0 %v3449
        %4165 = vmatprep.subr.bf16.mxu0 %v3448
        %4166 = vmatpush1.bf16.msra.mxu0 %v3447
        %4167 = vmatprep.subr.bf16.mxu0 %v3446
        %4168 = vmatpush1.bf16.msra.mxu0 %v3445
        %4169 = vmatprep.subr.bf16.mxu0 %v3476
        %4170 = vmatpush2.bf16.msra.mxu0 %v3475
        %4171 = vmatprep.subr.bf16.mxu0 %v3474
        %4172 = vmatpush2.bf16.msra.mxu0 %v3473
        %4173 = vmatprep.subr.bf16.mxu0 %v3472
        %4174 = vmatpush2.bf16.msra.mxu0 %v3471
        %4175 = vmatprep.subr.bf16.mxu0 %v3470
        %4176 = vmatpush2.bf16.msra.mxu0 %v3469
        %4177 = vmatprep.subr.bf16.mxu0 %v3468
        %4178 = vmatpush2.bf16.msra.mxu0 %v3467
        %4179 = vmatprep.subr.bf16.mxu0 %v3466
        %4180 = vmatpush2.bf16.msra.mxu0 %v3465
        %4181 = vmatprep.subr.bf16.mxu0 %v3464
        %4182 = vmatpush2.bf16.msra.mxu0 %v3463
        %4183 = vmatprep.subr.bf16.mxu0 %v3462
        %4184 = vmatpush2.bf16.msra.mxu0 %v3461
        %4185 = vmatprep.mubr.bf16.mxu0 %v600
        %4186 = vmatmul.mubr.bf16.gmra.mxu0 %v599
        %v4187 = vpop.f32.mrf.mxu0
        %v4188 = vadd.f32 %v4075, %v4187
        %v4189 = vpop.f32.mrf.mxu0
        %v4190 = vadd.f32 %v4077, %v4189
        %v4191 = vpop.f32.mrf.mxu0
        %v4192 = vadd.f32 %v4079, %v4191
        %v4193 = vpop.f32.mrf.mxu0
        %v4194 = vadd.f32 %v4081, %v4193
        %4195 = vmatprep.mubr.bf16.mxu0 %v612
        %4196 = vmatmul.mubr.bf16.gmra.mxu0 %v611
        %v4197 = vpop.f32.mrf.mxu0
        %v4198 = vadd.f32 %v4085, %v4197
        %v4199 = vpop.f32.mrf.mxu0
        %v4200 = vadd.f32 %v4087, %v4199
        %v4201 = vpop.f32.mrf.mxu0
        %v4202 = vadd.f32 %v4089, %v4201
        %v4203 = vpop.f32.mrf.mxu0
        %v4204 = vadd.f32 %v4091, %v4203
        %4205 = vmatprep.mubr.bf16.mxu0 %v624
        %4206 = vmatmul.mubr.bf16.gmra.mxu0 %v623
        %v4207 = vpop.f32.mrf.mxu0
        %v4208 = vadd.f32 %v4095, %v4207
        %v4209 = vpop.f32.mrf.mxu0
        %v4210 = vadd.f32 %v4097, %v4209
        %v4211 = vpop.f32.mrf.mxu0
        %v4212 = vadd.f32 %v4099, %v4211
        %v4213 = vpop.f32.mrf.mxu0
        %v4214 = vadd.f32 %v4101, %v4213
        %4215 = vmatprep.mubr.bf16.mxu0 %v636
        %4216 = vmatmul.mubr.bf16.gmra.mxu0 %v635
        %v4217 = vpop.f32.mrf.mxu0
        %v4218 = vadd.f32 %v4105, %v4217
        %v4219 = vpop.f32.mrf.mxu0
        %v4220 = vadd.f32 %v4107, %v4219
        %v4221 = vpop.f32.mrf.mxu0
        %v4222 = vadd.f32 %v4109, %v4221
        %v4223 = vpop.f32.mrf.mxu0
        %v4224 = vadd.f32 %v4111, %v4223
        %4225 = vmatprep.mubr.bf16.mxu0 %v648
        %4226 = vmatmul.mubr.bf16.gmra.mxu0 %v647
        %v4227 = vpop.f32.mrf.mxu0
        %v4228 = vadd.f32 %v4115, %v4227
        %v4229 = vpop.f32.mrf.mxu0
        %v4230 = vadd.f32 %v4117, %v4229
        %v4231 = vpop.f32.mrf.mxu0
        %v4232 = vadd.f32 %v4119, %v4231
        %v4233 = vpop.f32.mrf.mxu0
        %v4234 = vadd.f32 %v4121, %v4233
        %4235 = vmatprep.mubr.bf16.mxu0 %v660
        %4236 = vmatmul.mubr.bf16.gmra.mxu0 %v659
        %v4237 = vpop.f32.mrf.mxu0
        %v4238 = vadd.f32 %v4125, %v4237
        %v4239 = vpop.f32.mrf.mxu0
        %v4240 = vadd.f32 %v4127, %v4239
        %v4241 = vpop.f32.mrf.mxu0
        %v4242 = vadd.f32 %v4129, %v4241
        %v4243 = vpop.f32.mrf.mxu0
        %v4244 = vadd.f32 %v4131, %v4243
        %4245 = vmatprep.mubr.bf16.mxu0 %v672
        %4246 = vmatmul.mubr.bf16.gmra.mxu0 %v671
        %v4247 = vpop.f32.mrf.mxu0
        %v4248 = vadd.f32 %v4135, %v4247
        %v4249 = vpop.f32.mrf.mxu0
        %v4250 = vadd.f32 %v4137, %v4249
        %v4251 = vpop.f32.mrf.mxu0
        %v4252 = vadd.f32 %v4139, %v4251
        %v4253 = vpop.f32.mrf.mxu0
        %v4254 = vadd.f32 %v4141, %v4253
        %4255 = vmatprep.mubr.bf16.mxu0 %v684
        %4256 = vmatmul.mubr.bf16.gmra.mxu0 %v683
        %v4257 = vpop.f32.mrf.mxu0
        %v4258 = vadd.f32 %v4145, %v4257
        %v4259 = vpop.f32.mrf.mxu0
        %v4260 = vadd.f32 %v4147, %v4259
        %v4261 = vpop.f32.mrf.mxu0
        %v4262 = vadd.f32 %v4149, %v4261
        %v4263 = vpop.f32.mrf.mxu0
        %v4264 = vadd.f32 %v4151, %v4263
        %4265 = vdwg.mxu0
        %4266 = vmatprep.subr.bf16.mxu0 %v3492
        %4267 = vmatpush1.bf16.msra.mxu0 %v3491
        %4268 = vmatprep.subr.bf16.mxu0 %v3490
        %4269 = vmatpush1.bf16.msra.mxu0 %v3489
        %4270 = vmatprep.subr.bf16.mxu0 %v3488
        %4271 = vmatpush1.bf16.msra.mxu0 %v3487
        %4272 = vmatprep.subr.bf16.mxu0 %v3486
        %4273 = vmatpush1.bf16.msra.mxu0 %v3485
        %4274 = vmatprep.subr.bf16.mxu0 %v3484
        %4275 = vmatpush1.bf16.msra.mxu0 %v3483
        %4276 = vmatprep.subr.bf16.mxu0 %v3482
        %4277 = vmatpush1.bf16.msra.mxu0 %v3481
        %4278 = vmatprep.subr.bf16.mxu0 %v3480
        %4279 = vmatpush1.bf16.msra.mxu0 %v3479
        %4280 = vmatprep.subr.bf16.mxu0 %v3478
        %4281 = vmatpush1.bf16.msra.mxu0 %v3477
        %4282 = vmatprep.subr.bf16.mxu0 %v3508
        %4283 = vmatpush2.bf16.msra.mxu0 %v3507
        %4284 = vmatprep.subr.bf16.mxu0 %v3506
        %4285 = vmatpush2.bf16.msra.mxu0 %v3505
        %4286 = vmatprep.subr.bf16.mxu0 %v3504
        %4287 = vmatpush2.bf16.msra.mxu0 %v3503
        %4288 = vmatprep.subr.bf16.mxu0 %v3502
        %4289 = vmatpush2.bf16.msra.mxu0 %v3501
        %4290 = vmatprep.subr.bf16.mxu0 %v3500
        %4291 = vmatpush2.bf16.msra.mxu0 %v3499
        %4292 = vmatprep.subr.bf16.mxu0 %v3498
        %4293 = vmatpush2.bf16.msra.mxu0 %v3497
        %4294 = vmatprep.subr.bf16.mxu0 %v3496
        %4295 = vmatpush2.bf16.msra.mxu0 %v3495
        %4296 = vmatprep.subr.bf16.mxu0 %v3494
        %4297 = vmatpush2.bf16.msra.mxu0 %v3493
        %4298 = vmatprep.mubr.bf16.mxu0 %v602
        %4299 = vmatmul.mubr.bf16.gmra.mxu0 %v601
        %v4300 = vpop.f32.mrf.mxu0
        %v4301 = vadd.f32 %v4188, %v4300
        %v4302 = vpop.f32.mrf.mxu0
        %v4303 = vadd.f32 %v4190, %v4302
        %v4304 = vpop.f32.mrf.mxu0
        %v4305 = vadd.f32 %v4192, %v4304
        %v4306 = vpop.f32.mrf.mxu0
        %v4307 = vadd.f32 %v4194, %v4306
        %4308 = vmatprep.mubr.bf16.mxu0 %v614
        %4309 = vmatmul.mubr.bf16.gmra.mxu0 %v613
        %v4310 = vpop.f32.mrf.mxu0
        %v4311 = vadd.f32 %v4198, %v4310
        %v4312 = vpop.f32.mrf.mxu0
        %v4313 = vadd.f32 %v4200, %v4312
        %v4314 = vpop.f32.mrf.mxu0
        %v4315 = vadd.f32 %v4202, %v4314
        %v4316 = vpop.f32.mrf.mxu0
        %v4317 = vadd.f32 %v4204, %v4316
        %4318 = vmatprep.mubr.bf16.mxu0 %v626
        %4319 = vmatmul.mubr.bf16.gmra.mxu0 %v625
        %v4320 = vpop.f32.mrf.mxu0
        %v4321 = vadd.f32 %v4208, %v4320
        %v4322 = vpop.f32.mrf.mxu0
        %v4323 = vadd.f32 %v4210, %v4322
        %v4324 = vpop.f32.mrf.mxu0
        %v4325 = vadd.f32 %v4212, %v4324
        %v4326 = vpop.f32.mrf.mxu0
        %v4327 = vadd.f32 %v4214, %v4326
        %4328 = vmatprep.mubr.bf16.mxu0 %v638
        %4329 = vmatmul.mubr.bf16.gmra.mxu0 %v637
        %v4330 = vpop.f32.mrf.mxu0
        %v4331 = vadd.f32 %v4218, %v4330
        %v4332 = vpop.f32.mrf.mxu0
        %v4333 = vadd.f32 %v4220, %v4332
        %v4334 = vpop.f32.mrf.mxu0
        %v4335 = vadd.f32 %v4222, %v4334
        %v4336 = vpop.f32.mrf.mxu0
        %v4337 = vadd.f32 %v4224, %v4336
        %4338 = vmatprep.mubr.bf16.mxu0 %v650
        %4339 = vmatmul.mubr.bf16.gmra.mxu0 %v649
        %v4340 = vpop.f32.mrf.mxu0
        %v4341 = vadd.f32 %v4228, %v4340
        %v4342 = vpop.f32.mrf.mxu0
        %v4343 = vadd.f32 %v4230, %v4342
        %v4344 = vpop.f32.mrf.mxu0
        %v4345 = vadd.f32 %v4232, %v4344
        %v4346 = vpop.f32.mrf.mxu0
        %v4347 = vadd.f32 %v4234, %v4346
        %4348 = vmatprep.mubr.bf16.mxu0 %v662
        %4349 = vmatmul.mubr.bf16.gmra.mxu0 %v661
        %v4350 = vpop.f32.mrf.mxu0
        %v4351 = vadd.f32 %v4238, %v4350
        %v4352 = vpop.f32.mrf.mxu0
        %v4353 = vadd.f32 %v4240, %v4352
        %v4354 = vpop.f32.mrf.mxu0
        %v4355 = vadd.f32 %v4242, %v4354
        %v4356 = vpop.f32.mrf.mxu0
        %v4357 = vadd.f32 %v4244, %v4356
        %4358 = vmatprep.mubr.bf16.mxu0 %v674
        %4359 = vmatmul.mubr.bf16.gmra.mxu0 %v673
        %v4360 = vpop.f32.mrf.mxu0
        %v4361 = vadd.f32 %v4248, %v4360
        %v4362 = vpop.f32.mrf.mxu0
        %v4363 = vadd.f32 %v4250, %v4362
        %v4364 = vpop.f32.mrf.mxu0
        %v4365 = vadd.f32 %v4252, %v4364
        %v4366 = vpop.f32.mrf.mxu0
        %v4367 = vadd.f32 %v4254, %v4366
        %4368 = vmatprep.mubr.bf16.mxu0 %v686
        %4369 = vmatmul.mubr.bf16.gmra.mxu0 %v685
        %v4370 = vpop.f32.mrf.mxu0
        %v4371 = vadd.f32 %v4258, %v4370
        %v4372 = vpop.f32.mrf.mxu0
        %v4373 = vadd.f32 %v4260, %v4372
        %v4374 = vpop.f32.mrf.mxu0
        %v4375 = vadd.f32 %v4262, %v4374
        %v4376 = vpop.f32.mrf.mxu0
        %v4377 = vadd.f32 %v4264, %v4376
        %4378 = vdwg.mxu0
        %v4379 = vmax.f32 %v4301, 0.0
        %v4380 = vmax.f32 %v4303, 0.0
        %v4381 = vmax.f32 %v4305, 0.0
        %v4382 = vmax.f32 %v4307, 0.0
        %v4383 = vmax.f32 %v4311, 0.0
        %v4384 = vmax.f32 %v4313, 0.0
        %v4385 = vmax.f32 %v4315, 0.0
        %v4386 = vmax.f32 %v4317, 0.0
        %v4387 = vmax.f32 %v4321, 0.0
        %v4388 = vmax.f32 %v4323, 0.0
        %v4389 = vmax.f32 %v4325, 0.0
        %v4390 = vmax.f32 %v4327, 0.0
        %v4391 = vmax.f32 %v4331, 0.0
        %v4392 = vmax.f32 %v4333, 0.0
        %v4393 = vmax.f32 %v4335, 0.0
        %v4394 = vmax.f32 %v4337, 0.0
        %v4395 = vmax.f32 %v4341, 0.0
        %v4396 = vmax.f32 %v4343, 0.0
        %v4397 = vmax.f32 %v4345, 0.0
        %v4398 = vmax.f32 %v4347, 0.0
        %v4399 = vmax.f32 %v4351, 0.0
        %v4400 = vmax.f32 %v4353, 0.0
        %v4401 = vmax.f32 %v4355, 0.0
        %v4402 = vmax.f32 %v4357, 0.0
        %v4403 = vmax.f32 %v4361, 0.0
        %v4404 = vmax.f32 %v4363, 0.0
        %v4405 = vmax.f32 %v4365, 0.0
        %v4406 = vmax.f32 %v4367, 0.0
        %v4407 = vmax.f32 %v4371, 0.0
        %v4408 = vmax.f32 %v4373, 0.0
        %v4409 = vmax.f32 %v4375, 0.0
        %v4410 = vmax.f32 %v4377, 0.0
        %vm4411 = vcmask 1040384
        %vm4412 = vsmask.f32 256
        %vm4413 = vmand %vm4411, %vm4412
        %vm4414 = vcmask 126980
        %vm4415 = vsmask.f32 4352
        %vm4416 = vmand %vm4414, %vm4415
        %vm4417 = vmor %vm4416, %vm4413
        %v4418 = vld [vmem:[#allocation2] sm:$0x11]
        %v4419 = vsel %vm4417, 0, %v4418
        %4420 = vst [vmem:[#allocation2] sm:$0x11] %v4419
        %v4421 = vld [vmem:[#allocation2 + $0x10] sm:$0x11]
        %v4422 = vsel %vm4417, 0, %v4421
        %4423 = vst [vmem:[#allocation2 + $0x10] sm:$0x11] %v4422
        %v4424 = vld [vmem:[#allocation2 + $0x20] sm:$0x11]
        %v4425 = vsel %vm4417, 0, %v4424
        %4426 = vst [vmem:[#allocation2 + $0x20] sm:$0x11] %v4425
        %v4427 = vld [vmem:[#allocation2 + $0x30] sm:$0x11]
        %v4428 = vsel %vm4417, 0, %v4427
        %4429 = vst [vmem:[#allocation2 + $0x30] sm:$0x11] %v4428
        %v4430 = vld [vmem:[#allocation2 + $0x40] sm:$0x11]
        %v4431 = vsel %vm4417, 0, %v4430
        %4432 = vst [vmem:[#allocation2 + $0x40] sm:$0x11] %v4431
        %v4433 = vld [vmem:[#allocation2 + $0x50] sm:$0x11]
        %v4434 = vsel %vm4417, 0, %v4433
        %4435 = vst [vmem:[#allocation2 + $0x50] sm:$0x11] %v4434
        %v4436 = vld [vmem:[#allocation2 + $0x60] sm:$0x11]
        %v4437 = vsel %vm4417, 0, %v4436
        %4438 = vst [vmem:[#allocation2 + $0x60] sm:$0x11] %v4437
        %v4439 = vld [vmem:[#allocation2 + $0x70] sm:$0x11]
        %v4440 = vsel %vm4417, 0, %v4439
        %4441 = vst [vmem:[#allocation2 + $0x70] sm:$0x11] %v4440
        %v4442 = vld [vmem:[#allocation2 + $0x80] sm:$0x11]
        %v4443 = vsel %vm4417, 0, %v4442
        %4444 = vst [vmem:[#allocation2 + $0x80] sm:$0x11] %v4443
        %v4445 = vld [vmem:[#allocation2 + $0x90] sm:$0x11]
        %v4446 = vsel %vm4417, 0, %v4445
        %4447 = vst [vmem:[#allocation2 + $0x90] sm:$0x11] %v4446
        %v4448 = vld [vmem:[#allocation2 + $0xa0] sm:$0x11]
        %v4449 = vsel %vm4417, 0, %v4448
        %4450 = vst [vmem:[#allocation2 + $0xa0] sm:$0x11] %v4449
        %v4451 = vld [vmem:[#allocation2 + $0xb0] sm:$0x11]
        %v4452 = vsel %vm4417, 0, %v4451
        %4453 = vst [vmem:[#allocation2 + $0xb0] sm:$0x11] %v4452
        %v4454 = vld [vmem:[#allocation2 + $0xc0] sm:$0x11]
        %v4455 = vsel %vm4417, 0, %v4454
        %4456 = vst [vmem:[#allocation2 + $0xc0] sm:$0x11] %v4455
        %v4457 = vld [vmem:[#allocation2 + $0xd0] sm:$0x11]
        %v4458 = vsel %vm4417, 0, %v4457
        %4459 = vst [vmem:[#allocation2 + $0xd0] sm:$0x11] %v4458
        %v4460 = vld [vmem:[#allocation2 + $0xe0] sm:$0x11]
        %v4461 = vsel %vm4417, 0, %v4460
        %4462 = vst [vmem:[#allocation2 + $0xe0] sm:$0x11] %v4461
        %v4463 = vld [vmem:[#allocation2 + $0xf0] sm:$0x11]
        %v4464 = vsel %vm4417, 0, %v4463
        %4465 = vst [vmem:[#allocation2 + $0xf0] sm:$0x11] %v4464
        %vm4466 = vsmask.f32 7938
        %vm4467 = vmand %vm4411, %vm4466
        %vm4468 = vsmask.f32 7954
        %vm4469 = vmand %vm4414, %vm4468
        %vm4470 = vmor %vm4469, %vm4467
        %v4471 = vld [vmem:[#allocation2 + $0x8] sm:$0x11]
        %v4472 = vsel %vm4470, 0, %v4471
        %4473 = vst [vmem:[#allocation2 + $0x8] sm:$0x11] %v4472
        %v4474 = vld [vmem:[#allocation2 + $0x18] sm:$0x11]
        %v4475 = vsel %vm4470, 0, %v4474
        %4476 = vst [vmem:[#allocation2 + $0x18] sm:$0x11] %v4475
        %v4477 = vld [vmem:[#allocation2 + $0x28] sm:$0x11]
        %v4478 = vsel %vm4470, 0, %v4477
        %4479 = vst [vmem:[#allocation2 + $0x28] sm:$0x11] %v4478
        %v4480 = vld [vmem:[#allocation2 + $0x38] sm:$0x11]
        %v4481 = vsel %vm4470, 0, %v4480
        %4482 = vst [vmem:[#allocation2 + $0x38] sm:$0x11] %v4481
        %v4483 = vld [vmem:[#allocation2 + $0x48] sm:$0x11]
        %v4484 = vsel %vm4470, 0, %v4483
        %4485 = vst [vmem:[#allocation2 + $0x48] sm:$0x11] %v4484
        %v4486 = vld [vmem:[#allocation2 + $0x58] sm:$0x11]
        %v4487 = vsel %vm4470, 0, %v4486
        %4488 = vst [vmem:[#allocation2 + $0x58] sm:$0x11] %v4487
        %v4489 = vld [vmem:[#allocation2 + $0x68] sm:$0x11]
        %v4490 = vsel %vm4470, 0, %v4489
        %4491 = vst [vmem:[#allocation2 + $0x68] sm:$0x11] %v4490
        %v4492 = vld [vmem:[#allocation2 + $0x78] sm:$0x11]
        %v4493 = vsel %vm4470, 0, %v4492
        %4494 = vst [vmem:[#allocation2 + $0x78] sm:$0x11] %v4493
        %v4495 = vld [vmem:[#allocation2 + $0x88] sm:$0x11]
        %v4496 = vsel %vm4470, 0, %v4495
        %4497 = vst [vmem:[#allocation2 + $0x88] sm:$0x11] %v4496
        %v4498 = vld [vmem:[#allocation2 + $0x98] sm:$0x11]
        %v4499 = vsel %vm4470, 0, %v4498
        %4500 = vst [vmem:[#allocation2 + $0x98] sm:$0x11] %v4499
        %v4501 = vld [vmem:[#allocation2 + $0xa8] sm:$0x11]
        %v4502 = vsel %vm4470, 0, %v4501
        %4503 = vst [vmem:[#allocation2 + $0xa8] sm:$0x11] %v4502
        %v4504 = vld [vmem:[#allocation2 + $0xb8] sm:$0x11]
        %v4505 = vsel %vm4470, 0, %v4504
        %4506 = vst [vmem:[#allocation2 + $0xb8] sm:$0x11] %v4505
        %v4507 = vld [vmem:[#allocation2 + $0xc8] sm:$0x11]
        %v4508 = vsel %vm4470, 0, %v4507
        %4509 = vst [vmem:[#allocation2 + $0xc8] sm:$0x11] %v4508
        %v4510 = vld [vmem:[#allocation2 + $0xd8] sm:$0x11]
        %v4511 = vsel %vm4470, 0, %v4510
        %4512 = vst [vmem:[#allocation2 + $0xd8] sm:$0x11] %v4511
        %v4513 = vld [vmem:[#allocation2 + $0xe8] sm:$0x11]
        %v4514 = vsel %vm4470, 0, %v4513
        %4515 = vst [vmem:[#allocation2 + $0xe8] sm:$0x11] %v4514
        %v4516 = vld [vmem:[#allocation2 + $0xf8] sm:$0x11]
        %v4517 = vsel %vm4470, 0, %v4516
        %4518 = vst [vmem:[#allocation2 + $0xf8] sm:$0x11] %v4517
        %v4519 = vpack.c.bf16 %v4381, %v4379
        %v4520 = vpack.c.bf16 %v4382, %v4380
        %v4521 = vpack.c.bf16 %v4385, %v4383
        %v4522 = vpack.c.bf16 %v4386, %v4384
        %v4523 = vpack.c.bf16 %v4389, %v4387
        %v4524 = vpack.c.bf16 %v4390, %v4388
        %v4525 = vpack.c.bf16 %v4393, %v4391
        %v4526 = vpack.c.bf16 %v4394, %v4392
        %v4527 = vpack.c.bf16 %v4397, %v4395
        %v4528 = vpack.c.bf16 %v4398, %v4396
        %v4529 = vpack.c.bf16 %v4401, %v4399
        %v4530 = vpack.c.bf16 %v4402, %v4400
        %v4531 = vpack.c.bf16 %v4405, %v4403
        %v4532 = vpack.c.bf16 %v4406, %v4404
        %v4533 = vpack.c.bf16 %v4409, %v4407
        %v4534 = vpack.c.bf16 %v4410, %v4408
        %v4551 = vunpack.c.l.b16 %v4519
        %v4552 = vunpack.c.l.b16 %v4520
        %v4553 = vunpack.c.h.b16 %v4519
        %v4554 = vunpack.c.h.b16 %v4520
        %v4555 = vunpack.c.l.b16 %v4521
        %v4556 = vunpack.c.l.b16 %v4522
        %v4557 = vunpack.c.h.b16 %v4521
        %v4558 = vunpack.c.h.b16 %v4522
        %v4559 = vunpack.c.l.b16 %v4523
        %v4560 = vunpack.c.l.b16 %v4524
        %v4561 = vunpack.c.h.b16 %v4523
        %v4562 = vunpack.c.h.b16 %v4524
        %v4563 = vunpack.c.l.b16 %v4525
        %v4564 = vunpack.c.l.b16 %v4526
        %v4565 = vunpack.c.h.b16 %v4525
        %v4566 = vunpack.c.h.b16 %v4526
        %v4567 = vunpack.c.l.b16 %v4527
        %v4568 = vunpack.c.l.b16 %v4528
        %v4569 = vunpack.c.h.b16 %v4527
        %v4570 = vunpack.c.h.b16 %v4528
        %v4571 = vunpack.c.l.b16 %v4529
        %v4572 = vunpack.c.l.b16 %v4530
        %v4573 = vunpack.c.h.b16 %v4529
        %v4574 = vunpack.c.h.b16 %v4530
        %v4575 = vunpack.c.l.b16 %v4531
        %v4576 = vunpack.c.l.b16 %v4532
        %v4577 = vunpack.c.h.b16 %v4531
        %v4578 = vunpack.c.h.b16 %v4532
        %v4579 = vunpack.c.l.b16 %v4533
        %v4580 = vunpack.c.l.b16 %v4534
        %v4581 = vunpack.c.h.b16 %v4533
        %v4582 = vunpack.c.h.b16 %v4534
        %v4583 = vpack.c.b16 %v4552, %v4551
        %v4584 = vpack.c.b16 %v4554, %v4553
        %v4585 = vpack.c.b16 %v4556, %v4555
        %v4586 = vpack.c.b16 %v4558, %v4557
        %v4587 = vpack.c.b16 %v4560, %v4559
        %v4588 = vpack.c.b16 %v4562, %v4561
        %v4589 = vpack.c.b16 %v4564, %v4563
        %v4590 = vpack.c.b16 %v4566, %v4565
        %v4591 = vpack.c.b16 %v4568, %v4567
        %v4592 = vpack.c.b16 %v4570, %v4569
        %v4593 = vpack.c.b16 %v4572, %v4571
        %v4594 = vpack.c.b16 %v4574, %v4573
        %v4595 = vpack.c.b16 %v4576, %v4575
        %v4596 = vpack.c.b16 %v4578, %v4577
        %v4597 = vpack.c.b16 %v4580, %v4579
        %v4598 = vpack.c.b16 %v4582, %v4581
        %v4600 = vshrl.u32 %v4583, 16
        %v4602 = vrot.slane %v4600, 7
        %v4603 = vshll.u32 %v4583, 16
        %v4605 = vor.u32 %v4602, %v4603
        %v4606 = vrot.slane %v4602, 4
        %v4608 = vshrl.u32 %v4584, 16
        %v4610 = vrot.slane %v4608, 7
        %v4611 = vshll.u32 %v4584, 16
        %v4613 = vor.u32 %v4610, %v4611
        %v4614 = vrot.slane %v4610, 4
        %v4616 = vshrl.u32 %v4585, 16
        %v4618 = vrot.slane %v4616, 7
        %v4619 = vshll.u32 %v4585, 16
        %v4621 = vor.u32 %v4618, %v4619
        %v4622 = vrot.slane %v4618, 4
        %v4624 = vshrl.u32 %v4586, 16
        %v4626 = vrot.slane %v4624, 7
        %v4627 = vshll.u32 %v4586, 16
        %v4629 = vor.u32 %v4626, %v4627
        %v4630 = vrot.slane %v4626, 4
        %v4632 = vshrl.u32 %v4587, 16
        %v4634 = vrot.slane %v4632, 7
        %v4635 = vshll.u32 %v4587, 16
        %v4637 = vor.u32 %v4634, %v4635
        %v4638 = vrot.slane %v4634, 4
        %v4640 = vshrl.u32 %v4588, 16
        %v4642 = vrot.slane %v4640, 7
        %v4643 = vshll.u32 %v4588, 16
        %v4645 = vor.u32 %v4642, %v4643
        %v4646 = vrot.slane %v4642, 4
        %v4648 = vshrl.u32 %v4589, 16
        %v4650 = vrot.slane %v4648, 7
        %v4651 = vshll.u32 %v4589, 16
        %v4653 = vor.u32 %v4650, %v4651
        %v4654 = vrot.slane %v4650, 4
        %v4656 = vshrl.u32 %v4590, 16
        %v4658 = vrot.slane %v4656, 7
        %v4659 = vshll.u32 %v4590, 16
        %v4661 = vor.u32 %v4658, %v4659
        %v4662 = vrot.slane %v4658, 4
        %v4664 = vshrl.u32 %v4591, 16
        %v4666 = vrot.slane %v4664, 7
        %v4667 = vshll.u32 %v4591, 16
        %v4669 = vor.u32 %v4666, %v4667
        %v4670 = vrot.slane %v4666, 4
        %v4672 = vshrl.u32 %v4592, 16
        %v4674 = vrot.slane %v4672, 7
        %v4675 = vshll.u32 %v4592, 16
        %v4677 = vor.u32 %v4674, %v4675
        %v4678 = vrot.slane %v4674, 4
        %v4680 = vshrl.u32 %v4593, 16
        %v4682 = vrot.slane %v4680, 7
        %v4683 = vshll.u32 %v4593, 16
        %v4685 = vor.u32 %v4682, %v4683
        %v4686 = vrot.slane %v4682, 4
        %v4688 = vshrl.u32 %v4594, 16
        %v4690 = vrot.slane %v4688, 7
        %v4691 = vshll.u32 %v4594, 16
        %v4693 = vor.u32 %v4690, %v4691
        %v4694 = vrot.slane %v4690, 4
        %v4696 = vshrl.u32 %v4595, 16
        %v4698 = vrot.slane %v4696, 7
        %v4699 = vshll.u32 %v4595, 16
        %v4701 = vor.u32 %v4698, %v4699
        %v4702 = vrot.slane %v4698, 4
        %v4704 = vshrl.u32 %v4596, 16
        %v4706 = vrot.slane %v4704, 7
        %v4707 = vshll.u32 %v4596, 16
        %v4709 = vor.u32 %v4706, %v4707
        %v4710 = vrot.slane %v4706, 4
        %v4712 = vshrl.u32 %v4597, 16
        %v4714 = vrot.slane %v4712, 7
        %v4715 = vshll.u32 %v4597, 16
        %v4717 = vor.u32 %v4714, %v4715
        %v4718 = vrot.slane %v4714, 4
        %v4720 = vshrl.u32 %v4598, 16
        %v4722 = vrot.slane %v4720, 7
        %v4723 = vshll.u32 %v4598, 16
        %v4725 = vor.u32 %v4722, %v4723
        %v4726 = vrot.slane %v4722, 4
        %vm4759 = vcmask 1043456
        %vm4760 = vmand %vm4759, %vm4466
        %vm4761 = vcmask 130052
        %vm4762 = vmand %vm4761, %vm4468
        %vm4763 = vmor %vm4762, %vm4760
        %v4764 = vld [vmem:[#allocation2] sm:$0xff]
        %v4765 = vsel %vm4763, %v4605, %v4764
        %4766 = vst [vmem:[#allocation2] sm:$0xff] %v4765
        %v4767 = vld [vmem:[#allocation2 + $0x8] sm:$0x11]
        %v4768 = vsel %vm4417, %v4606, %v4767
        %4769 = vst [vmem:[#allocation2 + $0x8] sm:$0x11] %v4768
        %v4770 = vld [vmem:[#allocation2 + $0x10] sm:$0xff]
        %v4771 = vsel %vm4763, %v4613, %v4770
        %4772 = vst [vmem:[#allocation2 + $0x10] sm:$0xff] %v4771
        %v4773 = vld [vmem:[#allocation2 + $0x18] sm:$0x11]
        %v4774 = vsel %vm4417, %v4614, %v4773
        %4775 = vst [vmem:[#allocation2 + $0x18] sm:$0x11] %v4774
        %v4776 = vld [vmem:[#allocation2 + $0x20] sm:$0xff]
        %v4777 = vsel %vm4763, %v4621, %v4776
        %4778 = vst [vmem:[#allocation2 + $0x20] sm:$0xff] %v4777
        %v4779 = vld [vmem:[#allocation2 + $0x28] sm:$0x11]
        %v4780 = vsel %vm4417, %v4622, %v4779
        %4781 = vst [vmem:[#allocation2 + $0x28] sm:$0x11] %v4780
        %v4782 = vld [vmem:[#allocation2 + $0x30] sm:$0xff]
        %v4783 = vsel %vm4763, %v4629, %v4782
        %4784 = vst [vmem:[#allocation2 + $0x30] sm:$0xff] %v4783
        %v4785 = vld [vmem:[#allocation2 + $0x38] sm:$0x11]
        %v4786 = vsel %vm4417, %v4630, %v4785
        %4787 = vst [vmem:[#allocation2 + $0x38] sm:$0x11] %v4786
        %v4788 = vld [vmem:[#allocation2 + $0x40] sm:$0xff]
        %v4789 = vsel %vm4763, %v4637, %v4788
        %4790 = vst [vmem:[#allocation2 + $0x40] sm:$0xff] %v4789
        %v4791 = vld [vmem:[#allocation2 + $0x48] sm:$0x11]
        %v4792 = vsel %vm4417, %v4638, %v4791
        %4793 = vst [vmem:[#allocation2 + $0x48] sm:$0x11] %v4792
        %v4794 = vld [vmem:[#allocation2 + $0x50] sm:$0xff]
        %v4795 = vsel %vm4763, %v4645, %v4794
        %4796 = vst [vmem:[#allocation2 + $0x50] sm:$0xff] %v4795
        %v4797 = vld [vmem:[#allocation2 + $0x58] sm:$0x11]
        %v4798 = vsel %vm4417, %v4646, %v4797
        %4799 = vst [vmem:[#allocation2 + $0x58] sm:$0x11] %v4798
        %v4800 = vld [vmem:[#allocation2 + $0x60] sm:$0xff]
        %v4801 = vsel %vm4763, %v4653, %v4800
        %4802 = vst [vmem:[#allocation2 + $0x60] sm:$0xff] %v4801
        %v4803 = vld [vmem:[#allocation2 + $0x68] sm:$0x11]
        %v4804 = vsel %vm4417, %v4654, %v4803
        %4805 = vst [vmem:[#allocation2 + $0x68] sm:$0x11] %v4804
        %v4806 = vld [vmem:[#allocation2 + $0x70] sm:$0xff]
        %v4807 = vsel %vm4763, %v4661, %v4806
        %4808 = vst [vmem:[#allocation2 + $0x70] sm:$0xff] %v4807
        %v4809 = vld [vmem:[#allocation2 + $0x78] sm:$0x11]
        %v4810 = vsel %vm4417, %v4662, %v4809
        %4811 = vst [vmem:[#allocation2 + $0x78] sm:$0x11] %v4810
        %v4812 = vld [vmem:[#allocation2 + $0x80] sm:$0xff]
        %v4813 = vsel %vm4763, %v4669, %v4812
        %4814 = vst [vmem:[#allocation2 + $0x80] sm:$0xff] %v4813
        %v4815 = vld [vmem:[#allocation2 + $0x88] sm:$0x11]
        %v4816 = vsel %vm4417, %v4670, %v4815
        %4817 = vst [vmem:[#allocation2 + $0x88] sm:$0x11] %v4816
        %v4818 = vld [vmem:[#allocation2 + $0x90] sm:$0xff]
        %v4819 = vsel %vm4763, %v4677, %v4818
        %4820 = vst [vmem:[#allocation2 + $0x90] sm:$0xff] %v4819
        %v4821 = vld [vmem:[#allocation2 + $0x98] sm:$0x11]
        %v4822 = vsel %vm4417, %v4678, %v4821
        %4823 = vst [vmem:[#allocation2 + $0x98] sm:$0x11] %v4822
        %v4824 = vld [vmem:[#allocation2 + $0xa0] sm:$0xff]
        %v4825 = vsel %vm4763, %v4685, %v4824
        %4826 = vst [vmem:[#allocation2 + $0xa0] sm:$0xff] %v4825
        %v4827 = vld [vmem:[#allocation2 + $0xa8] sm:$0x11]
        %v4828 = vsel %vm4417, %v4686, %v4827
        %4829 = vst [vmem:[#allocation2 + $0xa8] sm:$0x11] %v4828
        %v4830 = vld [vmem:[#allocation2 + $0xb0] sm:$0xff]
        %v4831 = vsel %vm4763, %v4693, %v4830
        %4832 = vst [vmem:[#allocation2 + $0xb0] sm:$0xff] %v4831
        %v4833 = vld [vmem:[#allocation2 + $0xb8] sm:$0x11]
        %v4834 = vsel %vm4417, %v4694, %v4833
        %4835 = vst [vmem:[#allocation2 + $0xb8] sm:$0x11] %v4834
        %v4836 = vld [vmem:[#allocation2 + $0xc0] sm:$0xff]
        %v4837 = vsel %vm4763, %v4701, %v4836
        %4838 = vst [vmem:[#allocation2 + $0xc0] sm:$0xff] %v4837
        %v4839 = vld [vmem:[#allocation2 + $0xc8] sm:$0x11]
        %v4840 = vsel %vm4417, %v4702, %v4839
        %4841 = vst [vmem:[#allocation2 + $0xc8] sm:$0x11] %v4840
        %v4842 = vld [vmem:[#allocation2 + $0xd0] sm:$0xff]
        %v4843 = vsel %vm4763, %v4709, %v4842
        %4844 = vst [vmem:[#allocation2 + $0xd0] sm:$0xff] %v4843
        %v4845 = vld [vmem:[#allocation2 + $0xd8] sm:$0x11]
        %v4846 = vsel %vm4417, %v4710, %v4845
        %4847 = vst [vmem:[#allocation2 + $0xd8] sm:$0x11] %v4846
        %v4848 = vld [vmem:[#allocation2 + $0xe0] sm:$0xff]
        %v4849 = vsel %vm4763, %v4717, %v4848
        %4850 = vst [vmem:[#allocation2 + $0xe0] sm:$0xff] %v4849
        %v4851 = vld [vmem:[#allocation2 + $0xe8] sm:$0x11]
        %v4852 = vsel %vm4417, %v4718, %v4851
        %4853 = vst [vmem:[#allocation2 + $0xe8] sm:$0x11] %v4852
        %v4854 = vld [vmem:[#allocation2 + $0xf0] sm:$0xff]
        %v4855 = vsel %vm4763, %v4725, %v4854
        %4856 = vst [vmem:[#allocation2 + $0xf0] sm:$0xff] %v4855
        %v4857 = vld [vmem:[#allocation2 + $0xf8] sm:$0x11]
        %v4858 = vsel %vm4417, %v4726, %v4857
        %4859 = vst [vmem:[#allocation2 + $0xf8] sm:$0x11] %v4858
        %v4860 = vld [vmem:[#allocation2] sm:$0xff]
        %v4861 = vld [vmem:[#allocation2 + $0x10] sm:$0xff]
        %v4862 = vld [vmem:[#allocation2 + $0x20] sm:$0xff]
        %v4863 = vld [vmem:[#allocation2 + $0x30] sm:$0xff]
        %v4864 = vld [vmem:[#allocation2 + $0x40] sm:$0xff]
        %v4865 = vld [vmem:[#allocation2 + $0x50] sm:$0xff]
        %v4866 = vld [vmem:[#allocation2 + $0x60] sm:$0xff]
        %v4867 = vld [vmem:[#allocation2 + $0x70] sm:$0xff]
        %v4868 = vld [vmem:[#allocation2 + $0x80] sm:$0xff]
        %v4869 = vld [vmem:[#allocation2 + $0x90] sm:$0xff]
        %v4870 = vld [vmem:[#allocation2 + $0xa0] sm:$0xff]
        %v4871 = vld [vmem:[#allocation2 + $0xb0] sm:$0xff]
        %v4872 = vld [vmem:[#allocation2 + $0xc0] sm:$0xff]
        %v4873 = vld [vmem:[#allocation2 + $0xd0] sm:$0xff]
        %v4874 = vld [vmem:[#allocation2 + $0xe0] sm:$0xff]
        %v4875 = vld [vmem:[#allocation2 + $0xf0] sm:$0xff]
        %v4876 = vld [vmem:[#allocation7] sm:$0xff]
        %v4877 = vld [vmem:[#allocation7 + $0x8] sm:$0xff]
        %v4878 = vld [vmem:[#allocation7 + $0x10] sm:$0xff]
        %v4879 = vld [vmem:[#allocation7 + $0x18] sm:$0xff]
        %v4880 = vld [vmem:[#allocation7 + $0x20] sm:$0xff]
        %v4881 = vld [vmem:[#allocation7 + $0x28] sm:$0xff]
        %v4882 = vld [vmem:[#allocation7 + $0x30] sm:$0xff]
        %v4883 = vld [vmem:[#allocation7 + $0x38] sm:$0xff]
        %v4884 = vld [vmem:[#allocation7 + $0x40] sm:$0xff]
        %v4885 = vld [vmem:[#allocation7 + $0x48] sm:$0xff]
        %v4886 = vld [vmem:[#allocation7 + $0x50] sm:$0xff]
        %v4887 = vld [vmem:[#allocation7 + $0x58] sm:$0xff]
        %v4888 = vld [vmem:[#allocation7 + $0x60] sm:$0xff]
        %v4889 = vld [vmem:[#allocation7 + $0x68] sm:$0xff]
        %v4890 = vld [vmem:[#allocation7 + $0x70] sm:$0xff]
        %v4891 = vld [vmem:[#allocation7 + $0x78] sm:$0xff]
        %v4892 = vld [vmem:[#allocation7 + $0x80] sm:$0xff]
        %v4893 = vld [vmem:[#allocation7 + $0x88] sm:$0xff]
        %v4894 = vld [vmem:[#allocation2 + $0x8] sm:$0x11]
        %v4895 = vld [vmem:[#allocation2 + $0x18] sm:$0x11]
        %v4896 = vld [vmem:[#allocation2 + $0x28] sm:$0x11]
        %v4897 = vld [vmem:[#allocation2 + $0x38] sm:$0x11]
        %v4898 = vld [vmem:[#allocation2 + $0x48] sm:$0x11]
        %v4899 = vld [vmem:[#allocation2 + $0x58] sm:$0x11]
        %v4900 = vld [vmem:[#allocation2 + $0x68] sm:$0x11]
        %v4901 = vld [vmem:[#allocation2 + $0x78] sm:$0x11]
        %v4902 = vld [vmem:[#allocation2 + $0x88] sm:$0x11]
        %v4903 = vld [vmem:[#allocation2 + $0x98] sm:$0x11]
        %v4904 = vld [vmem:[#allocation2 + $0xa8] sm:$0x11]
        %v4905 = vld [vmem:[#allocation2 + $0xb8] sm:$0x11]
        %v4906 = vld [vmem:[#allocation2 + $0xc8] sm:$0x11]
        %v4907 = vld [vmem:[#allocation2 + $0xd8] sm:$0x11]
        %v4908 = vld [vmem:[#allocation2 + $0xe8] sm:$0x11]
        %v4909 = vld [vmem:[#allocation2 + $0xf8] sm:$0x11]
        %vm4910 = vsmask.f32 3328
        %vm4911 = vsmask.f32 7440
        %vm4912 = vmor %vm4910, %vm4911
        %v4914 = vshrl.u32 %v4860, 16
        %v4916 = vrot.slane %v4914, 4
        %v4917 = vshll.u32 %v4860, 16
        %v4919 = vrot.slane %v4917, 5
        %v4920 = vor.u32 %v4916, %v4919
        %v4921 = vrot.slane %v4920, 4
        %v4923 = vshll.u32 %v4894, 16
        %v4925 = vrot.slane %v4923, 5
        %v4926 = vsel %vm4912, %v4921, %v4925
        %v4928 = vshrl.u32 %v4861, 16
        %v4930 = vrot.slane %v4928, 4
        %v4931 = vshll.u32 %v4861, 16
        %v4933 = vrot.slane %v4931, 5
        %v4934 = vor.u32 %v4930, %v4933
        %v4935 = vrot.slane %v4934, 4
        %v4937 = vshll.u32 %v4895, 16
        %v4939 = vrot.slane %v4937, 5
        %v4940 = vsel %vm4912, %v4935, %v4939
        %v4942 = vshrl.u32 %v4862, 16
        %v4944 = vrot.slane %v4942, 4
        %v4945 = vshll.u32 %v4862, 16
        %v4947 = vrot.slane %v4945, 5
        %v4948 = vor.u32 %v4944, %v4947
        %v4949 = vrot.slane %v4948, 4
        %v4951 = vshll.u32 %v4896, 16
        %v4953 = vrot.slane %v4951, 5
        %v4954 = vsel %vm4912, %v4949, %v4953
        %v4956 = vshrl.u32 %v4863, 16
        %v4958 = vrot.slane %v4956, 4
        %v4959 = vshll.u32 %v4863, 16
        %v4961 = vrot.slane %v4959, 5
        %v4962 = vor.u32 %v4958, %v4961
        %v4963 = vrot.slane %v4962, 4
        %v4965 = vshll.u32 %v4897, 16
        %v4967 = vrot.slane %v4965, 5
        %v4968 = vsel %vm4912, %v4963, %v4967
        %v4970 = vshrl.u32 %v4864, 16
        %v4972 = vrot.slane %v4970, 4
        %v4973 = vshll.u32 %v4864, 16
        %v4975 = vrot.slane %v4973, 5
        %v4976 = vor.u32 %v4972, %v4975
        %v4977 = vrot.slane %v4976, 4
        %v4979 = vshll.u32 %v4898, 16
        %v4981 = vrot.slane %v4979, 5
        %v4982 = vsel %vm4912, %v4977, %v4981
        %v4984 = vshrl.u32 %v4865, 16
        %v4986 = vrot.slane %v4984, 4
        %v4987 = vshll.u32 %v4865, 16
        %v4989 = vrot.slane %v4987, 5
        %v4990 = vor.u32 %v4986, %v4989
        %v4991 = vrot.slane %v4990, 4
        %v4993 = vshll.u32 %v4899, 16
        %v4995 = vrot.slane %v4993, 5
        %v4996 = vsel %vm4912, %v4991, %v4995
        %v4998 = vshrl.u32 %v4866, 16
        %v5000 = vrot.slane %v4998, 4
        %v5001 = vshll.u32 %v4866, 16
        %v5003 = vrot.slane %v5001, 5
        %v5004 = vor.u32 %v5000, %v5003
        %v5005 = vrot.slane %v5004, 4
        %v5007 = vshll.u32 %v4900, 16
        %v5009 = vrot.slane %v5007, 5
        %v5010 = vsel %vm4912, %v5005, %v5009
        %v5012 = vshrl.u32 %v4867, 16
        %v5014 = vrot.slane %v5012, 4
        %v5015 = vshll.u32 %v4867, 16
        %v5017 = vrot.slane %v5015, 5
        %v5018 = vor.u32 %v5014, %v5017
        %v5019 = vrot.slane %v5018, 4
        %v5021 = vshll.u32 %v4901, 16
        %v5023 = vrot.slane %v5021, 5
        %v5024 = vsel %vm4912, %v5019, %v5023
        %v5026 = vshrl.u32 %v4868, 16
        %v5028 = vrot.slane %v5026, 4
        %v5029 = vshll.u32 %v4868, 16
        %v5031 = vrot.slane %v5029, 5
        %v5032 = vor.u32 %v5028, %v5031
        %v5033 = vrot.slane %v5032, 4
        %v5035 = vshll.u32 %v4902, 16
        %v5037 = vrot.slane %v5035, 5
        %v5038 = vsel %vm4912, %v5033, %v5037
        %v5040 = vshrl.u32 %v4869, 16
        %v5042 = vrot.slane %v5040, 4
        %v5043 = vshll.u32 %v4869, 16
        %v5045 = vrot.slane %v5043, 5
        %v5046 = vor.u32 %v5042, %v5045
        %v5047 = vrot.slane %v5046, 4
        %v5049 = vshll.u32 %v4903, 16
        %v5051 = vrot.slane %v5049, 5
        %v5052 = vsel %vm4912, %v5047, %v5051
        %v5054 = vshrl.u32 %v4870, 16
        %v5056 = vrot.slane %v5054, 4
        %v5057 = vshll.u32 %v4870, 16
        %v5059 = vrot.slane %v5057, 5
        %v5060 = vor.u32 %v5056, %v5059
        %v5061 = vrot.slane %v5060, 4
        %v5063 = vshll.u32 %v4904, 16
        %v5065 = vrot.slane %v5063, 5
        %v5066 = vsel %vm4912, %v5061, %v5065
        %v5068 = vshrl.u32 %v4871, 16
        %v5070 = vrot.slane %v5068, 4
        %v5071 = vshll.u32 %v4871, 16
        %v5073 = vrot.slane %v5071, 5
        %v5074 = vor.u32 %v5070, %v5073
        %v5075 = vrot.slane %v5074, 4
        %v5077 = vshll.u32 %v4905, 16
        %v5079 = vrot.slane %v5077, 5
        %v5080 = vsel %vm4912, %v5075, %v5079
        %v5082 = vshrl.u32 %v4872, 16
        %v5084 = vrot.slane %v5082, 4
        %v5085 = vshll.u32 %v4872, 16
        %v5087 = vrot.slane %v5085, 5
        %v5088 = vor.u32 %v5084, %v5087
        %v5089 = vrot.slane %v5088, 4
        %v5091 = vshll.u32 %v4906, 16
        %v5093 = vrot.slane %v5091, 5
        %v5094 = vsel %vm4912, %v5089, %v5093
        %v5096 = vshrl.u32 %v4873, 16
        %v5098 = vrot.slane %v5096, 4
        %v5099 = vshll.u32 %v4873, 16
        %v5101 = vrot.slane %v5099, 5
        %v5102 = vor.u32 %v5098, %v5101
        %v5103 = vrot.slane %v5102, 4
        %v5105 = vshll.u32 %v4907, 16
        %v5107 = vrot.slane %v5105, 5
        %v5108 = vsel %vm4912, %v5103, %v5107
        %v5110 = vshrl.u32 %v4874, 16
        %v5112 = vrot.slane %v5110, 4
        %v5113 = vshll.u32 %v4874, 16
        %v5115 = vrot.slane %v5113, 5
        %v5116 = vor.u32 %v5112, %v5115
        %v5117 = vrot.slane %v5116, 4
        %v5119 = vshll.u32 %v4908, 16
        %v5121 = vrot.slane %v5119, 5
        %v5122 = vsel %vm4912, %v5117, %v5121
        %v5124 = vshrl.u32 %v4875, 16
        %v5126 = vrot.slane %v5124, 4
        %v5127 = vshll.u32 %v4875, 16
        %v5129 = vrot.slane %v5127, 5
        %v5130 = vor.u32 %v5126, %v5129
        %v5131 = vrot.slane %v5130, 4
        %v5133 = vshll.u32 %v4909, 16
        %v5135 = vrot.slane %v5133, 5
        %v5136 = vsel %vm4912, %v5131, %v5135
        %s5137 = scalar_lea.vmem [#allocation7], 144
        %v5138 = vld [vmem:[%s5137] sm:$0xff]
        %v5139 = vld [vmem:[%s5137 + $0x8] sm:$0xff]
        %v5140 = vld [vmem:[%s5137 + $0x10] sm:$0xff]
        %v5141 = vld [vmem:[%s5137 + $0x18] sm:$0xff]
        %v5142 = vld [vmem:[%s5137 + $0x20] sm:$0xff]
        %v5143 = vld [vmem:[%s5137 + $0x28] sm:$0xff]
        %v5144 = vld [vmem:[%s5137 + $0x30] sm:$0xff]
        %v5145 = vld [vmem:[%s5137 + $0x38] sm:$0xff]
        %v5146 = vld [vmem:[%s5137 + $0x40] sm:$0xff]
        %v5147 = vld [vmem:[%s5137 + $0x48] sm:$0xff]
        %v5148 = vld [vmem:[%s5137 + $0x50] sm:$0xff]
        %v5149 = vld [vmem:[%s5137 + $0x58] sm:$0xff]
        %v5150 = vld [vmem:[%s5137 + $0x60] sm:$0xff]
        %v5151 = vld [vmem:[%s5137 + $0x68] sm:$0xff]
        %v5152 = vld [vmem:[%s5137 + $0x70] sm:$0xff]
        %v5153 = vld [vmem:[%s5137 + $0x78] sm:$0xff]
        %v5154 = vld [vmem:[%s5137 + $0x80] sm:$0xff]
        %v5155 = vld [vmem:[%s5137 + $0x88] sm:$0xff]
        %v5156 = vunpack.c.l.b16 %v4926
        %v5157 = vunpack.c.h.b16 %v4926
        %v5158 = vunpack.c.l.b16 %v4940
        %v5159 = vunpack.c.h.b16 %v4940
        %v5160 = vunpack.c.l.b16 %v4954
        %v5161 = vunpack.c.h.b16 %v4954
        %v5162 = vunpack.c.l.b16 %v4968
        %v5163 = vunpack.c.h.b16 %v4968
        %v5164 = vunpack.c.l.b16 %v4982
        %v5165 = vunpack.c.h.b16 %v4982
        %v5166 = vunpack.c.l.b16 %v4996
        %v5167 = vunpack.c.h.b16 %v4996
        %v5168 = vunpack.c.l.b16 %v5010
        %v5169 = vunpack.c.h.b16 %v5010
        %v5170 = vunpack.c.l.b16 %v5024
        %v5171 = vunpack.c.h.b16 %v5024
        %v5172 = vunpack.c.l.b16 %v5038
        %v5173 = vunpack.c.h.b16 %v5038
        %v5174 = vunpack.c.l.b16 %v5052
        %v5175 = vunpack.c.h.b16 %v5052
        %v5176 = vunpack.c.l.b16 %v5066
        %v5177 = vunpack.c.h.b16 %v5066
        %v5178 = vunpack.c.l.b16 %v5080
        %v5179 = vunpack.c.h.b16 %v5080
        %v5180 = vunpack.c.l.b16 %v5094
        %v5181 = vunpack.c.h.b16 %v5094
        %v5182 = vunpack.c.l.b16 %v5108
        %v5183 = vunpack.c.h.b16 %v5108
        %v5184 = vunpack.c.l.b16 %v5122
        %v5185 = vunpack.c.h.b16 %v5122
        %v5186 = vunpack.c.l.b16 %v5136
        %v5187 = vunpack.c.h.b16 %v5136
        %v5188 = vpack.c.b16 %v5158, %v5156
        %v5189 = vpack.c.b16 %v5159, %v5157
        %v5190 = vpack.c.b16 %v5162, %v5160
        %v5191 = vpack.c.b16 %v5163, %v5161
        %v5192 = vpack.c.b16 %v5166, %v5164
        %v5193 = vpack.c.b16 %v5167, %v5165
        %v5194 = vpack.c.b16 %v5170, %v5168
        %v5195 = vpack.c.b16 %v5171, %v5169
        %v5196 = vpack.c.b16 %v5174, %v5172
        %v5197 = vpack.c.b16 %v5175, %v5173
        %v5198 = vpack.c.b16 %v5178, %v5176
        %v5199 = vpack.c.b16 %v5179, %v5177
        %v5200 = vpack.c.b16 %v5182, %v5180
        %v5201 = vpack.c.b16 %v5183, %v5181
        %v5202 = vpack.c.b16 %v5186, %v5184
        %v5203 = vpack.c.b16 %v5187, %v5185
        %v5230 = vunpack.c.l.b16 %v5138
        %v5231 = vunpack.c.h.b16 %v5138
        %v5232 = vunpack.c.l.b16 %v5139
        %v5233 = vunpack.c.h.b16 %v5139
        %v5234 = vunpack.c.l.b16 %v5140
        %v5235 = vunpack.c.h.b16 %v5140
        %v5236 = vunpack.c.l.b16 %v5141
        %v5237 = vunpack.c.h.b16 %v5141
        %v5238 = vunpack.c.l.b16 %v5142
        %v5239 = vunpack.c.h.b16 %v5142
        %v5240 = vunpack.c.l.b16 %v5143
        %v5241 = vunpack.c.h.b16 %v5143
        %v5242 = vunpack.c.l.b16 %v5144
        %v5243 = vunpack.c.h.b16 %v5144
        %v5244 = vunpack.c.l.b16 %v5145
        %v5245 = vunpack.c.h.b16 %v5145
        %v5246 = vunpack.c.l.b16 %v5146
        %v5247 = vunpack.c.h.b16 %v5146
        %v5248 = vunpack.c.l.b16 %v5147
        %v5249 = vunpack.c.h.b16 %v5147
        %v5250 = vunpack.c.l.b16 %v5148
        %v5251 = vunpack.c.h.b16 %v5148
        %v5252 = vunpack.c.l.b16 %v5149
        %v5253 = vunpack.c.h.b16 %v5149
        %v5254 = vunpack.c.l.b16 %v5150
        %v5255 = vunpack.c.h.b16 %v5150
        %v5256 = vunpack.c.l.b16 %v5151
        %v5257 = vunpack.c.h.b16 %v5151
        %v5258 = vunpack.c.l.b16 %v5152
        %v5259 = vunpack.c.h.b16 %v5152
        %v5260 = vunpack.c.l.b16 %v5153
        %v5261 = vunpack.c.h.b16 %v5153
        %v5262 = vunpack.c.l.b16 %v5154
        %v5263 = vunpack.c.h.b16 %v5154
        %v5264 = vunpack.c.l.b16 %v5155
        %v5265 = vunpack.c.h.b16 %v5155
        %v5266 = vpack.c.b16 %v5232, %v5230
        %v5267 = vpack.c.b16 %v5233, %v5231
        %v5268 = vpack.c.b16 %v5236, %v5234
        %v5269 = vpack.c.b16 %v5237, %v5235
        %v5270 = vpack.c.b16 %v5240, %v5238
        %v5271 = vpack.c.b16 %v5241, %v5239
        %v5272 = vpack.c.b16 %v5244, %v5242
        %v5273 = vpack.c.b16 %v5245, %v5243
        %v5274 = vpack.c.b16 %v5248, %v5246
        %v5275 = vpack.c.b16 %v5249, %v5247
        %v5276 = vpack.c.b16 %v5252, %v5250
        %v5277 = vpack.c.b16 %v5253, %v5251
        %v5278 = vpack.c.b16 %v5256, %v5254
        %v5279 = vpack.c.b16 %v5257, %v5255
        %v5280 = vpack.c.b16 %v5260, %v5258
        %v5281 = vpack.c.b16 %v5261, %v5259
        %v5282 = vpack.c.b16 %v5264, %v5262
        %v5283 = vpack.c.b16 %v5265, %v5263
        %vm5302 = vcmask 130048
        %v5304 = vsel %vm5302, %v5189, 0
        %v5307 = vsel %vm5302, %v5191, 0
        %v5310 = vsel %vm5302, %v5193, 0
        %v5313 = vsel %vm5302, %v5195, 0
        %v5316 = vsel %vm5302, %v5197, 0
        %v5319 = vsel %vm5302, %v5199, 0
        %v5322 = vsel %vm5302, %v5201, 0
        %v5325 = vsel %vm5302, %v5203, 0
        %5327 = vmatprep.subr.bf16.mxu0 %v5281
        %5328 = vmatpush1.bf16.msra.mxu0 %v5280
        %5329 = vmatprep.subr.bf16.mxu0 %v5279
        %5330 = vmatpush1.bf16.msra.mxu0 %v5278
        %5331 = vmatprep.subr.bf16.mxu0 %v5277
        %5332 = vmatpush1.bf16.msra.mxu0 %v5276
        %5333 = vmatprep.subr.bf16.mxu0 %v5275
        %5334 = vmatpush1.bf16.msra.mxu0 %v5274
        %5335 = vmatprep.subr.bf16.mxu0 %v5273
        %5336 = vmatpush1.bf16.msra.mxu0 %v5272
        %5337 = vmatprep.subr.bf16.mxu0 %v5271
        %5338 = vmatpush1.bf16.msra.mxu0 %v5270
        %5339 = vmatprep.subr.bf16.mxu0 %v5269
        %5340 = vmatpush1.bf16.msra.mxu0 %v5268
        %5341 = vmatprep.subr.bf16.mxu0 %v5267
        %5342 = vmatpush1.bf16.msra.mxu0 %v5266
        %5343 = vmatprep.subr.bf16.mxu0 0
        %5344 = vmatpush2.bf16.msra.mxu0 0
        %5345 = vmatprep.subr.bf16.mxu0 0
        %5346 = vmatpush2.bf16.msra.mxu0 0
        %5347 = vmatprep.subr.bf16.mxu0 0
        %5348 = vmatpush2.bf16.msra.mxu0 0
        %5349 = vmatprep.subr.bf16.mxu0 0
        %5350 = vmatpush2.bf16.msra.mxu0 0
        %5351 = vmatprep.subr.bf16.mxu0 0
        %5352 = vmatpush2.bf16.msra.mxu0 0
        %5353 = vmatprep.subr.bf16.mxu0 0
        %5354 = vmatpush2.bf16.msra.mxu0 0
        %5355 = vmatprep.subr.bf16.mxu0 0
        %5356 = vmatpush2.bf16.msra.mxu0 0
        %5357 = vmatprep.subr.bf16.mxu0 %v5283
        %5358 = vmatpush2.bf16.msra.mxu0 %v5282
        %5359 = vmatprep.mubr.bf16.mxu0 %v5304
        %5360 = vmatmul.mubr.bf16.gmra.mxu0 %v5188
        %v5361 = vpop.f32.mrf.mxu0
        %v5362 = vadd.f32 0.0, %v5361
        %v5363 = vpop.f32.mrf.mxu0
        %v5364 = vadd.f32 0.0, %v5363
        %v5365 = vpop.f32.mrf.mxu0
        %v5366 = vadd.f32 0.0, %v5365
        %v5367 = vpop.f32.mrf.mxu0
        %v5368 = vadd.f32 0.0, %v5367
        %5369 = vmatprep.mubr.bf16.mxu0 %v5307
        %5370 = vmatmul.mubr.bf16.gmra.mxu0 %v5190
        %v5371 = vpop.f32.mrf.mxu0
        %v5372 = vadd.f32 0.0, %v5371
        %v5373 = vpop.f32.mrf.mxu0
        %v5374 = vadd.f32 0.0, %v5373
        %v5375 = vpop.f32.mrf.mxu0
        %v5376 = vadd.f32 0.0, %v5375
        %v5377 = vpop.f32.mrf.mxu0
        %v5378 = vadd.f32 0.0, %v5377
        %5379 = vmatprep.mubr.bf16.mxu0 %v5310
        %5380 = vmatmul.mubr.bf16.gmra.mxu0 %v5192
        %v5381 = vpop.f32.mrf.mxu0
        %v5382 = vadd.f32 0.0, %v5381
        %v5383 = vpop.f32.mrf.mxu0
        %v5384 = vadd.f32 0.0, %v5383
        %v5385 = vpop.f32.mrf.mxu0
        %v5386 = vadd.f32 0.0, %v5385
        %v5387 = vpop.f32.mrf.mxu0
        %v5388 = vadd.f32 0.0, %v5387
        %5389 = vmatprep.mubr.bf16.mxu0 %v5313
        %5390 = vmatmul.mubr.bf16.gmra.mxu0 %v5194
        %v5391 = vpop.f32.mrf.mxu0
        %v5392 = vadd.f32 0.0, %v5391
        %v5393 = vpop.f32.mrf.mxu0
        %v5394 = vadd.f32 0.0, %v5393
        %v5395 = vpop.f32.mrf.mxu0
        %v5396 = vadd.f32 0.0, %v5395
        %v5397 = vpop.f32.mrf.mxu0
        %v5398 = vadd.f32 0.0, %v5397
        %5399 = vmatprep.mubr.bf16.mxu0 %v5316
        %5400 = vmatmul.mubr.bf16.gmra.mxu0 %v5196
        %v5401 = vpop.f32.mrf.mxu0
        %v5402 = vadd.f32 0.0, %v5401
        %v5403 = vpop.f32.mrf.mxu0
        %v5404 = vadd.f32 0.0, %v5403
        %v5405 = vpop.f32.mrf.mxu0
        %v5406 = vadd.f32 0.0, %v5405
        %v5407 = vpop.f32.mrf.mxu0
        %v5408 = vadd.f32 0.0, %v5407
        %5409 = vmatprep.mubr.bf16.mxu0 %v5319
        %5410 = vmatmul.mubr.bf16.gmra.mxu0 %v5198
        %v5411 = vpop.f32.mrf.mxu0
        %v5412 = vadd.f32 0.0, %v5411
        %v5413 = vpop.f32.mrf.mxu0
        %v5414 = vadd.f32 0.0, %v5413
        %v5415 = vpop.f32.mrf.mxu0
        %v5416 = vadd.f32 0.0, %v5415
        %v5417 = vpop.f32.mrf.mxu0
        %v5418 = vadd.f32 0.0, %v5417
        %5419 = vmatprep.mubr.bf16.mxu0 %v5322
        %5420 = vmatmul.mubr.bf16.gmra.mxu0 %v5200
        %v5421 = vpop.f32.mrf.mxu0
        %v5422 = vadd.f32 0.0, %v5421
        %v5423 = vpop.f32.mrf.mxu0
        %v5424 = vadd.f32 0.0, %v5423
        %v5425 = vpop.f32.mrf.mxu0
        %v5426 = vadd.f32 0.0, %v5425
        %v5427 = vpop.f32.mrf.mxu0
        %v5428 = vadd.f32 0.0, %v5427
        %5429 = vmatprep.mubr.bf16.mxu0 %v5325
        %5430 = vmatmul.mubr.bf16.gmra.mxu0 %v5202
        %v5431 = vpop.f32.mrf.mxu0
        %v5432 = vadd.f32 0.0, %v5431
        %v5433 = vpop.f32.mrf.mxu0
        %v5434 = vadd.f32 0.0, %v5433
        %v5435 = vpop.f32.mrf.mxu0
        %v5436 = vadd.f32 0.0, %v5435
        %v5437 = vpop.f32.mrf.mxu0
        %v5438 = vadd.f32 0.0, %v5437
        %5439 = vdwg.mxu0
        %v5456 = vunpack.c.l.b16 %v4860
        %v5457 = vunpack.c.h.b16 %v4860
        %v5458 = vunpack.c.l.b16 %v4861
        %v5459 = vunpack.c.h.b16 %v4861
        %v5460 = vunpack.c.l.b16 %v4862
        %v5461 = vunpack.c.h.b16 %v4862
        %v5462 = vunpack.c.l.b16 %v4863
        %v5463 = vunpack.c.h.b16 %v4863
        %v5464 = vunpack.c.l.b16 %v4864
        %v5465 = vunpack.c.h.b16 %v4864
        %v5466 = vunpack.c.l.b16 %v4865
        %v5467 = vunpack.c.h.b16 %v4865
        %v5468 = vunpack.c.l.b16 %v4866
        %v5469 = vunpack.c.h.b16 %v4866
        %v5470 = vunpack.c.l.b16 %v4867
        %v5471 = vunpack.c.h.b16 %v4867
        %v5472 = vunpack.c.l.b16 %v4868
        %v5473 = vunpack.c.h.b16 %v4868
        %v5474 = vunpack.c.l.b16 %v4869
        %v5475 = vunpack.c.h.b16 %v4869
        %v5476 = vunpack.c.l.b16 %v4870
        %v5477 = vunpack.c.h.b16 %v4870
        %v5478 = vunpack.c.l.b16 %v4871
        %v5479 = vunpack.c.h.b16 %v4871
        %v5480 = vunpack.c.l.b16 %v4872
        %v5481 = vunpack.c.h.b16 %v4872
        %v5482 = vunpack.c.l.b16 %v4873
        %v5483 = vunpack.c.h.b16 %v4873
        %v5484 = vunpack.c.l.b16 %v4874
        %v5485 = vunpack.c.h.b16 %v4874
        %v5486 = vunpack.c.l.b16 %v4875
        %v5487 = vunpack.c.h.b16 %v4875
        %v5488 = vpack.c.b16 %v5458, %v5456
        %v5489 = vpack.c.b16 %v5459, %v5457
        %v5490 = vpack.c.b16 %v5462, %v5460
        %v5491 = vpack.c.b16 %v5463, %v5461
        %v5492 = vpack.c.b16 %v5466, %v5464
        %v5493 = vpack.c.b16 %v5467, %v5465
        %v5494 = vpack.c.b16 %v5470, %v5468
        %v5495 = vpack.c.b16 %v5471, %v5469
        %v5496 = vpack.c.b16 %v5474, %v5472
        %v5497 = vpack.c.b16 %v5475, %v5473
        %v5498 = vpack.c.b16 %v5478, %v5476
        %v5499 = vpack.c.b16 %v5479, %v5477
        %v5500 = vpack.c.b16 %v5482, %v5480
        %v5501 = vpack.c.b16 %v5483, %v5481
        %v5502 = vpack.c.b16 %v5486, %v5484
        %v5503 = vpack.c.b16 %v5487, %v5485
        %v5530 = vunpack.c.l.b16 %v4876
        %v5531 = vunpack.c.h.b16 %v4876
        %v5532 = vunpack.c.l.b16 %v4877
        %v5533 = vunpack.c.h.b16 %v4877
        %v5534 = vunpack.c.l.b16 %v4878
        %v5535 = vunpack.c.h.b16 %v4878
        %v5536 = vunpack.c.l.b16 %v4879
        %v5537 = vunpack.c.h.b16 %v4879
        %v5538 = vunpack.c.l.b16 %v4880
        %v5539 = vunpack.c.h.b16 %v4880
        %v5540 = vunpack.c.l.b16 %v4881
        %v5541 = vunpack.c.h.b16 %v4881
        %v5542 = vunpack.c.l.b16 %v4882
        %v5543 = vunpack.c.h.b16 %v4882
        %v5544 = vunpack.c.l.b16 %v4883
        %v5545 = vunpack.c.h.b16 %v4883
        %v5546 = vunpack.c.l.b16 %v4884
        %v5547 = vunpack.c.h.b16 %v4884
        %v5548 = vunpack.c.l.b16 %v4885
        %v5549 = vunpack.c.h.b16 %v4885
        %v5550 = vunpack.c.l.b16 %v4886
        %v5551 = vunpack.c.h.b16 %v4886
        %v5552 = vunpack.c.l.b16 %v4887
        %v5553 = vunpack.c.h.b16 %v4887
        %v5554 = vunpack.c.l.b16 %v4888
        %v5555 = vunpack.c.h.b16 %v4888
        %v5556 = vunpack.c.l.b16 %v4889
        %v5557 = vunpack.c.h.b16 %v4889
        %v5558 = vunpack.c.l.b16 %v4890
        %v5559 = vunpack.c.h.b16 %v4890
        %v5560 = vunpack.c.l.b16 %v4891
        %v5561 = vunpack.c.h.b16 %v4891
        %v5562 = vunpack.c.l.b16 %v4892
        %v5563 = vunpack.c.h.b16 %v4892
        %v5564 = vunpack.c.l.b16 %v4893
        %v5565 = vunpack.c.h.b16 %v4893
        %v5566 = vpack.c.b16 %v5532, %v5530
        %v5567 = vpack.c.b16 %v5533, %v5531
        %v5568 = vpack.c.b16 %v5536, %v5534
        %v5569 = vpack.c.b16 %v5537, %v5535
        %v5570 = vpack.c.b16 %v5540, %v5538
        %v5571 = vpack.c.b16 %v5541, %v5539
        %v5572 = vpack.c.b16 %v5544, %v5542
        %v5573 = vpack.c.b16 %v5545, %v5543
        %v5574 = vpack.c.b16 %v5548, %v5546
        %v5575 = vpack.c.b16 %v5549, %v5547
        %v5576 = vpack.c.b16 %v5552, %v5550
        %v5577 = vpack.c.b16 %v5553, %v5551
        %v5578 = vpack.c.b16 %v5556, %v5554
        %v5579 = vpack.c.b16 %v5557, %v5555
        %v5580 = vpack.c.b16 %v5560, %v5558
        %v5581 = vpack.c.b16 %v5561, %v5559
        %v5582 = vpack.c.b16 %v5564, %v5562
        %v5583 = vpack.c.b16 %v5565, %v5563
        %v5603 = vsel %vm5302, %v5489, 0
        %v5606 = vsel %vm5302, %v5491, 0
        %v5609 = vsel %vm5302, %v5493, 0
        %v5612 = vsel %vm5302, %v5495, 0
        %v5615 = vsel %vm5302, %v5497, 0
        %v5618 = vsel %vm5302, %v5499, 0
        %v5621 = vsel %vm5302, %v5501, 0
        %v5624 = vsel %vm5302, %v5503, 0
        %5626 = vmatprep.subr.bf16.mxu0 %v5581
        %5627 = vmatpush1.bf16.msra.mxu0 %v5580
        %5628 = vmatprep.subr.bf16.mxu0 %v5579
        %5629 = vmatpush1.bf16.msra.mxu0 %v5578
        %5630 = vmatprep.subr.bf16.mxu0 %v5577
        %5631 = vmatpush1.bf16.msra.mxu0 %v5576
        %5632 = vmatprep.subr.bf16.mxu0 %v5575
        %5633 = vmatpush1.bf16.msra.mxu0 %v5574
        %5634 = vmatprep.subr.bf16.mxu0 %v5573
        %5635 = vmatpush1.bf16.msra.mxu0 %v5572
        %5636 = vmatprep.subr.bf16.mxu0 %v5571
        %5637 = vmatpush1.bf16.msra.mxu0 %v5570
        %5638 = vmatprep.subr.bf16.mxu0 %v5569
        %5639 = vmatpush1.bf16.msra.mxu0 %v5568
        %5640 = vmatprep.subr.bf16.mxu0 %v5567
        %5641 = vmatpush1.bf16.msra.mxu0 %v5566
        %5642 = vmatprep.subr.bf16.mxu0 0
        %5643 = vmatpush2.bf16.msra.mxu0 0
        %5644 = vmatprep.subr.bf16.mxu0 0
        %5645 = vmatpush2.bf16.msra.mxu0 0
        %5646 = vmatprep.subr.bf16.mxu0 0
        %5647 = vmatpush2.bf16.msra.mxu0 0
        %5648 = vmatprep.subr.bf16.mxu0 0
        %5649 = vmatpush2.bf16.msra.mxu0 0
        %5650 = vmatprep.subr.bf16.mxu0 0
        %5651 = vmatpush2.bf16.msra.mxu0 0
        %5652 = vmatprep.subr.bf16.mxu0 0
        %5653 = vmatpush2.bf16.msra.mxu0 0
        %5654 = vmatprep.subr.bf16.mxu0 0
        %5655 = vmatpush2.bf16.msra.mxu0 0
        %5656 = vmatprep.subr.bf16.mxu0 %v5583
        %5657 = vmatpush2.bf16.msra.mxu0 %v5582
        %5658 = vmatprep.mubr.bf16.mxu0 %v5603
        %5659 = vmatmul.mubr.bf16.gmra.mxu0 %v5488
        %v5660 = vpop.f32.mrf.mxu0
        %v5661 = vadd.f32 %v5362, %v5660
        %v5662 = vpop.f32.mrf.mxu0
        %v5663 = vadd.f32 %v5364, %v5662
        %v5664 = vpop.f32.mrf.mxu0
        %v5665 = vadd.f32 %v5366, %v5664
        %v5666 = vpop.f32.mrf.mxu0
        %v5667 = vadd.f32 %v5368, %v5666
        %5668 = vmatprep.mubr.bf16.mxu0 %v5606
        %5669 = vmatmul.mubr.bf16.gmra.mxu0 %v5490
        %v5670 = vpop.f32.mrf.mxu0
        %v5671 = vadd.f32 %v5372, %v5670
        %v5672 = vpop.f32.mrf.mxu0
        %v5673 = vadd.f32 %v5374, %v5672
        %v5674 = vpop.f32.mrf.mxu0
        %v5675 = vadd.f32 %v5376, %v5674
        %v5676 = vpop.f32.mrf.mxu0
        %v5677 = vadd.f32 %v5378, %v5676
        %5678 = vmatprep.mubr.bf16.mxu0 %v5609
        %5679 = vmatmul.mubr.bf16.gmra.mxu0 %v5492
        %v5680 = vpop.f32.mrf.mxu0
        %v5681 = vadd.f32 %v5382, %v5680
        %v5682 = vpop.f32.mrf.mxu0
        %v5683 = vadd.f32 %v5384, %v5682
        %v5684 = vpop.f32.mrf.mxu0
        %v5685 = vadd.f32 %v5386, %v5684
        %v5686 = vpop.f32.mrf.mxu0
        %v5687 = vadd.f32 %v5388, %v5686
        %5688 = vmatprep.mubr.bf16.mxu0 %v5612
        %5689 = vmatmul.mubr.bf16.gmra.mxu0 %v5494
        %v5690 = vpop.f32.mrf.mxu0
        %v5691 = vadd.f32 %v5392, %v5690
        %v5692 = vpop.f32.mrf.mxu0
        %v5693 = vadd.f32 %v5394, %v5692
        %v5694 = vpop.f32.mrf.mxu0
        %v5695 = vadd.f32 %v5396, %v5694
        %v5696 = vpop.f32.mrf.mxu0
        %v5697 = vadd.f32 %v5398, %v5696
        %5698 = vmatprep.mubr.bf16.mxu0 %v5615
        %5699 = vmatmul.mubr.bf16.gmra.mxu0 %v5496
        %v5700 = vpop.f32.mrf.mxu0
        %v5701 = vadd.f32 %v5402, %v5700
        %v5702 = vpop.f32.mrf.mxu0
        %v5703 = vadd.f32 %v5404, %v5702
        %v5704 = vpop.f32.mrf.mxu0
        %v5705 = vadd.f32 %v5406, %v5704
        %v5706 = vpop.f32.mrf.mxu0
        %v5707 = vadd.f32 %v5408, %v5706
        %5708 = vmatprep.mubr.bf16.mxu0 %v5618
        %5709 = vmatmul.mubr.bf16.gmra.mxu0 %v5498
        %v5710 = vpop.f32.mrf.mxu0
        %v5711 = vadd.f32 %v5412, %v5710
        %v5712 = vpop.f32.mrf.mxu0
        %v5713 = vadd.f32 %v5414, %v5712
        %v5714 = vpop.f32.mrf.mxu0
        %v5715 = vadd.f32 %v5416, %v5714
        %v5716 = vpop.f32.mrf.mxu0
        %v5717 = vadd.f32 %v5418, %v5716
        %5718 = vmatprep.mubr.bf16.mxu0 %v5621
        %5719 = vmatmul.mubr.bf16.gmra.mxu0 %v5500
        %v5720 = vpop.f32.mrf.mxu0
        %v5721 = vadd.f32 %v5422, %v5720
        %v5722 = vpop.f32.mrf.mxu0
        %v5723 = vadd.f32 %v5424, %v5722
        %v5724 = vpop.f32.mrf.mxu0
        %v5725 = vadd.f32 %v5426, %v5724
        %v5726 = vpop.f32.mrf.mxu0
        %v5727 = vadd.f32 %v5428, %v5726
        %5728 = vmatprep.mubr.bf16.mxu0 %v5624
        %5729 = vmatmul.mubr.bf16.gmra.mxu0 %v5502
        %v5730 = vpop.f32.mrf.mxu0
        %v5731 = vadd.f32 %v5432, %v5730
        %v5732 = vpop.f32.mrf.mxu0
        %v5733 = vadd.f32 %v5434, %v5732
        %v5734 = vpop.f32.mrf.mxu0
        %v5735 = vadd.f32 %v5436, %v5734
        %v5736 = vpop.f32.mrf.mxu0
        %v5737 = vadd.f32 %v5438, %v5736
        %5738 = vdwg.mxu0
        %v5739 = vld [vmem:[#allocation2] sm:$0xee]
        %v5740 = vld [vmem:[#allocation2 + $0x10] sm:$0xee]
        %v5741 = vld [vmem:[#allocation2 + $0x20] sm:$0xee]
        %v5742 = vld [vmem:[#allocation2 + $0x30] sm:$0xee]
        %v5743 = vld [vmem:[#allocation2 + $0x40] sm:$0xee]
        %v5744 = vld [vmem:[#allocation2 + $0x50] sm:$0xee]
        %v5745 = vld [vmem:[#allocation2 + $0x60] sm:$0xee]
        %v5746 = vld [vmem:[#allocation2 + $0x70] sm:$0xee]
        %v5747 = vld [vmem:[#allocation2 + $0x80] sm:$0xee]
        %v5748 = vld [vmem:[#allocation2 + $0x90] sm:$0xee]
        %v5749 = vld [vmem:[#allocation2 + $0xa0] sm:$0xee]
        %v5750 = vld [vmem:[#allocation2 + $0xb0] sm:$0xee]
        %v5751 = vld [vmem:[#allocation2 + $0xc0] sm:$0xee]
        %v5752 = vld [vmem:[#allocation2 + $0xd0] sm:$0xee]
        %v5753 = vld [vmem:[#allocation2 + $0xe0] sm:$0xee]
        %v5754 = vld [vmem:[#allocation2 + $0xf0] sm:$0xee]
        %vm5787 = vcmask 1042432
        %vm5788 = vcmask 1046532
        %vm5789 = vmor %vm5787, %vm5788
        %v5790 = vrot.slane %v5739, 5
        %v5791 = vrot.slane %v5790, 4
        %v5792 = vrot.slane %v4894, 5
        %v5793 = vsel %vm5789, %v5791, %v5792
        %v5794 = vrot.slane %v5740, 5
        %v5795 = vrot.slane %v5794, 4
        %v5796 = vrot.slane %v4895, 5
        %v5797 = vsel %vm5789, %v5795, %v5796
        %v5798 = vrot.slane %v5741, 5
        %v5799 = vrot.slane %v5798, 4
        %v5800 = vrot.slane %v4896, 5
        %v5801 = vsel %vm5789, %v5799, %v5800
        %v5802 = vrot.slane %v5742, 5
        %v5803 = vrot.slane %v5802, 4
        %v5804 = vrot.slane %v4897, 5
        %v5805 = vsel %vm5789, %v5803, %v5804
        %v5806 = vrot.slane %v5743, 5
        %v5807 = vrot.slane %v5806, 4
        %v5808 = vrot.slane %v4898, 5
        %v5809 = vsel %vm5789, %v5807, %v5808
        %v5810 = vrot.slane %v5744, 5
        %v5811 = vrot.slane %v5810, 4
        %v5812 = vrot.slane %v4899, 5
        %v5813 = vsel %vm5789, %v5811, %v5812
        %v5814 = vrot.slane %v5745, 5
        %v5815 = vrot.slane %v5814, 4
        %v5816 = vrot.slane %v4900, 5
        %v5817 = vsel %vm5789, %v5815, %v5816
        %v5818 = vrot.slane %v5746, 5
        %v5819 = vrot.slane %v5818, 4
        %v5820 = vrot.slane %v4901, 5
        %v5821 = vsel %vm5789, %v5819, %v5820
        %v5822 = vrot.slane %v5747, 5
        %v5823 = vrot.slane %v5822, 4
        %v5824 = vrot.slane %v4902, 5
        %v5825 = vsel %vm5789, %v5823, %v5824
        %v5826 = vrot.slane %v5748, 5
        %v5827 = vrot.slane %v5826, 4
        %v5828 = vrot.slane %v4903, 5
        %v5829 = vsel %vm5789, %v5827, %v5828
        %v5830 = vrot.slane %v5749, 5
        %v5831 = vrot.slane %v5830, 4
        %v5832 = vrot.slane %v4904, 5
        %v5833 = vsel %vm5789, %v5831, %v5832
        %v5834 = vrot.slane %v5750, 5
        %v5835 = vrot.slane %v5834, 4
        %v5836 = vrot.slane %v4905, 5
        %v5837 = vsel %vm5789, %v5835, %v5836
        %v5838 = vrot.slane %v5751, 5
        %v5839 = vrot.slane %v5838, 4
        %v5840 = vrot.slane %v4906, 5
        %v5841 = vsel %vm5789, %v5839, %v5840
        %v5842 = vrot.slane %v5752, 5
        %v5843 = vrot.slane %v5842, 4
        %v5844 = vrot.slane %v4907, 5
        %v5845 = vsel %vm5789, %v5843, %v5844
        %v5846 = vrot.slane %v5753, 5
        %v5847 = vrot.slane %v5846, 4
        %v5848 = vrot.slane %v4908, 5
        %v5849 = vsel %vm5789, %v5847, %v5848
        %v5850 = vrot.slane %v5754, 5
        %v5851 = vrot.slane %v5850, 4
        %v5852 = vrot.slane %v4909, 5
        %v5853 = vsel %vm5789, %v5851, %v5852
        %s5854 = scalar_lea.vmem [#allocation7], 288
        %v5855 = vld [vmem:[%s5854] sm:$0xff]
        %v5856 = vld [vmem:[%s5854 + $0x8] sm:$0xff]
        %v5857 = vld [vmem:[%s5854 + $0x10] sm:$0xff]
        %v5858 = vld [vmem:[%s5854 + $0x18] sm:$0xff]
        %v5859 = vld [vmem:[%s5854 + $0x20] sm:$0xff]
        %v5860 = vld [vmem:[%s5854 + $0x28] sm:$0xff]
        %v5861 = vld [vmem:[%s5854 + $0x30] sm:$0xff]
        %v5862 = vld [vmem:[%s5854 + $0x38] sm:$0xff]
        %v5863 = vld [vmem:[%s5854 + $0x40] sm:$0xff]
        %v5864 = vld [vmem:[%s5854 + $0x48] sm:$0xff]
        %v5865 = vld [vmem:[%s5854 + $0x50] sm:$0xff]
        %v5866 = vld [vmem:[%s5854 + $0x58] sm:$0xff]
        %v5867 = vld [vmem:[%s5854 + $0x60] sm:$0xff]
        %v5868 = vld [vmem:[%s5854 + $0x68] sm:$0xff]
        %v5869 = vld [vmem:[%s5854 + $0x70] sm:$0xff]
        %v5870 = vld [vmem:[%s5854 + $0x78] sm:$0xff]
        %v5871 = vld [vmem:[%s5854 + $0x80] sm:$0xff]
        %v5872 = vld [vmem:[%s5854 + $0x88] sm:$0xff]
        %v5873 = vunpack.c.l.b16 %v5793
        %v5874 = vunpack.c.h.b16 %v5793
        %v5875 = vunpack.c.l.b16 %v5797
        %v5876 = vunpack.c.h.b16 %v5797
        %v5877 = vunpack.c.l.b16 %v5801
        %v5878 = vunpack.c.h.b16 %v5801
        %v5879 = vunpack.c.l.b16 %v5805
        %v5880 = vunpack.c.h.b16 %v5805
        %v5881 = vunpack.c.l.b16 %v5809
        %v5882 = vunpack.c.h.b16 %v5809
        %v5883 = vunpack.c.l.b16 %v5813
        %v5884 = vunpack.c.h.b16 %v5813
        %v5885 = vunpack.c.l.b16 %v5817
        %v5886 = vunpack.c.h.b16 %v5817
        %v5887 = vunpack.c.l.b16 %v5821
        %v5888 = vunpack.c.h.b16 %v5821
        %v5889 = vunpack.c.l.b16 %v5825
        %v5890 = vunpack.c.h.b16 %v5825
        %v5891 = vunpack.c.l.b16 %v5829
        %v5892 = vunpack.c.h.b16 %v5829
        %v5893 = vunpack.c.l.b16 %v5833
        %v5894 = vunpack.c.h.b16 %v5833
        %v5895 = vunpack.c.l.b16 %v5837
        %v5896 = vunpack.c.h.b16 %v5837
        %v5897 = vunpack.c.l.b16 %v5841
        %v5898 = vunpack.c.h.b16 %v5841
        %v5899 = vunpack.c.l.b16 %v5845
        %v5900 = vunpack.c.h.b16 %v5845
        %v5901 = vunpack.c.l.b16 %v5849
        %v5902 = vunpack.c.h.b16 %v5849
        %v5903 = vunpack.c.l.b16 %v5853
        %v5904 = vunpack.c.h.b16 %v5853
        %v5905 = vpack.c.b16 %v5875, %v5873
        %v5906 = vpack.c.b16 %v5876, %v5874
        %v5907 = vpack.c.b16 %v5879, %v5877
        %v5908 = vpack.c.b16 %v5880, %v5878
        %v5909 = vpack.c.b16 %v5883, %v5881
        %v5910 = vpack.c.b16 %v5884, %v5882
        %v5911 = vpack.c.b16 %v5887, %v5885
        %v5912 = vpack.c.b16 %v5888, %v5886
        %v5913 = vpack.c.b16 %v5891, %v5889
        %v5914 = vpack.c.b16 %v5892, %v5890
        %v5915 = vpack.c.b16 %v5895, %v5893
        %v5916 = vpack.c.b16 %v5896, %v5894
        %v5917 = vpack.c.b16 %v5899, %v5897
        %v5918 = vpack.c.b16 %v5900, %v5898
        %v5919 = vpack.c.b16 %v5903, %v5901
        %v5920 = vpack.c.b16 %v5904, %v5902
        %v5947 = vunpack.c.l.b16 %v5855
        %v5948 = vunpack.c.h.b16 %v5855
        %v5949 = vunpack.c.l.b16 %v5856
        %v5950 = vunpack.c.h.b16 %v5856
        %v5951 = vunpack.c.l.b16 %v5857
        %v5952 = vunpack.c.h.b16 %v5857
        %v5953 = vunpack.c.l.b16 %v5858
        %v5954 = vunpack.c.h.b16 %v5858
        %v5955 = vunpack.c.l.b16 %v5859
        %v5956 = vunpack.c.h.b16 %v5859
        %v5957 = vunpack.c.l.b16 %v5860
        %v5958 = vunpack.c.h.b16 %v5860
        %v5959 = vunpack.c.l.b16 %v5861
        %v5960 = vunpack.c.h.b16 %v5861
        %v5961 = vunpack.c.l.b16 %v5862
        %v5962 = vunpack.c.h.b16 %v5862
        %v5963 = vunpack.c.l.b16 %v5863
        %v5964 = vunpack.c.h.b16 %v5863
        %v5965 = vunpack.c.l.b16 %v5864
        %v5966 = vunpack.c.h.b16 %v5864
        %v5967 = vunpack.c.l.b16 %v5865
        %v5968 = vunpack.c.h.b16 %v5865
        %v5969 = vunpack.c.l.b16 %v5866
        %v5970 = vunpack.c.h.b16 %v5866
        %v5971 = vunpack.c.l.b16 %v5867
        %v5972 = vunpack.c.h.b16 %v5867
        %v5973 = vunpack.c.l.b16 %v5868
        %v5974 = vunpack.c.h.b16 %v5868
        %v5975 = vunpack.c.l.b16 %v5869
        %v5976 = vunpack.c.h.b16 %v5869
        %v5977 = vunpack.c.l.b16 %v5870
        %v5978 = vunpack.c.h.b16 %v5870
        %v5979 = vunpack.c.l.b16 %v5871
        %v5980 = vunpack.c.h.b16 %v5871
        %v5981 = vunpack.c.l.b16 %v5872
        %v5982 = vunpack.c.h.b16 %v5872
        %v5983 = vpack.c.b16 %v5949, %v5947
        %v5984 = vpack.c.b16 %v5950, %v5948
        %v5985 = vpack.c.b16 %v5953, %v5951
        %v5986 = vpack.c.b16 %v5954, %v5952
        %v5987 = vpack.c.b16 %v5957, %v5955
        %v5988 = vpack.c.b16 %v5958, %v5956
        %v5989 = vpack.c.b16 %v5961, %v5959
        %v5990 = vpack.c.b16 %v5962, %v5960
        %v5991 = vpack.c.b16 %v5965, %v5963
        %v5992 = vpack.c.b16 %v5966, %v5964
        %v5993 = vpack.c.b16 %v5969, %v5967
        %v5994 = vpack.c.b16 %v5970, %v5968
        %v5995 = vpack.c.b16 %v5973, %v5971
        %v5996 = vpack.c.b16 %v5974, %v5972
        %v5997 = vpack.c.b16 %v5977, %v5975
        %v5998 = vpack.c.b16 %v5978, %v5976
        %v5999 = vpack.c.b16 %v5981, %v5979
        %v6000 = vpack.c.b16 %v5982, %v5980
        %v6020 = vsel %vm5302, %v5906, 0
        %v6023 = vsel %vm5302, %v5908, 0
        %v6026 = vsel %vm5302, %v5910, 0
        %v6029 = vsel %vm5302, %v5912, 0
        %v6032 = vsel %vm5302, %v5914, 0
        %v6035 = vsel %vm5302, %v5916, 0
        %v6038 = vsel %vm5302, %v5918, 0
        %v6041 = vsel %vm5302, %v5920, 0
        %6043 = vmatprep.subr.bf16.mxu0 %v5998
        %6044 = vmatpush1.bf16.msra.mxu0 %v5997
        %6045 = vmatprep.subr.bf16.mxu0 %v5996
        %6046 = vmatpush1.bf16.msra.mxu0 %v5995
        %6047 = vmatprep.subr.bf16.mxu0 %v5994
        %6048 = vmatpush1.bf16.msra.mxu0 %v5993
        %6049 = vmatprep.subr.bf16.mxu0 %v5992
        %6050 = vmatpush1.bf16.msra.mxu0 %v5991
        %6051 = vmatprep.subr.bf16.mxu0 %v5990
        %6052 = vmatpush1.bf16.msra.mxu0 %v5989
        %6053 = vmatprep.subr.bf16.mxu0 %v5988
        %6054 = vmatpush1.bf16.msra.mxu0 %v5987
        %6055 = vmatprep.subr.bf16.mxu0 %v5986
        %6056 = vmatpush1.bf16.msra.mxu0 %v5985
        %6057 = vmatprep.subr.bf16.mxu0 %v5984
        %6058 = vmatpush1.bf16.msra.mxu0 %v5983
        %6059 = vmatprep.subr.bf16.mxu0 0
        %6060 = vmatpush2.bf16.msra.mxu0 0
        %6061 = vmatprep.subr.bf16.mxu0 0
        %6062 = vmatpush2.bf16.msra.mxu0 0
        %6063 = vmatprep.subr.bf16.mxu0 0
        %6064 = vmatpush2.bf16.msra.mxu0 0
        %6065 = vmatprep.subr.bf16.mxu0 0
        %6066 = vmatpush2.bf16.msra.mxu0 0
        %6067 = vmatprep.subr.bf16.mxu0 0
        %6068 = vmatpush2.bf16.msra.mxu0 0
        %6069 = vmatprep.subr.bf16.mxu0 0
        %6070 = vmatpush2.bf16.msra.mxu0 0
        %6071 = vmatprep.subr.bf16.mxu0 0
        %6072 = vmatpush2.bf16.msra.mxu0 0
        %6073 = vmatprep.subr.bf16.mxu0 %v6000
        %6074 = vmatpush2.bf16.msra.mxu0 %v5999
        %6075 = vmatprep.mubr.bf16.mxu0 %v6020
        %6076 = vmatmul.mubr.bf16.gmra.mxu0 %v5905
        %v6077 = vpop.f32.mrf.mxu0
        %v6078 = vadd.f32 0.0, %v6077
        %v6079 = vpop.f32.mrf.mxu0
        %v6080 = vadd.f32 0.0, %v6079
        %v6081 = vpop.f32.mrf.mxu0
        %v6082 = vadd.f32 0.0, %v6081
        %v6083 = vpop.f32.mrf.mxu0
        %v6084 = vadd.f32 0.0, %v6083
        %6085 = vmatprep.mubr.bf16.mxu0 %v6023
        %6086 = vmatmul.mubr.bf16.gmra.mxu0 %v5907
        %v6087 = vpop.f32.mrf.mxu0
        %v6088 = vadd.f32 0.0, %v6087
        %v6089 = vpop.f32.mrf.mxu0
        %v6090 = vadd.f32 0.0, %v6089
        %v6091 = vpop.f32.mrf.mxu0
        %v6092 = vadd.f32 0.0, %v6091
        %v6093 = vpop.f32.mrf.mxu0
        %v6094 = vadd.f32 0.0, %v6093
        %6095 = vmatprep.mubr.bf16.mxu0 %v6026
        %6096 = vmatmul.mubr.bf16.gmra.mxu0 %v5909
        %v6097 = vpop.f32.mrf.mxu0
        %v6098 = vadd.f32 0.0, %v6097
        %v6099 = vpop.f32.mrf.mxu0
        %v6100 = vadd.f32 0.0, %v6099
        %v6101 = vpop.f32.mrf.mxu0
        %v6102 = vadd.f32 0.0, %v6101
        %v6103 = vpop.f32.mrf.mxu0
        %v6104 = vadd.f32 0.0, %v6103
        %6105 = vmatprep.mubr.bf16.mxu0 %v6029
        %6106 = vmatmul.mubr.bf16.gmra.mxu0 %v5911
        %v6107 = vpop.f32.mrf.mxu0
        %v6108 = vadd.f32 0.0, %v6107
        %v6109 = vpop.f32.mrf.mxu0
        %v6110 = vadd.f32 0.0, %v6109
        %v6111 = vpop.f32.mrf.mxu0
        %v6112 = vadd.f32 0.0, %v6111
        %v6113 = vpop.f32.mrf.mxu0
        %v6114 = vadd.f32 0.0, %v6113
        %6115 = vmatprep.mubr.bf16.mxu0 %v6032
        %6116 = vmatmul.mubr.bf16.gmra.mxu0 %v5913
        %v6117 = vpop.f32.mrf.mxu0
        %v6118 = vadd.f32 0.0, %v6117
        %v6119 = vpop.f32.mrf.mxu0
        %v6120 = vadd.f32 0.0, %v6119
        %v6121 = vpop.f32.mrf.mxu0
        %v6122 = vadd.f32 0.0, %v6121
        %v6123 = vpop.f32.mrf.mxu0
        %v6124 = vadd.f32 0.0, %v6123
        %6125 = vmatprep.mubr.bf16.mxu0 %v6035
        %6126 = vmatmul.mubr.bf16.gmra.mxu0 %v5915
        %v6127 = vpop.f32.mrf.mxu0
        %v6128 = vadd.f32 0.0, %v6127
        %v6129 = vpop.f32.mrf.mxu0
        %v6130 = vadd.f32 0.0, %v6129
        %v6131 = vpop.f32.mrf.mxu0
        %v6132 = vadd.f32 0.0, %v6131
        %v6133 = vpop.f32.mrf.mxu0
        %v6134 = vadd.f32 0.0, %v6133
        %6135 = vmatprep.mubr.bf16.mxu0 %v6038
        %6136 = vmatmul.mubr.bf16.gmra.mxu0 %v5917
        %v6137 = vpop.f32.mrf.mxu0
        %v6138 = vadd.f32 0.0, %v6137
        %v6139 = vpop.f32.mrf.mxu0
        %v6140 = vadd.f32 0.0, %v6139
        %v6141 = vpop.f32.mrf.mxu0
        %v6142 = vadd.f32 0.0, %v6141
        %v6143 = vpop.f32.mrf.mxu0
        %v6144 = vadd.f32 0.0, %v6143
        %6145 = vmatprep.mubr.bf16.mxu0 %v6041
        %6146 = vmatmul.mubr.bf16.gmra.mxu0 %v5919
        %v6147 = vpop.f32.mrf.mxu0
        %v6148 = vadd.f32 0.0, %v6147
        %v6149 = vpop.f32.mrf.mxu0
        %v6150 = vadd.f32 0.0, %v6149
        %v6151 = vpop.f32.mrf.mxu0
        %v6152 = vadd.f32 0.0, %v6151
        %v6153 = vpop.f32.mrf.mxu0
        %v6154 = vadd.f32 0.0, %v6153
        %6155 = vdwg.mxu0
        %v6156 = vadd.f32 %v5661, %v6078
        %v6157 = vadd.f32 %v5663, %v6080
        %v6158 = vadd.f32 %v5665, %v6082
        %v6159 = vadd.f32 %v5667, %v6084
        %v6160 = vadd.f32 %v5671, %v6088
        %v6161 = vadd.f32 %v5673, %v6090
        %v6162 = vadd.f32 %v5675, %v6092
        %v6163 = vadd.f32 %v5677, %v6094
        %v6164 = vadd.f32 %v5681, %v6098
        %v6165 = vadd.f32 %v5683, %v6100
        %v6166 = vadd.f32 %v5685, %v6102
        %v6167 = vadd.f32 %v5687, %v6104
        %v6168 = vadd.f32 %v5691, %v6108
        %v6169 = vadd.f32 %v5693, %v6110
        %v6170 = vadd.f32 %v5695, %v6112
        %v6171 = vadd.f32 %v5697, %v6114
        %v6172 = vadd.f32 %v5701, %v6118
        %v6173 = vadd.f32 %v5703, %v6120
        %v6174 = vadd.f32 %v5705, %v6122
        %v6175 = vadd.f32 %v5707, %v6124
        %v6176 = vadd.f32 %v5711, %v6128
        %v6177 = vadd.f32 %v5713, %v6130
        %v6178 = vadd.f32 %v5715, %v6132
        %v6179 = vadd.f32 %v5717, %v6134
        %v6180 = vadd.f32 %v5721, %v6138
        %v6181 = vadd.f32 %v5723, %v6140
        %v6182 = vadd.f32 %v5725, %v6142
        %v6183 = vadd.f32 %v5727, %v6144
        %v6184 = vadd.f32 %v5731, %v6148
        %v6185 = vadd.f32 %v5733, %v6150
        %v6186 = vadd.f32 %v5735, %v6152
        %v6187 = vadd.f32 %v5737, %v6154
        %v6188 = vmax.f32 %v6156, 0.0
        %v6189 = vmax.f32 %v6157, 0.0
        %v6190 = vmax.f32 %v6158, 0.0
        %v6191 = vmax.f32 %v6159, 0.0
        %v6192 = vmax.f32 %v6160, 0.0
        %v6193 = vmax.f32 %v6161, 0.0
        %v6194 = vmax.f32 %v6162, 0.0
        %v6195 = vmax.f32 %v6163, 0.0
        %v6196 = vmax.f32 %v6164, 0.0
        %v6197 = vmax.f32 %v6165, 0.0
        %v6198 = vmax.f32 %v6166, 0.0
        %v6199 = vmax.f32 %v6167, 0.0
        %v6200 = vmax.f32 %v6168, 0.0
        %v6201 = vmax.f32 %v6169, 0.0
        %v6202 = vmax.f32 %v6170, 0.0
        %v6203 = vmax.f32 %v6171, 0.0
        %v6204 = vmax.f32 %v6172, 0.0
        %v6205 = vmax.f32 %v6173, 0.0
        %v6206 = vmax.f32 %v6174, 0.0
        %v6207 = vmax.f32 %v6175, 0.0
        %v6208 = vmax.f32 %v6176, 0.0
        %v6209 = vmax.f32 %v6177, 0.0
        %v6210 = vmax.f32 %v6178, 0.0
        %v6211 = vmax.f32 %v6179, 0.0
        %v6212 = vmax.f32 %v6180, 0.0
        %v6213 = vmax.f32 %v6181, 0.0
        %v6214 = vmax.f32 %v6182, 0.0
        %v6215 = vmax.f32 %v6183, 0.0
        %v6216 = vmax.f32 %v6184, 0.0
        %v6217 = vmax.f32 %v6185, 0.0
        %v6218 = vmax.f32 %v6186, 0.0
        %v6219 = vmax.f32 %v6187, 0.0
        %vm6220 = vcmask 1043456
        %vm6221 = vcmask 326660
        %vm6222 = vmor %vm6221, %vm6220
        %6223 = vst.msk [vmem:[#allocation3] sm:$0xff] %vm6222, 0
        %6224 = vst.msk [vmem:[#allocation3 + $0x50] sm:$0xff] %vm6222, 0
        %s6225 = scalar_lea.vmem [#allocation3], 72
        %6226 = vst.msk [vmem:[%s6225] sm:$0xff] %vm6222, 0
        %6227 = vst.msk [vmem:[%s6225 + $0x50] sm:$0xff] %vm6222, 0
        %v6228 = vpack.c.bf16 %v6190, %v6188
        %v6229 = vpack.c.bf16 %v6191, %v6189
        %v6230 = vpack.c.bf16 %v6194, %v6192
        %v6231 = vpack.c.bf16 %v6195, %v6193
        %v6232 = vpack.c.bf16 %v6198, %v6196
        %v6233 = vpack.c.bf16 %v6199, %v6197
        %v6234 = vpack.c.bf16 %v6202, %v6200
        %v6235 = vpack.c.bf16 %v6203, %v6201
        %v6236 = vpack.c.bf16 %v6206, %v6204
        %v6237 = vpack.c.bf16 %v6207, %v6205
        %v6238 = vpack.c.bf16 %v6210, %v6208
        %v6239 = vpack.c.bf16 %v6211, %v6209
        %v6240 = vpack.c.bf16 %v6214, %v6212
        %v6241 = vpack.c.bf16 %v6215, %v6213
        %v6242 = vpack.c.bf16 %v6218, %v6216
        %v6243 = vpack.c.bf16 %v6219, %v6217
        %v6260 = vunpack.c.l.b16 %v6228
        %v6261 = vunpack.c.l.b16 %v6229
        %v6262 = vunpack.c.h.b16 %v6228
        %v6263 = vunpack.c.h.b16 %v6229
        %v6264 = vunpack.c.l.b16 %v6230
        %v6265 = vunpack.c.l.b16 %v6231
        %v6266 = vunpack.c.h.b16 %v6230
        %v6267 = vunpack.c.h.b16 %v6231
        %v6268 = vunpack.c.l.b16 %v6232
        %v6269 = vunpack.c.l.b16 %v6233
        %v6270 = vunpack.c.h.b16 %v6232
        %v6271 = vunpack.c.h.b16 %v6233
        %v6272 = vunpack.c.l.b16 %v6234
        %v6273 = vunpack.c.l.b16 %v6235
        %v6274 = vunpack.c.h.b16 %v6234
        %v6275 = vunpack.c.h.b16 %v6235
        %v6276 = vunpack.c.l.b16 %v6236
        %v6277 = vunpack.c.l.b16 %v6237
        %v6278 = vunpack.c.h.b16 %v6236
        %v6279 = vunpack.c.h.b16 %v6237
        %v6280 = vunpack.c.l.b16 %v6238
        %v6281 = vunpack.c.l.b16 %v6239
        %v6282 = vunpack.c.h.b16 %v6238
        %v6283 = vunpack.c.h.b16 %v6239
        %v6284 = vunpack.c.l.b16 %v6240
        %v6285 = vunpack.c.l.b16 %v6241
        %v6286 = vunpack.c.h.b16 %v6240
        %v6287 = vunpack.c.h.b16 %v6241
        %v6288 = vunpack.c.l.b16 %v6242
        %v6289 = vunpack.c.l.b16 %v6243
        %v6290 = vunpack.c.h.b16 %v6242
        %v6291 = vunpack.c.h.b16 %v6243
        %v6292 = vpack.c.b16 %v6261, %v6260
        %v6293 = vpack.c.b16 %v6263, %v6262
        %v6294 = vpack.c.b16 %v6265, %v6264
        %v6295 = vpack.c.b16 %v6267, %v6266
        %v6296 = vpack.c.b16 %v6269, %v6268
        %v6297 = vpack.c.b16 %v6271, %v6270
        %v6298 = vpack.c.b16 %v6273, %v6272
        %v6299 = vpack.c.b16 %v6275, %v6274
        %v6300 = vpack.c.b16 %v6277, %v6276
        %v6301 = vpack.c.b16 %v6279, %v6278
        %v6302 = vpack.c.b16 %v6281, %v6280
        %v6303 = vpack.c.b16 %v6283, %v6282
        %v6304 = vpack.c.b16 %v6285, %v6284
        %v6305 = vpack.c.b16 %v6287, %v6286
        %v6306 = vpack.c.b16 %v6289, %v6288
        %v6307 = vpack.c.b16 %v6291, %v6290
        %s6324 = scalar_lea.vmem [#allocation3], 8
        %6325 = vst.msk [vmem:[%s6324] sm:$0xff] %vm6222, %v6292
        %6326 = vst.msk [vmem:[%s6324 + $0x8] sm:$0xff] %vm6222, %v6293
        %6327 = vst.msk [vmem:[%s6324 + $0x10] sm:$0xff] %vm6222, %v6294
        %6328 = vst.msk [vmem:[%s6324 + $0x18] sm:$0xff] %vm6222, %v6295
        %6329 = vst.msk [vmem:[%s6324 + $0x20] sm:$0xff] %vm6222, %v6296
        %6330 = vst.msk [vmem:[%s6324 + $0x28] sm:$0xff] %vm6222, %v6297
        %6331 = vst.msk [vmem:[%s6324 + $0x30] sm:$0xff] %vm6222, %v6298
        %6332 = vst.msk [vmem:[%s6324 + $0x38] sm:$0xff] %vm6222, %v6299
        %6333 = vst.msk [vmem:[%s6324 + $0x50] sm:$0xff] %vm6222, %v6300
        %6334 = vst.msk [vmem:[%s6324 + $0x58] sm:$0xff] %vm6222, %v6301
        %6335 = vst.msk [vmem:[%s6324 + $0x60] sm:$0xff] %vm6222, %v6302
        %6336 = vst.msk [vmem:[%s6324 + $0x68] sm:$0xff] %vm6222, %v6303
        %6337 = vst.msk [vmem:[%s6324 + $0x70] sm:$0xff] %vm6222, %v6304
        %6338 = vst.msk [vmem:[%s6324 + $0x78] sm:$0xff] %vm6222, %v6305
        %6339 = vst.msk [vmem:[%s6324 + $0x80] sm:$0xff] %vm6222, %v6306
        %6340 = vst.msk [vmem:[%s6324 + $0x88] sm:$0xff] %vm6222, %v6307
        %v6341 = vld [vmem:[#allocation3] sm:$0xff]
        %v6342 = vld [vmem:[#allocation3 + $0x8] sm:$0xff]
        %v6343 = vld [vmem:[#allocation3 + $0x10] sm:$0xff]
        %v6344 = vld [vmem:[#allocation3 + $0x18] sm:$0xff]
        %v6345 = vld [vmem:[#allocation3 + $0x20] sm:$0xff]
        %v6346 = vld [vmem:[#allocation3 + $0x28] sm:$0xff]
        %v6347 = vld [vmem:[#allocation3 + $0x30] sm:$0xff]
        %v6348 = vld [vmem:[#allocation3 + $0x38] sm:$0xff]
        %v6349 = vld [vmem:[#allocation3 + $0x50] sm:$0xff]
        %v6350 = vld [vmem:[#allocation3 + $0x58] sm:$0xff]
        %v6351 = vld [vmem:[#allocation3 + $0x60] sm:$0xff]
        %v6352 = vld [vmem:[#allocation3 + $0x68] sm:$0xff]
        %v6353 = vld [vmem:[#allocation3 + $0x70] sm:$0xff]
        %v6354 = vld [vmem:[#allocation3 + $0x78] sm:$0xff]
        %v6355 = vld [vmem:[#allocation3 + $0x80] sm:$0xff]
        %v6356 = vld [vmem:[#allocation3 + $0x88] sm:$0xff]
        %v6357 = vld [vmem:[#allocation9] sm:$0xff]
        %v6358 = vld [vmem:[#allocation9 + $0x8] sm:$0xff]
        %v6359 = vld [vmem:[#allocation9 + $0x10] sm:$0xff]
        %v6360 = vld [vmem:[#allocation9 + $0x18] sm:$0xff]
        %v6361 = vld [vmem:[#allocation9 + $0x20] sm:$0xff]
        %v6362 = vld [vmem:[#allocation9 + $0x28] sm:$0xff]
        %v6363 = vld [vmem:[#allocation9 + $0x30] sm:$0xff]
        %v6364 = vld [vmem:[#allocation9 + $0x38] sm:$0xff]
        %v6365 = vld [vmem:[#allocation9 + $0x40] sm:$0xff]
        %v6366 = vld [vmem:[#allocation9 + $0x48] sm:$0xff]
        %v6367 = vld [vmem:[#allocation9 + $0x50] sm:$0xff]
        %v6368 = vld [vmem:[#allocation9 + $0x58] sm:$0xff]
        %v6369 = vld [vmem:[#allocation9 + $0x60] sm:$0xff]
        %v6370 = vld [vmem:[#allocation9 + $0x68] sm:$0xff]
        %v6371 = vld [vmem:[#allocation9 + $0x70] sm:$0xff]
        %v6372 = vld [vmem:[#allocation9 + $0x78] sm:$0xff]
        %v6373 = vld [vmem:[#allocation9 + $0x80] sm:$0xff]
        %v6374 = vld [vmem:[#allocation9 + $0x88] sm:$0xff]
        %v6375 = vld [vmem:[#allocation9 + $0x90] sm:$0xff]
        %v6376 = vld [vmem:[#allocation9 + $0x98] sm:$0xff]
        %v6377 = vld [vmem:[#allocation9 + $0xa0] sm:$0xff]
        %v6378 = vld [vmem:[%s6324] sm:$0xff]
        %v6379 = vld [vmem:[%s6324 + $0x8] sm:$0xff]
        %v6380 = vld [vmem:[%s6324 + $0x10] sm:$0xff]
        %v6381 = vld [vmem:[%s6324 + $0x18] sm:$0xff]
        %v6382 = vld [vmem:[%s6324 + $0x20] sm:$0xff]
        %v6383 = vld [vmem:[%s6324 + $0x28] sm:$0xff]
        %v6384 = vld [vmem:[%s6324 + $0x30] sm:$0xff]
        %v6385 = vld [vmem:[%s6324 + $0x38] sm:$0xff]
        %v6386 = vld [vmem:[%s6324 + $0x50] sm:$0xff]
        %v6387 = vld [vmem:[%s6324 + $0x58] sm:$0xff]
        %v6388 = vld [vmem:[%s6324 + $0x60] sm:$0xff]
        %v6389 = vld [vmem:[%s6324 + $0x68] sm:$0xff]
        %v6390 = vld [vmem:[%s6324 + $0x70] sm:$0xff]
        %v6391 = vld [vmem:[%s6324 + $0x78] sm:$0xff]
        %v6392 = vld [vmem:[%s6324 + $0x80] sm:$0xff]
        %v6393 = vld [vmem:[%s6324 + $0x88] sm:$0xff]
        %s6394 = scalar_lea.vmem [#allocation9], 168
        %v6395 = vld [vmem:[%s6394] sm:$0xff]
        %v6396 = vld [vmem:[%s6394 + $0x8] sm:$0xff]
        %v6397 = vld [vmem:[%s6394 + $0x10] sm:$0xff]
        %v6398 = vld [vmem:[%s6394 + $0x18] sm:$0xff]
        %v6399 = vld [vmem:[%s6394 + $0x20] sm:$0xff]
        %v6400 = vld [vmem:[%s6394 + $0x28] sm:$0xff]
        %v6401 = vld [vmem:[%s6394 + $0x30] sm:$0xff]
        %v6402 = vld [vmem:[%s6394 + $0x38] sm:$0xff]
        %v6403 = vld [vmem:[%s6394 + $0x40] sm:$0xff]
        %v6404 = vld [vmem:[%s6394 + $0x48] sm:$0xff]
        %v6405 = vld [vmem:[%s6394 + $0x50] sm:$0xff]
        %v6406 = vld [vmem:[%s6394 + $0x58] sm:$0xff]
        %v6407 = vld [vmem:[%s6394 + $0x60] sm:$0xff]
        %v6408 = vld [vmem:[%s6394 + $0x68] sm:$0xff]
        %v6409 = vld [vmem:[%s6394 + $0x70] sm:$0xff]
        %v6410 = vld [vmem:[%s6394 + $0x78] sm:$0xff]
        %v6411 = vld [vmem:[%s6394 + $0x80] sm:$0xff]
        %v6412 = vld [vmem:[%s6394 + $0x88] sm:$0xff]
        %v6413 = vld [vmem:[%s6394 + $0x90] sm:$0xff]
        %v6414 = vld [vmem:[%s6394 + $0x98] sm:$0xff]
        %v6415 = vld [vmem:[%s6394 + $0xa0] sm:$0xff]
        %v6432 = vunpack.c.l.b16 %v6378
        %v6433 = vunpack.c.h.b16 %v6378
        %v6434 = vunpack.c.l.b16 %v6379
        %v6435 = vunpack.c.h.b16 %v6379
        %v6436 = vunpack.c.l.b16 %v6380
        %v6437 = vunpack.c.h.b16 %v6380
        %v6438 = vunpack.c.l.b16 %v6381
        %v6439 = vunpack.c.h.b16 %v6381
        %v6440 = vunpack.c.l.b16 %v6382
        %v6441 = vunpack.c.h.b16 %v6382
        %v6442 = vunpack.c.l.b16 %v6383
        %v6443 = vunpack.c.h.b16 %v6383
        %v6444 = vunpack.c.l.b16 %v6384
        %v6445 = vunpack.c.h.b16 %v6384
        %v6446 = vunpack.c.l.b16 %v6385
        %v6447 = vunpack.c.h.b16 %v6385
        %v6448 = vunpack.c.l.b16 %v6386
        %v6449 = vunpack.c.h.b16 %v6386
        %v6450 = vunpack.c.l.b16 %v6387
        %v6451 = vunpack.c.h.b16 %v6387
        %v6452 = vunpack.c.l.b16 %v6388
        %v6453 = vunpack.c.h.b16 %v6388
        %v6454 = vunpack.c.l.b16 %v6389
        %v6455 = vunpack.c.h.b16 %v6389
        %v6456 = vunpack.c.l.b16 %v6390
        %v6457 = vunpack.c.h.b16 %v6390
        %v6458 = vunpack.c.l.b16 %v6391
        %v6459 = vunpack.c.h.b16 %v6391
        %v6460 = vunpack.c.l.b16 %v6392
        %v6461 = vunpack.c.h.b16 %v6392
        %v6462 = vunpack.c.l.b16 %v6393
        %v6463 = vunpack.c.h.b16 %v6393
        %v6464 = vpack.c.b16 %v6434, %v6432
        %v6465 = vpack.c.b16 %v6435, %v6433
        %v6466 = vpack.c.b16 %v6438, %v6436
        %v6467 = vpack.c.b16 %v6439, %v6437
        %v6468 = vpack.c.b16 %v6442, %v6440
        %v6469 = vpack.c.b16 %v6443, %v6441
        %v6470 = vpack.c.b16 %v6446, %v6444
        %v6471 = vpack.c.b16 %v6447, %v6445
        %v6472 = vpack.c.b16 %v6450, %v6448
        %v6473 = vpack.c.b16 %v6451, %v6449
        %v6474 = vpack.c.b16 %v6454, %v6452
        %v6475 = vpack.c.b16 %v6455, %v6453
        %v6476 = vpack.c.b16 %v6458, %v6456
        %v6477 = vpack.c.b16 %v6459, %v6457
        %v6478 = vpack.c.b16 %v6462, %v6460
        %v6479 = vpack.c.b16 %v6463, %v6461
        %v6509 = vunpack.c.l.b16 %v6395
        %v6510 = vunpack.c.h.b16 %v6395
        %v6511 = vunpack.c.l.b16 %v6396
        %v6512 = vunpack.c.h.b16 %v6396
        %v6513 = vunpack.c.l.b16 %v6397
        %v6514 = vunpack.c.h.b16 %v6397
        %v6515 = vunpack.c.l.b16 %v6398
        %v6516 = vunpack.c.h.b16 %v6398
        %v6517 = vunpack.c.l.b16 %v6399
        %v6518 = vunpack.c.h.b16 %v6399
        %v6519 = vunpack.c.l.b16 %v6400
        %v6520 = vunpack.c.h.b16 %v6400
        %v6521 = vunpack.c.l.b16 %v6401
        %v6522 = vunpack.c.h.b16 %v6401
        %v6523 = vunpack.c.l.b16 %v6402
        %v6524 = vunpack.c.h.b16 %v6402
        %v6525 = vunpack.c.l.b16 %v6403
        %v6526 = vunpack.c.h.b16 %v6403
        %v6527 = vunpack.c.l.b16 %v6404
        %v6528 = vunpack.c.h.b16 %v6404
        %v6529 = vunpack.c.l.b16 %v6405
        %v6530 = vunpack.c.h.b16 %v6405
        %v6531 = vunpack.c.l.b16 %v6406
        %v6532 = vunpack.c.h.b16 %v6406
        %v6533 = vunpack.c.l.b16 %v6407
        %v6534 = vunpack.c.h.b16 %v6407
        %v6535 = vunpack.c.l.b16 %v6408
        %v6536 = vunpack.c.h.b16 %v6408
        %v6537 = vunpack.c.l.b16 %v6409
        %v6538 = vunpack.c.h.b16 %v6409
        %v6539 = vunpack.c.l.b16 %v6410
        %v6540 = vunpack.c.h.b16 %v6410
        %v6541 = vunpack.c.l.b16 %v6411
        %v6542 = vunpack.c.h.b16 %v6411
        %v6543 = vunpack.c.l.b16 %v6412
        %v6544 = vunpack.c.h.b16 %v6412
        %v6545 = vunpack.c.l.b16 %v6413
        %v6546 = vunpack.c.h.b16 %v6413
        %v6547 = vunpack.c.l.b16 %v6414
        %v6548 = vunpack.c.h.b16 %v6414
        %v6549 = vunpack.c.l.b16 %v6415
        %v6550 = vunpack.c.h.b16 %v6415
        %v6551 = vpack.c.b16 %v6511, %v6509
        %v6552 = vpack.c.b16 %v6512, %v6510
        %v6553 = vpack.c.b16 %v6515, %v6513
        %v6554 = vpack.c.b16 %v6516, %v6514
        %v6555 = vpack.c.b16 %v6519, %v6517
        %v6556 = vpack.c.b16 %v6520, %v6518
        %v6557 = vpack.c.b16 %v6523, %v6521
        %v6558 = vpack.c.b16 %v6524, %v6522
        %v6559 = vpack.c.b16 %v6527, %v6525
        %v6560 = vpack.c.b16 %v6528, %v6526
        %v6561 = vpack.c.b16 %v6531, %v6529
        %v6562 = vpack.c.b16 %v6532, %v6530
        %v6563 = vpack.c.b16 %v6535, %v6533
        %v6564 = vpack.c.b16 %v6536, %v6534
        %v6565 = vpack.c.b16 %v6539, %v6537
        %v6566 = vpack.c.b16 %v6540, %v6538
        %v6567 = vpack.c.b16 %v6543, %v6541
        %v6568 = vpack.c.b16 %v6544, %v6542
        %v6569 = vpack.c.b16 %v6547, %v6545
        %v6570 = vpack.c.b16 %v6548, %v6546
        %v6571 = vpack.c.b16 %v6549, %v6549
        %v6572 = vpack.c.b16 %v6550, %v6550
        %vm6593 = vcmask 326656
        %v6595 = vsel %vm6593, %v6465, 0
        %v6598 = vsel %vm6593, %v6467, 0
        %v6601 = vsel %vm6593, %v6469, 0
        %v6604 = vsel %vm6593, %v6471, 0
        %v6607 = vsel %vm6593, %v6473, 0
        %v6610 = vsel %vm6593, %v6475, 0
        %v6613 = vsel %vm6593, %v6477, 0
        %v6616 = vsel %vm6593, %v6479, 0
        %v6619 = vsel %vm6220, %v6571, 0
        %v6622 = vsel %vm6220, %v6572, 0
        %6624 = vmatprep.subr.bf16.mxu0 %v6566
        %6625 = vmatpush1.bf16.msra.mxu0 %v6565
        %6626 = vmatprep.subr.bf16.mxu0 %v6564
        %6627 = vmatpush1.bf16.msra.mxu0 %v6563
        %6628 = vmatprep.subr.bf16.mxu0 %v6562
        %6629 = vmatpush1.bf16.msra.mxu0 %v6561
        %6630 = vmatprep.subr.bf16.mxu0 %v6560
        %6631 = vmatpush1.bf16.msra.mxu0 %v6559
        %6632 = vmatprep.subr.bf16.mxu0 %v6558
        %6633 = vmatpush1.bf16.msra.mxu0 %v6557
        %6634 = vmatprep.subr.bf16.mxu0 %v6556
        %6635 = vmatpush1.bf16.msra.mxu0 %v6555
        %6636 = vmatprep.subr.bf16.mxu0 %v6554
        %6637 = vmatpush1.bf16.msra.mxu0 %v6553
        %6638 = vmatprep.subr.bf16.mxu0 %v6552
        %6639 = vmatpush1.bf16.msra.mxu0 %v6551
        %6640 = vmatprep.subr.bf16.mxu0 0
        %6641 = vmatpush2.bf16.msra.mxu0 0
        %6642 = vmatprep.subr.bf16.mxu0 0
        %6643 = vmatpush2.bf16.msra.mxu0 0
        %6644 = vmatprep.subr.bf16.mxu0 0
        %6645 = vmatpush2.bf16.msra.mxu0 0
        %6646 = vmatprep.subr.bf16.mxu0 0
        %6647 = vmatpush2.bf16.msra.mxu0 0
        %6648 = vmatprep.subr.bf16.mxu0 0
        %6649 = vmatpush2.bf16.msra.mxu0 0
        %6650 = vmatprep.subr.bf16.mxu0 %v6622
        %6651 = vmatpush2.bf16.msra.mxu0 %v6619
        %6652 = vmatprep.subr.bf16.mxu0 %v6570
        %6653 = vmatpush2.bf16.msra.mxu0 %v6569
        %6654 = vmatprep.subr.bf16.mxu0 %v6568
        %6655 = vmatpush2.bf16.msra.mxu0 %v6567
        %6656 = vmatprep.mubr.bf16.mxu0 %v6595
        %6657 = vmatmul.mubr.bf16.gmra.mxu0 %v6464
        %v6658 = vpop.f32.mrf.mxu0
        %v6659 = vadd.f32 0.0, %v6658
        %v6660 = vpop.f32.mrf.mxu0
        %v6661 = vadd.f32 0.0, %v6660
        %v6662 = vpop.f32.mrf.mxu0
        %v6663 = vadd.f32 0.0, %v6662
        %v6664 = vpop.f32.mrf.mxu0
        %v6665 = vadd.f32 0.0, %v6664
        %6666 = vmatprep.mubr.bf16.mxu0 %v6598
        %6667 = vmatmul.mubr.bf16.gmra.mxu0 %v6466
        %v6668 = vpop.f32.mrf.mxu0
        %v6669 = vadd.f32 0.0, %v6668
        %v6670 = vpop.f32.mrf.mxu0
        %v6671 = vadd.f32 0.0, %v6670
        %v6672 = vpop.f32.mrf.mxu0
        %v6673 = vadd.f32 0.0, %v6672
        %v6674 = vpop.f32.mrf.mxu0
        %v6675 = vadd.f32 0.0, %v6674
        %6676 = vmatprep.mubr.bf16.mxu0 %v6601
        %6677 = vmatmul.mubr.bf16.gmra.mxu0 %v6468
        %v6678 = vpop.f32.mrf.mxu0
        %v6679 = vadd.f32 0.0, %v6678
        %v6680 = vpop.f32.mrf.mxu0
        %v6681 = vadd.f32 0.0, %v6680
        %v6682 = vpop.f32.mrf.mxu0
        %v6683 = vadd.f32 0.0, %v6682
        %v6684 = vpop.f32.mrf.mxu0
        %v6685 = vadd.f32 0.0, %v6684
        %6686 = vmatprep.mubr.bf16.mxu0 %v6604
        %6687 = vmatmul.mubr.bf16.gmra.mxu0 %v6470
        %v6688 = vpop.f32.mrf.mxu0
        %v6689 = vadd.f32 0.0, %v6688
        %v6690 = vpop.f32.mrf.mxu0
        %v6691 = vadd.f32 0.0, %v6690
        %v6692 = vpop.f32.mrf.mxu0
        %v6693 = vadd.f32 0.0, %v6692
        %v6694 = vpop.f32.mrf.mxu0
        %v6695 = vadd.f32 0.0, %v6694
        %6696 = vmatprep.mubr.bf16.mxu0 %v6607
        %6697 = vmatmul.mubr.bf16.gmra.mxu0 %v6472
        %v6698 = vpop.f32.mrf.mxu0
        %v6699 = vadd.f32 0.0, %v6698
        %v6700 = vpop.f32.mrf.mxu0
        %v6701 = vadd.f32 0.0, %v6700
        %v6702 = vpop.f32.mrf.mxu0
        %v6703 = vadd.f32 0.0, %v6702
        %v6704 = vpop.f32.mrf.mxu0
        %v6705 = vadd.f32 0.0, %v6704
        %6706 = vmatprep.mubr.bf16.mxu0 %v6610
        %6707 = vmatmul.mubr.bf16.gmra.mxu0 %v6474
        %v6708 = vpop.f32.mrf.mxu0
        %v6709 = vadd.f32 0.0, %v6708
        %v6710 = vpop.f32.mrf.mxu0
        %v6711 = vadd.f32 0.0, %v6710
        %v6712 = vpop.f32.mrf.mxu0
        %v6713 = vadd.f32 0.0, %v6712
        %v6714 = vpop.f32.mrf.mxu0
        %v6715 = vadd.f32 0.0, %v6714
        %6716 = vmatprep.mubr.bf16.mxu0 %v6613
        %6717 = vmatmul.mubr.bf16.gmra.mxu0 %v6476
        %v6718 = vpop.f32.mrf.mxu0
        %v6719 = vadd.f32 0.0, %v6718
        %v6720 = vpop.f32.mrf.mxu0
        %v6721 = vadd.f32 0.0, %v6720
        %v6722 = vpop.f32.mrf.mxu0
        %v6723 = vadd.f32 0.0, %v6722
        %v6724 = vpop.f32.mrf.mxu0
        %v6725 = vadd.f32 0.0, %v6724
        %6726 = vmatprep.mubr.bf16.mxu0 %v6616
        %6727 = vmatmul.mubr.bf16.gmra.mxu0 %v6478
        %v6728 = vpop.f32.mrf.mxu0
        %v6729 = vadd.f32 0.0, %v6728
        %v6730 = vpop.f32.mrf.mxu0
        %v6731 = vadd.f32 0.0, %v6730
        %v6732 = vpop.f32.mrf.mxu0
        %v6733 = vadd.f32 0.0, %v6732
        %v6734 = vpop.f32.mrf.mxu0
        %v6735 = vadd.f32 0.0, %v6734
        %6736 = vdwg.mxu0
        %v6753 = vunpack.c.l.b16 %v6341
        %v6754 = vunpack.c.h.b16 %v6341
        %v6755 = vunpack.c.l.b16 %v6342
        %v6756 = vunpack.c.h.b16 %v6342
        %v6757 = vunpack.c.l.b16 %v6343
        %v6758 = vunpack.c.h.b16 %v6343
        %v6759 = vunpack.c.l.b16 %v6344
        %v6760 = vunpack.c.h.b16 %v6344
        %v6761 = vunpack.c.l.b16 %v6345
        %v6762 = vunpack.c.h.b16 %v6345
        %v6763 = vunpack.c.l.b16 %v6346
        %v6764 = vunpack.c.h.b16 %v6346
        %v6765 = vunpack.c.l.b16 %v6347
        %v6766 = vunpack.c.h.b16 %v6347
        %v6767 = vunpack.c.l.b16 %v6348
        %v6768 = vunpack.c.h.b16 %v6348
        %v6769 = vunpack.c.l.b16 %v6349
        %v6770 = vunpack.c.h.b16 %v6349
        %v6771 = vunpack.c.l.b16 %v6350
        %v6772 = vunpack.c.h.b16 %v6350
        %v6773 = vunpack.c.l.b16 %v6351
        %v6774 = vunpack.c.h.b16 %v6351
        %v6775 = vunpack.c.l.b16 %v6352
        %v6776 = vunpack.c.h.b16 %v6352
        %v6777 = vunpack.c.l.b16 %v6353
        %v6778 = vunpack.c.h.b16 %v6353
        %v6779 = vunpack.c.l.b16 %v6354
        %v6780 = vunpack.c.h.b16 %v6354
        %v6781 = vunpack.c.l.b16 %v6355
        %v6782 = vunpack.c.h.b16 %v6355
        %v6783 = vunpack.c.l.b16 %v6356
        %v6784 = vunpack.c.h.b16 %v6356
        %v6785 = vpack.c.b16 %v6755, %v6753
        %v6786 = vpack.c.b16 %v6756, %v6754
        %v6787 = vpack.c.b16 %v6759, %v6757
        %v6788 = vpack.c.b16 %v6760, %v6758
        %v6789 = vpack.c.b16 %v6763, %v6761
        %v6790 = vpack.c.b16 %v6764, %v6762
        %v6791 = vpack.c.b16 %v6767, %v6765
        %v6792 = vpack.c.b16 %v6768, %v6766
        %v6793 = vpack.c.b16 %v6771, %v6769
        %v6794 = vpack.c.b16 %v6772, %v6770
        %v6795 = vpack.c.b16 %v6775, %v6773
        %v6796 = vpack.c.b16 %v6776, %v6774
        %v6797 = vpack.c.b16 %v6779, %v6777
        %v6798 = vpack.c.b16 %v6780, %v6778
        %v6799 = vpack.c.b16 %v6783, %v6781
        %v6800 = vpack.c.b16 %v6784, %v6782
        %v6830 = vunpack.c.l.b16 %v6357
        %v6831 = vunpack.c.h.b16 %v6357
        %v6832 = vunpack.c.l.b16 %v6358
        %v6833 = vunpack.c.h.b16 %v6358
        %v6834 = vunpack.c.l.b16 %v6359
        %v6835 = vunpack.c.h.b16 %v6359
        %v6836 = vunpack.c.l.b16 %v6360
        %v6837 = vunpack.c.h.b16 %v6360
        %v6838 = vunpack.c.l.b16 %v6361
        %v6839 = vunpack.c.h.b16 %v6361
        %v6840 = vunpack.c.l.b16 %v6362
        %v6841 = vunpack.c.h.b16 %v6362
        %v6842 = vunpack.c.l.b16 %v6363
        %v6843 = vunpack.c.h.b16 %v6363
        %v6844 = vunpack.c.l.b16 %v6364
        %v6845 = vunpack.c.h.b16 %v6364
        %v6846 = vunpack.c.l.b16 %v6365
        %v6847 = vunpack.c.h.b16 %v6365
        %v6848 = vunpack.c.l.b16 %v6366
        %v6849 = vunpack.c.h.b16 %v6366
        %v6850 = vunpack.c.l.b16 %v6367
        %v6851 = vunpack.c.h.b16 %v6367
        %v6852 = vunpack.c.l.b16 %v6368
        %v6853 = vunpack.c.h.b16 %v6368
        %v6854 = vunpack.c.l.b16 %v6369
        %v6855 = vunpack.c.h.b16 %v6369
        %v6856 = vunpack.c.l.b16 %v6370
        %v6857 = vunpack.c.h.b16 %v6370
        %v6858 = vunpack.c.l.b16 %v6371
        %v6859 = vunpack.c.h.b16 %v6371
        %v6860 = vunpack.c.l.b16 %v6372
        %v6861 = vunpack.c.h.b16 %v6372
        %v6862 = vunpack.c.l.b16 %v6373
        %v6863 = vunpack.c.h.b16 %v6373
        %v6864 = vunpack.c.l.b16 %v6374
        %v6865 = vunpack.c.h.b16 %v6374
        %v6866 = vunpack.c.l.b16 %v6375
        %v6867 = vunpack.c.h.b16 %v6375
        %v6868 = vunpack.c.l.b16 %v6376
        %v6869 = vunpack.c.h.b16 %v6376
        %v6870 = vunpack.c.l.b16 %v6377
        %v6871 = vunpack.c.h.b16 %v6377
        %v6872 = vpack.c.b16 %v6832, %v6830
        %v6873 = vpack.c.b16 %v6833, %v6831
        %v6874 = vpack.c.b16 %v6836, %v6834
        %v6875 = vpack.c.b16 %v6837, %v6835
        %v6876 = vpack.c.b16 %v6840, %v6838
        %v6877 = vpack.c.b16 %v6841, %v6839
        %v6878 = vpack.c.b16 %v6844, %v6842
        %v6879 = vpack.c.b16 %v6845, %v6843
        %v6880 = vpack.c.b16 %v6848, %v6846
        %v6881 = vpack.c.b16 %v6849, %v6847
        %v6882 = vpack.c.b16 %v6852, %v6850
        %v6883 = vpack.c.b16 %v6853, %v6851
        %v6884 = vpack.c.b16 %v6856, %v6854
        %v6885 = vpack.c.b16 %v6857, %v6855
        %v6886 = vpack.c.b16 %v6860, %v6858
        %v6887 = vpack.c.b16 %v6861, %v6859
        %v6888 = vpack.c.b16 %v6864, %v6862
        %v6889 = vpack.c.b16 %v6865, %v6863
        %v6890 = vpack.c.b16 %v6868, %v6866
        %v6891 = vpack.c.b16 %v6869, %v6867
        %v6892 = vpack.c.b16 %v6870, %v6870
        %v6893 = vpack.c.b16 %v6871, %v6871
        %v6915 = vsel %vm6593, %v6786, 0
        %v6918 = vsel %vm6593, %v6788, 0
        %v6921 = vsel %vm6593, %v6790, 0
        %v6924 = vsel %vm6593, %v6792, 0
        %v6927 = vsel %vm6593, %v6794, 0
        %v6930 = vsel %vm6593, %v6796, 0
        %v6933 = vsel %vm6593, %v6798, 0
        %v6936 = vsel %vm6593, %v6800, 0
        %v6939 = vsel %vm6220, %v6892, 0
        %v6942 = vsel %vm6220, %v6893, 0
        %6944 = vmatprep.subr.bf16.mxu0 %v6887
        %6945 = vmatpush1.bf16.msra.mxu0 %v6886
        %6946 = vmatprep.subr.bf16.mxu0 %v6885
        %6947 = vmatpush1.bf16.msra.mxu0 %v6884
        %6948 = vmatprep.subr.bf16.mxu0 %v6883
        %6949 = vmatpush1.bf16.msra.mxu0 %v6882
        %6950 = vmatprep.subr.bf16.mxu0 %v6881
        %6951 = vmatpush1.bf16.msra.mxu0 %v6880
        %6952 = vmatprep.subr.bf16.mxu0 %v6879
        %6953 = vmatpush1.bf16.msra.mxu0 %v6878
        %6954 = vmatprep.subr.bf16.mxu0 %v6877
        %6955 = vmatpush1.bf16.msra.mxu0 %v6876
        %6956 = vmatprep.subr.bf16.mxu0 %v6875
        %6957 = vmatpush1.bf16.msra.mxu0 %v6874
        %6958 = vmatprep.subr.bf16.mxu0 %v6873
        %6959 = vmatpush1.bf16.msra.mxu0 %v6872
        %6960 = vmatprep.subr.bf16.mxu0 0
        %6961 = vmatpush2.bf16.msra.mxu0 0
        %6962 = vmatprep.subr.bf16.mxu0 0
        %6963 = vmatpush2.bf16.msra.mxu0 0
        %6964 = vmatprep.subr.bf16.mxu0 0
        %6965 = vmatpush2.bf16.msra.mxu0 0
        %6966 = vmatprep.subr.bf16.mxu0 0
        %6967 = vmatpush2.bf16.msra.mxu0 0
        %6968 = vmatprep.subr.bf16.mxu0 0
        %6969 = vmatpush2.bf16.msra.mxu0 0
        %6970 = vmatprep.subr.bf16.mxu0 %v6942
        %6971 = vmatpush2.bf16.msra.mxu0 %v6939
        %6972 = vmatprep.subr.bf16.mxu0 %v6891
        %6973 = vmatpush2.bf16.msra.mxu0 %v6890
        %6974 = vmatprep.subr.bf16.mxu0 %v6889
        %6975 = vmatpush2.bf16.msra.mxu0 %v6888
        %6976 = vmatprep.mubr.bf16.mxu0 %v6915
        %6977 = vmatmul.mubr.bf16.gmra.mxu0 %v6785
        %v6978 = vpop.f32.mrf.mxu0
        %v6979 = vadd.f32 %v6659, %v6978
        %v6980 = vpop.f32.mrf.mxu0
        %v6981 = vadd.f32 %v6661, %v6980
        %v6982 = vpop.f32.mrf.mxu0
        %v6983 = vadd.f32 %v6663, %v6982
        %v6984 = vpop.f32.mrf.mxu0
        %v6985 = vadd.f32 %v6665, %v6984
        %6986 = vmatprep.mubr.bf16.mxu0 %v6918
        %6987 = vmatmul.mubr.bf16.gmra.mxu0 %v6787
        %v6988 = vpop.f32.mrf.mxu0
        %v6989 = vadd.f32 %v6669, %v6988
        %v6990 = vpop.f32.mrf.mxu0
        %v6991 = vadd.f32 %v6671, %v6990
        %v6992 = vpop.f32.mrf.mxu0
        %v6993 = vadd.f32 %v6673, %v6992
        %v6994 = vpop.f32.mrf.mxu0
        %v6995 = vadd.f32 %v6675, %v6994
        %6996 = vmatprep.mubr.bf16.mxu0 %v6921
        %6997 = vmatmul.mubr.bf16.gmra.mxu0 %v6789
        %v6998 = vpop.f32.mrf.mxu0
        %v6999 = vadd.f32 %v6679, %v6998
        %v7000 = vpop.f32.mrf.mxu0
        %v7001 = vadd.f32 %v6681, %v7000
        %v7002 = vpop.f32.mrf.mxu0
        %v7003 = vadd.f32 %v6683, %v7002
        %v7004 = vpop.f32.mrf.mxu0
        %v7005 = vadd.f32 %v6685, %v7004
        %7006 = vmatprep.mubr.bf16.mxu0 %v6924
        %7007 = vmatmul.mubr.bf16.gmra.mxu0 %v6791
        %v7008 = vpop.f32.mrf.mxu0
        %v7009 = vadd.f32 %v6689, %v7008
        %v7010 = vpop.f32.mrf.mxu0
        %v7011 = vadd.f32 %v6691, %v7010
        %v7012 = vpop.f32.mrf.mxu0
        %v7013 = vadd.f32 %v6693, %v7012
        %v7014 = vpop.f32.mrf.mxu0
        %v7015 = vadd.f32 %v6695, %v7014
        %7016 = vmatprep.mubr.bf16.mxu0 %v6927
        %7017 = vmatmul.mubr.bf16.gmra.mxu0 %v6793
        %v7018 = vpop.f32.mrf.mxu0
        %v7019 = vadd.f32 %v6699, %v7018
        %v7020 = vpop.f32.mrf.mxu0
        %v7021 = vadd.f32 %v6701, %v7020
        %v7022 = vpop.f32.mrf.mxu0
        %v7023 = vadd.f32 %v6703, %v7022
        %v7024 = vpop.f32.mrf.mxu0
        %v7025 = vadd.f32 %v6705, %v7024
        %7026 = vmatprep.mubr.bf16.mxu0 %v6930
        %7027 = vmatmul.mubr.bf16.gmra.mxu0 %v6795
        %v7028 = vpop.f32.mrf.mxu0
        %v7029 = vadd.f32 %v6709, %v7028
        %v7030 = vpop.f32.mrf.mxu0
        %v7031 = vadd.f32 %v6711, %v7030
        %v7032 = vpop.f32.mrf.mxu0
        %v7033 = vadd.f32 %v6713, %v7032
        %v7034 = vpop.f32.mrf.mxu0
        %v7035 = vadd.f32 %v6715, %v7034
        %7036 = vmatprep.mubr.bf16.mxu0 %v6933
        %7037 = vmatmul.mubr.bf16.gmra.mxu0 %v6797
        %v7038 = vpop.f32.mrf.mxu0
        %v7039 = vadd.f32 %v6719, %v7038
        %v7040 = vpop.f32.mrf.mxu0
        %v7041 = vadd.f32 %v6721, %v7040
        %v7042 = vpop.f32.mrf.mxu0
        %v7043 = vadd.f32 %v6723, %v7042
        %v7044 = vpop.f32.mrf.mxu0
        %v7045 = vadd.f32 %v6725, %v7044
        %7046 = vmatprep.mubr.bf16.mxu0 %v6936
        %7047 = vmatmul.mubr.bf16.gmra.mxu0 %v6799
        %v7048 = vpop.f32.mrf.mxu0
        %v7049 = vadd.f32 %v6729, %v7048
        %v7050 = vpop.f32.mrf.mxu0
        %v7051 = vadd.f32 %v6731, %v7050
        %v7052 = vpop.f32.mrf.mxu0
        %v7053 = vadd.f32 %v6733, %v7052
        %v7054 = vpop.f32.mrf.mxu0
        %v7055 = vadd.f32 %v6735, %v7054
        %7056 = vdwg.mxu0
        %s7057 = scalar_lea.vmem [#allocation3], 16
        %v7058 = vld [vmem:[%s7057] sm:$0xff]
        %v7059 = vld [vmem:[%s7057 + $0x8] sm:$0xff]
        %v7060 = vld [vmem:[%s7057 + $0x10] sm:$0xff]
        %v7061 = vld [vmem:[%s7057 + $0x18] sm:$0xff]
        %v7062 = vld [vmem:[%s7057 + $0x20] sm:$0xff]
        %v7063 = vld [vmem:[%s7057 + $0x28] sm:$0xff]
        %v7064 = vld [vmem:[%s7057 + $0x30] sm:$0xff]
        %v7065 = vld [vmem:[%s7057 + $0x38] sm:$0xff]
        %v7066 = vld [vmem:[%s7057 + $0x50] sm:$0xff]
        %v7067 = vld [vmem:[%s7057 + $0x58] sm:$0xff]
        %v7068 = vld [vmem:[%s7057 + $0x60] sm:$0xff]
        %v7069 = vld [vmem:[%s7057 + $0x68] sm:$0xff]
        %v7070 = vld [vmem:[%s7057 + $0x70] sm:$0xff]
        %v7071 = vld [vmem:[%s7057 + $0x78] sm:$0xff]
        %v7072 = vld [vmem:[%s7057 + $0x80] sm:$0xff]
        %v7073 = vld [vmem:[%s7057 + $0x88] sm:$0xff]
        %s7074 = scalar_lea.vmem [#allocation9], 336
        %v7075 = vld [vmem:[%s7074] sm:$0xff]
        %v7076 = vld [vmem:[%s7074 + $0x8] sm:$0xff]
        %v7077 = vld [vmem:[%s7074 + $0x10] sm:$0xff]
        %v7078 = vld [vmem:[%s7074 + $0x18] sm:$0xff]
        %v7079 = vld [vmem:[%s7074 + $0x20] sm:$0xff]
        %v7080 = vld [vmem:[%s7074 + $0x28] sm:$0xff]
        %v7081 = vld [vmem:[%s7074 + $0x30] sm:$0xff]
        %v7082 = vld [vmem:[%s7074 + $0x38] sm:$0xff]
        %v7083 = vld [vmem:[%s7074 + $0x40] sm:$0xff]
        %v7084 = vld [vmem:[%s7074 + $0x48] sm:$0xff]
        %v7085 = vld [vmem:[%s7074 + $0x50] sm:$0xff]
        %v7086 = vld [vmem:[%s7074 + $0x58] sm:$0xff]
        %v7087 = vld [vmem:[%s7074 + $0x60] sm:$0xff]
        %v7088 = vld [vmem:[%s7074 + $0x68] sm:$0xff]
        %v7089 = vld [vmem:[%s7074 + $0x70] sm:$0xff]
        %v7090 = vld [vmem:[%s7074 + $0x78] sm:$0xff]
        %v7091 = vld [vmem:[%s7074 + $0x80] sm:$0xff]
        %v7092 = vld [vmem:[%s7074 + $0x88] sm:$0xff]
        %v7093 = vld [vmem:[%s7074 + $0x90] sm:$0xff]
        %v7094 = vld [vmem:[%s7074 + $0x98] sm:$0xff]
        %v7095 = vld [vmem:[%s7074 + $0xa0] sm:$0xff]
        %v7112 = vunpack.c.l.b16 %v7058
        %v7113 = vunpack.c.h.b16 %v7058
        %v7114 = vunpack.c.l.b16 %v7059
        %v7115 = vunpack.c.h.b16 %v7059
        %v7116 = vunpack.c.l.b16 %v7060
        %v7117 = vunpack.c.h.b16 %v7060
        %v7118 = vunpack.c.l.b16 %v7061
        %v7119 = vunpack.c.h.b16 %v7061
        %v7120 = vunpack.c.l.b16 %v7062
        %v7121 = vunpack.c.h.b16 %v7062
        %v7122 = vunpack.c.l.b16 %v7063
        %v7123 = vunpack.c.h.b16 %v7063
        %v7124 = vunpack.c.l.b16 %v7064
        %v7125 = vunpack.c.h.b16 %v7064
        %v7126 = vunpack.c.l.b16 %v7065
        %v7127 = vunpack.c.h.b16 %v7065
        %v7128 = vunpack.c.l.b16 %v7066
        %v7129 = vunpack.c.h.b16 %v7066
        %v7130 = vunpack.c.l.b16 %v7067
        %v7131 = vunpack.c.h.b16 %v7067
        %v7132 = vunpack.c.l.b16 %v7068
        %v7133 = vunpack.c.h.b16 %v7068
        %v7134 = vunpack.c.l.b16 %v7069
        %v7135 = vunpack.c.h.b16 %v7069
        %v7136 = vunpack.c.l.b16 %v7070
        %v7137 = vunpack.c.h.b16 %v7070
        %v7138 = vunpack.c.l.b16 %v7071
        %v7139 = vunpack.c.h.b16 %v7071
        %v7140 = vunpack.c.l.b16 %v7072
        %v7141 = vunpack.c.h.b16 %v7072
        %v7142 = vunpack.c.l.b16 %v7073
        %v7143 = vunpack.c.h.b16 %v7073
        %v7144 = vpack.c.b16 %v7114, %v7112
        %v7145 = vpack.c.b16 %v7115, %v7113
        %v7146 = vpack.c.b16 %v7118, %v7116
        %v7147 = vpack.c.b16 %v7119, %v7117
        %v7148 = vpack.c.b16 %v7122, %v7120
        %v7149 = vpack.c.b16 %v7123, %v7121
        %v7150 = vpack.c.b16 %v7126, %v7124
        %v7151 = vpack.c.b16 %v7127, %v7125
        %v7152 = vpack.c.b16 %v7130, %v7128
        %v7153 = vpack.c.b16 %v7131, %v7129
        %v7154 = vpack.c.b16 %v7134, %v7132
        %v7155 = vpack.c.b16 %v7135, %v7133
        %v7156 = vpack.c.b16 %v7138, %v7136
        %v7157 = vpack.c.b16 %v7139, %v7137
        %v7158 = vpack.c.b16 %v7142, %v7140
        %v7159 = vpack.c.b16 %v7143, %v7141
        %v7189 = vunpack.c.l.b16 %v7075
        %v7190 = vunpack.c.h.b16 %v7075
        %v7191 = vunpack.c.l.b16 %v7076
        %v7192 = vunpack.c.h.b16 %v7076
        %v7193 = vunpack.c.l.b16 %v7077
        %v7194 = vunpack.c.h.b16 %v7077
        %v7195 = vunpack.c.l.b16 %v7078
        %v7196 = vunpack.c.h.b16 %v7078
        %v7197 = vunpack.c.l.b16 %v7079
        %v7198 = vunpack.c.h.b16 %v7079
        %v7199 = vunpack.c.l.b16 %v7080
        %v7200 = vunpack.c.h.b16 %v7080
        %v7201 = vunpack.c.l.b16 %v7081
        %v7202 = vunpack.c.h.b16 %v7081
        %v7203 = vunpack.c.l.b16 %v7082
        %v7204 = vunpack.c.h.b16 %v7082
        %v7205 = vunpack.c.l.b16 %v7083
        %v7206 = vunpack.c.h.b16 %v7083
        %v7207 = vunpack.c.l.b16 %v7084
        %v7208 = vunpack.c.h.b16 %v7084
        %v7209 = vunpack.c.l.b16 %v7085
        %v7210 = vunpack.c.h.b16 %v7085
        %v7211 = vunpack.c.l.b16 %v7086
        %v7212 = vunpack.c.h.b16 %v7086
        %v7213 = vunpack.c.l.b16 %v7087
        %v7214 = vunpack.c.h.b16 %v7087
        %v7215 = vunpack.c.l.b16 %v7088
        %v7216 = vunpack.c.h.b16 %v7088
        %v7217 = vunpack.c.l.b16 %v7089
        %v7218 = vunpack.c.h.b16 %v7089
        %v7219 = vunpack.c.l.b16 %v7090
        %v7220 = vunpack.c.h.b16 %v7090
        %v7221 = vunpack.c.l.b16 %v7091
        %v7222 = vunpack.c.h.b16 %v7091
        %v7223 = vunpack.c.l.b16 %v7092
        %v7224 = vunpack.c.h.b16 %v7092
        %v7225 = vunpack.c.l.b16 %v7093
        %v7226 = vunpack.c.h.b16 %v7093
        %v7227 = vunpack.c.l.b16 %v7094
        %v7228 = vunpack.c.h.b16 %v7094
        %v7229 = vunpack.c.l.b16 %v7095
        %v7230 = vunpack.c.h.b16 %v7095
        %v7231 = vpack.c.b16 %v7191, %v7189
        %v7232 = vpack.c.b16 %v7192, %v7190
        %v7233 = vpack.c.b16 %v7195, %v7193
        %v7234 = vpack.c.b16 %v7196, %v7194
        %v7235 = vpack.c.b16 %v7199, %v7197
        %v7236 = vpack.c.b16 %v7200, %v7198
        %v7237 = vpack.c.b16 %v7203, %v7201
        %v7238 = vpack.c.b16 %v7204, %v7202
        %v7239 = vpack.c.b16 %v7207, %v7205
        %v7240 = vpack.c.b16 %v7208, %v7206
        %v7241 = vpack.c.b16 %v7211, %v7209
        %v7242 = vpack.c.b16 %v7212, %v7210
        %v7243 = vpack.c.b16 %v7215, %v7213
        %v7244 = vpack.c.b16 %v7216, %v7214
        %v7245 = vpack.c.b16 %v7219, %v7217
        %v7246 = vpack.c.b16 %v7220, %v7218
        %v7247 = vpack.c.b16 %v7223, %v7221
        %v7248 = vpack.c.b16 %v7224, %v7222
        %v7249 = vpack.c.b16 %v7227, %v7225
        %v7250 = vpack.c.b16 %v7228, %v7226
        %v7251 = vpack.c.b16 %v7229, %v7229
        %v7252 = vpack.c.b16 %v7230, %v7230
        %v7274 = vsel %vm6593, %v7145, 0
        %v7277 = vsel %vm6593, %v7147, 0
        %v7280 = vsel %vm6593, %v7149, 0
        %v7283 = vsel %vm6593, %v7151, 0
        %v7286 = vsel %vm6593, %v7153, 0
        %v7289 = vsel %vm6593, %v7155, 0
        %v7292 = vsel %vm6593, %v7157, 0
        %v7295 = vsel %vm6593, %v7159, 0
        %v7298 = vsel %vm6220, %v7251, 0
        %v7301 = vsel %vm6220, %v7252, 0
        %7303 = vmatprep.subr.bf16.mxu0 %v7246
        %7304 = vmatpush1.bf16.msra.mxu0 %v7245
        %7305 = vmatprep.subr.bf16.mxu0 %v7244
        %7306 = vmatpush1.bf16.msra.mxu0 %v7243
        %7307 = vmatprep.subr.bf16.mxu0 %v7242
        %7308 = vmatpush1.bf16.msra.mxu0 %v7241
        %7309 = vmatprep.subr.bf16.mxu0 %v7240
        %7310 = vmatpush1.bf16.msra.mxu0 %v7239
        %7311 = vmatprep.subr.bf16.mxu0 %v7238
        %7312 = vmatpush1.bf16.msra.mxu0 %v7237
        %7313 = vmatprep.subr.bf16.mxu0 %v7236
        %7314 = vmatpush1.bf16.msra.mxu0 %v7235
        %7315 = vmatprep.subr.bf16.mxu0 %v7234
        %7316 = vmatpush1.bf16.msra.mxu0 %v7233
        %7317 = vmatprep.subr.bf16.mxu0 %v7232
        %7318 = vmatpush1.bf16.msra.mxu0 %v7231
        %7319 = vmatprep.subr.bf16.mxu0 0
        %7320 = vmatpush2.bf16.msra.mxu0 0
        %7321 = vmatprep.subr.bf16.mxu0 0
        %7322 = vmatpush2.bf16.msra.mxu0 0
        %7323 = vmatprep.subr.bf16.mxu0 0
        %7324 = vmatpush2.bf16.msra.mxu0 0
        %7325 = vmatprep.subr.bf16.mxu0 0
        %7326 = vmatpush2.bf16.msra.mxu0 0
        %7327 = vmatprep.subr.bf16.mxu0 0
        %7328 = vmatpush2.bf16.msra.mxu0 0
        %7329 = vmatprep.subr.bf16.mxu0 %v7301
        %7330 = vmatpush2.bf16.msra.mxu0 %v7298
        %7331 = vmatprep.subr.bf16.mxu0 %v7250
        %7332 = vmatpush2.bf16.msra.mxu0 %v7249
        %7333 = vmatprep.subr.bf16.mxu0 %v7248
        %7334 = vmatpush2.bf16.msra.mxu0 %v7247
        %7335 = vmatprep.mubr.bf16.mxu0 %v7274
        %7336 = vmatmul.mubr.bf16.gmra.mxu0 %v7144
        %v7337 = vpop.f32.mrf.mxu0
        %v7338 = vadd.f32 0.0, %v7337
        %v7339 = vpop.f32.mrf.mxu0
        %v7340 = vadd.f32 0.0, %v7339
        %v7341 = vpop.f32.mrf.mxu0
        %v7342 = vadd.f32 0.0, %v7341
        %v7343 = vpop.f32.mrf.mxu0
        %v7344 = vadd.f32 0.0, %v7343
        %7345 = vmatprep.mubr.bf16.mxu0 %v7277
        %7346 = vmatmul.mubr.bf16.gmra.mxu0 %v7146
        %v7347 = vpop.f32.mrf.mxu0
        %v7348 = vadd.f32 0.0, %v7347
        %v7349 = vpop.f32.mrf.mxu0
        %v7350 = vadd.f32 0.0, %v7349
        %v7351 = vpop.f32.mrf.mxu0
        %v7352 = vadd.f32 0.0, %v7351
        %v7353 = vpop.f32.mrf.mxu0
        %v7354 = vadd.f32 0.0, %v7353
        %7355 = vmatprep.mubr.bf16.mxu0 %v7280
        %7356 = vmatmul.mubr.bf16.gmra.mxu0 %v7148
        %v7357 = vpop.f32.mrf.mxu0
        %v7358 = vadd.f32 0.0, %v7357
        %v7359 = vpop.f32.mrf.mxu0
        %v7360 = vadd.f32 0.0, %v7359
        %v7361 = vpop.f32.mrf.mxu0
        %v7362 = vadd.f32 0.0, %v7361
        %v7363 = vpop.f32.mrf.mxu0
        %v7364 = vadd.f32 0.0, %v7363
        %7365 = vmatprep.mubr.bf16.mxu0 %v7283
        %7366 = vmatmul.mubr.bf16.gmra.mxu0 %v7150
        %v7367 = vpop.f32.mrf.mxu0
        %v7368 = vadd.f32 0.0, %v7367
        %v7369 = vpop.f32.mrf.mxu0
        %v7370 = vadd.f32 0.0, %v7369
        %v7371 = vpop.f32.mrf.mxu0
        %v7372 = vadd.f32 0.0, %v7371
        %v7373 = vpop.f32.mrf.mxu0
        %v7374 = vadd.f32 0.0, %v7373
        %7375 = vmatprep.mubr.bf16.mxu0 %v7286
        %7376 = vmatmul.mubr.bf16.gmra.mxu0 %v7152
        %v7377 = vpop.f32.mrf.mxu0
        %v7378 = vadd.f32 0.0, %v7377
        %v7379 = vpop.f32.mrf.mxu0
        %v7380 = vadd.f32 0.0, %v7379
        %v7381 = vpop.f32.mrf.mxu0
        %v7382 = vadd.f32 0.0, %v7381
        %v7383 = vpop.f32.mrf.mxu0
        %v7384 = vadd.f32 0.0, %v7383
        %7385 = vmatprep.mubr.bf16.mxu0 %v7289
        %7386 = vmatmul.mubr.bf16.gmra.mxu0 %v7154
        %v7387 = vpop.f32.mrf.mxu0
        %v7388 = vadd.f32 0.0, %v7387
        %v7389 = vpop.f32.mrf.mxu0
        %v7390 = vadd.f32 0.0, %v7389
        %v7391 = vpop.f32.mrf.mxu0
        %v7392 = vadd.f32 0.0, %v7391
        %v7393 = vpop.f32.mrf.mxu0
        %v7394 = vadd.f32 0.0, %v7393
        %7395 = vmatprep.mubr.bf16.mxu0 %v7292
        %7396 = vmatmul.mubr.bf16.gmra.mxu0 %v7156
        %v7397 = vpop.f32.mrf.mxu0
        %v7398 = vadd.f32 0.0, %v7397
        %v7399 = vpop.f32.mrf.mxu0
        %v7400 = vadd.f32 0.0, %v7399
        %v7401 = vpop.f32.mrf.mxu0
        %v7402 = vadd.f32 0.0, %v7401
        %v7403 = vpop.f32.mrf.mxu0
        %v7404 = vadd.f32 0.0, %v7403
        %7405 = vmatprep.mubr.bf16.mxu0 %v7295
        %7406 = vmatmul.mubr.bf16.gmra.mxu0 %v7158
        %v7407 = vpop.f32.mrf.mxu0
        %v7408 = vadd.f32 0.0, %v7407
        %v7409 = vpop.f32.mrf.mxu0
        %v7410 = vadd.f32 0.0, %v7409
        %v7411 = vpop.f32.mrf.mxu0
        %v7412 = vadd.f32 0.0, %v7411
        %v7413 = vpop.f32.mrf.mxu0
        %v7414 = vadd.f32 0.0, %v7413
        %7415 = vdwg.mxu0
        %v7416 = vadd.f32 %v6979, %v7338
        %v7417 = vadd.f32 %v6981, %v7340
        %v7418 = vadd.f32 %v6983, %v7342
        %v7419 = vadd.f32 %v6985, %v7344
        %v7420 = vadd.f32 %v6989, %v7348
        %v7421 = vadd.f32 %v6991, %v7350
        %v7422 = vadd.f32 %v6993, %v7352
        %v7423 = vadd.f32 %v6995, %v7354
        %v7424 = vadd.f32 %v6999, %v7358
        %v7425 = vadd.f32 %v7001, %v7360
        %v7426 = vadd.f32 %v7003, %v7362
        %v7427 = vadd.f32 %v7005, %v7364
        %v7428 = vadd.f32 %v7009, %v7368
        %v7429 = vadd.f32 %v7011, %v7370
        %v7430 = vadd.f32 %v7013, %v7372
        %v7431 = vadd.f32 %v7015, %v7374
        %v7432 = vadd.f32 %v7019, %v7378
        %v7433 = vadd.f32 %v7021, %v7380
        %v7434 = vadd.f32 %v7023, %v7382
        %v7435 = vadd.f32 %v7025, %v7384
        %v7436 = vadd.f32 %v7029, %v7388
        %v7437 = vadd.f32 %v7031, %v7390
        %v7438 = vadd.f32 %v7033, %v7392
        %v7439 = vadd.f32 %v7035, %v7394
        %v7440 = vadd.f32 %v7039, %v7398
        %v7441 = vadd.f32 %v7041, %v7400
        %v7442 = vadd.f32 %v7043, %v7402
        %v7443 = vadd.f32 %v7045, %v7404
        %v7444 = vadd.f32 %v7049, %v7408
        %v7445 = vadd.f32 %v7051, %v7410
        %v7446 = vadd.f32 %v7053, %v7412
        %v7447 = vadd.f32 %v7055, %v7414
        %v7448 = vmax.f32 %v7416, 0.0
        %v7449 = vmax.f32 %v7417, 0.0
        %v7450 = vmax.f32 %v7418, 0.0
        %v7451 = vmax.f32 %v7419, 0.0
        %v7452 = vmax.f32 %v7420, 0.0
        %v7453 = vmax.f32 %v7421, 0.0
        %v7454 = vmax.f32 %v7422, 0.0
        %v7455 = vmax.f32 %v7423, 0.0
        %v7456 = vmax.f32 %v7424, 0.0
        %v7457 = vmax.f32 %v7425, 0.0
        %v7458 = vmax.f32 %v7426, 0.0
        %v7459 = vmax.f32 %v7427, 0.0
        %v7460 = vmax.f32 %v7428, 0.0
        %v7461 = vmax.f32 %v7429, 0.0
        %v7462 = vmax.f32 %v7430, 0.0
        %v7463 = vmax.f32 %v7431, 0.0
        %v7464 = vmax.f32 %v7432, 0.0
        %v7465 = vmax.f32 %v7433, 0.0
        %v7466 = vmax.f32 %v7434, 0.0
        %v7467 = vmax.f32 %v7435, 0.0
        %v7468 = vmax.f32 %v7436, 0.0
        %v7469 = vmax.f32 %v7437, 0.0
        %v7470 = vmax.f32 %v7438, 0.0
        %v7471 = vmax.f32 %v7439, 0.0
        %v7472 = vmax.f32 %v7440, 0.0
        %v7473 = vmax.f32 %v7441, 0.0
        %v7474 = vmax.f32 %v7442, 0.0
        %v7475 = vmax.f32 %v7443, 0.0
        %v7476 = vmax.f32 %v7444, 0.0
        %v7477 = vmax.f32 %v7445, 0.0
        %v7478 = vmax.f32 %v7446, 0.0
        %v7479 = vmax.f32 %v7447, 0.0
        %v7480 = vpack.c.bf16 %v2519, %v2517
        %v7481 = vpack.c.bf16 %v2520, %v2518
        %v7482 = vpack.c.bf16 %v2523, %v2521
        %v7483 = vpack.c.bf16 %v2524, %v2522
        %v7484 = vpack.c.bf16 %v2527, %v2525
        %v7485 = vpack.c.bf16 %v2528, %v2526
        %v7486 = vpack.c.bf16 %v2531, %v2529
        %v7487 = vpack.c.bf16 %v2532, %v2530
        %v7488 = vpack.c.bf16 %v2535, %v2533
        %v7489 = vpack.c.bf16 %v2536, %v2534
        %v7490 = vpack.c.bf16 %v2539, %v2537
        %v7491 = vpack.c.bf16 %v2540, %v2538
        %v7492 = vpack.c.bf16 %v2543, %v2541
        %v7493 = vpack.c.bf16 %v2544, %v2542
        %v7494 = vpack.c.bf16 %v2547, %v2545
        %v7495 = vpack.c.bf16 %v2548, %v2546
        %v7496 = vld [vmem:[#allocation10] sm:$0xff]
        %v7497 = vld [vmem:[#allocation10 + $0x8] sm:$0xff]
        %v7498 = vld [vmem:[#allocation10 + $0x10] sm:$0xff]
        %v7499 = vld [vmem:[#allocation10 + $0x18] sm:$0xff]
        %v7500 = vld [vmem:[#allocation10 + $0x20] sm:$0xff]
        %v7501 = vld [vmem:[#allocation10 + $0x28] sm:$0xff]
        %v7502 = vld [vmem:[#allocation10 + $0x30] sm:$0xff]
        %v7503 = vld [vmem:[#allocation10 + $0x38] sm:$0xff]
        %v7504 = vld [vmem:[#allocation10 + $0x40] sm:$0xff]
        %v7505 = vld [vmem:[#allocation10 + $0x48] sm:$0xff]
        %v7506 = vld [vmem:[#allocation10 + $0x50] sm:$0xff]
        %v7507 = vld [vmem:[#allocation10 + $0x58] sm:$0xff]
        %v7508 = vld [vmem:[#allocation10 + $0x60] sm:$0xff]
        %v7509 = vld [vmem:[#allocation10 + $0x68] sm:$0xff]
        %v7510 = vld [vmem:[#allocation10 + $0x70] sm:$0xff]
        %v7511 = vld [vmem:[#allocation10 + $0x78] sm:$0xff]
        %v7512 = vld [vmem:[#allocation10 + $0x80] sm:$0xff]
        %v7513 = vld [vmem:[#allocation10 + $0x88] sm:$0xff]
        %v7514 = vld [vmem:[#allocation10 + $0x90] sm:$0xff]
        %v7515 = vld [vmem:[#allocation10 + $0x98] sm:$0xff]
        %v7516 = vld [vmem:[#allocation10 + $0xa0] sm:$0xff]
        %v7517 = vld [vmem:[#allocation10 + $0xa8] sm:$0xff]
        %v7518 = vld [vmem:[#allocation10 + $0xb0] sm:$0xff]
        %v7519 = vld [vmem:[#allocation10 + $0xb8] sm:$0xff]
        %v7520 = vld [vmem:[#allocation10 + $0xc0] sm:$0xff]
        %v7521 = vld [vmem:[#allocation10 + $0xc8] sm:$0xff]
        %v7522 = vld [vmem:[#allocation10 + $0xd0] sm:$0xff]
        %v7523 = vld [vmem:[#allocation10 + $0xd8] sm:$0xff]
        %v7524 = vld [vmem:[#allocation10 + $0xe0] sm:$0xff]
        %v7525 = vld [vmem:[#allocation10 + $0xe8] sm:$0xff]
        %v7526 = vld [vmem:[#allocation10 + $0xf0] sm:$0xff]
        %v7527 = vld [vmem:[#allocation10 + $0xf8] sm:$0xff]
        %v7528 = vld [vmem:[#allocation10 + $0x100] sm:$0xff]
        %v7529 = vld [vmem:[#allocation10 + $0x108] sm:$0xff]
        %v7530 = vld [vmem:[#allocation10 + $0x110] sm:$0xff]
        %v7531 = vld [vmem:[#allocation10 + $0x118] sm:$0xff]
        %v7532 = vld [vmem:[#allocation10 + $0x120] sm:$0xff]
        %v7533 = vld [vmem:[#allocation10 + $0x128] sm:$0xff]
        %v7534 = vld [vmem:[#allocation10 + $0x130] sm:$0xff]
        %v7535 = vld [vmem:[#allocation10 + $0x138] sm:$0xff]
        %v7536 = vld [vmem:[#allocation10 + $0x140] sm:$0xff]
        %v7537 = vld [vmem:[#allocation10 + $0x148] sm:$0xff]
        %v7538 = vld [vmem:[#allocation10 + $0x150] sm:$0xff]
        %v7539 = vld [vmem:[#allocation10 + $0x158] sm:$0xff]
        %v7540 = vld [vmem:[#allocation10 + $0x160] sm:$0xff]
        %v7541 = vld [vmem:[#allocation10 + $0x168] sm:$0xff]
        %v7542 = vld [vmem:[#allocation10 + $0x170] sm:$0xff]
        %v7543 = vld [vmem:[#allocation10 + $0x178] sm:$0xff]
        %v7544 = vld [vmem:[#allocation10 + $0x180] sm:$0xff]
        %v7545 = vld [vmem:[#allocation10 + $0x188] sm:$0xff]
        %v7546 = vld [vmem:[#allocation10 + $0x190] sm:$0xff]
        %v7547 = vld [vmem:[#allocation10 + $0x198] sm:$0xff]
        %v7548 = vld [vmem:[#allocation10 + $0x1a0] sm:$0xff]
        %v7549 = vld [vmem:[#allocation10 + $0x1a8] sm:$0xff]
        %v7550 = vld [vmem:[#allocation10 + $0x1b0] sm:$0xff]
        %v7551 = vld [vmem:[#allocation10 + $0x1b8] sm:$0xff]
        %v7552 = vld [vmem:[#allocation10 + $0x1c0] sm:$0xff]
        %v7553 = vld [vmem:[#allocation10 + $0x1c8] sm:$0xff]
        %v7554 = vld [vmem:[#allocation10 + $0x1d0] sm:$0xff]
        %v7555 = vld [vmem:[#allocation10 + $0x1d8] sm:$0xff]
        %v7556 = vld [vmem:[#allocation10 + $0x1e0] sm:$0xff]
        %v7557 = vld [vmem:[#allocation10 + $0x1e8] sm:$0xff]
        %v7558 = vld [vmem:[#allocation10 + $0x1f0] sm:$0xff]
        %v7559 = vld [vmem:[#allocation10 + $0x1f8] sm:$0xff]
        %v7560 = vld [vmem:[#allocation10 + $0x200] sm:$0xff]
        %v7561 = vld [vmem:[#allocation10 + $0x208] sm:$0xff]
        %v7562 = vld [vmem:[#allocation10 + $0x210] sm:$0xff]
        %v7563 = vld [vmem:[#allocation10 + $0x218] sm:$0xff]
        %v7564 = vld [vmem:[#allocation10 + $0x220] sm:$0xff]
        %v7565 = vld [vmem:[#allocation10 + $0x228] sm:$0xff]
        %v7566 = vld [vmem:[#allocation10 + $0x230] sm:$0xff]
        %v7567 = vld [vmem:[#allocation10 + $0x238] sm:$0xff]
        %v7568 = vld [vmem:[#allocation10 + $0x240] sm:$0xff]
        %v7569 = vld [vmem:[#allocation10 + $0x248] sm:$0xff]
        %v7570 = vld [vmem:[#allocation10 + $0x250] sm:$0xff]
        %v7571 = vld [vmem:[#allocation10 + $0x258] sm:$0xff]
        %v7572 = vld [vmem:[#allocation10 + $0x260] sm:$0xff]
        %v7573 = vld [vmem:[#allocation10 + $0x268] sm:$0xff]
        %v7574 = vld [vmem:[#allocation10 + $0x270] sm:$0xff]
        %v7575 = vld [vmem:[#allocation10 + $0x278] sm:$0xff]
        %v7576 = vld [vmem:[#allocation10 + $0x280] sm:$0xff]
        %v7577 = vld [vmem:[#allocation10 + $0x288] sm:$0xff]
        %v7578 = vld [vmem:[#allocation10 + $0x290] sm:$0xff]
        %v7579 = vld [vmem:[#allocation10 + $0x298] sm:$0xff]
        %v7580 = vld [vmem:[#allocation10 + $0x2a0] sm:$0xff]
        %v7581 = vld [vmem:[#allocation10 + $0x2a8] sm:$0xff]
        %v7582 = vld [vmem:[#allocation10 + $0x2b0] sm:$0xff]
        %v7583 = vld [vmem:[#allocation10 + $0x2b8] sm:$0xff]
        %v7584 = vld [vmem:[#allocation10 + $0x2c0] sm:$0xff]
        %v7585 = vld [vmem:[#allocation10 + $0x2c8] sm:$0xff]
        %v7586 = vld [vmem:[#allocation10 + $0x2d0] sm:$0xff]
        %v7587 = vld [vmem:[#allocation10 + $0x2d8] sm:$0xff]
        %v7588 = vld [vmem:[#allocation10 + $0x2e0] sm:$0xff]
        %v7589 = vld [vmem:[#allocation10 + $0x2e8] sm:$0xff]
        %v7590 = vld [vmem:[#allocation10 + $0x2f0] sm:$0xff]
        %v7591 = vld [vmem:[#allocation10 + $0x2f8] sm:$0xff]
        %v7592 = vld [vmem:[#allocation10 + $0x300] sm:$0xff]
        %v7593 = vld [vmem:[#allocation10 + $0x308] sm:$0xff]
        %v7594 = vld [vmem:[#allocation10 + $0x310] sm:$0xff]
        %v7595 = vld [vmem:[#allocation10 + $0x318] sm:$0xff]
        %v7596 = vld [vmem:[#allocation10 + $0x320] sm:$0xff]
        %v7597 = vld [vmem:[#allocation10 + $0x328] sm:$0xff]
        %v7598 = vld [vmem:[#allocation10 + $0x330] sm:$0xff]
        %v7599 = vld [vmem:[#allocation10 + $0x338] sm:$0xff]
        %v7600 = vld [vmem:[#allocation10 + $0x340] sm:$0xff]
        %v7601 = vld [vmem:[#allocation10 + $0x348] sm:$0xff]
        %v7602 = vld [vmem:[#allocation10 + $0x350] sm:$0xff]
        %v7603 = vld [vmem:[#allocation10 + $0x358] sm:$0xff]
        %v7604 = vpack.c.bf16 %v7450, %v7448
        %v7605 = vpack.c.bf16 %v7451, %v7449
        %v7606 = vpack.c.bf16 %v7454, %v7452
        %v7607 = vpack.c.bf16 %v7455, %v7453
        %v7608 = vpack.c.bf16 %v7458, %v7456
        %v7609 = vpack.c.bf16 %v7459, %v7457
        %v7610 = vpack.c.bf16 %v7462, %v7460
        %v7611 = vpack.c.bf16 %v7463, %v7461
        %v7612 = vpack.c.bf16 %v7466, %v7464
        %v7613 = vpack.c.bf16 %v7467, %v7465
        %v7614 = vpack.c.bf16 %v7470, %v7468
        %v7615 = vpack.c.bf16 %v7471, %v7469
        %v7616 = vpack.c.bf16 %v7474, %v7472
        %v7617 = vpack.c.bf16 %v7475, %v7473
        %v7618 = vpack.c.bf16 %v7478, %v7476
        %v7619 = vpack.c.bf16 %v7479, %v7477
        %v7620 = vld [vmem:[#allocation12] sm:$0xff]
        %v7621 = vld [vmem:[#allocation12 + $0x8] sm:$0xff]
        %v7622 = vld [vmem:[#allocation12 + $0x10] sm:$0xff]
        %v7623 = vld [vmem:[#allocation12 + $0x18] sm:$0xff]
        %v7624 = vld [vmem:[#allocation12 + $0x20] sm:$0xff]
        %v7625 = vld [vmem:[#allocation12 + $0x28] sm:$0xff]
        %v7626 = vld [vmem:[#allocation12 + $0x30] sm:$0xff]
        %v7627 = vld [vmem:[#allocation12 + $0x38] sm:$0xff]
        %v7628 = vld [vmem:[#allocation12 + $0x40] sm:$0xff]
        %v7629 = vld [vmem:[#allocation12 + $0x48] sm:$0xff]
        %v7630 = vld [vmem:[#allocation12 + $0x50] sm:$0xff]
        %v7631 = vld [vmem:[#allocation12 + $0x58] sm:$0xff]
        %v7632 = vld [vmem:[#allocation12 + $0x60] sm:$0xff]
        %v7633 = vld [vmem:[#allocation12 + $0x68] sm:$0xff]
        %v7634 = vld [vmem:[#allocation12 + $0x70] sm:$0xff]
        %v7635 = vld [vmem:[#allocation12 + $0x78] sm:$0xff]
        %v7636 = vld [vmem:[#allocation12 + $0x80] sm:$0xff]
        %v7637 = vld [vmem:[#allocation12 + $0x88] sm:$0xff]
        %v7638 = vld [vmem:[#allocation12 + $0x90] sm:$0xff]
        %v7639 = vld [vmem:[#allocation12 + $0x98] sm:$0xff]
        %v7640 = vld [vmem:[#allocation12 + $0xa0] sm:$0xff]
        %v7641 = vld [vmem:[#allocation12 + $0xa8] sm:$0xff]
        %v7642 = vld [vmem:[#allocation12 + $0xb0] sm:$0xff]
        %v7643 = vld [vmem:[#allocation12 + $0xb8] sm:$0xff]
        %v7644 = vld [vmem:[#allocation12 + $0xc0] sm:$0xff]
        %v7645 = vld [vmem:[#allocation12 + $0xc8] sm:$0xff]
        %v7646 = vld [vmem:[#allocation12 + $0xd0] sm:$0xff]
        %v7647 = vld [vmem:[#allocation12 + $0xd8] sm:$0xff]
        %v7648 = vld [vmem:[#allocation12 + $0xe0] sm:$0xff]
        %v7649 = vld [vmem:[#allocation12 + $0xe8] sm:$0xff]
        %v7650 = vld [vmem:[#allocation12 + $0xf0] sm:$0xff]
        %v7651 = vld [vmem:[#allocation12 + $0xf8] sm:$0xff]
        %v7652 = vld [vmem:[#allocation12 + $0x100] sm:$0xff]
        %v7653 = vld [vmem:[#allocation12 + $0x108] sm:$0xff]
        %v7654 = vld [vmem:[#allocation12 + $0x110] sm:$0xff]
        %v7655 = vld [vmem:[#allocation12 + $0x118] sm:$0xff]
        %v7656 = vld [vmem:[#allocation12 + $0x120] sm:$0xff]
        %v7657 = vld [vmem:[#allocation12 + $0x128] sm:$0xff]
        %v7658 = vld [vmem:[#allocation12 + $0x130] sm:$0xff]
        %v7659 = vld [vmem:[#allocation12 + $0x138] sm:$0xff]
        %v7660 = vld [vmem:[#allocation12 + $0x140] sm:$0xff]
        %v7661 = vld [vmem:[#allocation12 + $0x148] sm:$0xff]
        %v7662 = vld [vmem:[#allocation12 + $0x150] sm:$0xff]
        %v7663 = vld [vmem:[#allocation12 + $0x158] sm:$0xff]
        %v7664 = vld [vmem:[#allocation12 + $0x160] sm:$0xff]
        %v7665 = vld [vmem:[#allocation12 + $0x168] sm:$0xff]
        %v7666 = vld [vmem:[#allocation12 + $0x170] sm:$0xff]
        %v7667 = vld [vmem:[#allocation12 + $0x178] sm:$0xff]
        %v7668 = vld [vmem:[#allocation12 + $0x180] sm:$0xff]
        %v7669 = vld [vmem:[#allocation12 + $0x188] sm:$0xff]
        %v7670 = vld [vmem:[#allocation12 + $0x190] sm:$0xff]
        %v7671 = vld [vmem:[#allocation12 + $0x198] sm:$0xff]
        %v7672 = vld [vmem:[#allocation12 + $0x1a0] sm:$0xff]
        %v7673 = vld [vmem:[#allocation12 + $0x1a8] sm:$0xff]
        %v7674 = vld [vmem:[#allocation12 + $0x1b0] sm:$0xff]
        %v7675 = vld [vmem:[#allocation12 + $0x1b8] sm:$0xff]
        %v7676 = vld [vmem:[#allocation12 + $0x1c0] sm:$0xff]
        %v7677 = vld [vmem:[#allocation12 + $0x1c8] sm:$0xff]
        %v7678 = vld [vmem:[#allocation12 + $0x1d0] sm:$0xff]
        %v7679 = vld [vmem:[#allocation12 + $0x1d8] sm:$0xff]
        %v7680 = vld [vmem:[#allocation12 + $0x1e0] sm:$0xff]
        %v7681 = vld [vmem:[#allocation12 + $0x1e8] sm:$0xff]
        %v7682 = vld [vmem:[#allocation12 + $0x1f0] sm:$0xff]
        %v7683 = vld [vmem:[#allocation12 + $0x1f8] sm:$0xff]
        %v7684 = vld [vmem:[#allocation12 + $0x200] sm:$0xff]
        %v7685 = vld [vmem:[#allocation12 + $0x208] sm:$0xff]
        %v7686 = vld [vmem:[#allocation12 + $0x210] sm:$0xff]
        %v7687 = vld [vmem:[#allocation12 + $0x218] sm:$0xff]
        %v7688 = vld [vmem:[#allocation12 + $0x220] sm:$0xff]
        %v7689 = vld [vmem:[#allocation12 + $0x228] sm:$0xff]
        %v7690 = vld [vmem:[#allocation12 + $0x230] sm:$0xff]
        %v7691 = vld [vmem:[#allocation12 + $0x238] sm:$0xff]
        %v7692 = vld [vmem:[#allocation12 + $0x240] sm:$0xff]
        %v7693 = vld [vmem:[#allocation12 + $0x248] sm:$0xff]
        %v7694 = vld [vmem:[#allocation12 + $0x250] sm:$0xff]
        %v7695 = vld [vmem:[#allocation12 + $0x258] sm:$0xff]
        %v7696 = vld [vmem:[#allocation12 + $0x260] sm:$0xff]
        %v7697 = vld [vmem:[#allocation12 + $0x268] sm:$0xff]
        %v7698 = vld [vmem:[#allocation12 + $0x270] sm:$0xff]
        %v7699 = vld [vmem:[#allocation12 + $0x278] sm:$0xff]
        %v7700 = vld [vmem:[#allocation12 + $0x280] sm:$0xff]
        %v7701 = vld [vmem:[#allocation12 + $0x288] sm:$0xff]
        %v7702 = vld [vmem:[#allocation12 + $0x290] sm:$0xff]
        %v7703 = vld [vmem:[#allocation12 + $0x298] sm:$0xff]
        %v7704 = vld [vmem:[#allocation12 + $0x2a0] sm:$0xff]
        %v7705 = vld [vmem:[#allocation12 + $0x2a8] sm:$0xff]
        %v7706 = vld [vmem:[#allocation12 + $0x2b0] sm:$0xff]
        %v7707 = vld [vmem:[#allocation12 + $0x2b8] sm:$0xff]
        %v7708 = vld [vmem:[#allocation12 + $0x2c0] sm:$0xff]
        %v7709 = vld [vmem:[#allocation12 + $0x2c8] sm:$0xff]
        %v7710 = vld [vmem:[#allocation12 + $0x2d0] sm:$0xff]
        %v7711 = vld [vmem:[#allocation12 + $0x2d8] sm:$0xff]
        %v7712 = vld [vmem:[#allocation12 + $0x2e0] sm:$0xff]
        %v7713 = vld [vmem:[#allocation12 + $0x2e8] sm:$0xff]
        %v7714 = vld [vmem:[#allocation12 + $0x2f0] sm:$0xff]
        %v7715 = vld [vmem:[#allocation12 + $0x2f8] sm:$0xff]
        %v7716 = vld [vmem:[#allocation12 + $0x300] sm:$0xff]
        %v7717 = vld [vmem:[#allocation12 + $0x308] sm:$0xff]
        %v7718 = vld [vmem:[#allocation12 + $0x310] sm:$0xff]
        %v7719 = vld [vmem:[#allocation12 + $0x318] sm:$0xff]
        %v7720 = vld [vmem:[#allocation12 + $0x320] sm:$0xff]
        %v7721 = vld [vmem:[#allocation12 + $0x328] sm:$0xff]
        %v7722 = vld [vmem:[#allocation12 + $0x330] sm:$0xff]
        %v7723 = vld [vmem:[#allocation12 + $0x338] sm:$0xff]
        %v7724 = vld [vmem:[#allocation12 + $0x340] sm:$0xff]
        %v7725 = vld [vmem:[#allocation12 + $0x348] sm:$0xff]
        %v7726 = vld [vmem:[#allocation12 + $0x350] sm:$0xff]
        %v7727 = vld [vmem:[#allocation12 + $0x358] sm:$0xff]
        %v7728 = vld [vmem:[#allocation12 + $0x360] sm:$0xff]
        %v7729 = vld [vmem:[#allocation12 + $0x368] sm:$0xff]
        %v7730 = vld [vmem:[#allocation12 + $0x370] sm:$0xff]
        %v7731 = vld [vmem:[#allocation12 + $0x378] sm:$0xff]
        %v7732 = vld [vmem:[#allocation12 + $0x380] sm:$0xff]
        %v7733 = vld [vmem:[#allocation12 + $0x388] sm:$0xff]
        %v7734 = vld [vmem:[#allocation12 + $0x390] sm:$0xff]
        %v7735 = vld [vmem:[#allocation12 + $0x398] sm:$0xff]
        %v7736 = vld [vmem:[#allocation12 + $0x3a0] sm:$0xff]
        %v7737 = vld [vmem:[#allocation12 + $0x3a8] sm:$0xff]
        %v7738 = vld [vmem:[#allocation12 + $0x3b0] sm:$0xff]
        %v7739 = vld [vmem:[#allocation12 + $0x3b8] sm:$0xff]
        %v7740 = vld [vmem:[#allocation12 + $0x3c0] sm:$0xff]
        %v7741 = vld [vmem:[#allocation12 + $0x3c8] sm:$0xff]
        %v7742 = vld [vmem:[#allocation12 + $0x3d0] sm:$0xff]
        %v7743 = vld [vmem:[#allocation12 + $0x3d8] sm:$0xff]
        %v7744 = vld [vmem:[#allocation12 + $0x3e0] sm:$0xff]
        %v7745 = vld [vmem:[#allocation12 + $0x3e8] sm:$0xff]
        %v7746 = vld [vmem:[#allocation12 + $0x3f0] sm:$0xff]
        %v7747 = vld [vmem:[#allocation12 + $0x3f8] sm:$0xff]
        %v7748 = vld [vmem:[#allocation12 + $0x400] sm:$0xff]
        %v7749 = vld [vmem:[#allocation12 + $0x408] sm:$0xff]
        %v7750 = vld [vmem:[#allocation12 + $0x410] sm:$0xff]
        %v7751 = vld [vmem:[#allocation12 + $0x418] sm:$0xff]
        %v7752 = vld [vmem:[#allocation12 + $0x420] sm:$0xff]
        %v7753 = vld [vmem:[#allocation12 + $0x428] sm:$0xff]
        %v7754 = vld [vmem:[#allocation12 + $0x430] sm:$0xff]
        %v7755 = vld [vmem:[#allocation12 + $0x438] sm:$0xff]
        %v7756 = vld [vmem:[#allocation12 + $0x440] sm:$0xff]
        %v7757 = vld [vmem:[#allocation12 + $0x448] sm:$0xff]
        %v7758 = vld [vmem:[#allocation12 + $0x450] sm:$0xff]
        %v7759 = vld [vmem:[#allocation12 + $0x458] sm:$0xff]
        %v7760 = vld [vmem:[#allocation12 + $0x460] sm:$0xff]
        %v7761 = vld [vmem:[#allocation12 + $0x468] sm:$0xff]
        %v7762 = vld [vmem:[#allocation12 + $0x470] sm:$0xff]
        %v7763 = vld [vmem:[#allocation12 + $0x478] sm:$0xff]
        %v7908 = vunpack.c.l.b16 %v7620
        %v7909 = vunpack.c.h.b16 %v7620
        %v7910 = vunpack.c.l.b16 %v7621
        %v7911 = vunpack.c.h.b16 %v7621
        %v7912 = vunpack.c.l.b16 %v7622
        %v7913 = vunpack.c.h.b16 %v7622
        %v7914 = vunpack.c.l.b16 %v7623
        %v7915 = vunpack.c.h.b16 %v7623
        %v7916 = vunpack.c.l.b16 %v7624
        %v7917 = vunpack.c.h.b16 %v7624
        %v7918 = vunpack.c.l.b16 %v7625
        %v7919 = vunpack.c.h.b16 %v7625
        %v7920 = vunpack.c.l.b16 %v7626
        %v7921 = vunpack.c.h.b16 %v7626
        %v7922 = vunpack.c.l.b16 %v7627
        %v7923 = vunpack.c.h.b16 %v7627
        %v7924 = vunpack.c.l.b16 %v7628
        %v7925 = vunpack.c.h.b16 %v7628
        %v7926 = vunpack.c.l.b16 %v7629
        %v7927 = vunpack.c.h.b16 %v7629
        %v7928 = vunpack.c.l.b16 %v7630
        %v7929 = vunpack.c.h.b16 %v7630
        %v7930 = vunpack.c.l.b16 %v7631
        %v7931 = vunpack.c.h.b16 %v7631
        %v7932 = vunpack.c.l.b16 %v7632
        %v7933 = vunpack.c.h.b16 %v7632
        %v7934 = vunpack.c.l.b16 %v7633
        %v7935 = vunpack.c.h.b16 %v7633
        %v7936 = vunpack.c.l.b16 %v7634
        %v7937 = vunpack.c.h.b16 %v7634
        %v7938 = vunpack.c.l.b16 %v7635
        %v7939 = vunpack.c.h.b16 %v7635
        %v7940 = vunpack.c.l.b16 %v7636
        %v7941 = vunpack.c.h.b16 %v7636
        %v7942 = vunpack.c.l.b16 %v7637
        %v7943 = vunpack.c.h.b16 %v7637
        %v7944 = vunpack.c.l.b16 %v7638
        %v7945 = vunpack.c.h.b16 %v7638
        %v7946 = vunpack.c.l.b16 %v7639
        %v7947 = vunpack.c.h.b16 %v7639
        %v7948 = vunpack.c.l.b16 %v7640
        %v7949 = vunpack.c.h.b16 %v7640
        %v7950 = vunpack.c.l.b16 %v7641
        %v7951 = vunpack.c.h.b16 %v7641
        %v7952 = vunpack.c.l.b16 %v7642
        %v7953 = vunpack.c.h.b16 %v7642
        %v7954 = vunpack.c.l.b16 %v7643
        %v7955 = vunpack.c.h.b16 %v7643
        %v7956 = vunpack.c.l.b16 %v7644
        %v7957 = vunpack.c.h.b16 %v7644
        %v7958 = vunpack.c.l.b16 %v7645
        %v7959 = vunpack.c.h.b16 %v7645
        %v7960 = vunpack.c.l.b16 %v7646
        %v7961 = vunpack.c.h.b16 %v7646
        %v7962 = vunpack.c.l.b16 %v7647
        %v7963 = vunpack.c.h.b16 %v7647
        %v7964 = vunpack.c.l.b16 %v7648
        %v7965 = vunpack.c.h.b16 %v7648
        %v7966 = vunpack.c.l.b16 %v7649
        %v7967 = vunpack.c.h.b16 %v7649
        %v7968 = vunpack.c.l.b16 %v7650
        %v7969 = vunpack.c.h.b16 %v7650
        %v7970 = vunpack.c.l.b16 %v7651
        %v7971 = vunpack.c.h.b16 %v7651
        %v7972 = vunpack.c.l.b16 %v7652
        %v7973 = vunpack.c.h.b16 %v7652
        %v7974 = vunpack.c.l.b16 %v7653
        %v7975 = vunpack.c.h.b16 %v7653
        %v7976 = vunpack.c.l.b16 %v7654
        %v7977 = vunpack.c.h.b16 %v7654
        %v7978 = vunpack.c.l.b16 %v7655
        %v7979 = vunpack.c.h.b16 %v7655
        %v7980 = vunpack.c.l.b16 %v7656
        %v7981 = vunpack.c.h.b16 %v7656
        %v7982 = vunpack.c.l.b16 %v7657
        %v7983 = vunpack.c.h.b16 %v7657
        %v7984 = vunpack.c.l.b16 %v7658
        %v7985 = vunpack.c.h.b16 %v7658
        %v7986 = vunpack.c.l.b16 %v7659
        %v7987 = vunpack.c.h.b16 %v7659
        %v7988 = vunpack.c.l.b16 %v7660
        %v7989 = vunpack.c.h.b16 %v7660
        %v7990 = vunpack.c.l.b16 %v7661
        %v7991 = vunpack.c.h.b16 %v7661
        %v7992 = vunpack.c.l.b16 %v7662
        %v7993 = vunpack.c.h.b16 %v7662
        %v7994 = vunpack.c.l.b16 %v7663
        %v7995 = vunpack.c.h.b16 %v7663
        %v7996 = vunpack.c.l.b16 %v7664
        %v7997 = vunpack.c.h.b16 %v7664
        %v7998 = vunpack.c.l.b16 %v7665
        %v7999 = vunpack.c.h.b16 %v7665
        %v8000 = vunpack.c.l.b16 %v7666
        %v8001 = vunpack.c.h.b16 %v7666
        %v8002 = vunpack.c.l.b16 %v7667
        %v8003 = vunpack.c.h.b16 %v7667
        %v8004 = vunpack.c.l.b16 %v7668
        %v8005 = vunpack.c.h.b16 %v7668
        %v8006 = vunpack.c.l.b16 %v7669
        %v8007 = vunpack.c.h.b16 %v7669
        %v8008 = vunpack.c.l.b16 %v7670
        %v8009 = vunpack.c.h.b16 %v7670
        %v8010 = vunpack.c.l.b16 %v7671
        %v8011 = vunpack.c.h.b16 %v7671
        %v8012 = vunpack.c.l.b16 %v7672
        %v8013 = vunpack.c.h.b16 %v7672
        %v8014 = vunpack.c.l.b16 %v7673
        %v8015 = vunpack.c.h.b16 %v7673
        %v8016 = vunpack.c.l.b16 %v7674
        %v8017 = vunpack.c.h.b16 %v7674
        %v8018 = vunpack.c.l.b16 %v7675
        %v8019 = vunpack.c.h.b16 %v7675
        %v8020 = vunpack.c.l.b16 %v7676
        %v8021 = vunpack.c.h.b16 %v7676
        %v8022 = vunpack.c.l.b16 %v7677
        %v8023 = vunpack.c.h.b16 %v7677
        %v8024 = vunpack.c.l.b16 %v7678
        %v8025 = vunpack.c.h.b16 %v7678
        %v8026 = vunpack.c.l.b16 %v7679
        %v8027 = vunpack.c.h.b16 %v7679
        %v8028 = vunpack.c.l.b16 %v7680
        %v8029 = vunpack.c.h.b16 %v7680
        %v8030 = vunpack.c.l.b16 %v7681
        %v8031 = vunpack.c.h.b16 %v7681
        %v8032 = vunpack.c.l.b16 %v7682
        %v8033 = vunpack.c.h.b16 %v7682
        %v8034 = vunpack.c.l.b16 %v7683
        %v8035 = vunpack.c.h.b16 %v7683
        %v8036 = vunpack.c.l.b16 %v7684
        %v8037 = vunpack.c.h.b16 %v7684
        %v8038 = vunpack.c.l.b16 %v7685
        %v8039 = vunpack.c.h.b16 %v7685
        %v8040 = vunpack.c.l.b16 %v7686
        %v8041 = vunpack.c.h.b16 %v7686
        %v8042 = vunpack.c.l.b16 %v7687
        %v8043 = vunpack.c.h.b16 %v7687
        %v8044 = vunpack.c.l.b16 %v7688
        %v8045 = vunpack.c.h.b16 %v7688
        %v8046 = vunpack.c.l.b16 %v7689
        %v8047 = vunpack.c.h.b16 %v7689
        %v8048 = vunpack.c.l.b16 %v7690
        %v8049 = vunpack.c.h.b16 %v7690
        %v8050 = vunpack.c.l.b16 %v7691
        %v8051 = vunpack.c.h.b16 %v7691
        %v8052 = vunpack.c.l.b16 %v7692
        %v8053 = vunpack.c.h.b16 %v7692
        %v8054 = vunpack.c.l.b16 %v7693
        %v8055 = vunpack.c.h.b16 %v7693
        %v8056 = vunpack.c.l.b16 %v7694
        %v8057 = vunpack.c.h.b16 %v7694
        %v8058 = vunpack.c.l.b16 %v7695
        %v8059 = vunpack.c.h.b16 %v7695
        %v8060 = vunpack.c.l.b16 %v7696
        %v8061 = vunpack.c.h.b16 %v7696
        %v8062 = vunpack.c.l.b16 %v7697
        %v8063 = vunpack.c.h.b16 %v7697
        %v8064 = vunpack.c.l.b16 %v7698
        %v8065 = vunpack.c.h.b16 %v7698
        %v8066 = vunpack.c.l.b16 %v7699
        %v8067 = vunpack.c.h.b16 %v7699
        %v8068 = vunpack.c.l.b16 %v7700
        %v8069 = vunpack.c.h.b16 %v7700
        %v8070 = vunpack.c.l.b16 %v7701
        %v8071 = vunpack.c.h.b16 %v7701
        %v8072 = vunpack.c.l.b16 %v7702
        %v8073 = vunpack.c.h.b16 %v7702
        %v8074 = vunpack.c.l.b16 %v7703
        %v8075 = vunpack.c.h.b16 %v7703
        %v8076 = vunpack.c.l.b16 %v7704
        %v8077 = vunpack.c.h.b16 %v7704
        %v8078 = vunpack.c.l.b16 %v7705
        %v8079 = vunpack.c.h.b16 %v7705
        %v8080 = vunpack.c.l.b16 %v7706
        %v8081 = vunpack.c.h.b16 %v7706
        %v8082 = vunpack.c.l.b16 %v7707
        %v8083 = vunpack.c.h.b16 %v7707
        %v8084 = vunpack.c.l.b16 %v7708
        %v8085 = vunpack.c.h.b16 %v7708
        %v8086 = vunpack.c.l.b16 %v7709
        %v8087 = vunpack.c.h.b16 %v7709
        %v8088 = vunpack.c.l.b16 %v7710
        %v8089 = vunpack.c.h.b16 %v7710
        %v8090 = vunpack.c.l.b16 %v7711
        %v8091 = vunpack.c.h.b16 %v7711
        %v8092 = vunpack.c.l.b16 %v7712
        %v8093 = vunpack.c.h.b16 %v7712
        %v8094 = vunpack.c.l.b16 %v7713
        %v8095 = vunpack.c.h.b16 %v7713
        %v8096 = vunpack.c.l.b16 %v7714
        %v8097 = vunpack.c.h.b16 %v7714
        %v8098 = vunpack.c.l.b16 %v7715
        %v8099 = vunpack.c.h.b16 %v7715
        %v8100 = vunpack.c.l.b16 %v7716
        %v8101 = vunpack.c.h.b16 %v7716
        %v8102 = vunpack.c.l.b16 %v7717
        %v8103 = vunpack.c.h.b16 %v7717
        %v8104 = vunpack.c.l.b16 %v7718
        %v8105 = vunpack.c.h.b16 %v7718
        %v8106 = vunpack.c.l.b16 %v7719
        %v8107 = vunpack.c.h.b16 %v7719
        %v8108 = vunpack.c.l.b16 %v7720
        %v8109 = vunpack.c.h.b16 %v7720
        %v8110 = vunpack.c.l.b16 %v7721
        %v8111 = vunpack.c.h.b16 %v7721
        %v8112 = vunpack.c.l.b16 %v7722
        %v8113 = vunpack.c.h.b16 %v7722
        %v8114 = vunpack.c.l.b16 %v7723
        %v8115 = vunpack.c.h.b16 %v7723
        %v8116 = vunpack.c.l.b16 %v7724
        %v8117 = vunpack.c.h.b16 %v7724
        %v8118 = vunpack.c.l.b16 %v7725
        %v8119 = vunpack.c.h.b16 %v7725
        %v8120 = vunpack.c.l.b16 %v7726
        %v8121 = vunpack.c.h.b16 %v7726
        %v8122 = vunpack.c.l.b16 %v7727
        %v8123 = vunpack.c.h.b16 %v7727
        %v8124 = vunpack.c.l.b16 %v7728
        %v8125 = vunpack.c.h.b16 %v7728
        %v8126 = vunpack.c.l.b16 %v7729
        %v8127 = vunpack.c.h.b16 %v7729
        %v8128 = vunpack.c.l.b16 %v7730
        %v8129 = vunpack.c.h.b16 %v7730
        %v8130 = vunpack.c.l.b16 %v7731
        %v8131 = vunpack.c.h.b16 %v7731
        %v8132 = vunpack.c.l.b16 %v7732
        %v8133 = vunpack.c.h.b16 %v7732
        %v8134 = vunpack.c.l.b16 %v7733
        %v8135 = vunpack.c.h.b16 %v7733
        %v8136 = vunpack.c.l.b16 %v7734
        %v8137 = vunpack.c.h.b16 %v7734
        %v8138 = vunpack.c.l.b16 %v7735
        %v8139 = vunpack.c.h.b16 %v7735
        %v8140 = vunpack.c.l.b16 %v7736
        %v8141 = vunpack.c.h.b16 %v7736
        %v8142 = vunpack.c.l.b16 %v7737
        %v8143 = vunpack.c.h.b16 %v7737
        %v8144 = vunpack.c.l.b16 %v7738
        %v8145 = vunpack.c.h.b16 %v7738
        %v8146 = vunpack.c.l.b16 %v7739
        %v8147 = vunpack.c.h.b16 %v7739
        %v8148 = vunpack.c.l.b16 %v7740
        %v8149 = vunpack.c.h.b16 %v7740
        %v8150 = vunpack.c.l.b16 %v7741
        %v8151 = vunpack.c.h.b16 %v7741
        %v8152 = vunpack.c.l.b16 %v7742
        %v8153 = vunpack.c.h.b16 %v7742
        %v8154 = vunpack.c.l.b16 %v7743
        %v8155 = vunpack.c.h.b16 %v7743
        %v8156 = vunpack.c.l.b16 %v7744
        %v8157 = vunpack.c.h.b16 %v7744
        %v8158 = vunpack.c.l.b16 %v7745
        %v8159 = vunpack.c.h.b16 %v7745
        %v8160 = vunpack.c.l.b16 %v7746
        %v8161 = vunpack.c.h.b16 %v7746
        %v8162 = vunpack.c.l.b16 %v7747
        %v8163 = vunpack.c.h.b16 %v7747
        %v8164 = vunpack.c.l.b16 %v7748
        %v8165 = vunpack.c.h.b16 %v7748
        %v8166 = vunpack.c.l.b16 %v7749
        %v8167 = vunpack.c.h.b16 %v7749
        %v8168 = vunpack.c.l.b16 %v7750
        %v8169 = vunpack.c.h.b16 %v7750
        %v8170 = vunpack.c.l.b16 %v7751
        %v8171 = vunpack.c.h.b16 %v7751
        %v8172 = vunpack.c.l.b16 %v7752
        %v8173 = vunpack.c.h.b16 %v7752
        %v8174 = vunpack.c.l.b16 %v7753
        %v8175 = vunpack.c.h.b16 %v7753
        %v8176 = vunpack.c.l.b16 %v7754
        %v8177 = vunpack.c.h.b16 %v7754
        %v8178 = vunpack.c.l.b16 %v7755
        %v8179 = vunpack.c.h.b16 %v7755
        %v8180 = vunpack.c.l.b16 %v7756
        %v8181 = vunpack.c.h.b16 %v7756
        %v8182 = vunpack.c.l.b16 %v7757
        %v8183 = vunpack.c.h.b16 %v7757
        %v8184 = vunpack.c.l.b16 %v7758
        %v8185 = vunpack.c.h.b16 %v7758
        %v8186 = vunpack.c.l.b16 %v7759
        %v8187 = vunpack.c.h.b16 %v7759
        %v8188 = vunpack.c.l.b16 %v7760
        %v8189 = vunpack.c.h.b16 %v7760
        %v8190 = vunpack.c.l.b16 %v7761
        %v8191 = vunpack.c.h.b16 %v7761
        %v8192 = vunpack.c.l.b16 %v7762
        %v8193 = vunpack.c.h.b16 %v7762
        %v8194 = vunpack.c.l.b16 %v7763
        %v8195 = vunpack.c.h.b16 %v7763
        %v8196 = vpack.c.b16 %v7920, %v7908
        %v8197 = vpack.c.b16 %v7921, %v7909
        %v8198 = vpack.c.b16 %v7922, %v7910
        %v8199 = vpack.c.b16 %v7923, %v7911
        %v8200 = vpack.c.b16 %v7924, %v7912
        %v8201 = vpack.c.b16 %v7925, %v7913
        %v8202 = vpack.c.b16 %v7926, %v7914
        %v8203 = vpack.c.b16 %v7927, %v7915
        %v8204 = vpack.c.b16 %v7928, %v7916
        %v8205 = vpack.c.b16 %v7929, %v7917
        %v8206 = vpack.c.b16 %v7930, %v7918
        %v8207 = vpack.c.b16 %v7931, %v7919
        %v8208 = vpack.c.b16 %v7944, %v7932
        %v8209 = vpack.c.b16 %v7945, %v7933
        %v8210 = vpack.c.b16 %v7946, %v7934
        %v8211 = vpack.c.b16 %v7947, %v7935
        %v8212 = vpack.c.b16 %v7948, %v7936
        %v8213 = vpack.c.b16 %v7949, %v7937
        %v8214 = vpack.c.b16 %v7950, %v7938
        %v8215 = vpack.c.b16 %v7951, %v7939
        %v8216 = vpack.c.b16 %v7952, %v7940
        %v8217 = vpack.c.b16 %v7953, %v7941
        %v8218 = vpack.c.b16 %v7954, %v7942
        %v8219 = vpack.c.b16 %v7955, %v7943
        %v8220 = vpack.c.b16 %v7968, %v7956
        %v8221 = vpack.c.b16 %v7969, %v7957
        %v8222 = vpack.c.b16 %v7970, %v7958
        %v8223 = vpack.c.b16 %v7971, %v7959
        %v8224 = vpack.c.b16 %v7972, %v7960
        %v8225 = vpack.c.b16 %v7973, %v7961
        %v8226 = vpack.c.b16 %v7974, %v7962
        %v8227 = vpack.c.b16 %v7975, %v7963
        %v8228 = vpack.c.b16 %v7976, %v7964
        %v8229 = vpack.c.b16 %v7977, %v7965
        %v8230 = vpack.c.b16 %v7978, %v7966
        %v8231 = vpack.c.b16 %v7979, %v7967
        %v8232 = vpack.c.b16 %v7992, %v7980
        %v8233 = vpack.c.b16 %v7993, %v7981
        %v8234 = vpack.c.b16 %v7994, %v7982
        %v8235 = vpack.c.b16 %v7995, %v7983
        %v8236 = vpack.c.b16 %v7996, %v7984
        %v8237 = vpack.c.b16 %v7997, %v7985
        %v8238 = vpack.c.b16 %v7998, %v7986
        %v8239 = vpack.c.b16 %v7999, %v7987
        %v8240 = vpack.c.b16 %v8000, %v7988
        %v8241 = vpack.c.b16 %v8001, %v7989
        %v8242 = vpack.c.b16 %v8002, %v7990
        %v8243 = vpack.c.b16 %v8003, %v7991
        %v8244 = vpack.c.b16 %v8016, %v8004
        %v8245 = vpack.c.b16 %v8017, %v8005
        %v8246 = vpack.c.b16 %v8018, %v8006
        %v8247 = vpack.c.b16 %v8019, %v8007
        %v8248 = vpack.c.b16 %v8020, %v8008
        %v8249 = vpack.c.b16 %v8021, %v8009
        %v8250 = vpack.c.b16 %v8022, %v8010
        %v8251 = vpack.c.b16 %v8023, %v8011
        %v8252 = vpack.c.b16 %v8024, %v8012
        %v8253 = vpack.c.b16 %v8025, %v8013
        %v8254 = vpack.c.b16 %v8026, %v8014
        %v8255 = vpack.c.b16 %v8027, %v8015
        %v8256 = vpack.c.b16 %v8040, %v8028
        %v8257 = vpack.c.b16 %v8041, %v8029
        %v8258 = vpack.c.b16 %v8042, %v8030
        %v8259 = vpack.c.b16 %v8043, %v8031
        %v8260 = vpack.c.b16 %v8044, %v8032
        %v8261 = vpack.c.b16 %v8045, %v8033
        %v8262 = vpack.c.b16 %v8046, %v8034
        %v8263 = vpack.c.b16 %v8047, %v8035
        %v8264 = vpack.c.b16 %v8048, %v8036
        %v8265 = vpack.c.b16 %v8049, %v8037
        %v8266 = vpack.c.b16 %v8050, %v8038
        %v8267 = vpack.c.b16 %v8051, %v8039
        %v8268 = vpack.c.b16 %v8064, %v8052
        %v8269 = vpack.c.b16 %v8065, %v8053
        %v8270 = vpack.c.b16 %v8066, %v8054
        %v8271 = vpack.c.b16 %v8067, %v8055
        %v8272 = vpack.c.b16 %v8068, %v8056
        %v8273 = vpack.c.b16 %v8069, %v8057
        %v8274 = vpack.c.b16 %v8070, %v8058
        %v8275 = vpack.c.b16 %v8071, %v8059
        %v8276 = vpack.c.b16 %v8072, %v8060
        %v8277 = vpack.c.b16 %v8073, %v8061
        %v8278 = vpack.c.b16 %v8074, %v8062
        %v8279 = vpack.c.b16 %v8075, %v8063
        %v8280 = vpack.c.b16 %v8088, %v8076
        %v8281 = vpack.c.b16 %v8089, %v8077
        %v8282 = vpack.c.b16 %v8090, %v8078
        %v8283 = vpack.c.b16 %v8091, %v8079
        %v8284 = vpack.c.b16 %v8092, %v8080
        %v8285 = vpack.c.b16 %v8093, %v8081
        %v8286 = vpack.c.b16 %v8094, %v8082
        %v8287 = vpack.c.b16 %v8095, %v8083
        %v8288 = vpack.c.b16 %v8096, %v8084
        %v8289 = vpack.c.b16 %v8097, %v8085
        %v8290 = vpack.c.b16 %v8098, %v8086
        %v8291 = vpack.c.b16 %v8099, %v8087
        %v8292 = vpack.c.b16 %v8112, %v8100
        %v8293 = vpack.c.b16 %v8113, %v8101
        %v8294 = vpack.c.b16 %v8114, %v8102
        %v8295 = vpack.c.b16 %v8115, %v8103
        %v8296 = vpack.c.b16 %v8116, %v8104
        %v8297 = vpack.c.b16 %v8117, %v8105
        %v8298 = vpack.c.b16 %v8118, %v8106
        %v8299 = vpack.c.b16 %v8119, %v8107
        %v8300 = vpack.c.b16 %v8120, %v8108
        %v8301 = vpack.c.b16 %v8121, %v8109
        %v8302 = vpack.c.b16 %v8122, %v8110
        %v8303 = vpack.c.b16 %v8123, %v8111
        %v8304 = vpack.c.b16 %v8136, %v8124
        %v8305 = vpack.c.b16 %v8137, %v8125
        %v8306 = vpack.c.b16 %v8138, %v8126
        %v8307 = vpack.c.b16 %v8139, %v8127
        %v8308 = vpack.c.b16 %v8140, %v8128
        %v8309 = vpack.c.b16 %v8141, %v8129
        %v8310 = vpack.c.b16 %v8142, %v8130
        %v8311 = vpack.c.b16 %v8143, %v8131
        %v8312 = vpack.c.b16 %v8144, %v8132
        %v8313 = vpack.c.b16 %v8145, %v8133
        %v8314 = vpack.c.b16 %v8146, %v8134
        %v8315 = vpack.c.b16 %v8147, %v8135
        %v8316 = vpack.c.b16 %v8160, %v8148
        %v8317 = vpack.c.b16 %v8161, %v8149
        %v8318 = vpack.c.b16 %v8162, %v8150
        %v8319 = vpack.c.b16 %v8163, %v8151
        %v8320 = vpack.c.b16 %v8164, %v8152
        %v8321 = vpack.c.b16 %v8165, %v8153
        %v8322 = vpack.c.b16 %v8166, %v8154
        %v8323 = vpack.c.b16 %v8167, %v8155
        %v8324 = vpack.c.b16 %v8168, %v8156
        %v8325 = vpack.c.b16 %v8169, %v8157
        %v8326 = vpack.c.b16 %v8170, %v8158
        %v8327 = vpack.c.b16 %v8171, %v8159
        %v8328 = vpack.c.b16 %v8184, %v8172
        %v8329 = vpack.c.b16 %v8185, %v8173
        %v8330 = vpack.c.b16 %v8186, %v8174
        %v8331 = vpack.c.b16 %v8187, %v8175
        %v8332 = vpack.c.b16 %v8188, %v8176
        %v8333 = vpack.c.b16 %v8189, %v8177
        %v8334 = vpack.c.b16 %v8190, %v8178
        %v8335 = vpack.c.b16 %v8191, %v8179
        %v8336 = vpack.c.b16 %v8192, %v8180
        %v8337 = vpack.c.b16 %v8193, %v8181
        %v8338 = vpack.c.b16 %v8194, %v8182
        %v8339 = vpack.c.b16 %v8195, %v8183
        %vm8484 = vcmask 523264
        %v8486 = vsel %vm8484, %v7605, 0
        %v8489 = vsel %vm8484, %v7607, 0
        %v8492 = vsel %vm8484, %v7609, 0
        %v8495 = vsel %vm8484, %v7611, 0
        %v8498 = vsel %vm8484, %v7613, 0
        %v8501 = vsel %vm8484, %v7615, 0
        %v8504 = vsel %vm8484, %v7617, 0
        %v8507 = vsel %vm8484, %v7619, 0
        %8509 = vmatprep.subr.bf16.mxu0 %v8281
        %8510 = vmatpush1.bf16.msra.mxu0 %v8280
        %8511 = vmatprep.subr.bf16.mxu0 %v8269
        %8512 = vmatpush1.bf16.msra.mxu0 %v8268
        %8513 = vmatprep.subr.bf16.mxu0 %v8257
        %8514 = vmatpush1.bf16.msra.mxu0 %v8256
        %8515 = vmatprep.subr.bf16.mxu0 %v8245
        %8516 = vmatpush1.bf16.msra.mxu0 %v8244
        %8517 = vmatprep.subr.bf16.mxu0 %v8233
        %8518 = vmatpush1.bf16.msra.mxu0 %v8232
        %8519 = vmatprep.subr.bf16.mxu0 %v8221
        %8520 = vmatpush1.bf16.msra.mxu0 %v8220
        %8521 = vmatprep.subr.bf16.mxu0 %v8209
        %8522 = vmatpush1.bf16.msra.mxu0 %v8208
        %8523 = vmatprep.subr.bf16.mxu0 %v8197
        %8524 = vmatpush1.bf16.msra.mxu0 %v8196
        %8525 = vmatprep.subr.bf16.mxu0 0
        %8526 = vmatpush2.bf16.msra.mxu0 0
        %8527 = vmatprep.subr.bf16.mxu0 0
        %8528 = vmatpush2.bf16.msra.mxu0 0
        %8529 = vmatprep.subr.bf16.mxu0 0
        %8530 = vmatpush2.bf16.msra.mxu0 0
        %8531 = vmatprep.subr.bf16.mxu0 0
        %8532 = vmatpush2.bf16.msra.mxu0 0
        %8533 = vmatprep.subr.bf16.mxu0 %v8329
        %8534 = vmatpush2.bf16.msra.mxu0 %v8328
        %8535 = vmatprep.subr.bf16.mxu0 %v8317
        %8536 = vmatpush2.bf16.msra.mxu0 %v8316
        %8537 = vmatprep.subr.bf16.mxu0 %v8305
        %8538 = vmatpush2.bf16.msra.mxu0 %v8304
        %8539 = vmatprep.subr.bf16.mxu0 %v8293
        %8540 = vmatpush2.bf16.msra.mxu0 %v8292
        %8541 = vmatprep.mubr.bf16.mxu0 %v8486
        %8542 = vmatmul.mubr.bf16.gmra.mxu0 %v7604
        %v8543 = vpop.f32.mrf.mxu0
        %v8544 = vadd.f32 0.0, %v8543
        %v8545 = vpop.f32.mrf.mxu0
        %v8546 = vadd.f32 0.0, %v8545
        %v8547 = vpop.f32.mrf.mxu0
        %v8548 = vadd.f32 0.0, %v8547
        %v8549 = vpop.f32.mrf.mxu0
        %v8550 = vadd.f32 0.0, %v8549
        %8551 = vmatprep.mubr.bf16.mxu0 %v8489
        %8552 = vmatmul.mubr.bf16.gmra.mxu0 %v7606
        %v8553 = vpop.f32.mrf.mxu0
        %v8554 = vadd.f32 0.0, %v8553
        %v8555 = vpop.f32.mrf.mxu0
        %v8556 = vadd.f32 0.0, %v8555
        %v8557 = vpop.f32.mrf.mxu0
        %v8558 = vadd.f32 0.0, %v8557
        %v8559 = vpop.f32.mrf.mxu0
        %v8560 = vadd.f32 0.0, %v8559
        %8561 = vmatprep.mubr.bf16.mxu0 %v8492
        %8562 = vmatmul.mubr.bf16.gmra.mxu0 %v7608
        %v8563 = vpop.f32.mrf.mxu0
        %v8564 = vadd.f32 0.0, %v8563
        %v8565 = vpop.f32.mrf.mxu0
        %v8566 = vadd.f32 0.0, %v8565
        %v8567 = vpop.f32.mrf.mxu0
        %v8568 = vadd.f32 0.0, %v8567
        %v8569 = vpop.f32.mrf.mxu0
        %v8570 = vadd.f32 0.0, %v8569
        %8571 = vmatprep.mubr.bf16.mxu0 %v8495
        %8572 = vmatmul.mubr.bf16.gmra.mxu0 %v7610
        %v8573 = vpop.f32.mrf.mxu0
        %v8574 = vadd.f32 0.0, %v8573
        %v8575 = vpop.f32.mrf.mxu0
        %v8576 = vadd.f32 0.0, %v8575
        %v8577 = vpop.f32.mrf.mxu0
        %v8578 = vadd.f32 0.0, %v8577
        %v8579 = vpop.f32.mrf.mxu0
        %v8580 = vadd.f32 0.0, %v8579
        %8581 = vmatprep.mubr.bf16.mxu0 %v8498
        %8582 = vmatmul.mubr.bf16.gmra.mxu0 %v7612
        %v8583 = vpop.f32.mrf.mxu0
        %v8584 = vadd.f32 0.0, %v8583
        %v8585 = vpop.f32.mrf.mxu0
        %v8586 = vadd.f32 0.0, %v8585
        %v8587 = vpop.f32.mrf.mxu0
        %v8588 = vadd.f32 0.0, %v8587
        %v8589 = vpop.f32.mrf.mxu0
        %v8590 = vadd.f32 0.0, %v8589
        %8591 = vmatprep.mubr.bf16.mxu0 %v8501
        %8592 = vmatmul.mubr.bf16.gmra.mxu0 %v7614
        %v8593 = vpop.f32.mrf.mxu0
        %v8594 = vadd.f32 0.0, %v8593
        %v8595 = vpop.f32.mrf.mxu0
        %v8596 = vadd.f32 0.0, %v8595
        %v8597 = vpop.f32.mrf.mxu0
        %v8598 = vadd.f32 0.0, %v8597
        %v8599 = vpop.f32.mrf.mxu0
        %v8600 = vadd.f32 0.0, %v8599
        %8601 = vmatprep.mubr.bf16.mxu0 %v8504
        %8602 = vmatmul.mubr.bf16.gmra.mxu0 %v7616
        %v8603 = vpop.f32.mrf.mxu0
        %v8604 = vadd.f32 0.0, %v8603
        %v8605 = vpop.f32.mrf.mxu0
        %v8606 = vadd.f32 0.0, %v8605
        %v8607 = vpop.f32.mrf.mxu0
        %v8608 = vadd.f32 0.0, %v8607
        %v8609 = vpop.f32.mrf.mxu0
        %v8610 = vadd.f32 0.0, %v8609
        %8611 = vmatprep.mubr.bf16.mxu0 %v8507
        %8612 = vmatmul.mubr.bf16.gmra.mxu0 %v7618
        %v8613 = vpop.f32.mrf.mxu0
        %v8614 = vadd.f32 0.0, %v8613
        %v8615 = vpop.f32.mrf.mxu0
        %v8616 = vadd.f32 0.0, %v8615
        %v8617 = vpop.f32.mrf.mxu0
        %v8618 = vadd.f32 0.0, %v8617
        %v8619 = vpop.f32.mrf.mxu0
        %v8620 = vadd.f32 0.0, %v8619
        %8621 = vdwg.mxu0
        %8622 = vmatprep.subr.bf16.mxu0 %v8283
        %8623 = vmatpush1.bf16.msra.mxu0 %v8282
        %8624 = vmatprep.subr.bf16.mxu0 %v8271
        %8625 = vmatpush1.bf16.msra.mxu0 %v8270
        %8626 = vmatprep.subr.bf16.mxu0 %v8259
        %8627 = vmatpush1.bf16.msra.mxu0 %v8258
        %8628 = vmatprep.subr.bf16.mxu0 %v8247
        %8629 = vmatpush1.bf16.msra.mxu0 %v8246
        %8630 = vmatprep.subr.bf16.mxu0 %v8235
        %8631 = vmatpush1.bf16.msra.mxu0 %v8234
        %8632 = vmatprep.subr.bf16.mxu0 %v8223
        %8633 = vmatpush1.bf16.msra.mxu0 %v8222
        %8634 = vmatprep.subr.bf16.mxu0 %v8211
        %8635 = vmatpush1.bf16.msra.mxu0 %v8210
        %8636 = vmatprep.subr.bf16.mxu0 %v8199
        %8637 = vmatpush1.bf16.msra.mxu0 %v8198
        %8638 = vmatprep.subr.bf16.mxu0 0
        %8639 = vmatpush2.bf16.msra.mxu0 0
        %8640 = vmatprep.subr.bf16.mxu0 0
        %8641 = vmatpush2.bf16.msra.mxu0 0
        %8642 = vmatprep.subr.bf16.mxu0 0
        %8643 = vmatpush2.bf16.msra.mxu0 0
        %8644 = vmatprep.subr.bf16.mxu0 0
        %8645 = vmatpush2.bf16.msra.mxu0 0
        %8646 = vmatprep.subr.bf16.mxu0 %v8331
        %8647 = vmatpush2.bf16.msra.mxu0 %v8330
        %8648 = vmatprep.subr.bf16.mxu0 %v8319
        %8649 = vmatpush2.bf16.msra.mxu0 %v8318
        %8650 = vmatprep.subr.bf16.mxu0 %v8307
        %8651 = vmatpush2.bf16.msra.mxu0 %v8306
        %8652 = vmatprep.subr.bf16.mxu0 %v8295
        %8653 = vmatpush2.bf16.msra.mxu0 %v8294
        %8654 = vmatprep.mubr.bf16.mxu0 %v8486
        %8655 = vmatmul.mubr.bf16.gmra.mxu0 %v7604
        %v8656 = vpop.f32.mrf.mxu0
        %v8657 = vadd.f32 0.0, %v8656
        %v8658 = vpop.f32.mrf.mxu0
        %v8659 = vadd.f32 0.0, %v8658
        %v8660 = vpop.f32.mrf.mxu0
        %v8661 = vadd.f32 0.0, %v8660
        %v8662 = vpop.f32.mrf.mxu0
        %v8663 = vadd.f32 0.0, %v8662
        %8664 = vmatprep.mubr.bf16.mxu0 %v8489
        %8665 = vmatmul.mubr.bf16.gmra.mxu0 %v7606
        %v8666 = vpop.f32.mrf.mxu0
        %v8667 = vadd.f32 0.0, %v8666
        %v8668 = vpop.f32.mrf.mxu0
        %v8669 = vadd.f32 0.0, %v8668
        %v8670 = vpop.f32.mrf.mxu0
        %v8671 = vadd.f32 0.0, %v8670
        %v8672 = vpop.f32.mrf.mxu0
        %v8673 = vadd.f32 0.0, %v8672
        %8674 = vmatprep.mubr.bf16.mxu0 %v8492
        %8675 = vmatmul.mubr.bf16.gmra.mxu0 %v7608
        %v8676 = vpop.f32.mrf.mxu0
        %v8677 = vadd.f32 0.0, %v8676
        %v8678 = vpop.f32.mrf.mxu0
        %v8679 = vadd.f32 0.0, %v8678
        %v8680 = vpop.f32.mrf.mxu0
        %v8681 = vadd.f32 0.0, %v8680
        %v8682 = vpop.f32.mrf.mxu0
        %v8683 = vadd.f32 0.0, %v8682
        %8684 = vmatprep.mubr.bf16.mxu0 %v8495
        %8685 = vmatmul.mubr.bf16.gmra.mxu0 %v7610
        %v8686 = vpop.f32.mrf.mxu0
        %v8687 = vadd.f32 0.0, %v8686
        %v8688 = vpop.f32.mrf.mxu0
        %v8689 = vadd.f32 0.0, %v8688
        %v8690 = vpop.f32.mrf.mxu0
        %v8691 = vadd.f32 0.0, %v8690
        %v8692 = vpop.f32.mrf.mxu0
        %v8693 = vadd.f32 0.0, %v8692
        %8694 = vmatprep.mubr.bf16.mxu0 %v8498
        %8695 = vmatmul.mubr.bf16.gmra.mxu0 %v7612
        %v8696 = vpop.f32.mrf.mxu0
        %v8697 = vadd.f32 0.0, %v8696
        %v8698 = vpop.f32.mrf.mxu0
        %v8699 = vadd.f32 0.0, %v8698
        %v8700 = vpop.f32.mrf.mxu0
        %v8701 = vadd.f32 0.0, %v8700
        %v8702 = vpop.f32.mrf.mxu0
        %v8703 = vadd.f32 0.0, %v8702
        %8704 = vmatprep.mubr.bf16.mxu0 %v8501
        %8705 = vmatmul.mubr.bf16.gmra.mxu0 %v7614
        %v8706 = vpop.f32.mrf.mxu0
        %v8707 = vadd.f32 0.0, %v8706
        %v8708 = vpop.f32.mrf.mxu0
        %v8709 = vadd.f32 0.0, %v8708
        %v8710 = vpop.f32.mrf.mxu0
        %v8711 = vadd.f32 0.0, %v8710
        %v8712 = vpop.f32.mrf.mxu0
        %v8713 = vadd.f32 0.0, %v8712
        %8714 = vmatprep.mubr.bf16.mxu0 %v8504
        %8715 = vmatmul.mubr.bf16.gmra.mxu0 %v7616
        %v8716 = vpop.f32.mrf.mxu0
        %v8717 = vadd.f32 0.0, %v8716
        %v8718 = vpop.f32.mrf.mxu0
        %v8719 = vadd.f32 0.0, %v8718
        %v8720 = vpop.f32.mrf.mxu0
        %v8721 = vadd.f32 0.0, %v8720
        %v8722 = vpop.f32.mrf.mxu0
        %v8723 = vadd.f32 0.0, %v8722
        %8724 = vmatprep.mubr.bf16.mxu0 %v8507
        %8725 = vmatmul.mubr.bf16.gmra.mxu0 %v7618
        %v8726 = vpop.f32.mrf.mxu0
        %v8727 = vadd.f32 0.0, %v8726
        %v8728 = vpop.f32.mrf.mxu0
        %v8729 = vadd.f32 0.0, %v8728
        %v8730 = vpop.f32.mrf.mxu0
        %v8731 = vadd.f32 0.0, %v8730
        %v8732 = vpop.f32.mrf.mxu0
        %v8733 = vadd.f32 0.0, %v8732
        %8734 = vdwg.mxu0
        %8735 = vmatprep.subr.bf16.mxu0 %v8285
        %8736 = vmatpush1.bf16.msra.mxu0 %v8284
        %8737 = vmatprep.subr.bf16.mxu0 %v8273
        %8738 = vmatpush1.bf16.msra.mxu0 %v8272
        %8739 = vmatprep.subr.bf16.mxu0 %v8261
        %8740 = vmatpush1.bf16.msra.mxu0 %v8260
        %8741 = vmatprep.subr.bf16.mxu0 %v8249
        %8742 = vmatpush1.bf16.msra.mxu0 %v8248
        %8743 = vmatprep.subr.bf16.mxu0 %v8237
        %8744 = vmatpush1.bf16.msra.mxu0 %v8236
        %8745 = vmatprep.subr.bf16.mxu0 %v8225
        %8746 = vmatpush1.bf16.msra.mxu0 %v8224
        %8747 = vmatprep.subr.bf16.mxu0 %v8213
        %8748 = vmatpush1.bf16.msra.mxu0 %v8212
        %8749 = vmatprep.subr.bf16.mxu0 %v8201
        %8750 = vmatpush1.bf16.msra.mxu0 %v8200
        %8751 = vmatprep.subr.bf16.mxu0 0
        %8752 = vmatpush2.bf16.msra.mxu0 0
        %8753 = vmatprep.subr.bf16.mxu0 0
        %8754 = vmatpush2.bf16.msra.mxu0 0
        %8755 = vmatprep.subr.bf16.mxu0 0
        %8756 = vmatpush2.bf16.msra.mxu0 0
        %8757 = vmatprep.subr.bf16.mxu0 0
        %8758 = vmatpush2.bf16.msra.mxu0 0
        %8759 = vmatprep.subr.bf16.mxu0 %v8333
        %8760 = vmatpush2.bf16.msra.mxu0 %v8332
        %8761 = vmatprep.subr.bf16.mxu0 %v8321
        %8762 = vmatpush2.bf16.msra.mxu0 %v8320
        %8763 = vmatprep.subr.bf16.mxu0 %v8309
        %8764 = vmatpush2.bf16.msra.mxu0 %v8308
        %8765 = vmatprep.subr.bf16.mxu0 %v8297
        %8766 = vmatpush2.bf16.msra.mxu0 %v8296
        %8767 = vmatprep.mubr.bf16.mxu0 %v8486
        %8768 = vmatmul.mubr.bf16.gmra.mxu0 %v7604
        %v8769 = vpop.f32.mrf.mxu0
        %v8770 = vadd.f32 0.0, %v8769
        %v8771 = vpop.f32.mrf.mxu0
        %v8772 = vadd.f32 0.0, %v8771
        %v8773 = vpop.f32.mrf.mxu0
        %v8774 = vadd.f32 0.0, %v8773
        %v8775 = vpop.f32.mrf.mxu0
        %v8776 = vadd.f32 0.0, %v8775
        %8777 = vmatprep.mubr.bf16.mxu0 %v8489
        %8778 = vmatmul.mubr.bf16.gmra.mxu0 %v7606
        %v8779 = vpop.f32.mrf.mxu0
        %v8780 = vadd.f32 0.0, %v8779
        %v8781 = vpop.f32.mrf.mxu0
        %v8782 = vadd.f32 0.0, %v8781
        %v8783 = vpop.f32.mrf.mxu0
        %v8784 = vadd.f32 0.0, %v8783
        %v8785 = vpop.f32.mrf.mxu0
        %v8786 = vadd.f32 0.0, %v8785
        %8787 = vmatprep.mubr.bf16.mxu0 %v8492
        %8788 = vmatmul.mubr.bf16.gmra.mxu0 %v7608
        %v8789 = vpop.f32.mrf.mxu0
        %v8790 = vadd.f32 0.0, %v8789
        %v8791 = vpop.f32.mrf.mxu0
        %v8792 = vadd.f32 0.0, %v8791
        %v8793 = vpop.f32.mrf.mxu0
        %v8794 = vadd.f32 0.0, %v8793
        %v8795 = vpop.f32.mrf.mxu0
        %v8796 = vadd.f32 0.0, %v8795
        %8797 = vmatprep.mubr.bf16.mxu0 %v8495
        %8798 = vmatmul.mubr.bf16.gmra.mxu0 %v7610
        %v8799 = vpop.f32.mrf.mxu0
        %v8800 = vadd.f32 0.0, %v8799
        %v8801 = vpop.f32.mrf.mxu0
        %v8802 = vadd.f32 0.0, %v8801
        %v8803 = vpop.f32.mrf.mxu0
        %v8804 = vadd.f32 0.0, %v8803
        %v8805 = vpop.f32.mrf.mxu0
        %v8806 = vadd.f32 0.0, %v8805
        %8807 = vmatprep.mubr.bf16.mxu0 %v8498
        %8808 = vmatmul.mubr.bf16.gmra.mxu0 %v7612
        %v8809 = vpop.f32.mrf.mxu0
        %v8810 = vadd.f32 0.0, %v8809
        %v8811 = vpop.f32.mrf.mxu0
        %v8812 = vadd.f32 0.0, %v8811
        %v8813 = vpop.f32.mrf.mxu0
        %v8814 = vadd.f32 0.0, %v8813
        %v8815 = vpop.f32.mrf.mxu0
        %v8816 = vadd.f32 0.0, %v8815
        %8817 = vmatprep.mubr.bf16.mxu0 %v8501
        %8818 = vmatmul.mubr.bf16.gmra.mxu0 %v7614
        %v8819 = vpop.f32.mrf.mxu0
        %v8820 = vadd.f32 0.0, %v8819
        %v8821 = vpop.f32.mrf.mxu0
        %v8822 = vadd.f32 0.0, %v8821
        %v8823 = vpop.f32.mrf.mxu0
        %v8824 = vadd.f32 0.0, %v8823
        %v8825 = vpop.f32.mrf.mxu0
        %v8826 = vadd.f32 0.0, %v8825
        %8827 = vmatprep.mubr.bf16.mxu0 %v8504
        %8828 = vmatmul.mubr.bf16.gmra.mxu0 %v7616
        %v8829 = vpop.f32.mrf.mxu0
        %v8830 = vadd.f32 0.0, %v8829
        %v8831 = vpop.f32.mrf.mxu0
        %v8832 = vadd.f32 0.0, %v8831
        %v8833 = vpop.f32.mrf.mxu0
        %v8834 = vadd.f32 0.0, %v8833
        %v8835 = vpop.f32.mrf.mxu0
        %v8836 = vadd.f32 0.0, %v8835
        %8837 = vmatprep.mubr.bf16.mxu0 %v8507
        %8838 = vmatmul.mubr.bf16.gmra.mxu0 %v7618
        %v8839 = vpop.f32.mrf.mxu0
        %v8840 = vadd.f32 0.0, %v8839
        %v8841 = vpop.f32.mrf.mxu0
        %v8842 = vadd.f32 0.0, %v8841
        %v8843 = vpop.f32.mrf.mxu0
        %v8844 = vadd.f32 0.0, %v8843
        %v8845 = vpop.f32.mrf.mxu0
        %v8846 = vadd.f32 0.0, %v8845
        %8847 = vdwg.mxu0
        %8848 = vmatprep.subr.bf16.mxu0 %v8287
        %8849 = vmatpush1.bf16.msra.mxu0 %v8286
        %8850 = vmatprep.subr.bf16.mxu0 %v8275
        %8851 = vmatpush1.bf16.msra.mxu0 %v8274
        %8852 = vmatprep.subr.bf16.mxu0 %v8263
        %8853 = vmatpush1.bf16.msra.mxu0 %v8262
        %8854 = vmatprep.subr.bf16.mxu0 %v8251
        %8855 = vmatpush1.bf16.msra.mxu0 %v8250
        %8856 = vmatprep.subr.bf16.mxu0 %v8239
        %8857 = vmatpush1.bf16.msra.mxu0 %v8238
        %8858 = vmatprep.subr.bf16.mxu0 %v8227
        %8859 = vmatpush1.bf16.msra.mxu0 %v8226
        %8860 = vmatprep.subr.bf16.mxu0 %v8215
        %8861 = vmatpush1.bf16.msra.mxu0 %v8214
        %8862 = vmatprep.subr.bf16.mxu0 %v8203
        %8863 = vmatpush1.bf16.msra.mxu0 %v8202
        %8864 = vmatprep.subr.bf16.mxu0 0
        %8865 = vmatpush2.bf16.msra.mxu0 0
        %8866 = vmatprep.subr.bf16.mxu0 0
        %8867 = vmatpush2.bf16.msra.mxu0 0
        %8868 = vmatprep.subr.bf16.mxu0 0
        %8869 = vmatpush2.bf16.msra.mxu0 0
        %8870 = vmatprep.subr.bf16.mxu0 0
        %8871 = vmatpush2.bf16.msra.mxu0 0
        %8872 = vmatprep.subr.bf16.mxu0 %v8335
        %8873 = vmatpush2.bf16.msra.mxu0 %v8334
        %8874 = vmatprep.subr.bf16.mxu0 %v8323
        %8875 = vmatpush2.bf16.msra.mxu0 %v8322
        %8876 = vmatprep.subr.bf16.mxu0 %v8311
        %8877 = vmatpush2.bf16.msra.mxu0 %v8310
        %8878 = vmatprep.subr.bf16.mxu0 %v8299
        %8879 = vmatpush2.bf16.msra.mxu0 %v8298
        %8880 = vmatprep.mubr.bf16.mxu0 %v8486
        %8881 = vmatmul.mubr.bf16.gmra.mxu0 %v7604
        %v8882 = vpop.f32.mrf.mxu0
        %v8883 = vadd.f32 0.0, %v8882
        %v8884 = vpop.f32.mrf.mxu0
        %v8885 = vadd.f32 0.0, %v8884
        %v8886 = vpop.f32.mrf.mxu0
        %v8887 = vadd.f32 0.0, %v8886
        %v8888 = vpop.f32.mrf.mxu0
        %v8889 = vadd.f32 0.0, %v8888
        %8890 = vmatprep.mubr.bf16.mxu0 %v8489
        %8891 = vmatmul.mubr.bf16.gmra.mxu0 %v7606
        %v8892 = vpop.f32.mrf.mxu0
        %v8893 = vadd.f32 0.0, %v8892
        %v8894 = vpop.f32.mrf.mxu0
        %v8895 = vadd.f32 0.0, %v8894
        %v8896 = vpop.f32.mrf.mxu0
        %v8897 = vadd.f32 0.0, %v8896
        %v8898 = vpop.f32.mrf.mxu0
        %v8899 = vadd.f32 0.0, %v8898
        %8900 = vmatprep.mubr.bf16.mxu0 %v8492
        %8901 = vmatmul.mubr.bf16.gmra.mxu0 %v7608
        %v8902 = vpop.f32.mrf.mxu0
        %v8903 = vadd.f32 0.0, %v8902
        %v8904 = vpop.f32.mrf.mxu0
        %v8905 = vadd.f32 0.0, %v8904
        %v8906 = vpop.f32.mrf.mxu0
        %v8907 = vadd.f32 0.0, %v8906
        %v8908 = vpop.f32.mrf.mxu0
        %v8909 = vadd.f32 0.0, %v8908
        %8910 = vmatprep.mubr.bf16.mxu0 %v8495
        %8911 = vmatmul.mubr.bf16.gmra.mxu0 %v7610
        %v8912 = vpop.f32.mrf.mxu0
        %v8913 = vadd.f32 0.0, %v8912
        %v8914 = vpop.f32.mrf.mxu0
        %v8915 = vadd.f32 0.0, %v8914
        %v8916 = vpop.f32.mrf.mxu0
        %v8917 = vadd.f32 0.0, %v8916
        %v8918 = vpop.f32.mrf.mxu0
        %v8919 = vadd.f32 0.0, %v8918
        %8920 = vmatprep.mubr.bf16.mxu0 %v8498
        %8921 = vmatmul.mubr.bf16.gmra.mxu0 %v7612
        %v8922 = vpop.f32.mrf.mxu0
        %v8923 = vadd.f32 0.0, %v8922
        %v8924 = vpop.f32.mrf.mxu0
        %v8925 = vadd.f32 0.0, %v8924
        %v8926 = vpop.f32.mrf.mxu0
        %v8927 = vadd.f32 0.0, %v8926
        %v8928 = vpop.f32.mrf.mxu0
        %v8929 = vadd.f32 0.0, %v8928
        %8930 = vmatprep.mubr.bf16.mxu0 %v8501
        %8931 = vmatmul.mubr.bf16.gmra.mxu0 %v7614
        %v8932 = vpop.f32.mrf.mxu0
        %v8933 = vadd.f32 0.0, %v8932
        %v8934 = vpop.f32.mrf.mxu0
        %v8935 = vadd.f32 0.0, %v8934
        %v8936 = vpop.f32.mrf.mxu0
        %v8937 = vadd.f32 0.0, %v8936
        %v8938 = vpop.f32.mrf.mxu0
        %v8939 = vadd.f32 0.0, %v8938
        %8940 = vmatprep.mubr.bf16.mxu0 %v8504
        %8941 = vmatmul.mubr.bf16.gmra.mxu0 %v7616
        %v8942 = vpop.f32.mrf.mxu0
        %v8943 = vadd.f32 0.0, %v8942
        %v8944 = vpop.f32.mrf.mxu0
        %v8945 = vadd.f32 0.0, %v8944
        %v8946 = vpop.f32.mrf.mxu0
        %v8947 = vadd.f32 0.0, %v8946
        %v8948 = vpop.f32.mrf.mxu0
        %v8949 = vadd.f32 0.0, %v8948
        %8950 = vmatprep.mubr.bf16.mxu0 %v8507
        %8951 = vmatmul.mubr.bf16.gmra.mxu0 %v7618
        %v8952 = vpop.f32.mrf.mxu0
        %v8953 = vadd.f32 0.0, %v8952
        %v8954 = vpop.f32.mrf.mxu0
        %v8955 = vadd.f32 0.0, %v8954
        %v8956 = vpop.f32.mrf.mxu0
        %v8957 = vadd.f32 0.0, %v8956
        %v8958 = vpop.f32.mrf.mxu0
        %v8959 = vadd.f32 0.0, %v8958
        %8960 = vdwg.mxu0
        %8961 = vmatprep.subr.bf16.mxu0 %v8289
        %8962 = vmatpush1.bf16.msra.mxu0 %v8288
        %8963 = vmatprep.subr.bf16.mxu0 %v8277
        %8964 = vmatpush1.bf16.msra.mxu0 %v8276
        %8965 = vmatprep.subr.bf16.mxu0 %v8265
        %8966 = vmatpush1.bf16.msra.mxu0 %v8264
        %8967 = vmatprep.subr.bf16.mxu0 %v8253
        %8968 = vmatpush1.bf16.msra.mxu0 %v8252
        %8969 = vmatprep.subr.bf16.mxu0 %v8241
        %8970 = vmatpush1.bf16.msra.mxu0 %v8240
        %8971 = vmatprep.subr.bf16.mxu0 %v8229
        %8972 = vmatpush1.bf16.msra.mxu0 %v8228
        %8973 = vmatprep.subr.bf16.mxu0 %v8217
        %8974 = vmatpush1.bf16.msra.mxu0 %v8216
        %8975 = vmatprep.subr.bf16.mxu0 %v8205
        %8976 = vmatpush1.bf16.msra.mxu0 %v8204
        %8977 = vmatprep.subr.bf16.mxu0 0
        %8978 = vmatpush2.bf16.msra.mxu0 0
        %8979 = vmatprep.subr.bf16.mxu0 0
        %8980 = vmatpush2.bf16.msra.mxu0 0
        %8981 = vmatprep.subr.bf16.mxu0 0
        %8982 = vmatpush2.bf16.msra.mxu0 0
        %8983 = vmatprep.subr.bf16.mxu0 0
        %8984 = vmatpush2.bf16.msra.mxu0 0
        %8985 = vmatprep.subr.bf16.mxu0 %v8337
        %8986 = vmatpush2.bf16.msra.mxu0 %v8336
        %8987 = vmatprep.subr.bf16.mxu0 %v8325
        %8988 = vmatpush2.bf16.msra.mxu0 %v8324
        %8989 = vmatprep.subr.bf16.mxu0 %v8313
        %8990 = vmatpush2.bf16.msra.mxu0 %v8312
        %8991 = vmatprep.subr.bf16.mxu0 %v8301
        %8992 = vmatpush2.bf16.msra.mxu0 %v8300
        %8993 = vmatprep.mubr.bf16.mxu0 %v8486
        %8994 = vmatmul.mubr.bf16.gmra.mxu0 %v7604
        %v8995 = vpop.f32.mrf.mxu0
        %v8996 = vadd.f32 0.0, %v8995
        %v8997 = vpop.f32.mrf.mxu0
        %v8998 = vadd.f32 0.0, %v8997
        %v8999 = vpop.f32.mrf.mxu0
        %v9000 = vadd.f32 0.0, %v8999
        %v9001 = vpop.f32.mrf.mxu0
        %v9002 = vadd.f32 0.0, %v9001
        %9003 = vmatprep.mubr.bf16.mxu0 %v8489
        %9004 = vmatmul.mubr.bf16.gmra.mxu0 %v7606
        %v9005 = vpop.f32.mrf.mxu0
        %v9006 = vadd.f32 0.0, %v9005
        %v9007 = vpop.f32.mrf.mxu0
        %v9008 = vadd.f32 0.0, %v9007
        %v9009 = vpop.f32.mrf.mxu0
        %v9010 = vadd.f32 0.0, %v9009
        %v9011 = vpop.f32.mrf.mxu0
        %v9012 = vadd.f32 0.0, %v9011
        %9013 = vmatprep.mubr.bf16.mxu0 %v8492
        %9014 = vmatmul.mubr.bf16.gmra.mxu0 %v7608
        %v9015 = vpop.f32.mrf.mxu0
        %v9016 = vadd.f32 0.0, %v9015
        %v9017 = vpop.f32.mrf.mxu0
        %v9018 = vadd.f32 0.0, %v9017
        %v9019 = vpop.f32.mrf.mxu0
        %v9020 = vadd.f32 0.0, %v9019
        %v9021 = vpop.f32.mrf.mxu0
        %v9022 = vadd.f32 0.0, %v9021
        %9023 = vmatprep.mubr.bf16.mxu0 %v8495
        %9024 = vmatmul.mubr.bf16.gmra.mxu0 %v7610
        %v9025 = vpop.f32.mrf.mxu0
        %v9026 = vadd.f32 0.0, %v9025
        %v9027 = vpop.f32.mrf.mxu0
        %v9028 = vadd.f32 0.0, %v9027
        %v9029 = vpop.f32.mrf.mxu0
        %v9030 = vadd.f32 0.0, %v9029
        %v9031 = vpop.f32.mrf.mxu0
        %v9032 = vadd.f32 0.0, %v9031
        %9033 = vmatprep.mubr.bf16.mxu0 %v8498
        %9034 = vmatmul.mubr.bf16.gmra.mxu0 %v7612
        %v9035 = vpop.f32.mrf.mxu0
        %v9036 = vadd.f32 0.0, %v9035
        %v9037 = vpop.f32.mrf.mxu0
        %v9038 = vadd.f32 0.0, %v9037
        %v9039 = vpop.f32.mrf.mxu0
        %v9040 = vadd.f32 0.0, %v9039
        %v9041 = vpop.f32.mrf.mxu0
        %v9042 = vadd.f32 0.0, %v9041
        %9043 = vmatprep.mubr.bf16.mxu0 %v8501
        %9044 = vmatmul.mubr.bf16.gmra.mxu0 %v7614
        %v9045 = vpop.f32.mrf.mxu0
        %v9046 = vadd.f32 0.0, %v9045
        %v9047 = vpop.f32.mrf.mxu0
        %v9048 = vadd.f32 0.0, %v9047
        %v9049 = vpop.f32.mrf.mxu0
        %v9050 = vadd.f32 0.0, %v9049
        %v9051 = vpop.f32.mrf.mxu0
        %v9052 = vadd.f32 0.0, %v9051
        %9053 = vmatprep.mubr.bf16.mxu0 %v8504
        %9054 = vmatmul.mubr.bf16.gmra.mxu0 %v7616
        %v9055 = vpop.f32.mrf.mxu0
        %v9056 = vadd.f32 0.0, %v9055
        %v9057 = vpop.f32.mrf.mxu0
        %v9058 = vadd.f32 0.0, %v9057
        %v9059 = vpop.f32.mrf.mxu0
        %v9060 = vadd.f32 0.0, %v9059
        %v9061 = vpop.f32.mrf.mxu0
        %v9062 = vadd.f32 0.0, %v9061
        %9063 = vmatprep.mubr.bf16.mxu0 %v8507
        %9064 = vmatmul.mubr.bf16.gmra.mxu0 %v7618
        %v9065 = vpop.f32.mrf.mxu0
        %v9066 = vadd.f32 0.0, %v9065
        %v9067 = vpop.f32.mrf.mxu0
        %v9068 = vadd.f32 0.0, %v9067
        %v9069 = vpop.f32.mrf.mxu0
        %v9070 = vadd.f32 0.0, %v9069
        %v9071 = vpop.f32.mrf.mxu0
        %v9072 = vadd.f32 0.0, %v9071
        %9073 = vdwg.mxu0
        %9074 = vmatprep.subr.bf16.mxu0 %v8291
        %9075 = vmatpush1.bf16.msra.mxu0 %v8290
        %9076 = vmatprep.subr.bf16.mxu0 %v8279
        %9077 = vmatpush1.bf16.msra.mxu0 %v8278
        %9078 = vmatprep.subr.bf16.mxu0 %v8267
        %9079 = vmatpush1.bf16.msra.mxu0 %v8266
        %9080 = vmatprep.subr.bf16.mxu0 %v8255
        %9081 = vmatpush1.bf16.msra.mxu0 %v8254
        %9082 = vmatprep.subr.bf16.mxu0 %v8243
        %9083 = vmatpush1.bf16.msra.mxu0 %v8242
        %9084 = vmatprep.subr.bf16.mxu0 %v8231
        %9085 = vmatpush1.bf16.msra.mxu0 %v8230
        %9086 = vmatprep.subr.bf16.mxu0 %v8219
        %9087 = vmatpush1.bf16.msra.mxu0 %v8218
        %9088 = vmatprep.subr.bf16.mxu0 %v8207
        %9089 = vmatpush1.bf16.msra.mxu0 %v8206
        %9090 = vmatprep.subr.bf16.mxu0 0
        %9091 = vmatpush2.bf16.msra.mxu0 0
        %9092 = vmatprep.subr.bf16.mxu0 0
        %9093 = vmatpush2.bf16.msra.mxu0 0
        %9094 = vmatprep.subr.bf16.mxu0 0
        %9095 = vmatpush2.bf16.msra.mxu0 0
        %9096 = vmatprep.subr.bf16.mxu0 0
        %9097 = vmatpush2.bf16.msra.mxu0 0
        %9098 = vmatprep.subr.bf16.mxu0 %v8339
        %9099 = vmatpush2.bf16.msra.mxu0 %v8338
        %9100 = vmatprep.subr.bf16.mxu0 %v8327
        %9101 = vmatpush2.bf16.msra.mxu0 %v8326
        %9102 = vmatprep.subr.bf16.mxu0 %v8315
        %9103 = vmatpush2.bf16.msra.mxu0 %v8314
        %9104 = vmatprep.subr.bf16.mxu0 %v8303
        %9105 = vmatpush2.bf16.msra.mxu0 %v8302
        %9106 = vmatprep.mubr.bf16.mxu0 %v8486
        %9107 = vmatmul.mubr.bf16.gmra.mxu0 %v7604
        %v9108 = vpop.f32.mrf.mxu0
        %v9109 = vadd.f32 0.0, %v9108
        %v9110 = vpop.f32.mrf.mxu0
        %v9111 = vadd.f32 0.0, %v9110
        %v9112 = vpop.f32.mrf.mxu0
        %v9113 = vadd.f32 0.0, %v9112
        %v9114 = vpop.f32.mrf.mxu0
        %v9115 = vadd.f32 0.0, %v9114
        %9116 = vmatprep.mubr.bf16.mxu0 %v8489
        %9117 = vmatmul.mubr.bf16.gmra.mxu0 %v7606
        %v9118 = vpop.f32.mrf.mxu0
        %v9119 = vadd.f32 0.0, %v9118
        %v9120 = vpop.f32.mrf.mxu0
        %v9121 = vadd.f32 0.0, %v9120
        %v9122 = vpop.f32.mrf.mxu0
        %v9123 = vadd.f32 0.0, %v9122
        %v9124 = vpop.f32.mrf.mxu0
        %v9125 = vadd.f32 0.0, %v9124
        %9126 = vmatprep.mubr.bf16.mxu0 %v8492
        %9127 = vmatmul.mubr.bf16.gmra.mxu0 %v7608
        %v9128 = vpop.f32.mrf.mxu0
        %v9129 = vadd.f32 0.0, %v9128
        %v9130 = vpop.f32.mrf.mxu0
        %v9131 = vadd.f32 0.0, %v9130
        %v9132 = vpop.f32.mrf.mxu0
        %v9133 = vadd.f32 0.0, %v9132
        %v9134 = vpop.f32.mrf.mxu0
        %v9135 = vadd.f32 0.0, %v9134
        %9136 = vmatprep.mubr.bf16.mxu0 %v8495
        %9137 = vmatmul.mubr.bf16.gmra.mxu0 %v7610
        %v9138 = vpop.f32.mrf.mxu0
        %v9139 = vadd.f32 0.0, %v9138
        %v9140 = vpop.f32.mrf.mxu0
        %v9141 = vadd.f32 0.0, %v9140
        %v9142 = vpop.f32.mrf.mxu0
        %v9143 = vadd.f32 0.0, %v9142
        %v9144 = vpop.f32.mrf.mxu0
        %v9145 = vadd.f32 0.0, %v9144
        %9146 = vmatprep.mubr.bf16.mxu0 %v8498
        %9147 = vmatmul.mubr.bf16.gmra.mxu0 %v7612
        %v9148 = vpop.f32.mrf.mxu0
        %v9149 = vadd.f32 0.0, %v9148
        %v9150 = vpop.f32.mrf.mxu0
        %v9151 = vadd.f32 0.0, %v9150
        %v9152 = vpop.f32.mrf.mxu0
        %v9153 = vadd.f32 0.0, %v9152
        %v9154 = vpop.f32.mrf.mxu0
        %v9155 = vadd.f32 0.0, %v9154
        %9156 = vmatprep.mubr.bf16.mxu0 %v8501
        %9157 = vmatmul.mubr.bf16.gmra.mxu0 %v7614
        %v9158 = vpop.f32.mrf.mxu0
        %v9159 = vadd.f32 0.0, %v9158
        %v9160 = vpop.f32.mrf.mxu0
        %v9161 = vadd.f32 0.0, %v9160
        %v9162 = vpop.f32.mrf.mxu0
        %v9163 = vadd.f32 0.0, %v9162
        %v9164 = vpop.f32.mrf.mxu0
        %v9165 = vadd.f32 0.0, %v9164
        %9166 = vmatprep.mubr.bf16.mxu0 %v8504
        %9167 = vmatmul.mubr.bf16.gmra.mxu0 %v7616
        %v9168 = vpop.f32.mrf.mxu0
        %v9169 = vadd.f32 0.0, %v9168
        %v9170 = vpop.f32.mrf.mxu0
        %v9171 = vadd.f32 0.0, %v9170
        %v9172 = vpop.f32.mrf.mxu0
        %v9173 = vadd.f32 0.0, %v9172
        %v9174 = vpop.f32.mrf.mxu0
        %v9175 = vadd.f32 0.0, %v9174
        %9176 = vmatprep.mubr.bf16.mxu0 %v8507
        %9177 = vmatmul.mubr.bf16.gmra.mxu0 %v7618
        %v9178 = vpop.f32.mrf.mxu0
        %v9179 = vadd.f32 0.0, %v9178
        %v9180 = vpop.f32.mrf.mxu0
        %v9181 = vadd.f32 0.0, %v9180
        %v9182 = vpop.f32.mrf.mxu0
        %v9183 = vadd.f32 0.0, %v9182
        %v9184 = vpop.f32.mrf.mxu0
        %v9185 = vadd.f32 0.0, %v9184
        %9186 = vdwg.mxu0
        %v9295 = vunpack.c.l.b16 %v7496
        %v9296 = vunpack.c.h.b16 %v7496
        %v9297 = vunpack.c.l.b16 %v7497
        %v9298 = vunpack.c.h.b16 %v7497
        %v9299 = vunpack.c.l.b16 %v7498
        %v9300 = vunpack.c.h.b16 %v7498
        %v9301 = vunpack.c.l.b16 %v7499
        %v9302 = vunpack.c.h.b16 %v7499
        %v9303 = vunpack.c.l.b16 %v7500
        %v9304 = vunpack.c.h.b16 %v7500
        %v9305 = vunpack.c.l.b16 %v7501
        %v9306 = vunpack.c.h.b16 %v7501
        %v9307 = vunpack.c.l.b16 %v7502
        %v9308 = vunpack.c.h.b16 %v7502
        %v9309 = vunpack.c.l.b16 %v7503
        %v9310 = vunpack.c.h.b16 %v7503
        %v9311 = vunpack.c.l.b16 %v7504
        %v9312 = vunpack.c.h.b16 %v7504
        %v9313 = vunpack.c.l.b16 %v7505
        %v9314 = vunpack.c.h.b16 %v7505
        %v9315 = vunpack.c.l.b16 %v7506
        %v9316 = vunpack.c.h.b16 %v7506
        %v9317 = vunpack.c.l.b16 %v7507
        %v9318 = vunpack.c.h.b16 %v7507
        %v9319 = vunpack.c.l.b16 %v7508
        %v9320 = vunpack.c.h.b16 %v7508
        %v9321 = vunpack.c.l.b16 %v7509
        %v9322 = vunpack.c.h.b16 %v7509
        %v9323 = vunpack.c.l.b16 %v7510
        %v9324 = vunpack.c.h.b16 %v7510
        %v9325 = vunpack.c.l.b16 %v7511
        %v9326 = vunpack.c.h.b16 %v7511
        %v9327 = vunpack.c.l.b16 %v7512
        %v9328 = vunpack.c.h.b16 %v7512
        %v9329 = vunpack.c.l.b16 %v7513
        %v9330 = vunpack.c.h.b16 %v7513
        %v9331 = vunpack.c.l.b16 %v7514
        %v9332 = vunpack.c.h.b16 %v7514
        %v9333 = vunpack.c.l.b16 %v7515
        %v9334 = vunpack.c.h.b16 %v7515
        %v9335 = vunpack.c.l.b16 %v7516
        %v9336 = vunpack.c.h.b16 %v7516
        %v9337 = vunpack.c.l.b16 %v7517
        %v9338 = vunpack.c.h.b16 %v7517
        %v9339 = vunpack.c.l.b16 %v7518
        %v9340 = vunpack.c.h.b16 %v7518
        %v9341 = vunpack.c.l.b16 %v7519
        %v9342 = vunpack.c.h.b16 %v7519
        %v9343 = vunpack.c.l.b16 %v7520
        %v9344 = vunpack.c.h.b16 %v7520
        %v9345 = vunpack.c.l.b16 %v7521
        %v9346 = vunpack.c.h.b16 %v7521
        %v9347 = vunpack.c.l.b16 %v7522
        %v9348 = vunpack.c.h.b16 %v7522
        %v9349 = vunpack.c.l.b16 %v7523
        %v9350 = vunpack.c.h.b16 %v7523
        %v9351 = vunpack.c.l.b16 %v7524
        %v9352 = vunpack.c.h.b16 %v7524
        %v9353 = vunpack.c.l.b16 %v7525
        %v9354 = vunpack.c.h.b16 %v7525
        %v9355 = vunpack.c.l.b16 %v7526
        %v9356 = vunpack.c.h.b16 %v7526
        %v9357 = vunpack.c.l.b16 %v7527
        %v9358 = vunpack.c.h.b16 %v7527
        %v9359 = vunpack.c.l.b16 %v7528
        %v9360 = vunpack.c.h.b16 %v7528
        %v9361 = vunpack.c.l.b16 %v7529
        %v9362 = vunpack.c.h.b16 %v7529
        %v9363 = vunpack.c.l.b16 %v7530
        %v9364 = vunpack.c.h.b16 %v7530
        %v9365 = vunpack.c.l.b16 %v7531
        %v9366 = vunpack.c.h.b16 %v7531
        %v9367 = vunpack.c.l.b16 %v7532
        %v9368 = vunpack.c.h.b16 %v7532
        %v9369 = vunpack.c.l.b16 %v7533
        %v9370 = vunpack.c.h.b16 %v7533
        %v9371 = vunpack.c.l.b16 %v7534
        %v9372 = vunpack.c.h.b16 %v7534
        %v9373 = vunpack.c.l.b16 %v7535
        %v9374 = vunpack.c.h.b16 %v7535
        %v9375 = vunpack.c.l.b16 %v7536
        %v9376 = vunpack.c.h.b16 %v7536
        %v9377 = vunpack.c.l.b16 %v7537
        %v9378 = vunpack.c.h.b16 %v7537
        %v9379 = vunpack.c.l.b16 %v7538
        %v9380 = vunpack.c.h.b16 %v7538
        %v9381 = vunpack.c.l.b16 %v7539
        %v9382 = vunpack.c.h.b16 %v7539
        %v9383 = vunpack.c.l.b16 %v7540
        %v9384 = vunpack.c.h.b16 %v7540
        %v9385 = vunpack.c.l.b16 %v7541
        %v9386 = vunpack.c.h.b16 %v7541
        %v9387 = vunpack.c.l.b16 %v7542
        %v9388 = vunpack.c.h.b16 %v7542
        %v9389 = vunpack.c.l.b16 %v7543
        %v9390 = vunpack.c.h.b16 %v7543
        %v9391 = vunpack.c.l.b16 %v7544
        %v9392 = vunpack.c.h.b16 %v7544
        %v9393 = vunpack.c.l.b16 %v7545
        %v9394 = vunpack.c.h.b16 %v7545
        %v9395 = vunpack.c.l.b16 %v7546
        %v9396 = vunpack.c.h.b16 %v7546
        %v9397 = vunpack.c.l.b16 %v7547
        %v9398 = vunpack.c.h.b16 %v7547
        %v9399 = vunpack.c.l.b16 %v7548
        %v9400 = vunpack.c.h.b16 %v7548
        %v9401 = vunpack.c.l.b16 %v7549
        %v9402 = vunpack.c.h.b16 %v7549
        %v9403 = vunpack.c.l.b16 %v7550
        %v9404 = vunpack.c.h.b16 %v7550
        %v9405 = vunpack.c.l.b16 %v7551
        %v9406 = vunpack.c.h.b16 %v7551
        %v9407 = vunpack.c.l.b16 %v7552
        %v9408 = vunpack.c.h.b16 %v7552
        %v9409 = vunpack.c.l.b16 %v7553
        %v9410 = vunpack.c.h.b16 %v7553
        %v9411 = vunpack.c.l.b16 %v7554
        %v9412 = vunpack.c.h.b16 %v7554
        %v9413 = vunpack.c.l.b16 %v7555
        %v9414 = vunpack.c.h.b16 %v7555
        %v9415 = vunpack.c.l.b16 %v7556
        %v9416 = vunpack.c.h.b16 %v7556
        %v9417 = vunpack.c.l.b16 %v7557
        %v9418 = vunpack.c.h.b16 %v7557
        %v9419 = vunpack.c.l.b16 %v7558
        %v9420 = vunpack.c.h.b16 %v7558
        %v9421 = vunpack.c.l.b16 %v7559
        %v9422 = vunpack.c.h.b16 %v7559
        %v9423 = vunpack.c.l.b16 %v7560
        %v9424 = vunpack.c.h.b16 %v7560
        %v9425 = vunpack.c.l.b16 %v7561
        %v9426 = vunpack.c.h.b16 %v7561
        %v9427 = vunpack.c.l.b16 %v7562
        %v9428 = vunpack.c.h.b16 %v7562
        %v9429 = vunpack.c.l.b16 %v7563
        %v9430 = vunpack.c.h.b16 %v7563
        %v9431 = vunpack.c.l.b16 %v7564
        %v9432 = vunpack.c.h.b16 %v7564
        %v9433 = vunpack.c.l.b16 %v7565
        %v9434 = vunpack.c.h.b16 %v7565
        %v9435 = vunpack.c.l.b16 %v7566
        %v9436 = vunpack.c.h.b16 %v7566
        %v9437 = vunpack.c.l.b16 %v7567
        %v9438 = vunpack.c.h.b16 %v7567
        %v9439 = vunpack.c.l.b16 %v7568
        %v9440 = vunpack.c.h.b16 %v7568
        %v9441 = vunpack.c.l.b16 %v7569
        %v9442 = vunpack.c.h.b16 %v7569
        %v9443 = vunpack.c.l.b16 %v7570
        %v9444 = vunpack.c.h.b16 %v7570
        %v9445 = vunpack.c.l.b16 %v7571
        %v9446 = vunpack.c.h.b16 %v7571
        %v9447 = vunpack.c.l.b16 %v7572
        %v9448 = vunpack.c.h.b16 %v7572
        %v9449 = vunpack.c.l.b16 %v7573
        %v9450 = vunpack.c.h.b16 %v7573
        %v9451 = vunpack.c.l.b16 %v7574
        %v9452 = vunpack.c.h.b16 %v7574
        %v9453 = vunpack.c.l.b16 %v7575
        %v9454 = vunpack.c.h.b16 %v7575
        %v9455 = vunpack.c.l.b16 %v7576
        %v9456 = vunpack.c.h.b16 %v7576
        %v9457 = vunpack.c.l.b16 %v7577
        %v9458 = vunpack.c.h.b16 %v7577
        %v9459 = vunpack.c.l.b16 %v7578
        %v9460 = vunpack.c.h.b16 %v7578
        %v9461 = vunpack.c.l.b16 %v7579
        %v9462 = vunpack.c.h.b16 %v7579
        %v9463 = vunpack.c.l.b16 %v7580
        %v9464 = vunpack.c.h.b16 %v7580
        %v9465 = vunpack.c.l.b16 %v7581
        %v9466 = vunpack.c.h.b16 %v7581
        %v9467 = vunpack.c.l.b16 %v7582
        %v9468 = vunpack.c.h.b16 %v7582
        %v9469 = vunpack.c.l.b16 %v7583
        %v9470 = vunpack.c.h.b16 %v7583
        %v9471 = vunpack.c.l.b16 %v7584
        %v9472 = vunpack.c.h.b16 %v7584
        %v9473 = vunpack.c.l.b16 %v7585
        %v9474 = vunpack.c.h.b16 %v7585
        %v9475 = vunpack.c.l.b16 %v7586
        %v9476 = vunpack.c.h.b16 %v7586
        %v9477 = vunpack.c.l.b16 %v7587
        %v9478 = vunpack.c.h.b16 %v7587
        %v9479 = vunpack.c.l.b16 %v7588
        %v9480 = vunpack.c.h.b16 %v7588
        %v9481 = vunpack.c.l.b16 %v7589
        %v9482 = vunpack.c.h.b16 %v7589
        %v9483 = vunpack.c.l.b16 %v7590
        %v9484 = vunpack.c.h.b16 %v7590
        %v9485 = vunpack.c.l.b16 %v7591
        %v9486 = vunpack.c.h.b16 %v7591
        %v9487 = vunpack.c.l.b16 %v7592
        %v9488 = vunpack.c.h.b16 %v7592
        %v9489 = vunpack.c.l.b16 %v7593
        %v9490 = vunpack.c.h.b16 %v7593
        %v9491 = vunpack.c.l.b16 %v7594
        %v9492 = vunpack.c.h.b16 %v7594
        %v9493 = vunpack.c.l.b16 %v7595
        %v9494 = vunpack.c.h.b16 %v7595
        %v9495 = vunpack.c.l.b16 %v7596
        %v9496 = vunpack.c.h.b16 %v7596
        %v9497 = vunpack.c.l.b16 %v7597
        %v9498 = vunpack.c.h.b16 %v7597
        %v9499 = vunpack.c.l.b16 %v7598
        %v9500 = vunpack.c.h.b16 %v7598
        %v9501 = vunpack.c.l.b16 %v7599
        %v9502 = vunpack.c.h.b16 %v7599
        %v9503 = vunpack.c.l.b16 %v7600
        %v9504 = vunpack.c.h.b16 %v7600
        %v9505 = vunpack.c.l.b16 %v7601
        %v9506 = vunpack.c.h.b16 %v7601
        %v9507 = vunpack.c.l.b16 %v7602
        %v9508 = vunpack.c.h.b16 %v7602
        %v9509 = vunpack.c.l.b16 %v7603
        %v9510 = vunpack.c.h.b16 %v7603
        %v9511 = vpack.c.b16 %v9307, %v9295
        %v9512 = vpack.c.b16 %v9308, %v9296
        %v9513 = vpack.c.b16 %v9309, %v9297
        %v9514 = vpack.c.b16 %v9310, %v9298
        %v9515 = vpack.c.b16 %v9311, %v9299
        %v9516 = vpack.c.b16 %v9312, %v9300
        %v9517 = vpack.c.b16 %v9313, %v9301
        %v9518 = vpack.c.b16 %v9314, %v9302
        %v9519 = vpack.c.b16 %v9315, %v9303
        %v9520 = vpack.c.b16 %v9316, %v9304
        %v9521 = vpack.c.b16 %v9317, %v9305
        %v9522 = vpack.c.b16 %v9318, %v9306
        %v9523 = vpack.c.b16 %v9331, %v9319
        %v9524 = vpack.c.b16 %v9332, %v9320
        %v9525 = vpack.c.b16 %v9333, %v9321
        %v9526 = vpack.c.b16 %v9334, %v9322
        %v9527 = vpack.c.b16 %v9335, %v9323
        %v9528 = vpack.c.b16 %v9336, %v9324
        %v9529 = vpack.c.b16 %v9337, %v9325
        %v9530 = vpack.c.b16 %v9338, %v9326
        %v9531 = vpack.c.b16 %v9339, %v9327
        %v9532 = vpack.c.b16 %v9340, %v9328
        %v9533 = vpack.c.b16 %v9341, %v9329
        %v9534 = vpack.c.b16 %v9342, %v9330
        %v9535 = vpack.c.b16 %v9355, %v9343
        %v9536 = vpack.c.b16 %v9356, %v9344
        %v9537 = vpack.c.b16 %v9357, %v9345
        %v9538 = vpack.c.b16 %v9358, %v9346
        %v9539 = vpack.c.b16 %v9359, %v9347
        %v9540 = vpack.c.b16 %v9360, %v9348
        %v9541 = vpack.c.b16 %v9361, %v9349
        %v9542 = vpack.c.b16 %v9362, %v9350
        %v9543 = vpack.c.b16 %v9363, %v9351
        %v9544 = vpack.c.b16 %v9364, %v9352
        %v9545 = vpack.c.b16 %v9365, %v9353
        %v9546 = vpack.c.b16 %v9366, %v9354
        %v9547 = vpack.c.b16 %v9379, %v9367
        %v9548 = vpack.c.b16 %v9380, %v9368
        %v9549 = vpack.c.b16 %v9381, %v9369
        %v9550 = vpack.c.b16 %v9382, %v9370
        %v9551 = vpack.c.b16 %v9383, %v9371
        %v9552 = vpack.c.b16 %v9384, %v9372
        %v9553 = vpack.c.b16 %v9385, %v9373
        %v9554 = vpack.c.b16 %v9386, %v9374
        %v9555 = vpack.c.b16 %v9387, %v9375
        %v9556 = vpack.c.b16 %v9388, %v9376
        %v9557 = vpack.c.b16 %v9389, %v9377
        %v9558 = vpack.c.b16 %v9390, %v9378
        %v9559 = vpack.c.b16 %v9403, %v9391
        %v9560 = vpack.c.b16 %v9404, %v9392
        %v9561 = vpack.c.b16 %v9405, %v9393
        %v9562 = vpack.c.b16 %v9406, %v9394
        %v9563 = vpack.c.b16 %v9407, %v9395
        %v9564 = vpack.c.b16 %v9408, %v9396
        %v9565 = vpack.c.b16 %v9409, %v9397
        %v9566 = vpack.c.b16 %v9410, %v9398
        %v9567 = vpack.c.b16 %v9411, %v9399
        %v9568 = vpack.c.b16 %v9412, %v9400
        %v9569 = vpack.c.b16 %v9413, %v9401
        %v9570 = vpack.c.b16 %v9414, %v9402
        %v9571 = vpack.c.b16 %v9427, %v9415
        %v9572 = vpack.c.b16 %v9428, %v9416
        %v9573 = vpack.c.b16 %v9429, %v9417
        %v9574 = vpack.c.b16 %v9430, %v9418
        %v9575 = vpack.c.b16 %v9431, %v9419
        %v9576 = vpack.c.b16 %v9432, %v9420
        %v9577 = vpack.c.b16 %v9433, %v9421
        %v9578 = vpack.c.b16 %v9434, %v9422
        %v9579 = vpack.c.b16 %v9435, %v9423
        %v9580 = vpack.c.b16 %v9436, %v9424
        %v9581 = vpack.c.b16 %v9437, %v9425
        %v9582 = vpack.c.b16 %v9438, %v9426
        %v9583 = vpack.c.b16 %v9451, %v9439
        %v9584 = vpack.c.b16 %v9452, %v9440
        %v9585 = vpack.c.b16 %v9453, %v9441
        %v9586 = vpack.c.b16 %v9454, %v9442
        %v9587 = vpack.c.b16 %v9455, %v9443
        %v9588 = vpack.c.b16 %v9456, %v9444
        %v9589 = vpack.c.b16 %v9457, %v9445
        %v9590 = vpack.c.b16 %v9458, %v9446
        %v9591 = vpack.c.b16 %v9459, %v9447
        %v9592 = vpack.c.b16 %v9460, %v9448
        %v9593 = vpack.c.b16 %v9461, %v9449
        %v9594 = vpack.c.b16 %v9462, %v9450
        %v9595 = vpack.c.b16 %v9475, %v9463
        %v9596 = vpack.c.b16 %v9476, %v9464
        %v9597 = vpack.c.b16 %v9477, %v9465
        %v9598 = vpack.c.b16 %v9478, %v9466
        %v9599 = vpack.c.b16 %v9479, %v9467
        %v9600 = vpack.c.b16 %v9480, %v9468
        %v9601 = vpack.c.b16 %v9481, %v9469
        %v9602 = vpack.c.b16 %v9482, %v9470
        %v9603 = vpack.c.b16 %v9483, %v9471
        %v9604 = vpack.c.b16 %v9484, %v9472
        %v9605 = vpack.c.b16 %v9485, %v9473
        %v9606 = vpack.c.b16 %v9486, %v9474
        %v9607 = vpack.c.b16 %v9499, %v9487
        %v9608 = vpack.c.b16 %v9500, %v9488
        %v9609 = vpack.c.b16 %v9501, %v9489
        %v9610 = vpack.c.b16 %v9502, %v9490
        %v9611 = vpack.c.b16 %v9503, %v9491
        %v9612 = vpack.c.b16 %v9504, %v9492
        %v9613 = vpack.c.b16 %v9505, %v9493
        %v9614 = vpack.c.b16 %v9506, %v9494
        %v9615 = vpack.c.b16 %v9507, %v9495
        %v9616 = vpack.c.b16 %v9508, %v9496
        %v9617 = vpack.c.b16 %v9509, %v9497
        %v9618 = vpack.c.b16 %v9510, %v9498
        %v9728 = vsel %vm5302, %v7481, 0
        %v9731 = vsel %vm5302, %v7483, 0
        %v9734 = vsel %vm5302, %v7485, 0
        %v9737 = vsel %vm5302, %v7487, 0
        %v9740 = vsel %vm5302, %v7489, 0
        %v9743 = vsel %vm5302, %v7491, 0
        %v9746 = vsel %vm5302, %v7493, 0
        %v9749 = vsel %vm5302, %v7495, 0
        %9751 = vmatprep.subr.bf16.mxu0 %v9596
        %9752 = vmatpush1.bf16.msra.mxu0 %v9595
        %9753 = vmatprep.subr.bf16.mxu0 %v9584
        %9754 = vmatpush1.bf16.msra.mxu0 %v9583
        %9755 = vmatprep.subr.bf16.mxu0 %v9572
        %9756 = vmatpush1.bf16.msra.mxu0 %v9571
        %9757 = vmatprep.subr.bf16.mxu0 %v9560
        %9758 = vmatpush1.bf16.msra.mxu0 %v9559
        %9759 = vmatprep.subr.bf16.mxu0 %v9548
        %9760 = vmatpush1.bf16.msra.mxu0 %v9547
        %9761 = vmatprep.subr.bf16.mxu0 %v9536
        %9762 = vmatpush1.bf16.msra.mxu0 %v9535
        %9763 = vmatprep.subr.bf16.mxu0 %v9524
        %9764 = vmatpush1.bf16.msra.mxu0 %v9523
        %9765 = vmatprep.subr.bf16.mxu0 %v9512
        %9766 = vmatpush1.bf16.msra.mxu0 %v9511
        %9767 = vmatprep.subr.bf16.mxu0 0
        %9768 = vmatpush2.bf16.msra.mxu0 0
        %9769 = vmatprep.subr.bf16.mxu0 0
        %9770 = vmatpush2.bf16.msra.mxu0 0
        %9771 = vmatprep.subr.bf16.mxu0 0
        %9772 = vmatpush2.bf16.msra.mxu0 0
        %9773 = vmatprep.subr.bf16.mxu0 0
        %9774 = vmatpush2.bf16.msra.mxu0 0
        %9775 = vmatprep.subr.bf16.mxu0 0
        %9776 = vmatpush2.bf16.msra.mxu0 0
        %9777 = vmatprep.subr.bf16.mxu0 0
        %9778 = vmatpush2.bf16.msra.mxu0 0
        %9779 = vmatprep.subr.bf16.mxu0 0
        %9780 = vmatpush2.bf16.msra.mxu0 0
        %9781 = vmatprep.subr.bf16.mxu0 %v9608
        %9782 = vmatpush2.bf16.msra.mxu0 %v9607
        %9783 = vmatprep.mubr.bf16.mxu0 %v9728
        %9784 = vmatmul.mubr.bf16.gmra.mxu0 %v7480
        %v9785 = vpop.f32.mrf.mxu0
        %v9786 = vadd.f32 %v8544, %v9785
        %v9787 = vpop.f32.mrf.mxu0
        %v9788 = vadd.f32 %v8546, %v9787
        %v9789 = vpop.f32.mrf.mxu0
        %v9790 = vadd.f32 %v8548, %v9789
        %v9791 = vpop.f32.mrf.mxu0
        %v9792 = vadd.f32 %v8550, %v9791
        %9793 = vmatprep.mubr.bf16.mxu0 %v9731
        %9794 = vmatmul.mubr.bf16.gmra.mxu0 %v7482
        %v9795 = vpop.f32.mrf.mxu0
        %v9796 = vadd.f32 %v8554, %v9795
        %v9797 = vpop.f32.mrf.mxu0
        %v9798 = vadd.f32 %v8556, %v9797
        %v9799 = vpop.f32.mrf.mxu0
        %v9800 = vadd.f32 %v8558, %v9799
        %v9801 = vpop.f32.mrf.mxu0
        %v9802 = vadd.f32 %v8560, %v9801
        %9803 = vmatprep.mubr.bf16.mxu0 %v9734
        %9804 = vmatmul.mubr.bf16.gmra.mxu0 %v7484
        %v9805 = vpop.f32.mrf.mxu0
        %v9806 = vadd.f32 %v8564, %v9805
        %v9807 = vpop.f32.mrf.mxu0
        %v9808 = vadd.f32 %v8566, %v9807
        %v9809 = vpop.f32.mrf.mxu0
        %v9810 = vadd.f32 %v8568, %v9809
        %v9811 = vpop.f32.mrf.mxu0
        %v9812 = vadd.f32 %v8570, %v9811
        %9813 = vmatprep.mubr.bf16.mxu0 %v9737
        %9814 = vmatmul.mubr.bf16.gmra.mxu0 %v7486
        %v9815 = vpop.f32.mrf.mxu0
        %v9816 = vadd.f32 %v8574, %v9815
        %v9817 = vpop.f32.mrf.mxu0
        %v9818 = vadd.f32 %v8576, %v9817
        %v9819 = vpop.f32.mrf.mxu0
        %v9820 = vadd.f32 %v8578, %v9819
        %v9821 = vpop.f32.mrf.mxu0
        %v9822 = vadd.f32 %v8580, %v9821
        %9823 = vmatprep.mubr.bf16.mxu0 %v9740
        %9824 = vmatmul.mubr.bf16.gmra.mxu0 %v7488
        %v9825 = vpop.f32.mrf.mxu0
        %v9826 = vadd.f32 %v8584, %v9825
        %v9827 = vpop.f32.mrf.mxu0
        %v9828 = vadd.f32 %v8586, %v9827
        %v9829 = vpop.f32.mrf.mxu0
        %v9830 = vadd.f32 %v8588, %v9829
        %v9831 = vpop.f32.mrf.mxu0
        %v9832 = vadd.f32 %v8590, %v9831
        %9833 = vmatprep.mubr.bf16.mxu0 %v9743
        %9834 = vmatmul.mubr.bf16.gmra.mxu0 %v7490
        %v9835 = vpop.f32.mrf.mxu0
        %v9836 = vadd.f32 %v8594, %v9835
        %v9837 = vpop.f32.mrf.mxu0
        %v9838 = vadd.f32 %v8596, %v9837
        %v9839 = vpop.f32.mrf.mxu0
        %v9840 = vadd.f32 %v8598, %v9839
        %v9841 = vpop.f32.mrf.mxu0
        %v9842 = vadd.f32 %v8600, %v9841
        %9843 = vmatprep.mubr.bf16.mxu0 %v9746
        %9844 = vmatmul.mubr.bf16.gmra.mxu0 %v7492
        %v9845 = vpop.f32.mrf.mxu0
        %v9846 = vadd.f32 %v8604, %v9845
        %v9847 = vpop.f32.mrf.mxu0
        %v9848 = vadd.f32 %v8606, %v9847
        %v9849 = vpop.f32.mrf.mxu0
        %v9850 = vadd.f32 %v8608, %v9849
        %v9851 = vpop.f32.mrf.mxu0
        %v9852 = vadd.f32 %v8610, %v9851
        %9853 = vmatprep.mubr.bf16.mxu0 %v9749
        %9854 = vmatmul.mubr.bf16.gmra.mxu0 %v7494
        %v9855 = vpop.f32.mrf.mxu0
        %v9856 = vadd.f32 %v8614, %v9855
        %v9857 = vpop.f32.mrf.mxu0
        %v9858 = vadd.f32 %v8616, %v9857
        %v9859 = vpop.f32.mrf.mxu0
        %v9860 = vadd.f32 %v8618, %v9859
        %v9861 = vpop.f32.mrf.mxu0
        %v9862 = vadd.f32 %v8620, %v9861
        %9863 = vdwg.mxu0
        %9864 = vmatprep.subr.bf16.mxu0 %v9598
        %9865 = vmatpush1.bf16.msra.mxu0 %v9597
        %9866 = vmatprep.subr.bf16.mxu0 %v9586
        %9867 = vmatpush1.bf16.msra.mxu0 %v9585
        %9868 = vmatprep.subr.bf16.mxu0 %v9574
        %9869 = vmatpush1.bf16.msra.mxu0 %v9573
        %9870 = vmatprep.subr.bf16.mxu0 %v9562
        %9871 = vmatpush1.bf16.msra.mxu0 %v9561
        %9872 = vmatprep.subr.bf16.mxu0 %v9550
        %9873 = vmatpush1.bf16.msra.mxu0 %v9549
        %9874 = vmatprep.subr.bf16.mxu0 %v9538
        %9875 = vmatpush1.bf16.msra.mxu0 %v9537
        %9876 = vmatprep.subr.bf16.mxu0 %v9526
        %9877 = vmatpush1.bf16.msra.mxu0 %v9525
        %9878 = vmatprep.subr.bf16.mxu0 %v9514
        %9879 = vmatpush1.bf16.msra.mxu0 %v9513
        %9880 = vmatprep.subr.bf16.mxu0 0
        %9881 = vmatpush2.bf16.msra.mxu0 0
        %9882 = vmatprep.subr.bf16.mxu0 0
        %9883 = vmatpush2.bf16.msra.mxu0 0
        %9884 = vmatprep.subr.bf16.mxu0 0
        %9885 = vmatpush2.bf16.msra.mxu0 0
        %9886 = vmatprep.subr.bf16.mxu0 0
        %9887 = vmatpush2.bf16.msra.mxu0 0
        %9888 = vmatprep.subr.bf16.mxu0 0
        %9889 = vmatpush2.bf16.msra.mxu0 0
        %9890 = vmatprep.subr.bf16.mxu0 0
        %9891 = vmatpush2.bf16.msra.mxu0 0
        %9892 = vmatprep.subr.bf16.mxu0 0
        %9893 = vmatpush2.bf16.msra.mxu0 0
        %9894 = vmatprep.subr.bf16.mxu0 %v9610
        %9895 = vmatpush2.bf16.msra.mxu0 %v9609
        %9896 = vmatprep.mubr.bf16.mxu0 %v9728
        %9897 = vmatmul.mubr.bf16.gmra.mxu0 %v7480
        %v9898 = vpop.f32.mrf.mxu0
        %v9899 = vadd.f32 %v8657, %v9898
        %v9900 = vpop.f32.mrf.mxu0
        %v9901 = vadd.f32 %v8659, %v9900
        %v9902 = vpop.f32.mrf.mxu0
        %v9903 = vadd.f32 %v8661, %v9902
        %v9904 = vpop.f32.mrf.mxu0
        %v9905 = vadd.f32 %v8663, %v9904
        %9906 = vmatprep.mubr.bf16.mxu0 %v9731
        %9907 = vmatmul.mubr.bf16.gmra.mxu0 %v7482
        %v9908 = vpop.f32.mrf.mxu0
        %v9909 = vadd.f32 %v8667, %v9908
        %v9910 = vpop.f32.mrf.mxu0
        %v9911 = vadd.f32 %v8669, %v9910
        %v9912 = vpop.f32.mrf.mxu0
        %v9913 = vadd.f32 %v8671, %v9912
        %v9914 = vpop.f32.mrf.mxu0
        %v9915 = vadd.f32 %v8673, %v9914
        %9916 = vmatprep.mubr.bf16.mxu0 %v9734
        %9917 = vmatmul.mubr.bf16.gmra.mxu0 %v7484
        %v9918 = vpop.f32.mrf.mxu0
        %v9919 = vadd.f32 %v8677, %v9918
        %v9920 = vpop.f32.mrf.mxu0
        %v9921 = vadd.f32 %v8679, %v9920
        %v9922 = vpop.f32.mrf.mxu0
        %v9923 = vadd.f32 %v8681, %v9922
        %v9924 = vpop.f32.mrf.mxu0
        %v9925 = vadd.f32 %v8683, %v9924
        %9926 = vmatprep.mubr.bf16.mxu0 %v9737
        %9927 = vmatmul.mubr.bf16.gmra.mxu0 %v7486
        %v9928 = vpop.f32.mrf.mxu0
        %v9929 = vadd.f32 %v8687, %v9928
        %v9930 = vpop.f32.mrf.mxu0
        %v9931 = vadd.f32 %v8689, %v9930
        %v9932 = vpop.f32.mrf.mxu0
        %v9933 = vadd.f32 %v8691, %v9932
        %v9934 = vpop.f32.mrf.mxu0
        %v9935 = vadd.f32 %v8693, %v9934
        %9936 = vmatprep.mubr.bf16.mxu0 %v9740
        %9937 = vmatmul.mubr.bf16.gmra.mxu0 %v7488
        %v9938 = vpop.f32.mrf.mxu0
        %v9939 = vadd.f32 %v8697, %v9938
        %v9940 = vpop.f32.mrf.mxu0
        %v9941 = vadd.f32 %v8699, %v9940
        %v9942 = vpop.f32.mrf.mxu0
        %v9943 = vadd.f32 %v8701, %v9942
        %v9944 = vpop.f32.mrf.mxu0
        %v9945 = vadd.f32 %v8703, %v9944
        %9946 = vmatprep.mubr.bf16.mxu0 %v9743
        %9947 = vmatmul.mubr.bf16.gmra.mxu0 %v7490
        %v9948 = vpop.f32.mrf.mxu0
        %v9949 = vadd.f32 %v8707, %v9948
        %v9950 = vpop.f32.mrf.mxu0
        %v9951 = vadd.f32 %v8709, %v9950
        %v9952 = vpop.f32.mrf.mxu0
        %v9953 = vadd.f32 %v8711, %v9952
        %v9954 = vpop.f32.mrf.mxu0
        %v9955 = vadd.f32 %v8713, %v9954
        %9956 = vmatprep.mubr.bf16.mxu0 %v9746
        %9957 = vmatmul.mubr.bf16.gmra.mxu0 %v7492
        %v9958 = vpop.f32.mrf.mxu0
        %v9959 = vadd.f32 %v8717, %v9958
        %v9960 = vpop.f32.mrf.mxu0
        %v9961 = vadd.f32 %v8719, %v9960
        %v9962 = vpop.f32.mrf.mxu0
        %v9963 = vadd.f32 %v8721, %v9962
        %v9964 = vpop.f32.mrf.mxu0
        %v9965 = vadd.f32 %v8723, %v9964
        %9966 = vmatprep.mubr.bf16.mxu0 %v9749
        %9967 = vmatmul.mubr.bf16.gmra.mxu0 %v7494
        %v9968 = vpop.f32.mrf.mxu0
        %v9969 = vadd.f32 %v8727, %v9968
        %v9970 = vpop.f32.mrf.mxu0
        %v9971 = vadd.f32 %v8729, %v9970
        %v9972 = vpop.f32.mrf.mxu0
        %v9973 = vadd.f32 %v8731, %v9972
        %v9974 = vpop.f32.mrf.mxu0
        %v9975 = vadd.f32 %v8733, %v9974
        %9976 = vdwg.mxu0
        %9977 = vmatprep.subr.bf16.mxu0 %v9600
        %9978 = vmatpush1.bf16.msra.mxu0 %v9599
        %9979 = vmatprep.subr.bf16.mxu0 %v9588
        %9980 = vmatpush1.bf16.msra.mxu0 %v9587
        %9981 = vmatprep.subr.bf16.mxu0 %v9576
        %9982 = vmatpush1.bf16.msra.mxu0 %v9575
        %9983 = vmatprep.subr.bf16.mxu0 %v9564
        %9984 = vmatpush1.bf16.msra.mxu0 %v9563
        %9985 = vmatprep.subr.bf16.mxu0 %v9552
        %9986 = vmatpush1.bf16.msra.mxu0 %v9551
        %9987 = vmatprep.subr.bf16.mxu0 %v9540
        %9988 = vmatpush1.bf16.msra.mxu0 %v9539
        %9989 = vmatprep.subr.bf16.mxu0 %v9528
        %9990 = vmatpush1.bf16.msra.mxu0 %v9527
        %9991 = vmatprep.subr.bf16.mxu0 %v9516
        %9992 = vmatpush1.bf16.msra.mxu0 %v9515
        %9993 = vmatprep.subr.bf16.mxu0 0
        %9994 = vmatpush2.bf16.msra.mxu0 0
        %9995 = vmatprep.subr.bf16.mxu0 0
        %9996 = vmatpush2.bf16.msra.mxu0 0
        %9997 = vmatprep.subr.bf16.mxu0 0
        %9998 = vmatpush2.bf16.msra.mxu0 0
        %9999 = vmatprep.subr.bf16.mxu0 0
        %10000 = vmatpush2.bf16.msra.mxu0 0
        %10001 = vmatprep.subr.bf16.mxu0 0
        %10002 = vmatpush2.bf16.msra.mxu0 0
        %10003 = vmatprep.subr.bf16.mxu0 0
        %10004 = vmatpush2.bf16.msra.mxu0 0
        %10005 = vmatprep.subr.bf16.mxu0 0
        %10006 = vmatpush2.bf16.msra.mxu0 0
        %10007 = vmatprep.subr.bf16.mxu0 %v9612
        %10008 = vmatpush2.bf16.msra.mxu0 %v9611
        %10009 = vmatprep.mubr.bf16.mxu0 %v9728
        %10010 = vmatmul.mubr.bf16.gmra.mxu0 %v7480
        %v10011 = vpop.f32.mrf.mxu0
        %v10012 = vadd.f32 %v8770, %v10011
        %v10013 = vpop.f32.mrf.mxu0
        %v10014 = vadd.f32 %v8772, %v10013
        %v10015 = vpop.f32.mrf.mxu0
        %v10016 = vadd.f32 %v8774, %v10015
        %v10017 = vpop.f32.mrf.mxu0
        %v10018 = vadd.f32 %v8776, %v10017
        %10019 = vmatprep.mubr.bf16.mxu0 %v9731
        %10020 = vmatmul.mubr.bf16.gmra.mxu0 %v7482
        %v10021 = vpop.f32.mrf.mxu0
        %v10022 = vadd.f32 %v8780, %v10021
        %v10023 = vpop.f32.mrf.mxu0
        %v10024 = vadd.f32 %v8782, %v10023
        %v10025 = vpop.f32.mrf.mxu0
        %v10026 = vadd.f32 %v8784, %v10025
        %v10027 = vpop.f32.mrf.mxu0
        %v10028 = vadd.f32 %v8786, %v10027
        %10029 = vmatprep.mubr.bf16.mxu0 %v9734
        %10030 = vmatmul.mubr.bf16.gmra.mxu0 %v7484
        %v10031 = vpop.f32.mrf.mxu0
        %v10032 = vadd.f32 %v8790, %v10031
        %v10033 = vpop.f32.mrf.mxu0
        %v10034 = vadd.f32 %v8792, %v10033
        %v10035 = vpop.f32.mrf.mxu0
        %v10036 = vadd.f32 %v8794, %v10035
        %v10037 = vpop.f32.mrf.mxu0
        %v10038 = vadd.f32 %v8796, %v10037
        %10039 = vmatprep.mubr.bf16.mxu0 %v9737
        %10040 = vmatmul.mubr.bf16.gmra.mxu0 %v7486
        %v10041 = vpop.f32.mrf.mxu0
        %v10042 = vadd.f32 %v8800, %v10041
        %v10043 = vpop.f32.mrf.mxu0
        %v10044 = vadd.f32 %v8802, %v10043
        %v10045 = vpop.f32.mrf.mxu0
        %v10046 = vadd.f32 %v8804, %v10045
        %v10047 = vpop.f32.mrf.mxu0
        %v10048 = vadd.f32 %v8806, %v10047
        %10049 = vmatprep.mubr.bf16.mxu0 %v9740
        %10050 = vmatmul.mubr.bf16.gmra.mxu0 %v7488
        %v10051 = vpop.f32.mrf.mxu0
        %v10052 = vadd.f32 %v8810, %v10051
        %v10053 = vpop.f32.mrf.mxu0
        %v10054 = vadd.f32 %v8812, %v10053
        %v10055 = vpop.f32.mrf.mxu0
        %v10056 = vadd.f32 %v8814, %v10055
        %v10057 = vpop.f32.mrf.mxu0
        %v10058 = vadd.f32 %v8816, %v10057
        %10059 = vmatprep.mubr.bf16.mxu0 %v9743
        %10060 = vmatmul.mubr.bf16.gmra.mxu0 %v7490
        %v10061 = vpop.f32.mrf.mxu0
        %v10062 = vadd.f32 %v8820, %v10061
        %v10063 = vpop.f32.mrf.mxu0
        %v10064 = vadd.f32 %v8822, %v10063
        %v10065 = vpop.f32.mrf.mxu0
        %v10066 = vadd.f32 %v8824, %v10065
        %v10067 = vpop.f32.mrf.mxu0
        %v10068 = vadd.f32 %v8826, %v10067
        %10069 = vmatprep.mubr.bf16.mxu0 %v9746
        %10070 = vmatmul.mubr.bf16.gmra.mxu0 %v7492
        %v10071 = vpop.f32.mrf.mxu0
        %v10072 = vadd.f32 %v8830, %v10071
        %v10073 = vpop.f32.mrf.mxu0
        %v10074 = vadd.f32 %v8832, %v10073
        %v10075 = vpop.f32.mrf.mxu0
        %v10076 = vadd.f32 %v8834, %v10075
        %v10077 = vpop.f32.mrf.mxu0
        %v10078 = vadd.f32 %v8836, %v10077
        %10079 = vmatprep.mubr.bf16.mxu0 %v9749
        %10080 = vmatmul.mubr.bf16.gmra.mxu0 %v7494
        %v10081 = vpop.f32.mrf.mxu0
        %v10082 = vadd.f32 %v8840, %v10081
        %v10083 = vpop.f32.mrf.mxu0
        %v10084 = vadd.f32 %v8842, %v10083
        %v10085 = vpop.f32.mrf.mxu0
        %v10086 = vadd.f32 %v8844, %v10085
        %v10087 = vpop.f32.mrf.mxu0
        %v10088 = vadd.f32 %v8846, %v10087
        %10089 = vdwg.mxu0
        %10090 = vmatprep.subr.bf16.mxu0 %v9602
        %10091 = vmatpush1.bf16.msra.mxu0 %v9601
        %10092 = vmatprep.subr.bf16.mxu0 %v9590
        %10093 = vmatpush1.bf16.msra.mxu0 %v9589
        %10094 = vmatprep.subr.bf16.mxu0 %v9578
        %10095 = vmatpush1.bf16.msra.mxu0 %v9577
        %10096 = vmatprep.subr.bf16.mxu0 %v9566
        %10097 = vmatpush1.bf16.msra.mxu0 %v9565
        %10098 = vmatprep.subr.bf16.mxu0 %v9554
        %10099 = vmatpush1.bf16.msra.mxu0 %v9553
        %10100 = vmatprep.subr.bf16.mxu0 %v9542
        %10101 = vmatpush1.bf16.msra.mxu0 %v9541
        %10102 = vmatprep.subr.bf16.mxu0 %v9530
        %10103 = vmatpush1.bf16.msra.mxu0 %v9529
        %10104 = vmatprep.subr.bf16.mxu0 %v9518
        %10105 = vmatpush1.bf16.msra.mxu0 %v9517
        %10106 = vmatprep.subr.bf16.mxu0 0
        %10107 = vmatpush2.bf16.msra.mxu0 0
        %10108 = vmatprep.subr.bf16.mxu0 0
        %10109 = vmatpush2.bf16.msra.mxu0 0
        %10110 = vmatprep.subr.bf16.mxu0 0
        %10111 = vmatpush2.bf16.msra.mxu0 0
        %10112 = vmatprep.subr.bf16.mxu0 0
        %10113 = vmatpush2.bf16.msra.mxu0 0
        %10114 = vmatprep.subr.bf16.mxu0 0
        %10115 = vmatpush2.bf16.msra.mxu0 0
        %10116 = vmatprep.subr.bf16.mxu0 0
        %10117 = vmatpush2.bf16.msra.mxu0 0
        %10118 = vmatprep.subr.bf16.mxu0 0
        %10119 = vmatpush2.bf16.msra.mxu0 0
        %10120 = vmatprep.subr.bf16.mxu0 %v9614
        %10121 = vmatpush2.bf16.msra.mxu0 %v9613
        %10122 = vmatprep.mubr.bf16.mxu0 %v9728
        %10123 = vmatmul.mubr.bf16.gmra.mxu0 %v7480
        %v10124 = vpop.f32.mrf.mxu0
        %v10125 = vadd.f32 %v8883, %v10124
        %v10126 = vpop.f32.mrf.mxu0
        %v10127 = vadd.f32 %v8885, %v10126
        %v10128 = vpop.f32.mrf.mxu0
        %v10129 = vadd.f32 %v8887, %v10128
        %v10130 = vpop.f32.mrf.mxu0
        %v10131 = vadd.f32 %v8889, %v10130
        %10132 = vmatprep.mubr.bf16.mxu0 %v9731
        %10133 = vmatmul.mubr.bf16.gmra.mxu0 %v7482
        %v10134 = vpop.f32.mrf.mxu0
        %v10135 = vadd.f32 %v8893, %v10134
        %v10136 = vpop.f32.mrf.mxu0
        %v10137 = vadd.f32 %v8895, %v10136
        %v10138 = vpop.f32.mrf.mxu0
        %v10139 = vadd.f32 %v8897, %v10138
        %v10140 = vpop.f32.mrf.mxu0
        %v10141 = vadd.f32 %v8899, %v10140
        %10142 = vmatprep.mubr.bf16.mxu0 %v9734
        %10143 = vmatmul.mubr.bf16.gmra.mxu0 %v7484
        %v10144 = vpop.f32.mrf.mxu0
        %v10145 = vadd.f32 %v8903, %v10144
        %v10146 = vpop.f32.mrf.mxu0
        %v10147 = vadd.f32 %v8905, %v10146
        %v10148 = vpop.f32.mrf.mxu0
        %v10149 = vadd.f32 %v8907, %v10148
        %v10150 = vpop.f32.mrf.mxu0
        %v10151 = vadd.f32 %v8909, %v10150
        %10152 = vmatprep.mubr.bf16.mxu0 %v9737
        %10153 = vmatmul.mubr.bf16.gmra.mxu0 %v7486
        %v10154 = vpop.f32.mrf.mxu0
        %v10155 = vadd.f32 %v8913, %v10154
        %v10156 = vpop.f32.mrf.mxu0
        %v10157 = vadd.f32 %v8915, %v10156
        %v10158 = vpop.f32.mrf.mxu0
        %v10159 = vadd.f32 %v8917, %v10158
        %v10160 = vpop.f32.mrf.mxu0
        %v10161 = vadd.f32 %v8919, %v10160
        %10162 = vmatprep.mubr.bf16.mxu0 %v9740
        %10163 = vmatmul.mubr.bf16.gmra.mxu0 %v7488
        %v10164 = vpop.f32.mrf.mxu0
        %v10165 = vadd.f32 %v8923, %v10164
        %v10166 = vpop.f32.mrf.mxu0
        %v10167 = vadd.f32 %v8925, %v10166
        %v10168 = vpop.f32.mrf.mxu0
        %v10169 = vadd.f32 %v8927, %v10168
        %v10170 = vpop.f32.mrf.mxu0
        %v10171 = vadd.f32 %v8929, %v10170
        %10172 = vmatprep.mubr.bf16.mxu0 %v9743
        %10173 = vmatmul.mubr.bf16.gmra.mxu0 %v7490
        %v10174 = vpop.f32.mrf.mxu0
        %v10175 = vadd.f32 %v8933, %v10174
        %v10176 = vpop.f32.mrf.mxu0
        %v10177 = vadd.f32 %v8935, %v10176
        %v10178 = vpop.f32.mrf.mxu0
        %v10179 = vadd.f32 %v8937, %v10178
        %v10180 = vpop.f32.mrf.mxu0
        %v10181 = vadd.f32 %v8939, %v10180
        %10182 = vmatprep.mubr.bf16.mxu0 %v9746
        %10183 = vmatmul.mubr.bf16.gmra.mxu0 %v7492
        %v10184 = vpop.f32.mrf.mxu0
        %v10185 = vadd.f32 %v8943, %v10184
        %v10186 = vpop.f32.mrf.mxu0
        %v10187 = vadd.f32 %v8945, %v10186
        %v10188 = vpop.f32.mrf.mxu0
        %v10189 = vadd.f32 %v8947, %v10188
        %v10190 = vpop.f32.mrf.mxu0
        %v10191 = vadd.f32 %v8949, %v10190
        %10192 = vmatprep.mubr.bf16.mxu0 %v9749
        %10193 = vmatmul.mubr.bf16.gmra.mxu0 %v7494
        %v10194 = vpop.f32.mrf.mxu0
        %v10195 = vadd.f32 %v8953, %v10194
        %v10196 = vpop.f32.mrf.mxu0
        %v10197 = vadd.f32 %v8955, %v10196
        %v10198 = vpop.f32.mrf.mxu0
        %v10199 = vadd.f32 %v8957, %v10198
        %v10200 = vpop.f32.mrf.mxu0
        %v10201 = vadd.f32 %v8959, %v10200
        %10202 = vdwg.mxu0
        %10203 = vmatprep.subr.bf16.mxu0 %v9604
        %10204 = vmatpush1.bf16.msra.mxu0 %v9603
        %10205 = vmatprep.subr.bf16.mxu0 %v9592
        %10206 = vmatpush1.bf16.msra.mxu0 %v9591
        %10207 = vmatprep.subr.bf16.mxu0 %v9580
        %10208 = vmatpush1.bf16.msra.mxu0 %v9579
        %10209 = vmatprep.subr.bf16.mxu0 %v9568
        %10210 = vmatpush1.bf16.msra.mxu0 %v9567
        %10211 = vmatprep.subr.bf16.mxu0 %v9556
        %10212 = vmatpush1.bf16.msra.mxu0 %v9555
        %10213 = vmatprep.subr.bf16.mxu0 %v9544
        %10214 = vmatpush1.bf16.msra.mxu0 %v9543
        %10215 = vmatprep.subr.bf16.mxu0 %v9532
        %10216 = vmatpush1.bf16.msra.mxu0 %v9531
        %10217 = vmatprep.subr.bf16.mxu0 %v9520
        %10218 = vmatpush1.bf16.msra.mxu0 %v9519
        %10219 = vmatprep.subr.bf16.mxu0 0
        %10220 = vmatpush2.bf16.msra.mxu0 0
        %10221 = vmatprep.subr.bf16.mxu0 0
        %10222 = vmatpush2.bf16.msra.mxu0 0
        %10223 = vmatprep.subr.bf16.mxu0 0
        %10224 = vmatpush2.bf16.msra.mxu0 0
        %10225 = vmatprep.subr.bf16.mxu0 0
        %10226 = vmatpush2.bf16.msra.mxu0 0
        %10227 = vmatprep.subr.bf16.mxu0 0
        %10228 = vmatpush2.bf16.msra.mxu0 0
        %10229 = vmatprep.subr.bf16.mxu0 0
        %10230 = vmatpush2.bf16.msra.mxu0 0
        %10231 = vmatprep.subr.bf16.mxu0 0
        %10232 = vmatpush2.bf16.msra.mxu0 0
        %10233 = vmatprep.subr.bf16.mxu0 %v9616
        %10234 = vmatpush2.bf16.msra.mxu0 %v9615
        %10235 = vmatprep.mubr.bf16.mxu0 %v9728
        %10236 = vmatmul.mubr.bf16.gmra.mxu0 %v7480
        %v10237 = vpop.f32.mrf.mxu0
        %v10238 = vadd.f32 %v8996, %v10237
        %v10239 = vpop.f32.mrf.mxu0
        %v10240 = vadd.f32 %v8998, %v10239
        %v10241 = vpop.f32.mrf.mxu0
        %v10242 = vadd.f32 %v9000, %v10241
        %v10243 = vpop.f32.mrf.mxu0
        %v10244 = vadd.f32 %v9002, %v10243
        %10245 = vmatprep.mubr.bf16.mxu0 %v9731
        %10246 = vmatmul.mubr.bf16.gmra.mxu0 %v7482
        %v10247 = vpop.f32.mrf.mxu0
        %v10248 = vadd.f32 %v9006, %v10247
        %v10249 = vpop.f32.mrf.mxu0
        %v10250 = vadd.f32 %v9008, %v10249
        %v10251 = vpop.f32.mrf.mxu0
        %v10252 = vadd.f32 %v9010, %v10251
        %v10253 = vpop.f32.mrf.mxu0
        %v10254 = vadd.f32 %v9012, %v10253
        %10255 = vmatprep.mubr.bf16.mxu0 %v9734
        %10256 = vmatmul.mubr.bf16.gmra.mxu0 %v7484
        %v10257 = vpop.f32.mrf.mxu0
        %v10258 = vadd.f32 %v9016, %v10257
        %v10259 = vpop.f32.mrf.mxu0
        %v10260 = vadd.f32 %v9018, %v10259
        %v10261 = vpop.f32.mrf.mxu0
        %v10262 = vadd.f32 %v9020, %v10261
        %v10263 = vpop.f32.mrf.mxu0
        %v10264 = vadd.f32 %v9022, %v10263
        %10265 = vmatprep.mubr.bf16.mxu0 %v9737
        %10266 = vmatmul.mubr.bf16.gmra.mxu0 %v7486
        %v10267 = vpop.f32.mrf.mxu0
        %v10268 = vadd.f32 %v9026, %v10267
        %v10269 = vpop.f32.mrf.mxu0
        %v10270 = vadd.f32 %v9028, %v10269
        %v10271 = vpop.f32.mrf.mxu0
        %v10272 = vadd.f32 %v9030, %v10271
        %v10273 = vpop.f32.mrf.mxu0
        %v10274 = vadd.f32 %v9032, %v10273
        %10275 = vmatprep.mubr.bf16.mxu0 %v9740
        %10276 = vmatmul.mubr.bf16.gmra.mxu0 %v7488
        %v10277 = vpop.f32.mrf.mxu0
        %v10278 = vadd.f32 %v9036, %v10277
        %v10279 = vpop.f32.mrf.mxu0
        %v10280 = vadd.f32 %v9038, %v10279
        %v10281 = vpop.f32.mrf.mxu0
        %v10282 = vadd.f32 %v9040, %v10281
        %v10283 = vpop.f32.mrf.mxu0
        %v10284 = vadd.f32 %v9042, %v10283
        %10285 = vmatprep.mubr.bf16.mxu0 %v9743
        %10286 = vmatmul.mubr.bf16.gmra.mxu0 %v7490
        %v10287 = vpop.f32.mrf.mxu0
        %v10288 = vadd.f32 %v9046, %v10287
        %v10289 = vpop.f32.mrf.mxu0
        %v10290 = vadd.f32 %v9048, %v10289
        %v10291 = vpop.f32.mrf.mxu0
        %v10292 = vadd.f32 %v9050, %v10291
        %v10293 = vpop.f32.mrf.mxu0
        %v10294 = vadd.f32 %v9052, %v10293
        %10295 = vmatprep.mubr.bf16.mxu0 %v9746
        %10296 = vmatmul.mubr.bf16.gmra.mxu0 %v7492
        %v10297 = vpop.f32.mrf.mxu0
        %v10298 = vadd.f32 %v9056, %v10297
        %v10299 = vpop.f32.mrf.mxu0
        %v10300 = vadd.f32 %v9058, %v10299
        %v10301 = vpop.f32.mrf.mxu0
        %v10302 = vadd.f32 %v9060, %v10301
        %v10303 = vpop.f32.mrf.mxu0
        %v10304 = vadd.f32 %v9062, %v10303
        %10305 = vmatprep.mubr.bf16.mxu0 %v9749
        %10306 = vmatmul.mubr.bf16.gmra.mxu0 %v7494
        %v10307 = vpop.f32.mrf.mxu0
        %v10308 = vadd.f32 %v9066, %v10307
        %v10309 = vpop.f32.mrf.mxu0
        %v10310 = vadd.f32 %v9068, %v10309
        %v10311 = vpop.f32.mrf.mxu0
        %v10312 = vadd.f32 %v9070, %v10311
        %v10313 = vpop.f32.mrf.mxu0
        %v10314 = vadd.f32 %v9072, %v10313
        %10315 = vdwg.mxu0
        %10316 = vmatprep.subr.bf16.mxu0 %v9606
        %10317 = vmatpush1.bf16.msra.mxu0 %v9605
        %10318 = vmatprep.subr.bf16.mxu0 %v9594
        %10319 = vmatpush1.bf16.msra.mxu0 %v9593
        %10320 = vmatprep.subr.bf16.mxu0 %v9582
        %10321 = vmatpush1.bf16.msra.mxu0 %v9581
        %10322 = vmatprep.subr.bf16.mxu0 %v9570
        %10323 = vmatpush1.bf16.msra.mxu0 %v9569
        %10324 = vmatprep.subr.bf16.mxu0 %v9558
        %10325 = vmatpush1.bf16.msra.mxu0 %v9557
        %10326 = vmatprep.subr.bf16.mxu0 %v9546
        %10327 = vmatpush1.bf16.msra.mxu0 %v9545
        %10328 = vmatprep.subr.bf16.mxu0 %v9534
        %10329 = vmatpush1.bf16.msra.mxu0 %v9533
        %10330 = vmatprep.subr.bf16.mxu0 %v9522
        %10331 = vmatpush1.bf16.msra.mxu0 %v9521
        %10332 = vmatprep.subr.bf16.mxu0 0
        %10333 = vmatpush2.bf16.msra.mxu0 0
        %10334 = vmatprep.subr.bf16.mxu0 0
        %10335 = vmatpush2.bf16.msra.mxu0 0
        %10336 = vmatprep.subr.bf16.mxu0 0
        %10337 = vmatpush2.bf16.msra.mxu0 0
        %10338 = vmatprep.subr.bf16.mxu0 0
        %10339 = vmatpush2.bf16.msra.mxu0 0
        %10340 = vmatprep.subr.bf16.mxu0 0
        %10341 = vmatpush2.bf16.msra.mxu0 0
        %10342 = vmatprep.subr.bf16.mxu0 0
        %10343 = vmatpush2.bf16.msra.mxu0 0
        %10344 = vmatprep.subr.bf16.mxu0 0
        %10345 = vmatpush2.bf16.msra.mxu0 0
        %10346 = vmatprep.subr.bf16.mxu0 %v9618
        %10347 = vmatpush2.bf16.msra.mxu0 %v9617
        %10348 = vmatprep.mubr.bf16.mxu0 %v9728
        %10349 = vmatmul.mubr.bf16.gmra.mxu0 %v7480
        %v10350 = vpop.f32.mrf.mxu0
        %v10351 = vadd.f32 %v9109, %v10350
        %v10352 = vpop.f32.mrf.mxu0
        %v10353 = vadd.f32 %v9111, %v10352
        %v10354 = vpop.f32.mrf.mxu0
        %v10355 = vadd.f32 %v9113, %v10354
        %v10356 = vpop.f32.mrf.mxu0
        %v10357 = vadd.f32 %v9115, %v10356
        %10358 = vmatprep.mubr.bf16.mxu0 %v9731
        %10359 = vmatmul.mubr.bf16.gmra.mxu0 %v7482
        %v10360 = vpop.f32.mrf.mxu0
        %v10361 = vadd.f32 %v9119, %v10360
        %v10362 = vpop.f32.mrf.mxu0
        %v10363 = vadd.f32 %v9121, %v10362
        %v10364 = vpop.f32.mrf.mxu0
        %v10365 = vadd.f32 %v9123, %v10364
        %v10366 = vpop.f32.mrf.mxu0
        %v10367 = vadd.f32 %v9125, %v10366
        %10368 = vmatprep.mubr.bf16.mxu0 %v9734
        %10369 = vmatmul.mubr.bf16.gmra.mxu0 %v7484
        %v10370 = vpop.f32.mrf.mxu0
        %v10371 = vadd.f32 %v9129, %v10370
        %v10372 = vpop.f32.mrf.mxu0
        %v10373 = vadd.f32 %v9131, %v10372
        %v10374 = vpop.f32.mrf.mxu0
        %v10375 = vadd.f32 %v9133, %v10374
        %v10376 = vpop.f32.mrf.mxu0
        %v10377 = vadd.f32 %v9135, %v10376
        %10378 = vmatprep.mubr.bf16.mxu0 %v9737
        %10379 = vmatmul.mubr.bf16.gmra.mxu0 %v7486
        %v10380 = vpop.f32.mrf.mxu0
        %v10381 = vadd.f32 %v9139, %v10380
        %v10382 = vpop.f32.mrf.mxu0
        %v10383 = vadd.f32 %v9141, %v10382
        %v10384 = vpop.f32.mrf.mxu0
        %v10385 = vadd.f32 %v9143, %v10384
        %v10386 = vpop.f32.mrf.mxu0
        %v10387 = vadd.f32 %v9145, %v10386
        %10388 = vmatprep.mubr.bf16.mxu0 %v9740
        %10389 = vmatmul.mubr.bf16.gmra.mxu0 %v7488
        %v10390 = vpop.f32.mrf.mxu0
        %v10391 = vadd.f32 %v9149, %v10390
        %v10392 = vpop.f32.mrf.mxu0
        %v10393 = vadd.f32 %v9151, %v10392
        %v10394 = vpop.f32.mrf.mxu0
        %v10395 = vadd.f32 %v9153, %v10394
        %v10396 = vpop.f32.mrf.mxu0
        %v10397 = vadd.f32 %v9155, %v10396
        %10398 = vmatprep.mubr.bf16.mxu0 %v9743
        %10399 = vmatmul.mubr.bf16.gmra.mxu0 %v7490
        %v10400 = vpop.f32.mrf.mxu0
        %v10401 = vadd.f32 %v9159, %v10400
        %v10402 = vpop.f32.mrf.mxu0
        %v10403 = vadd.f32 %v9161, %v10402
        %v10404 = vpop.f32.mrf.mxu0
        %v10405 = vadd.f32 %v9163, %v10404
        %v10406 = vpop.f32.mrf.mxu0
        %v10407 = vadd.f32 %v9165, %v10406
        %10408 = vmatprep.mubr.bf16.mxu0 %v9746
        %10409 = vmatmul.mubr.bf16.gmra.mxu0 %v7492
        %v10410 = vpop.f32.mrf.mxu0
        %v10411 = vadd.f32 %v9169, %v10410
        %v10412 = vpop.f32.mrf.mxu0
        %v10413 = vadd.f32 %v9171, %v10412
        %v10414 = vpop.f32.mrf.mxu0
        %v10415 = vadd.f32 %v9173, %v10414
        %v10416 = vpop.f32.mrf.mxu0
        %v10417 = vadd.f32 %v9175, %v10416
        %10418 = vmatprep.mubr.bf16.mxu0 %v9749
        %10419 = vmatmul.mubr.bf16.gmra.mxu0 %v7494
        %v10420 = vpop.f32.mrf.mxu0
        %v10421 = vadd.f32 %v9179, %v10420
        %v10422 = vpop.f32.mrf.mxu0
        %v10423 = vadd.f32 %v9181, %v10422
        %v10424 = vpop.f32.mrf.mxu0
        %v10425 = vadd.f32 %v9183, %v10424
        %v10426 = vpop.f32.mrf.mxu0
        %v10427 = vadd.f32 %v9185, %v10426
        %10428 = vdwg.mxu0
        %v10429 = vld [vmem:[#allocation13] sm:$0xff]
        %v10430 = vld [vmem:[#allocation13 + $0x8] sm:$0xf]
        %v10433 = vlaneseq
        %v10434 = vshrl.u32 %v10433, 7
        %v10435 = vsub.s32 0, %v10434
        %v10436 = vrot.slane %v10429, %v10435
        %v10437 = vlaneseq
        %v10438 = vshrl.u32 %v10437, 7
        %v10439 = vsub.s32 1, %v10438
        %v10440 = vrot.slane %v10429, %v10439
        %v10441 = vlaneseq
        %v10442 = vshrl.u32 %v10441, 7
        %v10443 = vsub.s32 2, %v10442
        %v10444 = vrot.slane %v10429, %v10443
        %v10445 = vlaneseq
        %v10446 = vshrl.u32 %v10445, 7
        %v10447 = vsub.s32 3, %v10446
        %v10448 = vrot.slane %v10429, %v10447
        %v10449 = vlaneseq
        %v10450 = vshrl.u32 %v10449, 7
        %v10451 = vsub.s32 4, %v10450
        %v10452 = vrot.slane %v10429, %v10451
        %v10453 = vlaneseq
        %v10454 = vshrl.u32 %v10453, 7
        %v10455 = vsub.s32 5, %v10454
        %v10456 = vrot.slane %v10429, %v10455
        %v10457 = vlaneseq
        %v10458 = vshrl.u32 %v10457, 7
        %v10459 = vsub.s32 6, %v10458
        %v10460 = vrot.slane %v10429, %v10459
        %v10461 = vlaneseq
        %v10462 = vshrl.u32 %v10461, 7
        %v10463 = vsub.s32 7, %v10462
        %v10464 = vrot.slane %v10429, %v10463
        %v10465 = vlaneseq
        %v10466 = vshrl.u32 %v10465, 7
        %v10467 = vsub.s32 0, %v10466
        %v10468 = vrot.slane %v10430, %v10467
        %v10469 = vlaneseq
        %v10470 = vshrl.u32 %v10469, 7
        %v10471 = vsub.s32 1, %v10470
        %v10472 = vrot.slane %v10430, %v10471
        %v10473 = vlaneseq
        %v10474 = vshrl.u32 %v10473, 7
        %v10475 = vsub.s32 2, %v10474
        %v10476 = vrot.slane %v10430, %v10475
        %v10477 = vlaneseq
        %v10478 = vshrl.u32 %v10477, 7
        %v10479 = vsub.s32 3, %v10478
        %v10480 = vrot.slane %v10430, %v10479
        %v10493 = vadd.f32 %v9786, %v10436
        %v10494 = vadd.f32 %v9788, %v10440
        %v10495 = vadd.f32 %v9899, %v10444
        %v10496 = vadd.f32 %v9901, %v10448
        %v10497 = vadd.f32 %v10012, %v10452
        %v10498 = vadd.f32 %v10014, %v10456
        %v10499 = vadd.f32 %v10125, %v10460
        %v10500 = vadd.f32 %v10127, %v10464
        %v10501 = vadd.f32 %v10238, %v10468
        %v10502 = vadd.f32 %v10240, %v10472
        %v10503 = vadd.f32 %v10351, %v10476
        %v10504 = vadd.f32 %v10353, %v10480
        %v10505 = vadd.f32 %v9790, %v10436
        %v10506 = vadd.f32 %v9792, %v10440
        %v10507 = vadd.f32 %v9903, %v10444
        %v10508 = vadd.f32 %v9905, %v10448
        %v10509 = vadd.f32 %v10016, %v10452
        %v10510 = vadd.f32 %v10018, %v10456
        %v10511 = vadd.f32 %v10129, %v10460
        %v10512 = vadd.f32 %v10131, %v10464
        %v10513 = vadd.f32 %v10242, %v10468
        %v10514 = vadd.f32 %v10244, %v10472
        %v10515 = vadd.f32 %v10355, %v10476
        %v10516 = vadd.f32 %v10357, %v10480
        %v10517 = vadd.f32 %v9796, %v10436
        %v10518 = vadd.f32 %v9798, %v10440
        %v10519 = vadd.f32 %v9909, %v10444
        %v10520 = vadd.f32 %v9911, %v10448
        %v10521 = vadd.f32 %v10022, %v10452
        %v10522 = vadd.f32 %v10024, %v10456
        %v10523 = vadd.f32 %v10135, %v10460
        %v10524 = vadd.f32 %v10137, %v10464
        %v10525 = vadd.f32 %v10248, %v10468
        %v10526 = vadd.f32 %v10250, %v10472
        %v10527 = vadd.f32 %v10361, %v10476
        %v10528 = vadd.f32 %v10363, %v10480
        %v10529 = vadd.f32 %v9800, %v10436
        %v10530 = vadd.f32 %v9802, %v10440
        %v10531 = vadd.f32 %v9913, %v10444
        %v10532 = vadd.f32 %v9915, %v10448
        %v10533 = vadd.f32 %v10026, %v10452
        %v10534 = vadd.f32 %v10028, %v10456
        %v10535 = vadd.f32 %v10139, %v10460
        %v10536 = vadd.f32 %v10141, %v10464
        %v10537 = vadd.f32 %v10252, %v10468
        %v10538 = vadd.f32 %v10254, %v10472
        %v10539 = vadd.f32 %v10365, %v10476
        %v10540 = vadd.f32 %v10367, %v10480
        %v10541 = vadd.f32 %v9806, %v10436
        %v10542 = vadd.f32 %v9808, %v10440
        %v10543 = vadd.f32 %v9919, %v10444
        %v10544 = vadd.f32 %v9921, %v10448
        %v10545 = vadd.f32 %v10032, %v10452
        %v10546 = vadd.f32 %v10034, %v10456
        %v10547 = vadd.f32 %v10145, %v10460
        %v10548 = vadd.f32 %v10147, %v10464
        %v10549 = vadd.f32 %v10258, %v10468
        %v10550 = vadd.f32 %v10260, %v10472
        %v10551 = vadd.f32 %v10371, %v10476
        %v10552 = vadd.f32 %v10373, %v10480
        %v10553 = vadd.f32 %v9810, %v10436
        %v10554 = vadd.f32 %v9812, %v10440
        %v10555 = vadd.f32 %v9923, %v10444
        %v10556 = vadd.f32 %v9925, %v10448
        %v10557 = vadd.f32 %v10036, %v10452
        %v10558 = vadd.f32 %v10038, %v10456
        %v10559 = vadd.f32 %v10149, %v10460
        %v10560 = vadd.f32 %v10151, %v10464
        %v10561 = vadd.f32 %v10262, %v10468
        %v10562 = vadd.f32 %v10264, %v10472
        %v10563 = vadd.f32 %v10375, %v10476
        %v10564 = vadd.f32 %v10377, %v10480
        %v10565 = vadd.f32 %v9816, %v10436
        %v10566 = vadd.f32 %v9818, %v10440
        %v10567 = vadd.f32 %v9929, %v10444
        %v10568 = vadd.f32 %v9931, %v10448
        %v10569 = vadd.f32 %v10042, %v10452
        %v10570 = vadd.f32 %v10044, %v10456
        %v10571 = vadd.f32 %v10155, %v10460
        %v10572 = vadd.f32 %v10157, %v10464
        %v10573 = vadd.f32 %v10268, %v10468
        %v10574 = vadd.f32 %v10270, %v10472
        %v10575 = vadd.f32 %v10381, %v10476
        %v10576 = vadd.f32 %v10383, %v10480
        %v10577 = vadd.f32 %v9820, %v10436
        %v10578 = vadd.f32 %v9822, %v10440
        %v10579 = vadd.f32 %v9933, %v10444
        %v10580 = vadd.f32 %v9935, %v10448
        %v10581 = vadd.f32 %v10046, %v10452
        %v10582 = vadd.f32 %v10048, %v10456
        %v10583 = vadd.f32 %v10159, %v10460
        %v10584 = vadd.f32 %v10161, %v10464
        %v10585 = vadd.f32 %v10272, %v10468
        %v10586 = vadd.f32 %v10274, %v10472
        %v10587 = vadd.f32 %v10385, %v10476
        %v10588 = vadd.f32 %v10387, %v10480
        %v10589 = vadd.f32 %v9826, %v10436
        %v10590 = vadd.f32 %v9828, %v10440
        %v10591 = vadd.f32 %v9939, %v10444
        %v10592 = vadd.f32 %v9941, %v10448
        %v10593 = vadd.f32 %v10052, %v10452
        %v10594 = vadd.f32 %v10054, %v10456
        %v10595 = vadd.f32 %v10165, %v10460
        %v10596 = vadd.f32 %v10167, %v10464
        %v10597 = vadd.f32 %v10278, %v10468
        %v10598 = vadd.f32 %v10280, %v10472
        %v10599 = vadd.f32 %v10391, %v10476
        %v10600 = vadd.f32 %v10393, %v10480
        %v10601 = vadd.f32 %v9830, %v10436
        %v10602 = vadd.f32 %v9832, %v10440
        %v10603 = vadd.f32 %v9943, %v10444
        %v10604 = vadd.f32 %v9945, %v10448
        %v10605 = vadd.f32 %v10056, %v10452
        %v10606 = vadd.f32 %v10058, %v10456
        %v10607 = vadd.f32 %v10169, %v10460
        %v10608 = vadd.f32 %v10171, %v10464
        %v10609 = vadd.f32 %v10282, %v10468
        %v10610 = vadd.f32 %v10284, %v10472
        %v10611 = vadd.f32 %v10395, %v10476
        %v10612 = vadd.f32 %v10397, %v10480
        %v10613 = vadd.f32 %v9836, %v10436
        %v10614 = vadd.f32 %v9838, %v10440
        %v10615 = vadd.f32 %v9949, %v10444
        %v10616 = vadd.f32 %v9951, %v10448
        %v10617 = vadd.f32 %v10062, %v10452
        %v10618 = vadd.f32 %v10064, %v10456
        %v10619 = vadd.f32 %v10175, %v10460
        %v10620 = vadd.f32 %v10177, %v10464
        %v10621 = vadd.f32 %v10288, %v10468
        %v10622 = vadd.f32 %v10290, %v10472
        %v10623 = vadd.f32 %v10401, %v10476
        %v10624 = vadd.f32 %v10403, %v10480
        %v10625 = vadd.f32 %v9840, %v10436
        %v10626 = vadd.f32 %v9842, %v10440
        %v10627 = vadd.f32 %v9953, %v10444
        %v10628 = vadd.f32 %v9955, %v10448
        %v10629 = vadd.f32 %v10066, %v10452
        %v10630 = vadd.f32 %v10068, %v10456
        %v10631 = vadd.f32 %v10179, %v10460
        %v10632 = vadd.f32 %v10181, %v10464
        %v10633 = vadd.f32 %v10292, %v10468
        %v10634 = vadd.f32 %v10294, %v10472
        %v10635 = vadd.f32 %v10405, %v10476
        %v10636 = vadd.f32 %v10407, %v10480
        %v10637 = vadd.f32 %v9846, %v10436
        %v10638 = vadd.f32 %v9848, %v10440
        %v10639 = vadd.f32 %v9959, %v10444
        %v10640 = vadd.f32 %v9961, %v10448
        %v10641 = vadd.f32 %v10072, %v10452
        %v10642 = vadd.f32 %v10074, %v10456
        %v10643 = vadd.f32 %v10185, %v10460
        %v10644 = vadd.f32 %v10187, %v10464
        %v10645 = vadd.f32 %v10298, %v10468
        %v10646 = vadd.f32 %v10300, %v10472
        %v10647 = vadd.f32 %v10411, %v10476
        %v10648 = vadd.f32 %v10413, %v10480
        %v10649 = vadd.f32 %v9850, %v10436
        %v10650 = vadd.f32 %v9852, %v10440
        %v10651 = vadd.f32 %v9963, %v10444
        %v10652 = vadd.f32 %v9965, %v10448
        %v10653 = vadd.f32 %v10076, %v10452
        %v10654 = vadd.f32 %v10078, %v10456
        %v10655 = vadd.f32 %v10189, %v10460
        %v10656 = vadd.f32 %v10191, %v10464
        %v10657 = vadd.f32 %v10302, %v10468
        %v10658 = vadd.f32 %v10304, %v10472
        %v10659 = vadd.f32 %v10415, %v10476
        %v10660 = vadd.f32 %v10417, %v10480
        %v10661 = vadd.f32 %v9856, %v10436
        %v10662 = vadd.f32 %v9858, %v10440
        %v10663 = vadd.f32 %v9969, %v10444
        %v10664 = vadd.f32 %v9971, %v10448
        %v10665 = vadd.f32 %v10082, %v10452
        %v10666 = vadd.f32 %v10084, %v10456
        %v10667 = vadd.f32 %v10195, %v10460
        %v10668 = vadd.f32 %v10197, %v10464
        %v10669 = vadd.f32 %v10308, %v10468
        %v10670 = vadd.f32 %v10310, %v10472
        %v10671 = vadd.f32 %v10421, %v10476
        %v10672 = vadd.f32 %v10423, %v10480
        %v10673 = vadd.f32 %v9860, %v10436
        %v10674 = vadd.f32 %v9862, %v10440
        %v10675 = vadd.f32 %v9973, %v10444
        %v10676 = vadd.f32 %v9975, %v10448
        %v10677 = vadd.f32 %v10086, %v10452
        %v10678 = vadd.f32 %v10088, %v10456
        %v10679 = vadd.f32 %v10199, %v10460
        %v10680 = vadd.f32 %v10201, %v10464
        %v10681 = vadd.f32 %v10312, %v10468
        %v10682 = vadd.f32 %v10314, %v10472
        %v10683 = vadd.f32 %v10425, %v10476
        %v10684 = vadd.f32 %v10427, %v10480
        %v10685 = vmul.f32 %v10493, 0.01
        %v10686 = vmul.f32 %v10494, 0.01
        %v10687 = vmul.f32 %v10495, 0.01
        %v10688 = vmul.f32 %v10496, 0.01
        %v10689 = vmul.f32 %v10497, 0.01
        %v10690 = vmul.f32 %v10498, 0.01
        %v10691 = vmul.f32 %v10499, 0.01
        %v10692 = vmul.f32 %v10500, 0.01
        %v10693 = vmul.f32 %v10501, 0.01
        %v10694 = vmul.f32 %v10502, 0.01
        %v10695 = vmul.f32 %v10503, 0.01
        %v10696 = vmul.f32 %v10504, 0.01
        %v10697 = vmul.f32 %v10505, 0.01
        %v10698 = vmul.f32 %v10506, 0.01
        %v10699 = vmul.f32 %v10507, 0.01
        %v10700 = vmul.f32 %v10508, 0.01
        %v10701 = vmul.f32 %v10509, 0.01
        %v10702 = vmul.f32 %v10510, 0.01
        %v10703 = vmul.f32 %v10511, 0.01
        %v10704 = vmul.f32 %v10512, 0.01
        %v10705 = vmul.f32 %v10513, 0.01
        %v10706 = vmul.f32 %v10514, 0.01
        %v10707 = vmul.f32 %v10515, 0.01
        %v10708 = vmul.f32 %v10516, 0.01
        %v10709 = vmul.f32 %v10517, 0.01
        %v10710 = vmul.f32 %v10518, 0.01
        %v10711 = vmul.f32 %v10519, 0.01
        %v10712 = vmul.f32 %v10520, 0.01
        %v10713 = vmul.f32 %v10521, 0.01
        %v10714 = vmul.f32 %v10522, 0.01
        %v10715 = vmul.f32 %v10523, 0.01
        %v10716 = vmul.f32 %v10524, 0.01
        %v10717 = vmul.f32 %v10525, 0.01
        %v10718 = vmul.f32 %v10526, 0.01
        %v10719 = vmul.f32 %v10527, 0.01
        %v10720 = vmul.f32 %v10528, 0.01
        %v10721 = vmul.f32 %v10529, 0.01
        %v10722 = vmul.f32 %v10530, 0.01
        %v10723 = vmul.f32 %v10531, 0.01
        %v10724 = vmul.f32 %v10532, 0.01
        %v10725 = vmul.f32 %v10533, 0.01
        %v10726 = vmul.f32 %v10534, 0.01
        %v10727 = vmul.f32 %v10535, 0.01
        %v10728 = vmul.f32 %v10536, 0.01
        %v10729 = vmul.f32 %v10537, 0.01
        %v10730 = vmul.f32 %v10538, 0.01
        %v10731 = vmul.f32 %v10539, 0.01
        %v10732 = vmul.f32 %v10540, 0.01
        %v10733 = vmul.f32 %v10541, 0.01
        %v10734 = vmul.f32 %v10542, 0.01
        %v10735 = vmul.f32 %v10543, 0.01
        %v10736 = vmul.f32 %v10544, 0.01
        %v10737 = vmul.f32 %v10545, 0.01
        %v10738 = vmul.f32 %v10546, 0.01
        %v10739 = vmul.f32 %v10547, 0.01
        %v10740 = vmul.f32 %v10548, 0.01
        %v10741 = vmul.f32 %v10549, 0.01
        %v10742 = vmul.f32 %v10550, 0.01
        %v10743 = vmul.f32 %v10551, 0.01
        %v10744 = vmul.f32 %v10552, 0.01
        %v10745 = vmul.f32 %v10553, 0.01
        %v10746 = vmul.f32 %v10554, 0.01
        %v10747 = vmul.f32 %v10555, 0.01
        %v10748 = vmul.f32 %v10556, 0.01
        %v10749 = vmul.f32 %v10557, 0.01
        %v10750 = vmul.f32 %v10558, 0.01
        %v10751 = vmul.f32 %v10559, 0.01
        %v10752 = vmul.f32 %v10560, 0.01
        %v10753 = vmul.f32 %v10561, 0.01
        %v10754 = vmul.f32 %v10562, 0.01
        %v10755 = vmul.f32 %v10563, 0.01
        %v10756 = vmul.f32 %v10564, 0.01
        %v10757 = vmul.f32 %v10565, 0.01
        %v10758 = vmul.f32 %v10566, 0.01
        %v10759 = vmul.f32 %v10567, 0.01
        %v10760 = vmul.f32 %v10568, 0.01
        %v10761 = vmul.f32 %v10569, 0.01
        %v10762 = vmul.f32 %v10570, 0.01
        %v10763 = vmul.f32 %v10571, 0.01
        %v10764 = vmul.f32 %v10572, 0.01
        %v10765 = vmul.f32 %v10573, 0.01
        %v10766 = vmul.f32 %v10574, 0.01
        %v10767 = vmul.f32 %v10575, 0.01
        %v10768 = vmul.f32 %v10576, 0.01
        %v10769 = vmul.f32 %v10577, 0.01
        %v10770 = vmul.f32 %v10578, 0.01
        %v10771 = vmul.f32 %v10579, 0.01
        %v10772 = vmul.f32 %v10580, 0.01
        %v10773 = vmul.f32 %v10581, 0.01
        %v10774 = vmul.f32 %v10582, 0.01
        %v10775 = vmul.f32 %v10583, 0.01
        %v10776 = vmul.f32 %v10584, 0.01
        %v10777 = vmul.f32 %v10585, 0.01
        %v10778 = vmul.f32 %v10586, 0.01
        %v10779 = vmul.f32 %v10587, 0.01
        %v10780 = vmul.f32 %v10588, 0.01
        %v10781 = vmul.f32 %v10589, 0.01
        %v10782 = vmul.f32 %v10590, 0.01
        %v10783 = vmul.f32 %v10591, 0.01
        %v10784 = vmul.f32 %v10592, 0.01
        %v10785 = vmul.f32 %v10593, 0.01
        %v10786 = vmul.f32 %v10594, 0.01
        %v10787 = vmul.f32 %v10595, 0.01
        %v10788 = vmul.f32 %v10596, 0.01
        %v10789 = vmul.f32 %v10597, 0.01
        %v10790 = vmul.f32 %v10598, 0.01
        %v10791 = vmul.f32 %v10599, 0.01
        %v10792 = vmul.f32 %v10600, 0.01
        %v10793 = vmul.f32 %v10601, 0.01
        %v10794 = vmul.f32 %v10602, 0.01
        %v10795 = vmul.f32 %v10603, 0.01
        %v10796 = vmul.f32 %v10604, 0.01
        %v10797 = vmul.f32 %v10605, 0.01
        %v10798 = vmul.f32 %v10606, 0.01
        %v10799 = vmul.f32 %v10607, 0.01
        %v10800 = vmul.f32 %v10608, 0.01
        %v10801 = vmul.f32 %v10609, 0.01
        %v10802 = vmul.f32 %v10610, 0.01
        %v10803 = vmul.f32 %v10611, 0.01
        %v10804 = vmul.f32 %v10612, 0.01
        %v10805 = vmul.f32 %v10613, 0.01
        %v10806 = vmul.f32 %v10614, 0.01
        %v10807 = vmul.f32 %v10615, 0.01
        %v10808 = vmul.f32 %v10616, 0.01
        %v10809 = vmul.f32 %v10617, 0.01
        %v10810 = vmul.f32 %v10618, 0.01
        %v10811 = vmul.f32 %v10619, 0.01
        %v10812 = vmul.f32 %v10620, 0.01
        %v10813 = vmul.f32 %v10621, 0.01
        %v10814 = vmul.f32 %v10622, 0.01
        %v10815 = vmul.f32 %v10623, 0.01
        %v10816 = vmul.f32 %v10624, 0.01
        %v10817 = vmul.f32 %v10625, 0.01
        %v10818 = vmul.f32 %v10626, 0.01
        %v10819 = vmul.f32 %v10627, 0.01
        %v10820 = vmul.f32 %v10628, 0.01
        %v10821 = vmul.f32 %v10629, 0.01
        %v10822 = vmul.f32 %v10630, 0.01
        %v10823 = vmul.f32 %v10631, 0.01
        %v10824 = vmul.f32 %v10632, 0.01
        %v10825 = vmul.f32 %v10633, 0.01
        %v10826 = vmul.f32 %v10634, 0.01
        %v10827 = vmul.f32 %v10635, 0.01
        %v10828 = vmul.f32 %v10636, 0.01
        %v10829 = vmul.f32 %v10637, 0.01
        %v10830 = vmul.f32 %v10638, 0.01
        %v10831 = vmul.f32 %v10639, 0.01
        %v10832 = vmul.f32 %v10640, 0.01
        %v10833 = vmul.f32 %v10641, 0.01
        %v10834 = vmul.f32 %v10642, 0.01
        %v10835 = vmul.f32 %v10643, 0.01
        %v10836 = vmul.f32 %v10644, 0.01
        %v10837 = vmul.f32 %v10645, 0.01
        %v10838 = vmul.f32 %v10646, 0.01
        %v10839 = vmul.f32 %v10647, 0.01
        %v10840 = vmul.f32 %v10648, 0.01
        %v10841 = vmul.f32 %v10649, 0.01
        %v10842 = vmul.f32 %v10650, 0.01
        %v10843 = vmul.f32 %v10651, 0.01
        %v10844 = vmul.f32 %v10652, 0.01
        %v10845 = vmul.f32 %v10653, 0.01
        %v10846 = vmul.f32 %v10654, 0.01
        %v10847 = vmul.f32 %v10655, 0.01
        %v10848 = vmul.f32 %v10656, 0.01
        %v10849 = vmul.f32 %v10657, 0.01
        %v10850 = vmul.f32 %v10658, 0.01
        %v10851 = vmul.f32 %v10659, 0.01
        %v10852 = vmul.f32 %v10660, 0.01
        %v10853 = vmul.f32 %v10661, 0.01
        %v10854 = vmul.f32 %v10662, 0.01
        %v10855 = vmul.f32 %v10663, 0.01
        %v10856 = vmul.f32 %v10664, 0.01
        %v10857 = vmul.f32 %v10665, 0.01
        %v10858 = vmul.f32 %v10666, 0.01
        %v10859 = vmul.f32 %v10667, 0.01
        %v10860 = vmul.f32 %v10668, 0.01
        %v10861 = vmul.f32 %v10669, 0.01
        %v10862 = vmul.f32 %v10670, 0.01
        %v10863 = vmul.f32 %v10671, 0.01
        %v10864 = vmul.f32 %v10672, 0.01
        %v10865 = vmul.f32 %v10673, 0.01
        %v10866 = vmul.f32 %v10674, 0.01
        %v10867 = vmul.f32 %v10675, 0.01
        %v10868 = vmul.f32 %v10676, 0.01
        %v10869 = vmul.f32 %v10677, 0.01
        %v10870 = vmul.f32 %v10678, 0.01
        %v10871 = vmul.f32 %v10679, 0.01
        %v10872 = vmul.f32 %v10680, 0.01
        %v10873 = vmul.f32 %v10681, 0.01
        %v10874 = vmul.f32 %v10682, 0.01
        %v10875 = vmul.f32 %v10683, 0.01
        %v10876 = vmul.f32 %v10684, 0.01
        %v10877 = vadd.f32 %v399, %v10685
        %v10878 = vadd.f32 %v400, %v10686
        %v10879 = vadd.f32 %v401, %v10687
        %v10880 = vadd.f32 %v402, %v10688
        %v10881 = vadd.f32 %v403, %v10689
        %v10882 = vadd.f32 %v404, %v10690
        %v10883 = vadd.f32 %v405, %v10691
        %v10884 = vadd.f32 %v406, %v10692
        %v10885 = vadd.f32 %v407, %v10693
        %v10886 = vadd.f32 %v408, %v10694
        %v10887 = vadd.f32 %v409, %v10695
        %v10888 = vadd.f32 %v410, %v10696
        %v10889 = vadd.f32 %v411, %v10697
        %v10890 = vadd.f32 %v412, %v10698
        %v10891 = vadd.f32 %v413, %v10699
        %v10892 = vadd.f32 %v414, %v10700
        %v10893 = vadd.f32 %v415, %v10701
        %v10894 = vadd.f32 %v416, %v10702
        %v10895 = vadd.f32 %v417, %v10703
        %v10896 = vadd.f32 %v418, %v10704
        %v10897 = vadd.f32 %v419, %v10705
        %v10898 = vadd.f32 %v420, %v10706
        %v10899 = vadd.f32 %v421, %v10707
        %v10900 = vadd.f32 %v422, %v10708
        %v10901 = vadd.f32 %v423, %v10709
        %v10902 = vadd.f32 %v424, %v10710
        %v10903 = vadd.f32 %v425, %v10711
        %v10904 = vadd.f32 %v426, %v10712
        %v10905 = vadd.f32 %v427, %v10713
        %v10906 = vadd.f32 %v428, %v10714
        %v10907 = vadd.f32 %v429, %v10715
        %v10908 = vadd.f32 %v430, %v10716
        %v10909 = vadd.f32 %v431, %v10717
        %v10910 = vadd.f32 %v432, %v10718
        %v10911 = vadd.f32 %v433, %v10719
        %v10912 = vadd.f32 %v434, %v10720
        %v10913 = vadd.f32 %v435, %v10721
        %v10914 = vadd.f32 %v436, %v10722
        %v10915 = vadd.f32 %v437, %v10723
        %v10916 = vadd.f32 %v438, %v10724
        %v10917 = vadd.f32 %v439, %v10725
        %v10918 = vadd.f32 %v440, %v10726
        %v10919 = vadd.f32 %v441, %v10727
        %v10920 = vadd.f32 %v442, %v10728
        %v10921 = vadd.f32 %v443, %v10729
        %v10922 = vadd.f32 %v444, %v10730
        %v10923 = vadd.f32 %v445, %v10731
        %v10924 = vadd.f32 %v446, %v10732
        %v10925 = vadd.f32 %v447, %v10733
        %v10926 = vadd.f32 %v448, %v10734
        %v10927 = vadd.f32 %v449, %v10735
        %v10928 = vadd.f32 %v450, %v10736
        %v10929 = vadd.f32 %v451, %v10737
        %v10930 = vadd.f32 %v452, %v10738
        %v10931 = vadd.f32 %v453, %v10739
        %v10932 = vadd.f32 %v454, %v10740
        %v10933 = vadd.f32 %v455, %v10741
        %v10934 = vadd.f32 %v456, %v10742
        %v10935 = vadd.f32 %v457, %v10743
        %v10936 = vadd.f32 %v458, %v10744
        %v10937 = vadd.f32 %v459, %v10745
        %v10938 = vadd.f32 %v460, %v10746
        %v10939 = vadd.f32 %v461, %v10747
        %v10940 = vadd.f32 %v462, %v10748
        %v10941 = vadd.f32 %v463, %v10749
        %v10942 = vadd.f32 %v464, %v10750
        %v10943 = vadd.f32 %v465, %v10751
        %v10944 = vadd.f32 %v466, %v10752
        %v10945 = vadd.f32 %v467, %v10753
        %v10946 = vadd.f32 %v468, %v10754
        %v10947 = vadd.f32 %v469, %v10755
        %v10948 = vadd.f32 %v470, %v10756
        %v10949 = vadd.f32 %v471, %v10757
        %v10950 = vadd.f32 %v472, %v10758
        %v10951 = vadd.f32 %v473, %v10759
        %v10952 = vadd.f32 %v474, %v10760
        %v10953 = vadd.f32 %v475, %v10761
        %v10954 = vadd.f32 %v476, %v10762
        %v10955 = vadd.f32 %v477, %v10763
        %v10956 = vadd.f32 %v478, %v10764
        %v10957 = vadd.f32 %v479, %v10765
        %v10958 = vadd.f32 %v480, %v10766
        %v10959 = vadd.f32 %v481, %v10767
        %v10960 = vadd.f32 %v482, %v10768
        %v10961 = vadd.f32 %v483, %v10769
        %v10962 = vadd.f32 %v484, %v10770
        %v10963 = vadd.f32 %v485, %v10771
        %v10964 = vadd.f32 %v486, %v10772
        %v10965 = vadd.f32 %v487, %v10773
        %v10966 = vadd.f32 %v488, %v10774
        %v10967 = vadd.f32 %v489, %v10775
        %v10968 = vadd.f32 %v490, %v10776
        %v10969 = vadd.f32 %v491, %v10777
        %v10970 = vadd.f32 %v492, %v10778
        %v10971 = vadd.f32 %v493, %v10779
        %v10972 = vadd.f32 %v494, %v10780
        %v10973 = vadd.f32 %v495, %v10781
        %v10974 = vadd.f32 %v496, %v10782
        %v10975 = vadd.f32 %v497, %v10783
        %v10976 = vadd.f32 %v498, %v10784
        %v10977 = vadd.f32 %v499, %v10785
        %v10978 = vadd.f32 %v500, %v10786
        %v10979 = vadd.f32 %v501, %v10787
        %v10980 = vadd.f32 %v502, %v10788
        %v10981 = vadd.f32 %v503, %v10789
        %v10982 = vadd.f32 %v504, %v10790
        %v10983 = vadd.f32 %v505, %v10791
        %v10984 = vadd.f32 %v506, %v10792
        %v10985 = vadd.f32 %v507, %v10793
        %v10986 = vadd.f32 %v508, %v10794
        %v10987 = vadd.f32 %v509, %v10795
        %v10988 = vadd.f32 %v510, %v10796
        %v10989 = vadd.f32 %v511, %v10797
        %v10990 = vadd.f32 %v512, %v10798
        %v10991 = vadd.f32 %v513, %v10799
        %v10992 = vadd.f32 %v514, %v10800
        %v10993 = vadd.f32 %v515, %v10801
        %v10994 = vadd.f32 %v516, %v10802
        %v10995 = vadd.f32 %v517, %v10803
        %v10996 = vadd.f32 %v518, %v10804
        %v10997 = vadd.f32 %v519, %v10805
        %v10998 = vadd.f32 %v520, %v10806
        %v10999 = vadd.f32 %v521, %v10807
        %v11000 = vadd.f32 %v522, %v10808
        %v11001 = vadd.f32 %v523, %v10809
        %v11002 = vadd.f32 %v524, %v10810
        %v11003 = vadd.f32 %v525, %v10811
        %v11004 = vadd.f32 %v526, %v10812
        %v11005 = vadd.f32 %v527, %v10813
        %v11006 = vadd.f32 %v528, %v10814
        %v11007 = vadd.f32 %v529, %v10815
        %v11008 = vadd.f32 %v530, %v10816
        %v11009 = vadd.f32 %v531, %v10817
        %v11010 = vadd.f32 %v532, %v10818
        %v11011 = vadd.f32 %v533, %v10819
        %v11012 = vadd.f32 %v534, %v10820
        %v11013 = vadd.f32 %v535, %v10821
        %v11014 = vadd.f32 %v536, %v10822
        %v11015 = vadd.f32 %v537, %v10823
        %v11016 = vadd.f32 %v538, %v10824
        %v11017 = vadd.f32 %v539, %v10825
        %v11018 = vadd.f32 %v540, %v10826
        %v11019 = vadd.f32 %v541, %v10827
        %v11020 = vadd.f32 %v542, %v10828
        %v11021 = vadd.f32 %v543, %v10829
        %v11022 = vadd.f32 %v544, %v10830
        %v11023 = vadd.f32 %v545, %v10831
        %v11024 = vadd.f32 %v546, %v10832
        %v11025 = vadd.f32 %v547, %v10833
        %v11026 = vadd.f32 %v548, %v10834
        %v11027 = vadd.f32 %v549, %v10835
        %v11028 = vadd.f32 %v550, %v10836
        %v11029 = vadd.f32 %v551, %v10837
        %v11030 = vadd.f32 %v552, %v10838
        %v11031 = vadd.f32 %v553, %v10839
        %v11032 = vadd.f32 %v554, %v10840
        %v11033 = vadd.f32 %v555, %v10841
        %v11034 = vadd.f32 %v556, %v10842
        %v11035 = vadd.f32 %v557, %v10843
        %v11036 = vadd.f32 %v558, %v10844
        %v11037 = vadd.f32 %v559, %v10845
        %v11038 = vadd.f32 %v560, %v10846
        %v11039 = vadd.f32 %v561, %v10847
        %v11040 = vadd.f32 %v562, %v10848
        %v11041 = vadd.f32 %v563, %v10849
        %v11042 = vadd.f32 %v564, %v10850
        %v11043 = vadd.f32 %v565, %v10851
        %v11044 = vadd.f32 %v566, %v10852
        %v11045 = vadd.f32 %v567, %v10853
        %v11046 = vadd.f32 %v568, %v10854
        %v11047 = vadd.f32 %v569, %v10855
        %v11048 = vadd.f32 %v570, %v10856
        %v11049 = vadd.f32 %v571, %v10857
        %v11050 = vadd.f32 %v572, %v10858
        %v11051 = vadd.f32 %v573, %v10859
        %v11052 = vadd.f32 %v574, %v10860
        %v11053 = vadd.f32 %v575, %v10861
        %v11054 = vadd.f32 %v576, %v10862
        %v11055 = vadd.f32 %v577, %v10863
        %v11056 = vadd.f32 %v578, %v10864
        %v11057 = vadd.f32 %v579, %v10865
        %v11058 = vadd.f32 %v580, %v10866
        %v11059 = vadd.f32 %v581, %v10867
        %v11060 = vadd.f32 %v582, %v10868
        %v11061 = vadd.f32 %v583, %v10869
        %v11062 = vadd.f32 %v584, %v10870
        %v11063 = vadd.f32 %v585, %v10871
        %v11064 = vadd.f32 %v586, %v10872
        %v11065 = vadd.f32 %v587, %v10873
        %v11066 = vadd.f32 %v588, %v10874
        %v11067 = vadd.f32 %v589, %v10875
        %v11068 = vadd.f32 %v590, %v10876
        %v11069 = vmax.f32 %v10877, 0.0
        %v11070 = vmax.f32 %v10878, 0.0
        %v11071 = vmax.f32 %v10879, 0.0
        %v11072 = vmax.f32 %v10880, 0.0
        %v11073 = vmax.f32 %v10881, 0.0
        %v11074 = vmax.f32 %v10882, 0.0
        %v11075 = vmax.f32 %v10883, 0.0
        %v11076 = vmax.f32 %v10884, 0.0
        %v11077 = vmax.f32 %v10885, 0.0
        %v11078 = vmax.f32 %v10886, 0.0
        %v11079 = vmax.f32 %v10887, 0.0
        %v11080 = vmax.f32 %v10888, 0.0
        %v11081 = vmax.f32 %v10889, 0.0
        %v11082 = vmax.f32 %v10890, 0.0
        %v11083 = vmax.f32 %v10891, 0.0
        %v11084 = vmax.f32 %v10892, 0.0
        %v11085 = vmax.f32 %v10893, 0.0
        %v11086 = vmax.f32 %v10894, 0.0
        %v11087 = vmax.f32 %v10895, 0.0
        %v11088 = vmax.f32 %v10896, 0.0
        %v11089 = vmax.f32 %v10897, 0.0
        %v11090 = vmax.f32 %v10898, 0.0
        %v11091 = vmax.f32 %v10899, 0.0
        %v11092 = vmax.f32 %v10900, 0.0
        %v11093 = vmax.f32 %v10901, 0.0
        %v11094 = vmax.f32 %v10902, 0.0
        %v11095 = vmax.f32 %v10903, 0.0
        %v11096 = vmax.f32 %v10904, 0.0
        %v11097 = vmax.f32 %v10905, 0.0
        %v11098 = vmax.f32 %v10906, 0.0
        %v11099 = vmax.f32 %v10907, 0.0
        %v11100 = vmax.f32 %v10908, 0.0
        %v11101 = vmax.f32 %v10909, 0.0
        %v11102 = vmax.f32 %v10910, 0.0
        %v11103 = vmax.f32 %v10911, 0.0
        %v11104 = vmax.f32 %v10912, 0.0
        %v11105 = vmax.f32 %v10913, 0.0
        %v11106 = vmax.f32 %v10914, 0.0
        %v11107 = vmax.f32 %v10915, 0.0
        %v11108 = vmax.f32 %v10916, 0.0
        %v11109 = vmax.f32 %v10917, 0.0
        %v11110 = vmax.f32 %v10918, 0.0
        %v11111 = vmax.f32 %v10919, 0.0
        %v11112 = vmax.f32 %v10920, 0.0
        %v11113 = vmax.f32 %v10921, 0.0
        %v11114 = vmax.f32 %v10922, 0.0
        %v11115 = vmax.f32 %v10923, 0.0
        %v11116 = vmax.f32 %v10924, 0.0
        %v11117 = vmax.f32 %v10925, 0.0
        %v11118 = vmax.f32 %v10926, 0.0
        %v11119 = vmax.f32 %v10927, 0.0
        %v11120 = vmax.f32 %v10928, 0.0
        %v11121 = vmax.f32 %v10929, 0.0
        %v11122 = vmax.f32 %v10930, 0.0
        %v11123 = vmax.f32 %v10931, 0.0
        %v11124 = vmax.f32 %v10932, 0.0
        %v11125 = vmax.f32 %v10933, 0.0
        %v11126 = vmax.f32 %v10934, 0.0
        %v11127 = vmax.f32 %v10935, 0.0
        %v11128 = vmax.f32 %v10936, 0.0
        %v11129 = vmax.f32 %v10937, 0.0
        %v11130 = vmax.f32 %v10938, 0.0
        %v11131 = vmax.f32 %v10939, 0.0
        %v11132 = vmax.f32 %v10940, 0.0
        %v11133 = vmax.f32 %v10941, 0.0
        %v11134 = vmax.f32 %v10942, 0.0
        %v11135 = vmax.f32 %v10943, 0.0
        %v11136 = vmax.f32 %v10944, 0.0
        %v11137 = vmax.f32 %v10945, 0.0
        %v11138 = vmax.f32 %v10946, 0.0
        %v11139 = vmax.f32 %v10947, 0.0
        %v11140 = vmax.f32 %v10948, 0.0
        %v11141 = vmax.f32 %v10949, 0.0
        %v11142 = vmax.f32 %v10950, 0.0
        %v11143 = vmax.f32 %v10951, 0.0
        %v11144 = vmax.f32 %v10952, 0.0
        %v11145 = vmax.f32 %v10953, 0.0
        %v11146 = vmax.f32 %v10954, 0.0
        %v11147 = vmax.f32 %v10955, 0.0
        %v11148 = vmax.f32 %v10956, 0.0
        %v11149 = vmax.f32 %v10957, 0.0
        %v11150 = vmax.f32 %v10958, 0.0
        %v11151 = vmax.f32 %v10959, 0.0
        %v11152 = vmax.f32 %v10960, 0.0
        %v11153 = vmax.f32 %v10961, 0.0
        %v11154 = vmax.f32 %v10962, 0.0
        %v11155 = vmax.f32 %v10963, 0.0
        %v11156 = vmax.f32 %v10964, 0.0
        %v11157 = vmax.f32 %v10965, 0.0
        %v11158 = vmax.f32 %v10966, 0.0
        %v11159 = vmax.f32 %v10967, 0.0
        %v11160 = vmax.f32 %v10968, 0.0
        %v11161 = vmax.f32 %v10969, 0.0
        %v11162 = vmax.f32 %v10970, 0.0
        %v11163 = vmax.f32 %v10971, 0.0
        %v11164 = vmax.f32 %v10972, 0.0
        %v11165 = vmax.f32 %v10973, 0.0
        %v11166 = vmax.f32 %v10974, 0.0
        %v11167 = vmax.f32 %v10975, 0.0
        %v11168 = vmax.f32 %v10976, 0.0
        %v11169 = vmax.f32 %v10977, 0.0
        %v11170 = vmax.f32 %v10978, 0.0
        %v11171 = vmax.f32 %v10979, 0.0
        %v11172 = vmax.f32 %v10980, 0.0
        %v11173 = vmax.f32 %v10981, 0.0
        %v11174 = vmax.f32 %v10982, 0.0
        %v11175 = vmax.f32 %v10983, 0.0
        %v11176 = vmax.f32 %v10984, 0.0
        %v11177 = vmax.f32 %v10985, 0.0
        %v11178 = vmax.f32 %v10986, 0.0
        %v11179 = vmax.f32 %v10987, 0.0
        %v11180 = vmax.f32 %v10988, 0.0
        %v11181 = vmax.f32 %v10989, 0.0
        %v11182 = vmax.f32 %v10990, 0.0
        %v11183 = vmax.f32 %v10991, 0.0
        %v11184 = vmax.f32 %v10992, 0.0
        %v11185 = vmax.f32 %v10993, 0.0
        %v11186 = vmax.f32 %v10994, 0.0
        %v11187 = vmax.f32 %v10995, 0.0
        %v11188 = vmax.f32 %v10996, 0.0
        %v11189 = vmax.f32 %v10997, 0.0
        %v11190 = vmax.f32 %v10998, 0.0
        %v11191 = vmax.f32 %v10999, 0.0
        %v11192 = vmax.f32 %v11000, 0.0
        %v11193 = vmax.f32 %v11001, 0.0
        %v11194 = vmax.f32 %v11002, 0.0
        %v11195 = vmax.f32 %v11003, 0.0
        %v11196 = vmax.f32 %v11004, 0.0
        %v11197 = vmax.f32 %v11005, 0.0
        %v11198 = vmax.f32 %v11006, 0.0
        %v11199 = vmax.f32 %v11007, 0.0
        %v11200 = vmax.f32 %v11008, 0.0
        %v11201 = vmax.f32 %v11009, 0.0
        %v11202 = vmax.f32 %v11010, 0.0
        %v11203 = vmax.f32 %v11011, 0.0
        %v11204 = vmax.f32 %v11012, 0.0
        %v11205 = vmax.f32 %v11013, 0.0
        %v11206 = vmax.f32 %v11014, 0.0
        %v11207 = vmax.f32 %v11015, 0.0
        %v11208 = vmax.f32 %v11016, 0.0
        %v11209 = vmax.f32 %v11017, 0.0
        %v11210 = vmax.f32 %v11018, 0.0
        %v11211 = vmax.f32 %v11019, 0.0
        %v11212 = vmax.f32 %v11020, 0.0
        %v11213 = vmax.f32 %v11021, 0.0
        %v11214 = vmax.f32 %v11022, 0.0
        %v11215 = vmax.f32 %v11023, 0.0
        %v11216 = vmax.f32 %v11024, 0.0
        %v11217 = vmax.f32 %v11025, 0.0
        %v11218 = vmax.f32 %v11026, 0.0
        %v11219 = vmax.f32 %v11027, 0.0
        %v11220 = vmax.f32 %v11028, 0.0
        %v11221 = vmax.f32 %v11029, 0.0
        %v11222 = vmax.f32 %v11030, 0.0
        %v11223 = vmax.f32 %v11031, 0.0
        %v11224 = vmax.f32 %v11032, 0.0
        %v11225 = vmax.f32 %v11033, 0.0
        %v11226 = vmax.f32 %v11034, 0.0
        %v11227 = vmax.f32 %v11035, 0.0
        %v11228 = vmax.f32 %v11036, 0.0
        %v11229 = vmax.f32 %v11037, 0.0
        %v11230 = vmax.f32 %v11038, 0.0
        %v11231 = vmax.f32 %v11039, 0.0
        %v11232 = vmax.f32 %v11040, 0.0
        %v11233 = vmax.f32 %v11041, 0.0
        %v11234 = vmax.f32 %v11042, 0.0
        %v11235 = vmax.f32 %v11043, 0.0
        %v11236 = vmax.f32 %v11044, 0.0
        %v11237 = vmax.f32 %v11045, 0.0
        %v11238 = vmax.f32 %v11046, 0.0
        %v11239 = vmax.f32 %v11047, 0.0
        %v11240 = vmax.f32 %v11048, 0.0
        %v11241 = vmax.f32 %v11049, 0.0
        %v11242 = vmax.f32 %v11050, 0.0
        %v11243 = vmax.f32 %v11051, 0.0
        %v11244 = vmax.f32 %v11052, 0.0
        %v11245 = vmax.f32 %v11053, 0.0
        %v11246 = vmax.f32 %v11054, 0.0
        %v11247 = vmax.f32 %v11055, 0.0
        %v11248 = vmax.f32 %v11056, 0.0
        %v11249 = vmax.f32 %v11057, 0.0
        %v11250 = vmax.f32 %v11058, 0.0
        %v11251 = vmax.f32 %v11059, 0.0
        %v11252 = vmax.f32 %v11060, 0.0
        %v11253 = vmax.f32 %v11061, 0.0
        %v11254 = vmax.f32 %v11062, 0.0
        %v11255 = vmax.f32 %v11063, 0.0
        %v11256 = vmax.f32 %v11064, 0.0
        %v11257 = vmax.f32 %v11065, 0.0
        %v11258 = vmax.f32 %v11066, 0.0
        %v11259 = vmax.f32 %v11067, 0.0
        %v11260 = vmax.f32 %v11068, 0.0
        %11261 = vst [vmem:[%s395] sm:$0xff] %v11069
        %11262 = vst [vmem:[%s395 + $0x8] sm:$0xff] %v11070
        %11263 = vst [vmem:[%s395 + $0x10] sm:$0xff] %v11071
        %11264 = vst [vmem:[%s395 + $0x18] sm:$0xff] %v11072
        %11265 = vst [vmem:[%s395 + $0x20] sm:$0xff] %v11073
        %11266 = vst [vmem:[%s395 + $0x28] sm:$0xff] %v11074
        %11267 = vst [vmem:[%s395 + $0x30] sm:$0xff] %v11075
        %11268 = vst [vmem:[%s395 + $0x38] sm:$0xff] %v11076
        %11269 = vst [vmem:[%s395 + $0x40] sm:$0xff] %v11077
        %11270 = vst [vmem:[%s395 + $0x48] sm:$0xff] %v11078
        %11271 = vst [vmem:[%s395 + $0x50] sm:$0xff] %v11079
        %11272 = vst [vmem:[%s395 + $0x58] sm:$0xff] %v11080
        %11273 = vst [vmem:[%s395 + $0x60] sm:$0xff] %v11081
        %11274 = vst [vmem:[%s395 + $0x68] sm:$0xff] %v11082
        %11275 = vst [vmem:[%s395 + $0x70] sm:$0xff] %v11083
        %11276 = vst [vmem:[%s395 + $0x78] sm:$0xff] %v11084
        %11277 = vst [vmem:[%s395 + $0x80] sm:$0xff] %v11085
        %11278 = vst [vmem:[%s395 + $0x88] sm:$0xff] %v11086
        %11279 = vst [vmem:[%s395 + $0x90] sm:$0xff] %v11087
        %11280 = vst [vmem:[%s395 + $0x98] sm:$0xff] %v11088
        %11281 = vst [vmem:[%s395 + $0xa0] sm:$0xff] %v11089
        %11282 = vst [vmem:[%s395 + $0xa8] sm:$0xff] %v11090
        %11283 = vst [vmem:[%s395 + $0xb0] sm:$0xff] %v11091
        %11284 = vst [vmem:[%s395 + $0xb8] sm:$0xff] %v11092
        %11285 = vst [vmem:[%s395 + $0xc0] sm:$0xff] %v11093
        %11286 = vst [vmem:[%s395 + $0xc8] sm:$0xff] %v11094
        %11287 = vst [vmem:[%s395 + $0xd0] sm:$0xff] %v11095
        %11288 = vst [vmem:[%s395 + $0xd8] sm:$0xff] %v11096
        %11289 = vst [vmem:[%s395 + $0xe0] sm:$0xff] %v11097
        %11290 = vst [vmem:[%s395 + $0xe8] sm:$0xff] %v11098
        %11291 = vst [vmem:[%s395 + $0xf0] sm:$0xff] %v11099
        %11292 = vst [vmem:[%s395 + $0xf8] sm:$0xff] %v11100
        %11293 = vst [vmem:[%s395 + $0x100] sm:$0xff] %v11101
        %11294 = vst [vmem:[%s395 + $0x108] sm:$0xff] %v11102
        %11295 = vst [vmem:[%s395 + $0x110] sm:$0xff] %v11103
        %11296 = vst [vmem:[%s395 + $0x118] sm:$0xff] %v11104
        %11297 = vst [vmem:[%s395 + $0x120] sm:$0xff] %v11105
        %11298 = vst [vmem:[%s395 + $0x128] sm:$0xff] %v11106
        %11299 = vst [vmem:[%s395 + $0x130] sm:$0xff] %v11107
        %11300 = vst [vmem:[%s395 + $0x138] sm:$0xff] %v11108
        %11301 = vst [vmem:[%s395 + $0x140] sm:$0xff] %v11109
        %11302 = vst [vmem:[%s395 + $0x148] sm:$0xff] %v11110
        %11303 = vst [vmem:[%s395 + $0x150] sm:$0xff] %v11111
        %11304 = vst [vmem:[%s395 + $0x158] sm:$0xff] %v11112
        %11305 = vst [vmem:[%s395 + $0x160] sm:$0xff] %v11113
        %11306 = vst [vmem:[%s395 + $0x168] sm:$0xff] %v11114
        %11307 = vst [vmem:[%s395 + $0x170] sm:$0xff] %v11115
        %11308 = vst [vmem:[%s395 + $0x178] sm:$0xff] %v11116
        %11309 = vst [vmem:[%s395 + $0x180] sm:$0xff] %v11117
        %11310 = vst [vmem:[%s395 + $0x188] sm:$0xff] %v11118
        %11311 = vst [vmem:[%s395 + $0x190] sm:$0xff] %v11119
        %11312 = vst [vmem:[%s395 + $0x198] sm:$0xff] %v11120
        %11313 = vst [vmem:[%s395 + $0x1a0] sm:$0xff] %v11121
        %11314 = vst [vmem:[%s395 + $0x1a8] sm:$0xff] %v11122
        %11315 = vst [vmem:[%s395 + $0x1b0] sm:$0xff] %v11123
        %11316 = vst [vmem:[%s395 + $0x1b8] sm:$0xff] %v11124
        %11317 = vst [vmem:[%s395 + $0x1c0] sm:$0xff] %v11125
        %11318 = vst [vmem:[%s395 + $0x1c8] sm:$0xff] %v11126
        %11319 = vst [vmem:[%s395 + $0x1d0] sm:$0xff] %v11127
        %11320 = vst [vmem:[%s395 + $0x1d8] sm:$0xff] %v11128
        %11321 = vst [vmem:[%s395 + $0x1e0] sm:$0xff] %v11129
        %11322 = vst [vmem:[%s395 + $0x1e8] sm:$0xff] %v11130
        %11323 = vst [vmem:[%s395 + $0x1f0] sm:$0xff] %v11131
        %11324 = vst [vmem:[%s395 + $0x1f8] sm:$0xff] %v11132
        %11325 = vst [vmem:[%s395 + $0x200] sm:$0xff] %v11133
        %11326 = vst [vmem:[%s395 + $0x208] sm:$0xff] %v11134
        %11327 = vst [vmem:[%s395 + $0x210] sm:$0xff] %v11135
        %11328 = vst [vmem:[%s395 + $0x218] sm:$0xff] %v11136
        %11329 = vst [vmem:[%s395 + $0x220] sm:$0xff] %v11137
        %11330 = vst [vmem:[%s395 + $0x228] sm:$0xff] %v11138
        %11331 = vst [vmem:[%s395 + $0x230] sm:$0xff] %v11139
        %11332 = vst [vmem:[%s395 + $0x238] sm:$0xff] %v11140
        %11333 = vst [vmem:[%s395 + $0x240] sm:$0xff] %v11141
        %11334 = vst [vmem:[%s395 + $0x248] sm:$0xff] %v11142
        %11335 = vst [vmem:[%s395 + $0x250] sm:$0xff] %v11143
        %11336 = vst [vmem:[%s395 + $0x258] sm:$0xff] %v11144
        %11337 = vst [vmem:[%s395 + $0x260] sm:$0xff] %v11145
        %11338 = vst [vmem:[%s395 + $0x268] sm:$0xff] %v11146
        %11339 = vst [vmem:[%s395 + $0x270] sm:$0xff] %v11147
        %11340 = vst [vmem:[%s395 + $0x278] sm:$0xff] %v11148
        %11341 = vst [vmem:[%s395 + $0x280] sm:$0xff] %v11149
        %11342 = vst [vmem:[%s395 + $0x288] sm:$0xff] %v11150
        %11343 = vst [vmem:[%s395 + $0x290] sm:$0xff] %v11151
        %11344 = vst [vmem:[%s395 + $0x298] sm:$0xff] %v11152
        %11345 = vst [vmem:[%s395 + $0x2a0] sm:$0xff] %v11153
        %11346 = vst [vmem:[%s395 + $0x2a8] sm:$0xff] %v11154
        %11347 = vst [vmem:[%s395 + $0x2b0] sm:$0xff] %v11155
        %11348 = vst [vmem:[%s395 + $0x2b8] sm:$0xff] %v11156
        %11349 = vst [vmem:[%s395 + $0x2c0] sm:$0xff] %v11157
        %11350 = vst [vmem:[%s395 + $0x2c8] sm:$0xff] %v11158
        %11351 = vst [vmem:[%s395 + $0x2d0] sm:$0xff] %v11159
        %11352 = vst [vmem:[%s395 + $0x2d8] sm:$0xff] %v11160
        %11353 = vst [vmem:[%s395 + $0x2e0] sm:$0xff] %v11161
        %11354 = vst [vmem:[%s395 + $0x2e8] sm:$0xff] %v11162
        %11355 = vst [vmem:[%s395 + $0x2f0] sm:$0xff] %v11163
        %11356 = vst [vmem:[%s395 + $0x2f8] sm:$0xff] %v11164
        %11357 = vst [vmem:[%s395 + $0x300] sm:$0xff] %v11165
        %11358 = vst [vmem:[%s395 + $0x308] sm:$0xff] %v11166
        %11359 = vst [vmem:[%s395 + $0x310] sm:$0xff] %v11167
        %11360 = vst [vmem:[%s395 + $0x318] sm:$0xff] %v11168
        %11361 = vst [vmem:[%s395 + $0x320] sm:$0xff] %v11169
        %11362 = vst [vmem:[%s395 + $0x328] sm:$0xff] %v11170
        %11363 = vst [vmem:[%s395 + $0x330] sm:$0xff] %v11171
        %11364 = vst [vmem:[%s395 + $0x338] sm:$0xff] %v11172
        %11365 = vst [vmem:[%s395 + $0x340] sm:$0xff] %v11173
        %11366 = vst [vmem:[%s395 + $0x348] sm:$0xff] %v11174
        %11367 = vst [vmem:[%s395 + $0x350] sm:$0xff] %v11175
        %11368 = vst [vmem:[%s395 + $0x358] sm:$0xff] %v11176
        %11369 = vst [vmem:[%s395 + $0x360] sm:$0xff] %v11177
        %11370 = vst [vmem:[%s395 + $0x368] sm:$0xff] %v11178
        %11371 = vst [vmem:[%s395 + $0x370] sm:$0xff] %v11179
        %11372 = vst [vmem:[%s395 + $0x378] sm:$0xff] %v11180
        %11373 = vst [vmem:[%s395 + $0x380] sm:$0xff] %v11181
        %11374 = vst [vmem:[%s395 + $0x388] sm:$0xff] %v11182
        %11375 = vst [vmem:[%s395 + $0x390] sm:$0xff] %v11183
        %11376 = vst [vmem:[%s395 + $0x398] sm:$0xff] %v11184
        %11377 = vst [vmem:[%s395 + $0x3a0] sm:$0xff] %v11185
        %11378 = vst [vmem:[%s395 + $0x3a8] sm:$0xff] %v11186
        %11379 = vst [vmem:[%s395 + $0x3b0] sm:$0xff] %v11187
        %11380 = vst [vmem:[%s395 + $0x3b8] sm:$0xff] %v11188
        %11381 = vst [vmem:[%s395 + $0x3c0] sm:$0xff] %v11189
        %11382 = vst [vmem:[%s395 + $0x3c8] sm:$0xff] %v11190
        %11383 = vst [vmem:[%s395 + $0x3d0] sm:$0xff] %v11191
        %11384 = vst [vmem:[%s395 + $0x3d8] sm:$0xff] %v11192
        %11385 = vst [vmem:[%s395 + $0x3e0] sm:$0xff] %v11193
        %11386 = vst [vmem:[%s395 + $0x3e8] sm:$0xff] %v11194
        %11387 = vst [vmem:[%s395 + $0x3f0] sm:$0xff] %v11195
        %11388 = vst [vmem:[%s395 + $0x3f8] sm:$0xff] %v11196
        %11389 = vst [vmem:[%s395 + $0x400] sm:$0xff] %v11197
        %11390 = vst [vmem:[%s395 + $0x408] sm:$0xff] %v11198
        %11391 = vst [vmem:[%s395 + $0x410] sm:$0xff] %v11199
        %11392 = vst [vmem:[%s395 + $0x418] sm:$0xff] %v11200
        %11393 = vst [vmem:[%s395 + $0x420] sm:$0xff] %v11201
        %11394 = vst [vmem:[%s395 + $0x428] sm:$0xff] %v11202
        %11395 = vst [vmem:[%s395 + $0x430] sm:$0xff] %v11203
        %11396 = vst [vmem:[%s395 + $0x438] sm:$0xff] %v11204
        %11397 = vst [vmem:[%s395 + $0x440] sm:$0xff] %v11205
        %11398 = vst [vmem:[%s395 + $0x448] sm:$0xff] %v11206
        %11399 = vst [vmem:[%s395 + $0x450] sm:$0xff] %v11207
        %11400 = vst [vmem:[%s395 + $0x458] sm:$0xff] %v11208
        %11401 = vst [vmem:[%s395 + $0x460] sm:$0xff] %v11209
        %11402 = vst [vmem:[%s395 + $0x468] sm:$0xff] %v11210
        %11403 = vst [vmem:[%s395 + $0x470] sm:$0xff] %v11211
        %11404 = vst [vmem:[%s395 + $0x478] sm:$0xff] %v11212
        %11405 = vst [vmem:[%s395 + $0x480] sm:$0xff] %v11213
        %11406 = vst [vmem:[%s395 + $0x488] sm:$0xff] %v11214
        %11407 = vst [vmem:[%s395 + $0x490] sm:$0xff] %v11215
        %11408 = vst [vmem:[%s395 + $0x498] sm:$0xff] %v11216
        %11409 = vst [vmem:[%s395 + $0x4a0] sm:$0xff] %v11217
        %11410 = vst [vmem:[%s395 + $0x4a8] sm:$0xff] %v11218
        %11411 = vst [vmem:[%s395 + $0x4b0] sm:$0xff] %v11219
        %11412 = vst [vmem:[%s395 + $0x4b8] sm:$0xff] %v11220
        %11413 = vst [vmem:[%s395 + $0x4c0] sm:$0xff] %v11221
        %11414 = vst [vmem:[%s395 + $0x4c8] sm:$0xff] %v11222
        %11415 = vst [vmem:[%s395 + $0x4d0] sm:$0xff] %v11223
        %11416 = vst [vmem:[%s395 + $0x4d8] sm:$0xff] %v11224
        %11417 = vst [vmem:[%s395 + $0x4e0] sm:$0xff] %v11225
        %11418 = vst [vmem:[%s395 + $0x4e8] sm:$0xff] %v11226
        %11419 = vst [vmem:[%s395 + $0x4f0] sm:$0xff] %v11227
        %11420 = vst [vmem:[%s395 + $0x4f8] sm:$0xff] %v11228
        %11421 = vst [vmem:[%s395 + $0x500] sm:$0xff] %v11229
        %11422 = vst [vmem:[%s395 + $0x508] sm:$0xff] %v11230
        %11423 = vst [vmem:[%s395 + $0x510] sm:$0xff] %v11231
        %11424 = vst [vmem:[%s395 + $0x518] sm:$0xff] %v11232
        %11425 = vst [vmem:[%s395 + $0x520] sm:$0xff] %v11233
        %11426 = vst [vmem:[%s395 + $0x528] sm:$0xff] %v11234
        %11427 = vst [vmem:[%s395 + $0x530] sm:$0xff] %v11235
        %11428 = vst [vmem:[%s395 + $0x538] sm:$0xff] %v11236
        %11429 = vst [vmem:[%s395 + $0x540] sm:$0xff] %v11237
        %11430 = vst [vmem:[%s395 + $0x548] sm:$0xff] %v11238
        %11431 = vst [vmem:[%s395 + $0x550] sm:$0xff] %v11239
        %11432 = vst [vmem:[%s395 + $0x558] sm:$0xff] %v11240
        %11433 = vst [vmem:[%s395 + $0x560] sm:$0xff] %v11241
        %11434 = vst [vmem:[%s395 + $0x568] sm:$0xff] %v11242
        %11435 = vst [vmem:[%s395 + $0x570] sm:$0xff] %v11243
        %11436 = vst [vmem:[%s395 + $0x578] sm:$0xff] %v11244
        %11437 = vst [vmem:[%s395 + $0x580] sm:$0xff] %v11245
        %11438 = vst [vmem:[%s395 + $0x588] sm:$0xff] %v11246
        %11439 = vst [vmem:[%s395 + $0x590] sm:$0xff] %v11247
        %11440 = vst [vmem:[%s395 + $0x598] sm:$0xff] %v11248
        %11441 = vst [vmem:[%s395 + $0x5a0] sm:$0xff] %v11249
        %11442 = vst [vmem:[%s395 + $0x5a8] sm:$0xff] %v11250
        %11443 = vst [vmem:[%s395 + $0x5b0] sm:$0xff] %v11251
        %11444 = vst [vmem:[%s395 + $0x5b8] sm:$0xff] %v11252
        %11445 = vst [vmem:[%s395 + $0x5c0] sm:$0xff] %v11253
        %11446 = vst [vmem:[%s395 + $0x5c8] sm:$0xff] %v11254
        %11447 = vst [vmem:[%s395 + $0x5d0] sm:$0xff] %v11255
        %11448 = vst [vmem:[%s395 + $0x5d8] sm:$0xff] %v11256
        %11449 = vst [vmem:[%s395 + $0x5e0] sm:$0xff] %v11257
        %11450 = vst [vmem:[%s395 + $0x5e8] sm:$0xff] %v11258
        %11451 = vst [vmem:[%s395 + $0x5f0] sm:$0xff] %v11259
        %11452 = vst [vmem:[%s395 + $0x5f8] sm:$0xff] %v11260
        %s11453 = sand.u32 %s209, 1
        %s11454 = scalar_lea.sflag [#allocation6], %s11453
        %s11455 = sand.u32 %s209, 1
        %s11456 = smul.addr %s11455, 1536
        %s11457 = scalar_lea.vmem [#allocation15], %s11456
        // Predicated region
        $region77: #{incept_c_forward.1} parent=51 // pred_check
          %p11458 = pneg %p219
        $region78: #{incept_c_forward.1} parent=51 // pred_check_branch
          %11460 = sbr.rel (%p11458) target = $region80
        $region79: #{incept_c_forward.1} parent=51 // pred_region
          %s11461 = smul.u32 2, %s28
          %s11463 = ssub.s32 24576, 24576
          %11464 = vsyncadd %s11454, %s11463
          %s11465 = smul.addr %s11461, 96
          %s11466 = smul.addr %s11465, 128
          %s11467 = scalar_lea.hbm %s8, %s11466
          %s11468 = sshll.u32 %s11457, 4
          %s11469 = int_to_ptr.vmem [resolvable:$true] %s11468
          %11474 = dma.vmem_to_hbm [thread:$0]  %s11469, 24576, %s11467, %s11454, 1536, 1536, 96
        $region80: #{incept_c_forward.1} parent=51 // pred_fallthru
          _
      $region52: #{incept_c_forward.1} parent=5 // pred_fallthru
        _
      %p11475 = scmp.le.s32.totalorder 2, %s23
      // Predicated region
      $region81: #{incept_c_forward.1} parent=5 // pred_check
        %p11476 = pneg %p11475
      $region82: #{incept_c_forward.1} parent=5 // pred_check_branch
        %11478 = sbr.rel (%p11476) target = $region84
      $region83: #{incept_c_forward.1} parent=5 // pred_region
        %s11479 = ssub.s32 %s23, 2
        // Predicated region
        $region85: #{incept_c_forward.1} parent=83 // pred_check
          %p11480 = pneg %p225
        $region86: #{incept_c_forward.1} parent=83 // pred_check_branch
          %11482 = sbr.rel (%p11480) target = $region88
        $region87: #{incept_c_forward.1} parent=83 // pred_region
          %s11483 = sand.u32 %s210, 1
          %s11484 = scalar_lea.sflag [#allocation6], %s11483
          %s11485 = sand.u32 %s210, 1
          %s11486 = smul.addr %s11485, 1536
          %s11487 = scalar_lea.vmem [#allocation15], %s11486
          %11488 = dma.done %s11484, 24576
        $region88: #{incept_c_forward.1} parent=83 // pred_fallthru
          _
      $region84: #{incept_c_forward.1} parent=5 // pred_fallthru
        _
    $region6: #{incept_c_forward.1} parent=1 // loop_footer
      %s27 = sadd.s32 1, %s23
    $region7: #{incept_c_forward.1} parent=1 // loop_footer_branch
      %22 = sbr.rel target = $region3
    $region8: #{incept_c_forward.1} parent=1 // loop_exit
      _
    %11489 = vsyncpa [#allocation5], 1
    %s11490 = scalar_lea.sflag [#allocation5], 1
    %11491 = vsyncpa %s11490, 1
    %11492 = vsyncpa [#allocation8], 1
    %11493 = vsyncpa [#allocation11], 1
    %11494 = vsyncpa [#allocation14], 1
    %11495 = vsyncpa [#allocation6], 1
    %s11496 = scalar_lea.sflag [#allocation6], 1
    %11497 = vsyncpa %s11496, 1

</llo_original>
